<compile_context>
chip_gen: v7x
topology: tpu7x:2x2x1
jax: 0.10.0
libtpu: 0.0.40
codegen_flags: <defaults>
</compile_context>

<pallas_src>
import jax
import jax.numpy as jnp
from jax.experimental import pallas as pl
from jax.experimental.pallas import tpu as pltpu


def _fused_conv_bn_relu_x2_kernel(x_ref, w1_ref, s1_ref, b1_ref,
                                  w2_ref, s2_ref, b2_ref,
                                  o_ref,
                                  xpad_ref, midpad_ref, col2_ref):
    # x_ref:      (1, H, W, Cin)   f32  -- one batch element
    # w1_ref:     (9, Cin, C1)     f32  -- conv1 taps, tap = dy*3 + dx
    # s1/b1_ref:  (1, C1)          f32  -- folded BN1 scale / (conv-bias+BN1) shift
    # w2_ref:     (9*C1, C2)       bf16 -- conv2 im2col weights
    # s2/b2_ref:  (1, C2)          f32
    # o_ref:      (1, H*W, C2)     f32  -- lane-dense output slab
    # xpad_ref:   (H+2, W+2, Cin)  f32  VMEM scratch (padded input)
    # midpad_ref: (H+2, W+2, C1)   f32  VMEM scratch (padded conv1 output)
    # col2_ref:   (H*W, 9*C1)      bf16 VMEM scratch (im2col for conv2)
    _, H, W, Cin = x_ref.shape
    C1 = w1_ref.shape[2]
    C2 = o_ref.shape[2]
    HW = H * W

    # ---------- layer 1: conv3x3(Cin->C1) + BN + ReLU (tiny, keep f32) ----------
    # Full re-zero every grid step (cheap; keeps borders correct regardless of
    # how the "parallel" batch axis is split across cores).
    xpad_ref[...] = jnp.zeros_like(xpad_ref)
    xpad_ref[1:H + 1, 1:W + 1, :] = x_ref[0]

    scale1 = s1_ref[0]
    shift1 = b1_ref[0]
    acc1 = jnp.zeros((HW, C1), jnp.float32)
    for dy in range(3):
        for dx in range(3):
            patch = xpad_ref[dy:dy + H, dx:dx + W, :].reshape(HW, Cin)
            acc1 = acc1 + jnp.dot(patch, w1_ref[dy * 3 + dx],
                                  preferred_element_type=jnp.float32)
    y1 = jnp.maximum(acc1 * scale1 + shift1, 0.0)                 # (HW, C1) f32

    # ---------- intermediate stays in VMEM: zero-pad for conv2 ----------
    midpad_ref[...] = jnp.zeros_like(midpad_ref)
    midpad_ref[1:H + 1, 1:W + 1, :] = y1.reshape(H, W, C1)

    # ---------- layer 2: im2col once per tap into lane-dense bf16 scratch ----------
    for dy in range(3):
        for dx in range(3):
            tap = dy * 3 + dx
            patch = midpad_ref[dy:dy + H, dx:dx + W, :].reshape(HW, C1)
            col2_ref[:, tap * C1:(tap + 1) * C1] = patch.astype(col2_ref.dtype)

    # ---------- one K = 9*C1 matmul, M tiled to 128 rows, fused f32 epilogue ----------
    tile_m = 128 if HW % 128 == 0 else HW
    scale2 = s2_ref[0]
    shift2 = b2_ref[0]
    for mt in range(HW // tile_m):
        lo, hi = mt * tile_m, (mt + 1) * tile_m
        acc2 = jnp.dot(col2_ref[lo:hi, :], w2_ref[...],
                       preferred_element_type=jnp.float32)        # (tile_m, C2) f32
        y2 = jnp.maximum(acc2 * scale2 + shift2, 0.0)
        o_ref[0, lo:hi, :] = y2.astype(o_ref.dtype)


def model_net_forward(x_nchw, p, eps=1e-5):
    """Matches Model_Net.forward (eval-mode BN); input/output are NCHW."""
    x = jnp.transpose(x_nchw, (0, 2, 3, 1)).astype(jnp.float32)   # NCHW -> NHWC
    N, H, W, Cin = x.shape
    C1 = p["w1"].shape[0]
    C2 = p["w2"].shape[0]
    HW = H * W

    # Fold conv bias + eval-mode BN into per-channel scale / shift:
    #   relu( conv_nobias(x)*scale + ((b_conv - mean)*scale + beta) )
    def fold(b, g, be, m, v):
        s = (g / jnp.sqrt(v + eps)).astype(jnp.float32)
        return s, ((b - m) * s + be).astype(jnp.float32)

    s1, t1 = fold(p["b1"], p["g1"], p["be1"], p["m1"], p["v1"])
    s2, t2 = fold(p["b2"], p["g2"], p["be2"], p["m2"], p["v2"])

    # torch (Cout, Cin, 3, 3) -> (9, Cin, C1)  /  (9*C1, C2)
    w1 = jnp.transpose(p["w1"], (2, 3, 1, 0)).reshape(9, Cin, C1).astype(jnp.float32)
    w2 = jnp.transpose(p["w2"], (2, 3, 1, 0)).reshape(9 * C1, C2).astype(jnp.bfloat16)

    flops = N * (2 * HW * 9 * Cin * C1 + 2 * HW * 9 * C1 * C2)
    bytes_accessed = (x.size * 4 + N * HW * C2 * 4
                      + w1.size * 4 + w2.size * 2
                      + 2 * (C1 + C2) * 4)

    out_flat = pl.pallas_call(
        _fused_conv_bn_relu_x2_kernel,
        out_shape=jax.ShapeDtypeStruct((N, HW, C2), jnp.float32),
        grid_spec=pltpu.PrefetchScalarGridSpec(
            num_scalar_prefetch=0,
            grid=(N,),
            in_specs=[
                pl.BlockSpec((1, H, W, Cin), lambda n: (n, 0, 0, 0)),
                pl.BlockSpec((9, Cin, C1), lambda n: (0, 0, 0)),
                pl.BlockSpec((1, C1), lambda n: (0, 0)),
                pl.BlockSpec((1, C1), lambda n: (0, 0)),
                pl.BlockSpec((9 * C1, C2), lambda n: (0, 0)),
                pl.BlockSpec((1, C2), lambda n: (0, 0)),
                pl.BlockSpec((1, C2), lambda n: (0, 0)),
            ],
            out_specs=pl.BlockSpec((1, HW, C2), lambda n: (n, 0, 0)),
            scratch_shapes=[
                pltpu.VMEM((H + 2, W + 2, Cin), jnp.float32),
                pltpu.VMEM((H + 2, W + 2, C1), jnp.float32),
                pltpu.VMEM((HW, 9 * C1), jnp.bfloat16),
            ],
        ),
        compiler_params=pltpu.CompilerParams(
            dimension_semantics=("parallel",)),
        cost_estimate=pl.CostEstimate(
            flops=flops, transcendentals=0, bytes_accessed=bytes_accessed),
    )(x, w1, s1.reshape(1, C1), t1.reshape(1, C1),
      w2, s2.reshape(1, C2), t2.reshape(1, C2))

    out = out_flat.reshape(N, H, W, C2)
    return jnp.transpose(out, (0, 3, 1, 2))                       # NHWC -> NCHW


def init_params(key):
    k1, k2, k3, k4 = jax.random.split(key, 4)
    return {
        # Conv2d(3, 64, 3, padding=1)
        "w1": 0.1 * jax.random.normal(k1, (64, 3, 3, 3), jnp.float32),
        "b1": 0.1 * jax.random.normal(k2, (64,), jnp.float32),
        # BatchNorm2d(64) -- PyTorch default init, eval-mode running stats
        "g1": jnp.ones((64,), jnp.float32),
        "be1": jnp.zeros((64,), jnp.float32),
        "m1": jnp.zeros((64,), jnp.float32),
        "v1": jnp.ones((64,), jnp.float32),
        # Conv2d(64, 256, 3, padding=1)
        "w2": 0.05 * jax.random.normal(k3, (256, 64, 3, 3), jnp.float32),
        "b2": 0.1 * jax.random.normal(k4, (256,), jnp.float32),
        # BatchNorm2d(256)
        "g2": jnp.ones((256,), jnp.float32),
        "be2": jnp.zeros((256,), jnp.float32),
        "m2": jnp.zeros((256,), jnp.float32),
        "v2": jnp.ones((256,), jnp.float32),
    }


def _reference_forward(x_nchw, p, eps=1e-5):
    """Pure-JAX f32 reference (lax conv) for the correctness check."""
    def block(x, w, b, g, be, m, v):
        y = jax.lax.conv_general_dilated(
            x, jnp.transpose(w, (2, 3, 1, 0)), (1, 1), "SAME",
            dimension_numbers=("NHWC", "HWIO", "NHWC")) + b
        y = (y - m) / jnp.sqrt(v + eps) * g + be
        return jnp.maximum(y, 0.0)

    x = jnp.transpose(x_nchw, (0, 2, 3, 1))
    x = block(x, p["w1"], p["b1"], p["g1"], p["be1"], p["m1"], p["v1"])
    x = block(x, p["w2"], p["b2"], p["g2"], p["be2"], p["m2"], p["v2"])
    return jnp.transpose(x, (0, 3, 1, 2))


if __name__ == "__main__":
    key = jax.random.PRNGKey(0)
    pkey, xkey = jax.random.split(key)
    params = init_params(pkey)

    # Small input consistent with the module: NCHW, 3 input channels.
    x = jax.random.normal(xkey, (2, 3, 16, 16), jnp.float32)

    out = jax.block_until_ready(model_net_forward(x, params))
    assert out.shape == (2, 256, 16, 16), out.shape

    ref = jax.block_until_ready(_reference_forward(x, params))
    # Tolerance relaxed vs an all-f32 run: conv2 uses bf16 MXU operands with
    # f32 accumulation (expected max abs error ~4e-3 at these magnitudes).
    assert jnp.allclose(out, ref, atol=2e-2, rtol=2e-2), (
        float(jnp.max(jnp.abs(out - ref))))

    print("KERNEL_OK")
</pallas_src>

<mosaic_0001>
module attributes {stable_mosaic.version = 11 : i64} {
  func.func @_fused_conv_bn_relu_x2_kernel(%arg0: i32, %arg1: memref<1x16x16x3xf32, #tpu.memory_space<vmem>>, %arg2: memref<9x3x64xf32, #tpu.memory_space<vmem>>, %arg3: memref<1x64xf32, #tpu.memory_space<vmem>>, %arg4: memref<1x64xf32, #tpu.memory_space<vmem>>, %arg5: memref<576x256xbf16, #tpu.memory_space<vmem>>, %arg6: memref<1x256xf32, #tpu.memory_space<vmem>>, %arg7: memref<1x256xf32, #tpu.memory_space<vmem>>, %arg8: memref<1x256x256xf32, #tpu.memory_space<vmem>>, %arg9: memref<18x18x3xf32, #tpu.memory_space<vmem>>, %arg10: memref<18x18x64xf32, #tpu.memory_space<vmem>>, %arg11: memref<256x576xbf16, #tpu.memory_space<vmem>>) attributes {dimension_semantics = [#tpu.dimension_semantics<parallel>], iteration_bounds = array<i64: 2>, scalar_prefetch = 0 : i64, scratch_operands = 3 : i64, tpu.core_type = #tpu.core_type<tc>, window_params = [{transform_indices = @transform_0, window_bounds = array<i64: 1, 16, 16, 3>}, {pipeline_mode = #tpu.pipeline_mode<synchronous>, transform_indices = @transform_1, window_bounds = array<i64: 9, 3, 64>}, {pipeline_mode = #tpu.pipeline_mode<synchronous>, transform_indices = @transform_2, window_bounds = array<i64: 1, 64>}, {pipeline_mode = #tpu.pipeline_mode<synchronous>, transform_indices = @transform_3, window_bounds = array<i64: 1, 64>}, {pipeline_mode = #tpu.pipeline_mode<synchronous>, transform_indices = @transform_4, window_bounds = array<i64: 576, 256>}, {pipeline_mode = #tpu.pipeline_mode<synchronous>, transform_indices = @transform_5, window_bounds = array<i64: 1, 256>}, {pipeline_mode = #tpu.pipeline_mode<synchronous>, transform_indices = @transform_6, window_bounds = array<i64: 1, 256>}, {transform_indices = @transform_7, window_bounds = array<i64: 1, 256, 256>}]} {
    %cst = arith.constant 0.000000e+00 : f32
    %0 = vector.broadcast %cst : f32 to vector<18x18x3xf32>
    %c0 = arith.constant 0 : index
    %c0_0 = arith.constant 0 : index
    %c0_1 = arith.constant 0 : index
    %1 = vector.load %arg9[%c0, %c0_0, %c0_1] : memref<18x18x3xf32, #tpu.memory_space<vmem>>, vector<18x18x3xf32>
    tpu.vector_store %arg9[%c0, %c0_0, %c0_1], %0 {strides = array<i32>} : memref<18x18x3xf32, #tpu.memory_space<vmem>>, vector<18x18x3xf32>,
    %c0_2 = arith.constant 0 : index
    %c0_3 = arith.constant 0 : index
    %c0_4 = arith.constant 0 : index
    %c0_5 = arith.constant 0 : index
    %2 = vector.load %arg1[%c0_2, %c0_3, %c0_4, %c0_5] : memref<1x16x16x3xf32, #tpu.memory_space<vmem>>, vector<1x16x16x3xf32>
    %3 = vector.shape_cast %2 : vector<1x16x16x3xf32> to vector<16x16x3xf32>
    %c1 = arith.constant 1 : index
    %c1_6 = arith.constant 1 : index
    %c0_7 = arith.constant 0 : index
    %4 = vector.load %arg9[%c1, %c1_6, %c0_7] : memref<18x18x3xf32, #tpu.memory_space<vmem>>, vector<16x16x3xf32>
    tpu.vector_store %arg9[%c1, %c1_6, %c0_7], %3 {strides = array<i32>} : memref<18x18x3xf32, #tpu.memory_space<vmem>>, vector<16x16x3xf32>,
    %c0_8 = arith.constant 0 : index
    %c0_9 = arith.constant 0 : index
    %5 = vector.load %arg3[%c0_8, %c0_9] : memref<1x64xf32, #tpu.memory_space<vmem>>, vector<1x64xf32>
    %6 = vector.shape_cast %5 : vector<1x64xf32> to vector<64xf32>
    %c0_10 = arith.constant 0 : index
    %c0_11 = arith.constant 0 : index
    %7 = vector.load %arg4[%c0_10, %c0_11] : memref<1x64xf32, #tpu.memory_space<vmem>>, vector<1x64xf32>
    %8 = vector.shape_cast %7 : vector<1x64xf32> to vector<64xf32>
    %cst_12 = arith.constant 0.000000e+00 : f32
    %9 = vector.broadcast %cst_12 : f32 to vector<256x64xf32>
    %c0_13 = arith.constant 0 : index
    %c0_14 = arith.constant 0 : index
    %c0_15 = arith.constant 0 : index
    %10 = vector.load %arg9[%c0_13, %c0_14, %c0_15] : memref<18x18x3xf32, #tpu.memory_space<vmem>>, vector<16x16x3xf32>
    %11 = vector.shape_cast %10 : vector<16x16x3xf32> to vector<256x3xf32>
    %c0_16 = arith.constant 0 : index
    %c0_17 = arith.constant 0 : index
    %c0_18 = arith.constant 0 : index
    %12 = vector.load %arg2[%c0_16, %c0_17, %c0_18] : memref<9x3x64xf32, #tpu.memory_space<vmem>>, vector<1x3x64xf32>
    %13 = vector.shape_cast %12 : vector<1x3x64xf32> to vector<3x64xf32>
    %cst_19 = arith.constant dense<0.000000e+00> : vector<256x64xf32>
    %14 = tpu.matmul %11, %13, %cst_19 {dimension_numbers = #tpu.dot_dimension_numbers<[1], [0], [0], [1], [0, 0, 1, 1], [], []>} : vector<256x3xf32>, vector<3x64xf32>, vector<256x64xf32> -> vector<256x64xf32>
    %15 = arith.addf %9, %14 : vector<256x64xf32>
    %c0_20 = arith.constant 0 : index
    %c1_21 = arith.constant 1 : index
    %c0_22 = arith.constant 0 : index
    %16 = vector.load %arg9[%c0_20, %c1_21, %c0_22] : memref<18x18x3xf32, #tpu.memory_space<vmem>>, vector<16x16x3xf32>
    %17 = vector.shape_cast %16 : vector<16x16x3xf32> to vector<256x3xf32>
    %c1_23 = arith.constant 1 : index
    %c0_24 = arith.constant 0 : index
    %c0_25 = arith.constant 0 : index
    %18 = vector.load %arg2[%c1_23, %c0_24, %c0_25] : memref<9x3x64xf32, #tpu.memory_space<vmem>>, vector<1x3x64xf32>
    %19 = vector.shape_cast %18 : vector<1x3x64xf32> to vector<3x64xf32>
    %cst_26 = arith.constant dense<0.000000e+00> : vector<256x64xf32>
    %20 = tpu.matmul %17, %19, %cst_26 {dimension_numbers = #tpu.dot_dimension_numbers<[1], [0], [0], [1], [0, 0, 1, 1], [], []>} : vector<256x3xf32>, vector<3x64xf32>, vector<256x64xf32> -> vector<256x64xf32>
    %21 = arith.addf %15, %20 : vector<256x64xf32>
    %c0_27 = arith.constant 0 : index
    %c2 = arith.constant 2 : index
    %c0_28 = arith.constant 0 : index
    %22 = vector.load %arg9[%c0_27, %c2, %c0_28] : memref<18x18x3xf32, #tpu.memory_space<vmem>>, vector<16x16x3xf32>
    %23 = vector.shape_cast %22 : vector<16x16x3xf32> to vector<256x3xf32>
    %c2_29 = arith.constant 2 : index
    %c0_30 = arith.constant 0 : index
    %c0_31 = arith.constant 0 : index
    %24 = vector.load %arg2[%c2_29, %c0_30, %c0_31] : memref<9x3x64xf32, #tpu.memory_space<vmem>>, vector<1x3x64xf32>
    %25 = vector.shape_cast %24 : vector<1x3x64xf32> to vector<3x64xf32>
    %cst_32 = arith.constant dense<0.000000e+00> : vector<256x64xf32>
    %26 = tpu.matmul %23, %25, %cst_32 {dimension_numbers = #tpu.dot_dimension_numbers<[1], [0], [0], [1], [0, 0, 1, 1], [], []>} : vector<256x3xf32>, vector<3x64xf32>, vector<256x64xf32> -> vector<256x64xf32>
    %27 = arith.addf %21, %26 : vector<256x64xf32>
    %c1_33 = arith.constant 1 : index
    %c0_34 = arith.constant 0 : index
    %c0_35 = arith.constant 0 : index
    %28 = vector.load %arg9[%c1_33, %c0_34, %c0_35] : memref<18x18x3xf32, #tpu.memory_space<vmem>>, vector<16x16x3xf32>
    %29 = vector.shape_cast %28 : vector<16x16x3xf32> to vector<256x3xf32>
    %c3 = arith.constant 3 : index
    %c0_36 = arith.constant 0 : index
    %c0_37 = arith.constant 0 : index
    %30 = vector.load %arg2[%c3, %c0_36, %c0_37] : memref<9x3x64xf32, #tpu.memory_space<vmem>>, vector<1x3x64xf32>
    %31 = vector.shape_cast %30 : vector<1x3x64xf32> to vector<3x64xf32>
    %cst_38 = arith.constant dense<0.000000e+00> : vector<256x64xf32>
    %32 = tpu.matmul %29, %31, %cst_38 {dimension_numbers = #tpu.dot_dimension_numbers<[1], [0], [0], [1], [0, 0, 1, 1], [], []>} : vector<256x3xf32>, vector<3x64xf32>, vector<256x64xf32> -> vector<256x64xf32>
    %33 = arith.addf %27, %32 : vector<256x64xf32>
    %c1_39 = arith.constant 1 : index
    %c1_40 = arith.constant 1 : index
    %c0_41 = arith.constant 0 : index
    %34 = vector.load %arg9[%c1_39, %c1_40, %c0_41] : memref<18x18x3xf32, #tpu.memory_space<vmem>>, vector<16x16x3xf32>
    %35 = vector.shape_cast %34 : vector<16x16x3xf32> to vector<256x3xf32>
    %c4 = arith.constant 4 : index
    %c0_42 = arith.constant 0 : index
    %c0_43 = arith.constant 0 : index
    %36 = vector.load %arg2[%c4, %c0_42, %c0_43] : memref<9x3x64xf32, #tpu.memory_space<vmem>>, vector<1x3x64xf32>
    %37 = vector.shape_cast %36 : vector<1x3x64xf32> to vector<3x64xf32>
    %cst_44 = arith.constant dense<0.000000e+00> : vector<256x64xf32>
    %38 = tpu.matmul %35, %37, %cst_44 {dimension_numbers = #tpu.dot_dimension_numbers<[1], [0], [0], [1], [0, 0, 1, 1], [], []>} : vector<256x3xf32>, vector<3x64xf32>, vector<256x64xf32> -> vector<256x64xf32>
    %39 = arith.addf %33, %38 : vector<256x64xf32>
    %c1_45 = arith.constant 1 : index
    %c2_46 = arith.constant 2 : index
    %c0_47 = arith.constant 0 : index
    %40 = vector.load %arg9[%c1_45, %c2_46, %c0_47] : memref<18x18x3xf32, #tpu.memory_space<vmem>>, vector<16x16x3xf32>
    %41 = vector.shape_cast %40 : vector<16x16x3xf32> to vector<256x3xf32>
    %c5 = arith.constant 5 : index
    %c0_48 = arith.constant 0 : index
    %c0_49 = arith.constant 0 : index
    %42 = vector.load %arg2[%c5, %c0_48, %c0_49] : memref<9x3x64xf32, #tpu.memory_space<vmem>>, vector<1x3x64xf32>
    %43 = vector.shape_cast %42 : vector<1x3x64xf32> to vector<3x64xf32>
    %cst_50 = arith.constant dense<0.000000e+00> : vector<256x64xf32>
    %44 = tpu.matmul %41, %43, %cst_50 {dimension_numbers = #tpu.dot_dimension_numbers<[1], [0], [0], [1], [0, 0, 1, 1], [], []>} : vector<256x3xf32>, vector<3x64xf32>, vector<256x64xf32> -> vector<256x64xf32>
    %45 = arith.addf %39, %44 : vector<256x64xf32>
    %c2_51 = arith.constant 2 : index
    %c0_52 = arith.constant 0 : index
    %c0_53 = arith.constant 0 : index
    %46 = vector.load %arg9[%c2_51, %c0_52, %c0_53] : memref<18x18x3xf32, #tpu.memory_space<vmem>>, vector<16x16x3xf32>
    %47 = vector.shape_cast %46 : vector<16x16x3xf32> to vector<256x3xf32>
    %c6 = arith.constant 6 : index
    %c0_54 = arith.constant 0 : index
    %c0_55 = arith.constant 0 : index
    %48 = vector.load %arg2[%c6, %c0_54, %c0_55] : memref<9x3x64xf32, #tpu.memory_space<vmem>>, vector<1x3x64xf32>
    %49 = vector.shape_cast %48 : vector<1x3x64xf32> to vector<3x64xf32>
    %cst_56 = arith.constant dense<0.000000e+00> : vector<256x64xf32>
    %50 = tpu.matmul %47, %49, %cst_56 {dimension_numbers = #tpu.dot_dimension_numbers<[1], [0], [0], [1], [0, 0, 1, 1], [], []>} : vector<256x3xf32>, vector<3x64xf32>, vector<256x64xf32> -> vector<256x64xf32>
    %51 = arith.addf %45, %50 : vector<256x64xf32>
    %c2_57 = arith.constant 2 : index
    %c1_58 = arith.constant 1 : index
    %c0_59 = arith.constant 0 : index
    %52 = vector.load %arg9[%c2_57, %c1_58, %c0_59] : memref<18x18x3xf32, #tpu.memory_space<vmem>>, vector<16x16x3xf32>
    %53 = vector.shape_cast %52 : vector<16x16x3xf32> to vector<256x3xf32>
    %c7 = arith.constant 7 : index
    %c0_60 = arith.constant 0 : index
    %c0_61 = arith.constant 0 : index
    %54 = vector.load %arg2[%c7, %c0_60, %c0_61] : memref<9x3x64xf32, #tpu.memory_space<vmem>>, vector<1x3x64xf32>
    %55 = vector.shape_cast %54 : vector<1x3x64xf32> to vector<3x64xf32>
    %cst_62 = arith.constant dense<0.000000e+00> : vector<256x64xf32>
    %56 = tpu.matmul %53, %55, %cst_62 {dimension_numbers = #tpu.dot_dimension_numbers<[1], [0], [0], [1], [0, 0, 1, 1], [], []>} : vector<256x3xf32>, vector<3x64xf32>, vector<256x64xf32> -> vector<256x64xf32>
    %57 = arith.addf %51, %56 : vector<256x64xf32>
    %c2_63 = arith.constant 2 : index
    %c2_64 = arith.constant 2 : index
    %c0_65 = arith.constant 0 : index
    %58 = vector.load %arg9[%c2_63, %c2_64, %c0_65] : memref<18x18x3xf32, #tpu.memory_space<vmem>>, vector<16x16x3xf32>
    %59 = vector.shape_cast %58 : vector<16x16x3xf32> to vector<256x3xf32>
    %c8 = arith.constant 8 : index
    %c0_66 = arith.constant 0 : index
    %c0_67 = arith.constant 0 : index
    %60 = vector.load %arg2[%c8, %c0_66, %c0_67] : memref<9x3x64xf32, #tpu.memory_space<vmem>>, vector<1x3x64xf32>
    %61 = vector.shape_cast %60 : vector<1x3x64xf32> to vector<3x64xf32>
    %cst_68 = arith.constant dense<0.000000e+00> : vector<256x64xf32>
    %62 = tpu.matmul %59, %61, %cst_68 {dimension_numbers = #tpu.dot_dimension_numbers<[1], [0], [0], [1], [0, 0, 1, 1], [], []>} : vector<256x3xf32>, vector<3x64xf32>, vector<256x64xf32> -> vector<256x64xf32>
    %63 = arith.addf %57, %62 : vector<256x64xf32>
    %64 = vector.shape_cast %6 : vector<64xf32> to vector<1x64xf32>
    %65 = vector.broadcast %64 : vector<1x64xf32> to vector<256x64xf32>
    %66 = arith.mulf %63, %65 : vector<256x64xf32>
    %67 = vector.shape_cast %8 : vector<64xf32> to vector<1x64xf32>
    %68 = vector.broadcast %67 : vector<1x64xf32> to vector<256x64xf32>
    %69 = arith.addf %66, %68 : vector<256x64xf32>
    %cst_69 = arith.constant 0.000000e+00 : f32
    %70 = vector.broadcast %cst_69 : f32 to vector<256x64xf32>
    %71 = arith.maximumf %69, %70 : vector<256x64xf32>
    %cst_70 = arith.constant 0.000000e+00 : f32
    %72 = vector.broadcast %cst_70 : f32 to vector<18x18x64xf32>
    %c0_71 = arith.constant 0 : index
    %c0_72 = arith.constant 0 : index
    %c0_73 = arith.constant 0 : index
    %73 = vector.load %arg10[%c0_71, %c0_72, %c0_73] : memref<18x18x64xf32, #tpu.memory_space<vmem>>, vector<18x18x64xf32>
    tpu.vector_store %arg10[%c0_71, %c0_72, %c0_73], %72 {strides = array<i32>} : memref<18x18x64xf32, #tpu.memory_space<vmem>>, vector<18x18x64xf32>,
    %74 = vector.shape_cast %71 : vector<256x64xf32> to vector<16x16x64xf32>
    %c1_74 = arith.constant 1 : index
    %c1_75 = arith.constant 1 : index
    %c0_76 = arith.constant 0 : index
    %75 = vector.load %arg10[%c1_74, %c1_75, %c0_76] : memref<18x18x64xf32, #tpu.memory_space<vmem>>, vector<16x16x64xf32>
    tpu.vector_store %arg10[%c1_74, %c1_75, %c0_76], %74 {strides = array<i32>} : memref<18x18x64xf32, #tpu.memory_space<vmem>>, vector<16x16x64xf32>,
    %c0_77 = arith.constant 0 : index
    %c0_78 = arith.constant 0 : index
    %c0_79 = arith.constant 0 : index
    %76 = vector.load %arg10[%c0_77, %c0_78, %c0_79] : memref<18x18x64xf32, #tpu.memory_space<vmem>>, vector<16x16x64xf32>
    %77 = vector.shape_cast %76 : vector<16x16x64xf32> to vector<256x64xf32>
    %78 = arith.truncf %77 : vector<256x64xf32> to vector<256x64xbf16>
    %c0_80 = arith.constant 0 : index
    %c0_81 = arith.constant 0 : index
    %79 = vector.load %arg11[%c0_80, %c0_81] : memref<256x576xbf16, #tpu.memory_space<vmem>>, vector<256x64xbf16>
    tpu.vector_store %arg11[%c0_80, %c0_81], %78 {strides = array<i32>} : memref<256x576xbf16, #tpu.memory_space<vmem>>, vector<256x64xbf16>,
    %c0_82 = arith.constant 0 : index
    %c1_83 = arith.constant 1 : index
    %c0_84 = arith.constant 0 : index
    %80 = vector.load %arg10[%c0_82, %c1_83, %c0_84] : memref<18x18x64xf32, #tpu.memory_space<vmem>>, vector<16x16x64xf32>
    %81 = vector.shape_cast %80 : vector<16x16x64xf32> to vector<256x64xf32>
    %82 = arith.truncf %81 : vector<256x64xf32> to vector<256x64xbf16>
    %c0_85 = arith.constant 0 : index
    %c64 = arith.constant 64 : index
    %83 = vector.load %arg11[%c0_85, %c64] : memref<256x576xbf16, #tpu.memory_space<vmem>>, vector<256x64xbf16>
    tpu.vector_store %arg11[%c0_85, %c64], %82 {strides = array<i32>} : memref<256x576xbf16, #tpu.memory_space<vmem>>, vector<256x64xbf16>,
    %c0_86 = arith.constant 0 : index
    %c2_87 = arith.constant 2 : index
    %c0_88 = arith.constant 0 : index
    %84 = vector.load %arg10[%c0_86, %c2_87, %c0_88] : memref<18x18x64xf32, #tpu.memory_space<vmem>>, vector<16x16x64xf32>
    %85 = vector.shape_cast %84 : vector<16x16x64xf32> to vector<256x64xf32>
    %86 = arith.truncf %85 : vector<256x64xf32> to vector<256x64xbf16>
    %c0_89 = arith.constant 0 : index
    %c128 = arith.constant 128 : index
    %87 = vector.load %arg11[%c0_89, %c128] : memref<256x576xbf16, #tpu.memory_space<vmem>>, vector<256x64xbf16>
    tpu.vector_store %arg11[%c0_89, %c128], %86 {strides = array<i32>} : memref<256x576xbf16, #tpu.memory_space<vmem>>, vector<256x64xbf16>,
    %c1_90 = arith.constant 1 : index
    %c0_91 = arith.constant 0 : index
    %c0_92 = arith.constant 0 : index
    %88 = vector.load %arg10[%c1_90, %c0_91, %c0_92] : memref<18x18x64xf32, #tpu.memory_space<vmem>>, vector<16x16x64xf32>
    %89 = vector.shape_cast %88 : vector<16x16x64xf32> to vector<256x64xf32>
    %90 = arith.truncf %89 : vector<256x64xf32> to vector<256x64xbf16>
    %c0_93 = arith.constant 0 : index
    %c192 = arith.constant 192 : index
    %91 = vector.load %arg11[%c0_93, %c192] : memref<256x576xbf16, #tpu.memory_space<vmem>>, vector<256x64xbf16>
    tpu.vector_store %arg11[%c0_93, %c192], %90 {strides = array<i32>} : memref<256x576xbf16, #tpu.memory_space<vmem>>, vector<256x64xbf16>,
    %c1_94 = arith.constant 1 : index
    %c1_95 = arith.constant 1 : index
    %c0_96 = arith.constant 0 : index
    %92 = vector.load %arg10[%c1_94, %c1_95, %c0_96] : memref<18x18x64xf32, #tpu.memory_space<vmem>>, vector<16x16x64xf32>
    %93 = vector.shape_cast %92 : vector<16x16x64xf32> to vector<256x64xf32>
    %94 = arith.truncf %93 : vector<256x64xf32> to vector<256x64xbf16>
    %c0_97 = arith.constant 0 : index
    %c256 = arith.constant 256 : index
    %95 = vector.load %arg11[%c0_97, %c256] : memref<256x576xbf16, #tpu.memory_space<vmem>>, vector<256x64xbf16>
    tpu.vector_store %arg11[%c0_97, %c256], %94 {strides = array<i32>} : memref<256x576xbf16, #tpu.memory_space<vmem>>, vector<256x64xbf16>,
    %c1_98 = arith.constant 1 : index
    %c2_99 = arith.constant 2 : index
    %c0_100 = arith.constant 0 : index
    %96 = vector.load %arg10[%c1_98, %c2_99, %c0_100] : memref<18x18x64xf32, #tpu.memory_space<vmem>>, vector<16x16x64xf32>
    %97 = vector.shape_cast %96 : vector<16x16x64xf32> to vector<256x64xf32>
    %98 = arith.truncf %97 : vector<256x64xf32> to vector<256x64xbf16>
    %c0_101 = arith.constant 0 : index
    %c320 = arith.constant 320 : index
    %99 = vector.load %arg11[%c0_101, %c320] : memref<256x576xbf16, #tpu.memory_space<vmem>>, vector<256x64xbf16>
    tpu.vector_store %arg11[%c0_101, %c320], %98 {strides = array<i32>} : memref<256x576xbf16, #tpu.memory_space<vmem>>, vector<256x64xbf16>,
    %c2_102 = arith.constant 2 : index
    %c0_103 = arith.constant 0 : index
    %c0_104 = arith.constant 0 : index
    %100 = vector.load %arg10[%c2_102, %c0_103, %c0_104] : memref<18x18x64xf32, #tpu.memory_space<vmem>>, vector<16x16x64xf32>
    %101 = vector.shape_cast %100 : vector<16x16x64xf32> to vector<256x64xf32>
    %102 = arith.truncf %101 : vector<256x64xf32> to vector<256x64xbf16>
    %c0_105 = arith.constant 0 : index
    %c384 = arith.constant 384 : index
    %103 = vector.load %arg11[%c0_105, %c384] : memref<256x576xbf16, #tpu.memory_space<vmem>>, vector<256x64xbf16>
    tpu.vector_store %arg11[%c0_105, %c384], %102 {strides = array<i32>} : memref<256x576xbf16, #tpu.memory_space<vmem>>, vector<256x64xbf16>,
    %c2_106 = arith.constant 2 : index
    %c1_107 = arith.constant 1 : index
    %c0_108 = arith.constant 0 : index
    %104 = vector.load %arg10[%c2_106, %c1_107, %c0_108] : memref<18x18x64xf32, #tpu.memory_space<vmem>>, vector<16x16x64xf32>
    %105 = vector.shape_cast %104 : vector<16x16x64xf32> to vector<256x64xf32>
    %106 = arith.truncf %105 : vector<256x64xf32> to vector<256x64xbf16>
    %c0_109 = arith.constant 0 : index
    %c448 = arith.constant 448 : index
    %107 = vector.load %arg11[%c0_109, %c448] : memref<256x576xbf16, #tpu.memory_space<vmem>>, vector<256x64xbf16>
    tpu.vector_store %arg11[%c0_109, %c448], %106 {strides = array<i32>} : memref<256x576xbf16, #tpu.memory_space<vmem>>, vector<256x64xbf16>,
    %c2_110 = arith.constant 2 : index
    %c2_111 = arith.constant 2 : index
    %c0_112 = arith.constant 0 : index
    %108 = vector.load %arg10[%c2_110, %c2_111, %c0_112] : memref<18x18x64xf32, #tpu.memory_space<vmem>>, vector<16x16x64xf32>
    %109 = vector.shape_cast %108 : vector<16x16x64xf32> to vector<256x64xf32>
    %110 = arith.truncf %109 : vector<256x64xf32> to vector<256x64xbf16>
    %c0_113 = arith.constant 0 : index
    %c512 = arith.constant 512 : index
    %111 = vector.load %arg11[%c0_113, %c512] : memref<256x576xbf16, #tpu.memory_space<vmem>>, vector<256x64xbf16>
    tpu.vector_store %arg11[%c0_113, %c512], %110 {strides = array<i32>} : memref<256x576xbf16, #tpu.memory_space<vmem>>, vector<256x64xbf16>,
    %c0_114 = arith.constant 0 : index
    %c0_115 = arith.constant 0 : index
    %112 = vector.load %arg6[%c0_114, %c0_115] : memref<1x256xf32, #tpu.memory_space<vmem>>, vector<1x256xf32>
    %113 = vector.shape_cast %112 : vector<1x256xf32> to vector<256xf32>
    %c0_116 = arith.constant 0 : index
    %c0_117 = arith.constant 0 : index
    %114 = vector.load %arg7[%c0_116, %c0_117] : memref<1x256xf32, #tpu.memory_space<vmem>>, vector<1x256xf32>
    %115 = vector.shape_cast %114 : vector<1x256xf32> to vector<256xf32>
    %c0_118 = arith.constant 0 : index
    %c0_119 = arith.constant 0 : index
    %116 = vector.load %arg11[%c0_118, %c0_119] : memref<256x576xbf16, #tpu.memory_space<vmem>>, vector<128x576xbf16>
    %c0_120 = arith.constant 0 : index
    %c0_121 = arith.constant 0 : index
    %117 = vector.load %arg5[%c0_120, %c0_121] : memref<576x256xbf16, #tpu.memory_space<vmem>>, vector<576x256xbf16>
    %cst_122 = arith.constant dense<0.000000e+00> : vector<128x256xf32>
    %118 = tpu.matmul %116, %117, %cst_122 {dimension_numbers = #tpu.dot_dimension_numbers<[1], [0], [0], [1], [0, 0, 1, 1], [], []>} : vector<128x576xbf16>, vector<576x256xbf16>, vector<128x256xf32> -> vector<128x256xf32>
    %119 = vector.shape_cast %113 : vector<256xf32> to vector<1x256xf32>
    %120 = vector.broadcast %119 : vector<1x256xf32> to vector<128x256xf32>
    %121 = arith.mulf %118, %120 : vector<128x256xf32>
    %122 = vector.shape_cast %115 : vector<256xf32> to vector<1x256xf32>
    %123 = vector.broadcast %122 : vector<1x256xf32> to vector<128x256xf32>
    %124 = arith.addf %121, %123 : vector<128x256xf32>
    %cst_123 = arith.constant 0.000000e+00 : f32
    %125 = vector.broadcast %cst_123 : f32 to vector<128x256xf32>
    %126 = arith.maximumf %124, %125 : vector<128x256xf32>
    %c0_124 = arith.constant 0 : index
    %c0_125 = arith.constant 0 : index
    %c0_126 = arith.constant 0 : index
    %127 = vector.load %arg8[%c0_124, %c0_125, %c0_126] : memref<1x256x256xf32, #tpu.memory_space<vmem>>, vector<1x128x256xf32>
    %128 = vector.shape_cast %127 : vector<1x128x256xf32> to vector<128x256xf32>
    %129 = vector.shape_cast %126 : vector<128x256xf32> to vector<1x128x256xf32>
    tpu.vector_store %arg8[%c0_124, %c0_125, %c0_126], %129 {strides = array<i32>} : memref<1x256x256xf32, #tpu.memory_space<vmem>>, vector<1x128x256xf32>,
    %c128_127 = arith.constant 128 : index
    %c0_128 = arith.constant 0 : index
    %130 = vector.load %arg11[%c128_127, %c0_128] : memref<256x576xbf16, #tpu.memory_space<vmem>>, vector<128x576xbf16>
    %c0_129 = arith.constant 0 : index
    %c0_130 = arith.constant 0 : index
    %131 = vector.load %arg5[%c0_129, %c0_130] : memref<576x256xbf16, #tpu.memory_space<vmem>>, vector<576x256xbf16>
    %cst_131 = arith.constant dense<0.000000e+00> : vector<128x256xf32>
    %132 = tpu.matmul %130, %131, %cst_131 {dimension_numbers = #tpu.dot_dimension_numbers<[1], [0], [0], [1], [0, 0, 1, 1], [], []>} : vector<128x576xbf16>, vector<576x256xbf16>, vector<128x256xf32> -> vector<128x256xf32>
    %133 = vector.shape_cast %113 : vector<256xf32> to vector<1x256xf32>
    %134 = vector.broadcast %133 : vector<1x256xf32> to vector<128x256xf32>
    %135 = arith.mulf %132, %134 : vector<128x256xf32>
    %136 = vector.shape_cast %115 : vector<256xf32> to vector<1x256xf32>
    %137 = vector.broadcast %136 : vector<1x256xf32> to vector<128x256xf32>
    %138 = arith.addf %135, %137 : vector<128x256xf32>
    %cst_132 = arith.constant 0.000000e+00 : f32
    %139 = vector.broadcast %cst_132 : f32 to vector<128x256xf32>
    %140 = arith.maximumf %138, %139 : vector<128x256xf32>
    %c0_133 = arith.constant 0 : index
    %c128_134 = arith.constant 128 : index
    %c0_135 = arith.constant 0 : index
    %141 = vector.load %arg8[%c0_133, %c128_134, %c0_135] : memref<1x256x256xf32, #tpu.memory_space<vmem>>, vector<1x128x256xf32>
    %142 = vector.shape_cast %141 : vector<1x128x256xf32> to vector<128x256xf32>
    %143 = vector.shape_cast %140 : vector<128x256xf32> to vector<1x128x256xf32>
    tpu.vector_store %arg8[%c0_133, %c128_134, %c0_135], %143 {strides = array<i32>} : memref<1x256x256xf32, #tpu.memory_space<vmem>>, vector<1x128x256xf32>,
    return
  }
  func.func @transform_0(%arg0: i32) -> (i32, i32, i32, i32) {
    %c0_i32 = arith.constant 0 : i32
    %c0_i32_0 = arith.constant 0 : i32
    %c0_i32_1 = arith.constant 0 : i32
    %c0_i32_2 = arith.constant 0 : i32
    return %arg0, %c0_i32, %c0_i32_0, %c0_i32_1 : i32, i32, i32, i32
  }
  func.func @transform_1(%arg0: i32) -> (i32, i32, i32) {
    %c0_i32 = arith.constant 0 : i32
    %c0_i32_0 = arith.constant 0 : i32
    %c0_i32_1 = arith.constant 0 : i32
    %c0_i32_2 = arith.constant 0 : i32
    return %c0_i32, %c0_i32_0, %c0_i32_1 : i32, i32, i32
  }
  func.func @transform_2(%arg0: i32) -> (i32, i32) {
    %c0_i32 = arith.constant 0 : i32
    %c0_i32_0 = arith.constant 0 : i32
    %c0_i32_1 = arith.constant 0 : i32
    return %c0_i32, %c0_i32_0 : i32, i32
  }
  func.func @transform_3(%arg0: i32) -> (i32, i32) {
    %c0_i32 = arith.constant 0 : i32
    %c0_i32_0 = arith.constant 0 : i32
    %c0_i32_1 = arith.constant 0 : i32
    return %c0_i32, %c0_i32_0 : i32, i32
  }
  func.func @transform_4(%arg0: i32) -> (i32, i32) {
    %c0_i32 = arith.constant 0 : i32
    %c0_i32_0 = arith.constant 0 : i32
    %c0_i32_1 = arith.constant 0 : i32
    return %c0_i32, %c0_i32_0 : i32, i32
  }
  func.func @transform_5(%arg0: i32) -> (i32, i32) {
    %c0_i32 = arith.constant 0 : i32
    %c0_i32_0 = arith.constant 0 : i32
    %c0_i32_1 = arith.constant 0 : i32
    return %c0_i32, %c0_i32_0 : i32, i32
  }
  func.func @transform_6(%arg0: i32) -> (i32, i32) {
    %c0_i32 = arith.constant 0 : i32
    %c0_i32_0 = arith.constant 0 : i32
    %c0_i32_1 = arith.constant 0 : i32
    return %c0_i32, %c0_i32_0 : i32, i32
  }
  func.func @transform_7(%arg0: i32) -> (i32, i32, i32) {
    %c0_i32 = arith.constant 0 : i32
    %c0_i32_0 = arith.constant 0 : i32
    %c0_i32_1 = arith.constant 0 : i32
    return %arg0, %c0_i32, %c0_i32_0 : i32, i32, i32
  }
}

</mosaic_0001>

<llo_original>
// kernel: tpu_custom_call.1
$region0: #{tpu_custom_call.1}
  #allocation0 [shape = 'u32[]', space=smem, size = 0x4, offset = 0x4, fixed_abs, tag = 'smem constant byte address 0x4 - core index']
  #allocation1 [shape = 'u32[144,128]{1,0:T(1,128)}', space=vmem, size = 0x12000, scoped, tag = 'internal scratch']
  #allocation2 [shape = 'f32[18,18,3]{2,1,0:T(8,128)}', space=vmem, size = 0x36000, scoped, tag = 'scratch operand']
  #allocation3 [shape = 'f32[18,18,64]{2,1,0:T(8,128)}', space=vmem, size = 0x36000, scoped, tag = 'scratch operand']
  #allocation4 [shape = 'bf16[256,576]{1,0:T(16,128)(2,1)}', space=vmem, size = 0x50000, scoped, tag = 'scratch operand']
  %s0 = inlined_call_operand.vmem [shape: f32[2,16,16,3], index: 0, kind: input, shape index: {}]
  %s1 = inlined_call_operand.vmem [shape: f32[9,3,64], index: 1, kind: input, shape index: {}]
  %s2 = inlined_call_operand.vmem [shape: f32[1,64], index: 2, kind: input, shape index: {}]
  %s3 = inlined_call_operand.vmem [shape: f32[1,64], index: 3, kind: input, shape index: {}]
  %s4 = inlined_call_operand.vmem [shape: bf16[576,256], index: 4, kind: input, shape index: {}]
  %s5 = inlined_call_operand.vmem [shape: f32[1,256], index: 5, kind: input, shape index: {}]
  %s6 = inlined_call_operand.vmem [shape: f32[1,256], index: 6, kind: input, shape index: {}]
  %s7 = inlined_call_operand.hbm [shape: f32[2,256,256], index: 7, kind: output, shape index: {}]
  %s8 = sld [smem:[#allocation0]]
  $region61: #{tpu_custom_call.1} parent=0
    _
  %s10 = ssub.s32 1, %s8
  %s11 = scalar_select 0, %s10, %s8
  $region1: #{tpu_custom_call.1} parent=0
    #allocation5 [shape = 'u8[524288]{0}', space=vmem, size = 0x80000, scoped, tag = 'output window, operand 0']
    #allocation6 [shape = 's32[2]{0}', space=sflag, size = 0x8, scoped, tag = 'scoped memory for tpu_custom_call.1']
    %12 = vsyncpa [#allocation6], 0
    %s13 = scalar_lea.sflag [#allocation6], 1
    %14 = vsyncpa %s13, 0
    loop: start=0, step=1, limit=4
    $region2: #{tpu_custom_call.1} parent=1 // loop_pre_header
      _
    $region3: #{tpu_custom_call.1} parent=1 // loop_header
      %s16 = sphi 0, %s20
      %p17 = scmp.ge.s32.totalorder %s16, 4
      %s26 = sphi 0, %s28
      %s29 = sphi 0, %s26
      %s30 = sphi 0, %s29
      %s46 = sphi 0, %s30
      %s50 = sphi 0, %s50
      %s52 = sphi 0, %s50
      %s53 = sphi 0, %s52
      %s67 = sphi 0, %s53
      %s71 = sphi 0, %s71
      %s73 = sphi 0, %s71
      %s74 = sphi 0, %s73
      %s88 = sphi 0, %s74
      %s92 = sphi 0, %s92
      %s94 = sphi 0, %s92
      %s95 = sphi 0, %s94
      %s109 = sphi 0, %s95
      %s113 = sphi 0, %s113
      %s115 = sphi 0, %s113
      %s116 = sphi 0, %s115
      %s130 = sphi 0, %s116
      %s134 = sphi 0, %s134
      %s136 = sphi 0, %s134
      %s137 = sphi 0, %s136
      %s151 = sphi 0, %s137
      %s155 = sphi 0, %s155
      %s157 = sphi 0, %s155
      %s158 = sphi 0, %s157
      %s172 = sphi 0, %s158
      %s178 = sphi 0, %s180
      %s181 = sphi 0, %s178
      %s182 = sphi 0, %s181
      %s198 = sphi 0, %s182
    $region4: #{tpu_custom_call.1} parent=1 // loop_header_branch
      %19 = sbr.rel (%p17) target = $region8
    $region5: #{tpu_custom_call.1} parent=1 // loop_body
      %s21 = ssub.s32 %s16, 1
      %s22 = ssub.s32 %s16, 2
      %s23 = sadd.s32 %s16, 1
      %s24 = ssub.s32 %s16, %s23
      %p25 = scmp.eq.s32.totalorder %s24, 0
      %s27 = sadd.s32 %s26, 1
      %s28 = scalar_select %p25, %s26, %s27
      %p31 = pneg %p25
      %p32 = scmp.eq.s32.totalorder %s16, 1
      %p33 = por %p31, %p32
      %p34 = scmp.ne.s32.totalorder %s26, %s29
      %p35 = scmp.eq.s32.totalorder %s16, 0
      %p36 = por %p34, %p35
      %p37 = scmp.ne.s32.totalorder %s26, %s29
      %p38 = scmp.eq.s32.totalorder %s21, 1
      %p39 = por %p37, %p38
      %p40 = scmp.ne.s32.totalorder %s29, %s30
      %p41 = scmp.eq.s32.totalorder %s21, 0
      %p42 = por %p40, %p41
      %p43 = scmp.ne.s32.totalorder %s29, %s30
      %p44 = scmp.eq.s32.totalorder %s22, 1
      %p45 = por %p43, %p44
      %p47 = scmp.ne.s32.totalorder %s30, %s46
      %p48 = scmp.eq.s32.totalorder %s22, 0
      %p49 = por %p47, %p48
      %s51 = sadd.s32 %s50, 1
      %p54 = scmp.eq.s32.totalorder %s16, 1
      %p55 = scmp.ne.s32.totalorder %s50, %s52
      %p56 = scmp.eq.s32.totalorder %s16, 0
      %p57 = por %p55, %p56
      %p58 = scmp.ne.s32.totalorder %s50, %s52
      %p59 = scmp.eq.s32.totalorder %s21, 1
      %p60 = por %p58, %p59
      %p61 = scmp.ne.s32.totalorder %s52, %s53
      %p62 = scmp.eq.s32.totalorder %s21, 0
      %p63 = por %p61, %p62
      %p64 = scmp.ne.s32.totalorder %s52, %s53
      %p65 = scmp.eq.s32.totalorder %s22, 1
      %p66 = por %p64, %p65
      %p68 = scmp.ne.s32.totalorder %s53, %s67
      %p69 = scmp.eq.s32.totalorder %s22, 0
      %p70 = por %p68, %p69
      %s72 = sadd.s32 %s71, 1
      %p75 = scmp.eq.s32.totalorder %s16, 1
      %p76 = scmp.ne.s32.totalorder %s71, %s73
      %p77 = scmp.eq.s32.totalorder %s16, 0
      %p78 = por %p76, %p77
      %p79 = scmp.ne.s32.totalorder %s71, %s73
      %p80 = scmp.eq.s32.totalorder %s21, 1
      %p81 = por %p79, %p80
      %p82 = scmp.ne.s32.totalorder %s73, %s74
      %p83 = scmp.eq.s32.totalorder %s21, 0
      %p84 = por %p82, %p83
      %p85 = scmp.ne.s32.totalorder %s73, %s74
      %p86 = scmp.eq.s32.totalorder %s22, 1
      %p87 = por %p85, %p86
      %p89 = scmp.ne.s32.totalorder %s74, %s88
      %p90 = scmp.eq.s32.totalorder %s22, 0
      %p91 = por %p89, %p90
      %s93 = sadd.s32 %s92, 1
      %p96 = scmp.eq.s32.totalorder %s16, 1
      %p97 = scmp.ne.s32.totalorder %s92, %s94
      %p98 = scmp.eq.s32.totalorder %s16, 0
      %p99 = por %p97, %p98
      %p100 = scmp.ne.s32.totalorder %s92, %s94
      %p101 = scmp.eq.s32.totalorder %s21, 1
      %p102 = por %p100, %p101
      %p103 = scmp.ne.s32.totalorder %s94, %s95
      %p104 = scmp.eq.s32.totalorder %s21, 0
      %p105 = por %p103, %p104
      %p106 = scmp.ne.s32.totalorder %s94, %s95
      %p107 = scmp.eq.s32.totalorder %s22, 1
      %p108 = por %p106, %p107
      %p110 = scmp.ne.s32.totalorder %s95, %s109
      %p111 = scmp.eq.s32.totalorder %s22, 0
      %p112 = por %p110, %p111
      %s114 = sadd.s32 %s113, 1
      %p117 = scmp.eq.s32.totalorder %s16, 1
      %p118 = scmp.ne.s32.totalorder %s113, %s115
      %p119 = scmp.eq.s32.totalorder %s16, 0
      %p120 = por %p118, %p119
      %p121 = scmp.ne.s32.totalorder %s113, %s115
      %p122 = scmp.eq.s32.totalorder %s21, 1
      %p123 = por %p121, %p122
      %p124 = scmp.ne.s32.totalorder %s115, %s116
      %p125 = scmp.eq.s32.totalorder %s21, 0
      %p126 = por %p124, %p125
      %p127 = scmp.ne.s32.totalorder %s115, %s116
      %p128 = scmp.eq.s32.totalorder %s22, 1
      %p129 = por %p127, %p128
      %p131 = scmp.ne.s32.totalorder %s116, %s130
      %p132 = scmp.eq.s32.totalorder %s22, 0
      %p133 = por %p131, %p132
      %s135 = sadd.s32 %s134, 1
      %p138 = scmp.eq.s32.totalorder %s16, 1
      %p139 = scmp.ne.s32.totalorder %s134, %s136
      %p140 = scmp.eq.s32.totalorder %s16, 0
      %p141 = por %p139, %p140
      %p142 = scmp.ne.s32.totalorder %s134, %s136
      %p143 = scmp.eq.s32.totalorder %s21, 1
      %p144 = por %p142, %p143
      %p145 = scmp.ne.s32.totalorder %s136, %s137
      %p146 = scmp.eq.s32.totalorder %s21, 0
      %p147 = por %p145, %p146
      %p148 = scmp.ne.s32.totalorder %s136, %s137
      %p149 = scmp.eq.s32.totalorder %s22, 1
      %p150 = por %p148, %p149
      %p152 = scmp.ne.s32.totalorder %s137, %s151
      %p153 = scmp.eq.s32.totalorder %s22, 0
      %p154 = por %p152, %p153
      %s156 = sadd.s32 %s155, 1
      %p159 = scmp.eq.s32.totalorder %s16, 1
      %p160 = scmp.ne.s32.totalorder %s155, %s157
      %p161 = scmp.eq.s32.totalorder %s16, 0
      %p162 = por %p160, %p161
      %p163 = scmp.ne.s32.totalorder %s155, %s157
      %p164 = scmp.eq.s32.totalorder %s21, 1
      %p165 = por %p163, %p164
      %p166 = scmp.ne.s32.totalorder %s157, %s158
      %p167 = scmp.eq.s32.totalorder %s21, 0
      %p168 = por %p166, %p167
      %p169 = scmp.ne.s32.totalorder %s157, %s158
      %p170 = scmp.eq.s32.totalorder %s22, 1
      %p171 = por %p169, %p170
      %p173 = scmp.ne.s32.totalorder %s158, %s172
      %p174 = scmp.eq.s32.totalorder %s22, 0
      %p175 = por %p173, %p174
      %s176 = ssub.s32 %s16, %s23
      %p177 = scmp.eq.s32.totalorder %s176, 0
      %s179 = sadd.s32 %s178, 1
      %s180 = scalar_select %p177, %s178, %s179
      %p183 = pneg %p177
      %p184 = scmp.eq.s32.totalorder %s16, 1
      %p185 = por %p183, %p184
      %p186 = scmp.ne.s32.totalorder %s178, %s181
      %p187 = scmp.eq.s32.totalorder %s16, 0
      %p188 = por %p186, %p187
      %p189 = scmp.ne.s32.totalorder %s178, %s181
      %p190 = scmp.eq.s32.totalorder %s21, 1
      %p191 = por %p189, %p190
      %p192 = scmp.ne.s32.totalorder %s181, %s182
      %p193 = scmp.eq.s32.totalorder %s21, 0
      %p194 = por %p192, %p193
      %p195 = scmp.ne.s32.totalorder %s181, %s182
      %p196 = scmp.eq.s32.totalorder %s22, 1
      %p197 = por %p195, %p196
      %p199 = scmp.ne.s32.totalorder %s182, %s198
      %p200 = scmp.eq.s32.totalorder %s22, 0
      %p201 = por %p199, %p200
      %p202 = scmp.le.s32.totalorder 1, %s16
      %p203 = scmp.lt.s32.totalorder %s16, 3
      %p204 = pnand %p202, %p203
      %p205 = pneg %p204
      // Predicated region
      $region9: #{tpu_custom_call.1} parent=5 // pred_check
        _
      $region10: #{tpu_custom_call.1} parent=5 // pred_check_branch
        %207 = sbr.rel (%p204) target = $region12
      $region11: #{tpu_custom_call.1} parent=5 // pred_region
        %s208 = ssub.s32 %s16, 1
        // Predicated region
        $region13: #{tpu_custom_call.1} parent=11 // pred_check
          %p209 = pneg %p63
        $region14: #{tpu_custom_call.1} parent=11 // pred_check_branch
          %211 = sbr.rel (%p209) target = $region16
        $region15: #{tpu_custom_call.1} parent=11 // pred_region
          _
        $region16: #{tpu_custom_call.1} parent=11 // pred_fallthru
          _
        // Predicated region
        $region17: #{tpu_custom_call.1} parent=11 // pred_check
          %p212 = pneg %p84
        $region18: #{tpu_custom_call.1} parent=11 // pred_check_branch
          %214 = sbr.rel (%p212) target = $region20
        $region19: #{tpu_custom_call.1} parent=11 // pred_region
          _
        $region20: #{tpu_custom_call.1} parent=11 // pred_fallthru
          _
        // Predicated region
        $region21: #{tpu_custom_call.1} parent=11 // pred_check
          %p215 = pneg %p105
        $region22: #{tpu_custom_call.1} parent=11 // pred_check_branch
          %217 = sbr.rel (%p215) target = $region24
        $region23: #{tpu_custom_call.1} parent=11 // pred_region
          _
        $region24: #{tpu_custom_call.1} parent=11 // pred_fallthru
          _
        // Predicated region
        $region25: #{tpu_custom_call.1} parent=11 // pred_check
          %p218 = pneg %p126
        $region26: #{tpu_custom_call.1} parent=11 // pred_check_branch
          %220 = sbr.rel (%p218) target = $region28
        $region27: #{tpu_custom_call.1} parent=11 // pred_region
          _
        $region28: #{tpu_custom_call.1} parent=11 // pred_fallthru
          _
        // Predicated region
        $region29: #{tpu_custom_call.1} parent=11 // pred_check
          %p221 = pneg %p147
        $region30: #{tpu_custom_call.1} parent=11 // pred_check_branch
          %223 = sbr.rel (%p221) target = $region32
        $region31: #{tpu_custom_call.1} parent=11 // pred_region
          _
        $region32: #{tpu_custom_call.1} parent=11 // pred_fallthru
          _
        // Predicated region
        $region33: #{tpu_custom_call.1} parent=11 // pred_check
          %p224 = pneg %p168
        $region34: #{tpu_custom_call.1} parent=11 // pred_check_branch
          %226 = sbr.rel (%p224) target = $region36
        $region35: #{tpu_custom_call.1} parent=11 // pred_region
          _
        $region36: #{tpu_custom_call.1} parent=11 // pred_fallthru
          _
      $region12: #{tpu_custom_call.1} parent=5 // pred_fallthru
        _
      %p227 = scmp.lt.s32.totalorder %s16, 2
      // Predicated region
      $region37: #{tpu_custom_call.1} parent=5 // pred_check
        %p228 = pneg %p227
      $region38: #{tpu_custom_call.1} parent=5 // pred_check_branch
        %230 = sbr.rel (%p228) target = $region40
      $region39: #{tpu_custom_call.1} parent=5 // pred_region
        // Predicated region
        $region41: #{tpu_custom_call.1} parent=39 // pred_check
          %p231 = pneg %p36
        $region42: #{tpu_custom_call.1} parent=39 // pred_check_branch
          %233 = sbr.rel (%p231) target = $region44
        $region43: #{tpu_custom_call.1} parent=39 // pred_region
          %p234 = scmp.lt.s32.totalorder %s16, 1
          %s235 = scalar_select %p234, %s16, 1
          %s236 = smul.addr %s235, 32
          %s237 = smul.addr %s236, 8
          %s238 = scalar_lea.vmem %s0, %s237
        $region44: #{tpu_custom_call.1} parent=39 // pred_fallthru
          _
      $region40: #{tpu_custom_call.1} parent=5 // pred_fallthru
        _
      %p239 = scmp.le.s32.totalorder 1, %s16
      %p240 = scmp.lt.s32.totalorder %s16, 3
      %p241 = pnand %p239, %p240
      %p242 = pneg %p241
      // Predicated region
      $region45: #{tpu_custom_call.1} parent=5 // pred_check
        _
      $region46: #{tpu_custom_call.1} parent=5 // pred_check_branch
        %244 = sbr.rel (%p241) target = $region48
      $region47: #{tpu_custom_call.1} parent=5 // pred_region
        %s245 = ssub.s32 %s16, 1
        %p246 = scmp.lt.s32.totalorder %s21, 1
        %s247 = scalar_select %p246, %s21, 1
        %s248 = smul.addr %s247, 32
        %s249 = smul.addr %s248, 8
        %s250 = scalar_lea.vmem %s0, %s249
        %p251 = pneg %p42
        %p252 = pneg %p39
        %p253 = pneg %p63
        %p254 = pneg %p60
        %p255 = pneg %p84
        %p256 = pneg %p81
        %p257 = pneg %p105
        %p258 = pneg %p102
        %p259 = pneg %p126
        %p260 = pneg %p123
        %p261 = pneg %p147
        %p262 = pneg %p144
        %p263 = pneg %p168
        %p264 = pneg %p165
        %p265 = pneg %p194
        %p266 = pneg %p191
        %s267 = sand.u32 %s181, 1
        %s268 = scalar_lea.sflag [#allocation6], %s267
        %s269 = sand.u32 %s181, 1
        %s270 = smul.addr %s269, 512
        %s271 = scalar_lea.vmem [#allocation5], %s270
        %p272 = scmp.lt.s32.totalorder %s21, 1
        %s273 = scalar_select %p272, %s21, 1
        %s274 = smul.addr %s273, 32
        %s275 = smul.addr %s274, 8
        %s276 = scalar_lea.vmem %s0, %s275
        %vm278 = vcmask 23552
        %279 = vst.msk [vmem:[#allocation2] sm:$0xff] %vm278, 0.0
        %280 = vst.msk [vmem:[#allocation2 + $0x8] sm:$0xff] %vm278, 0.0
        %vm281 = vcmask 17408
        %282 = vst.msk [vmem:[#allocation2 + $0x10] sm:$0x3] %vm281, 0.0
        %283 = vst.msk [vmem:[#allocation2 + $0x18] sm:$0xff] %vm278, 0.0
        %284 = vst.msk [vmem:[#allocation2 + $0x20] sm:$0xff] %vm278, 0.0
        %285 = vst.msk [vmem:[#allocation2 + $0x28] sm:$0x3] %vm281, 0.0
        %286 = vst.msk [vmem:[#allocation2 + $0x30] sm:$0xff] %vm278, 0.0
        %287 = vst.msk [vmem:[#allocation2 + $0x38] sm:$0xff] %vm278, 0.0
        %288 = vst.msk [vmem:[#allocation2 + $0x40] sm:$0x3] %vm281, 0.0
        %289 = vst.msk [vmem:[#allocation2 + $0x48] sm:$0xff] %vm278, 0.0
        %290 = vst.msk [vmem:[#allocation2 + $0x50] sm:$0xff] %vm278, 0.0
        %291 = vst.msk [vmem:[#allocation2 + $0x58] sm:$0x3] %vm281, 0.0
        %292 = vst.msk [vmem:[#allocation2 + $0x60] sm:$0xff] %vm278, 0.0
        %293 = vst.msk [vmem:[#allocation2 + $0x68] sm:$0xff] %vm278, 0.0
        %294 = vst.msk [vmem:[#allocation2 + $0x70] sm:$0x3] %vm281, 0.0
        %295 = vst.msk [vmem:[#allocation2 + $0x78] sm:$0xff] %vm278, 0.0
        %296 = vst.msk [vmem:[#allocation2 + $0x80] sm:$0xff] %vm278, 0.0
        %297 = vst.msk [vmem:[#allocation2 + $0x88] sm:$0x3] %vm281, 0.0
        %298 = vst.msk [vmem:[#allocation2 + $0x90] sm:$0xff] %vm278, 0.0
        %299 = vst.msk [vmem:[#allocation2 + $0x98] sm:$0xff] %vm278, 0.0
        %300 = vst.msk [vmem:[#allocation2 + $0xa0] sm:$0x3] %vm281, 0.0
        %301 = vst.msk [vmem:[#allocation2 + $0xa8] sm:$0xff] %vm278, 0.0
        %302 = vst.msk [vmem:[#allocation2 + $0xb0] sm:$0xff] %vm278, 0.0
        %303 = vst.msk [vmem:[#allocation2 + $0xb8] sm:$0x3] %vm281, 0.0
        %304 = vst.msk [vmem:[#allocation2 + $0xc0] sm:$0xff] %vm278, 0.0
        %305 = vst.msk [vmem:[#allocation2 + $0xc8] sm:$0xff] %vm278, 0.0
        %306 = vst.msk [vmem:[#allocation2 + $0xd0] sm:$0x3] %vm281, 0.0
        %307 = vst.msk [vmem:[#allocation2 + $0xd8] sm:$0xff] %vm278, 0.0
        %308 = vst.msk [vmem:[#allocation2 + $0xe0] sm:$0xff] %vm278, 0.0
        %309 = vst.msk [vmem:[#allocation2 + $0xe8] sm:$0x3] %vm281, 0.0
        %310 = vst.msk [vmem:[#allocation2 + $0xf0] sm:$0xff] %vm278, 0.0
        %311 = vst.msk [vmem:[#allocation2 + $0xf8] sm:$0xff] %vm278, 0.0
        %312 = vst.msk [vmem:[#allocation2 + $0x100] sm:$0x3] %vm281, 0.0
        %313 = vst.msk [vmem:[#allocation2 + $0x108] sm:$0xff] %vm278, 0.0
        %314 = vst.msk [vmem:[#allocation2 + $0x110] sm:$0xff] %vm278, 0.0
        %315 = vst.msk [vmem:[#allocation2 + $0x118] sm:$0x3] %vm281, 0.0
        %316 = vst.msk [vmem:[#allocation2 + $0x120] sm:$0xff] %vm278, 0.0
        %317 = vst.msk [vmem:[#allocation2 + $0x128] sm:$0xff] %vm278, 0.0
        %318 = vst.msk [vmem:[#allocation2 + $0x130] sm:$0x3] %vm281, 0.0
        %319 = vst.msk [vmem:[#allocation2 + $0x138] sm:$0xff] %vm278, 0.0
        %320 = vst.msk [vmem:[#allocation2 + $0x140] sm:$0xff] %vm278, 0.0
        %321 = vst.msk [vmem:[#allocation2 + $0x148] sm:$0x3] %vm281, 0.0
        %322 = vst.msk [vmem:[#allocation2 + $0x150] sm:$0xff] %vm278, 0.0
        %323 = vst.msk [vmem:[#allocation2 + $0x158] sm:$0xff] %vm278, 0.0
        %324 = vst.msk [vmem:[#allocation2 + $0x160] sm:$0x3] %vm281, 0.0
        %325 = vst.msk [vmem:[#allocation2 + $0x168] sm:$0xff] %vm278, 0.0
        %326 = vst.msk [vmem:[#allocation2 + $0x170] sm:$0xff] %vm278, 0.0
        %327 = vst.msk [vmem:[#allocation2 + $0x178] sm:$0x3] %vm281, 0.0
        %328 = vst.msk [vmem:[#allocation2 + $0x180] sm:$0xff] %vm278, 0.0
        %329 = vst.msk [vmem:[#allocation2 + $0x188] sm:$0xff] %vm278, 0.0
        %330 = vst.msk [vmem:[#allocation2 + $0x190] sm:$0x3] %vm281, 0.0
        %331 = vst.msk [vmem:[#allocation2 + $0x198] sm:$0xff] %vm278, 0.0
        %332 = vst.msk [vmem:[#allocation2 + $0x1a0] sm:$0xff] %vm278, 0.0
        %333 = vst.msk [vmem:[#allocation2 + $0x1a8] sm:$0x3] %vm281, 0.0
        %v334 = vld [vmem:[%s276] sm:$0xff]
        %v335 = vld [vmem:[%s276 + $0x8] sm:$0xff]
        %v336 = vld [vmem:[%s276 + $0x10] sm:$0xff]
        %v337 = vld [vmem:[%s276 + $0x18] sm:$0xff]
        %v338 = vld [vmem:[%s276 + $0x20] sm:$0xff]
        %v339 = vld [vmem:[%s276 + $0x28] sm:$0xff]
        %v340 = vld [vmem:[%s276 + $0x30] sm:$0xff]
        %v341 = vld [vmem:[%s276 + $0x38] sm:$0xff]
        %v342 = vld [vmem:[%s276 + $0x40] sm:$0xff]
        %v343 = vld [vmem:[%s276 + $0x48] sm:$0xff]
        %v344 = vld [vmem:[%s276 + $0x50] sm:$0xff]
        %v345 = vld [vmem:[%s276 + $0x58] sm:$0xff]
        %v346 = vld [vmem:[%s276 + $0x60] sm:$0xff]
        %v347 = vld [vmem:[%s276 + $0x68] sm:$0xff]
        %v348 = vld [vmem:[%s276 + $0x70] sm:$0xff]
        %v349 = vld [vmem:[%s276 + $0x78] sm:$0xff]
        %v350 = vld [vmem:[%s276 + $0x80] sm:$0xff]
        %v351 = vld [vmem:[%s276 + $0x88] sm:$0xff]
        %v352 = vld [vmem:[%s276 + $0x90] sm:$0xff]
        %v353 = vld [vmem:[%s276 + $0x98] sm:$0xff]
        %v354 = vld [vmem:[%s276 + $0xa0] sm:$0xff]
        %v355 = vld [vmem:[%s276 + $0xa8] sm:$0xff]
        %v356 = vld [vmem:[%s276 + $0xb0] sm:$0xff]
        %v357 = vld [vmem:[%s276 + $0xb8] sm:$0xff]
        %v358 = vld [vmem:[%s276 + $0xc0] sm:$0xff]
        %v359 = vld [vmem:[%s276 + $0xc8] sm:$0xff]
        %v360 = vld [vmem:[%s276 + $0xd0] sm:$0xff]
        %v361 = vld [vmem:[%s276 + $0xd8] sm:$0xff]
        %v362 = vld [vmem:[%s276 + $0xe0] sm:$0xff]
        %v363 = vld [vmem:[%s276 + $0xe8] sm:$0xff]
        %v364 = vld [vmem:[%s276 + $0xf0] sm:$0xff]
        %v365 = vld [vmem:[%s276 + $0xf8] sm:$0xff]
        %s366 = scalar_lea.vmem [#allocation2], 24
        %367 = vst.msk [vmem:[%s366 + $0x1] sm:$0xff] %vm278, %v334
        %368 = vst.msk [vmem:[%s366 + $0x9] sm:$0xff] %vm278, %v335
        %369 = vst.msk [vmem:[%s366 + $0x19] sm:$0xff] %vm278, %v336
        %370 = vst.msk [vmem:[%s366 + $0x21] sm:$0xff] %vm278, %v337
        %371 = vst.msk [vmem:[%s366 + $0x31] sm:$0xff] %vm278, %v338
        %372 = vst.msk [vmem:[%s366 + $0x39] sm:$0xff] %vm278, %v339
        %373 = vst.msk [vmem:[%s366 + $0x49] sm:$0xff] %vm278, %v340
        %374 = vst.msk [vmem:[%s366 + $0x51] sm:$0xff] %vm278, %v341
        %375 = vst.msk [vmem:[%s366 + $0x61] sm:$0xff] %vm278, %v342
        %376 = vst.msk [vmem:[%s366 + $0x69] sm:$0xff] %vm278, %v343
        %377 = vst.msk [vmem:[%s366 + $0x79] sm:$0xff] %vm278, %v344
        %378 = vst.msk [vmem:[%s366 + $0x81] sm:$0xff] %vm278, %v345
        %379 = vst.msk [vmem:[%s366 + $0x91] sm:$0xff] %vm278, %v346
        %380 = vst.msk [vmem:[%s366 + $0x99] sm:$0xff] %vm278, %v347
        %381 = vst.msk [vmem:[%s366 + $0xa9] sm:$0xff] %vm278, %v348
        %382 = vst.msk [vmem:[%s366 + $0xb1] sm:$0xff] %vm278, %v349
        %383 = vst.msk [vmem:[%s366 + $0xc1] sm:$0xff] %vm278, %v350
        %384 = vst.msk [vmem:[%s366 + $0xc9] sm:$0xff] %vm278, %v351
        %385 = vst.msk [vmem:[%s366 + $0xd9] sm:$0xff] %vm278, %v352
        %386 = vst.msk [vmem:[%s366 + $0xe1] sm:$0xff] %vm278, %v353
        %387 = vst.msk [vmem:[%s366 + $0xf1] sm:$0xff] %vm278, %v354
        %388 = vst.msk [vmem:[%s366 + $0xf9] sm:$0xff] %vm278, %v355
        %389 = vst.msk [vmem:[%s366 + $0x109] sm:$0xff] %vm278, %v356
        %390 = vst.msk [vmem:[%s366 + $0x111] sm:$0xff] %vm278, %v357
        %391 = vst.msk [vmem:[%s366 + $0x121] sm:$0xff] %vm278, %v358
        %392 = vst.msk [vmem:[%s366 + $0x129] sm:$0xff] %vm278, %v359
        %393 = vst.msk [vmem:[%s366 + $0x139] sm:$0xff] %vm278, %v360
        %394 = vst.msk [vmem:[%s366 + $0x141] sm:$0xff] %vm278, %v361
        %395 = vst.msk [vmem:[%s366 + $0x151] sm:$0xff] %vm278, %v362
        %396 = vst.msk [vmem:[%s366 + $0x159] sm:$0xff] %vm278, %v363
        %397 = vst.msk [vmem:[%s366 + $0x169] sm:$0xff] %vm278, %v364
        %398 = vst.msk [vmem:[%s366 + $0x171] sm:$0xff] %vm278, %v365
        %v399 = vld [vmem:[%s2] sm:$0x1]
        %v400 = vld [vmem:[%s3] sm:$0x1]
        %v401 = vld [vmem:[#allocation2] sm:$0xff]
        %v402 = vld [vmem:[#allocation2 + $0x8] sm:$0xff]
        %v403 = vld [vmem:[#allocation2 + $0x18] sm:$0xff]
        %v404 = vld [vmem:[#allocation2 + $0x20] sm:$0xff]
        %v405 = vld [vmem:[#allocation2 + $0x30] sm:$0xff]
        %v406 = vld [vmem:[#allocation2 + $0x38] sm:$0xff]
        %v407 = vld [vmem:[#allocation2 + $0x48] sm:$0xff]
        %v408 = vld [vmem:[#allocation2 + $0x50] sm:$0xff]
        %v409 = vld [vmem:[#allocation2 + $0x60] sm:$0xff]
        %v410 = vld [vmem:[#allocation2 + $0x68] sm:$0xff]
        %v411 = vld [vmem:[#allocation2 + $0x78] sm:$0xff]
        %v412 = vld [vmem:[#allocation2 + $0x80] sm:$0xff]
        %v413 = vld [vmem:[#allocation2 + $0x90] sm:$0xff]
        %v414 = vld [vmem:[#allocation2 + $0x98] sm:$0xff]
        %v415 = vld [vmem:[#allocation2 + $0xa8] sm:$0xff]
        %v416 = vld [vmem:[#allocation2 + $0xb0] sm:$0xff]
        %v417 = vld [vmem:[#allocation2 + $0xc0] sm:$0xff]
        %v418 = vld [vmem:[#allocation2 + $0xc8] sm:$0xff]
        %v419 = vld [vmem:[#allocation2 + $0xd8] sm:$0xff]
        %v420 = vld [vmem:[#allocation2 + $0xe0] sm:$0xff]
        %v421 = vld [vmem:[#allocation2 + $0xf0] sm:$0xff]
        %v422 = vld [vmem:[#allocation2 + $0xf8] sm:$0xff]
        %v423 = vld [vmem:[#allocation2 + $0x108] sm:$0xff]
        %v424 = vld [vmem:[#allocation2 + $0x110] sm:$0xff]
        %v425 = vld [vmem:[#allocation2 + $0x120] sm:$0xff]
        %v426 = vld [vmem:[#allocation2 + $0x128] sm:$0xff]
        %v427 = vld [vmem:[#allocation2 + $0x138] sm:$0xff]
        %v428 = vld [vmem:[#allocation2 + $0x140] sm:$0xff]
        %v429 = vld [vmem:[#allocation2 + $0x150] sm:$0xff]
        %v430 = vld [vmem:[#allocation2 + $0x158] sm:$0xff]
        %v431 = vld [vmem:[#allocation2 + $0x168] sm:$0xff]
        %v432 = vld [vmem:[#allocation2 + $0x170] sm:$0xff]
        %v433 = vld [vmem:[%s1] sm:$0x7]
        %v434 = vld [vmem:[#allocation2 + $0x1] sm:$0xff]
        %v435 = vld [vmem:[#allocation2 + $0x9] sm:$0xff]
        %v436 = vld [vmem:[#allocation2 + $0x19] sm:$0xff]
        %v437 = vld [vmem:[#allocation2 + $0x21] sm:$0xff]
        %v438 = vld [vmem:[#allocation2 + $0x31] sm:$0xff]
        %v439 = vld [vmem:[#allocation2 + $0x39] sm:$0xff]
        %v440 = vld [vmem:[#allocation2 + $0x49] sm:$0xff]
        %v441 = vld [vmem:[#allocation2 + $0x51] sm:$0xff]
        %v442 = vld [vmem:[#allocation2 + $0x61] sm:$0xff]
        %v443 = vld [vmem:[#allocation2 + $0x69] sm:$0xff]
        %v444 = vld [vmem:[#allocation2 + $0x79] sm:$0xff]
        %v445 = vld [vmem:[#allocation2 + $0x81] sm:$0xff]
        %v446 = vld [vmem:[#allocation2 + $0x91] sm:$0xff]
        %v447 = vld [vmem:[#allocation2 + $0x99] sm:$0xff]
        %v448 = vld [vmem:[#allocation2 + $0xa9] sm:$0xff]
        %v449 = vld [vmem:[#allocation2 + $0xb1] sm:$0xff]
        %v450 = vld [vmem:[#allocation2 + $0xc1] sm:$0xff]
        %v451 = vld [vmem:[#allocation2 + $0xc9] sm:$0xff]
        %v452 = vld [vmem:[#allocation2 + $0xd9] sm:$0xff]
        %v453 = vld [vmem:[#allocation2 + $0xe1] sm:$0xff]
        %v454 = vld [vmem:[#allocation2 + $0xf1] sm:$0xff]
        %v455 = vld [vmem:[#allocation2 + $0xf9] sm:$0xff]
        %v456 = vld [vmem:[#allocation2 + $0x109] sm:$0xff]
        %v457 = vld [vmem:[#allocation2 + $0x111] sm:$0xff]
        %v458 = vld [vmem:[#allocation2 + $0x121] sm:$0xff]
        %v459 = vld [vmem:[#allocation2 + $0x129] sm:$0xff]
        %v460 = vld [vmem:[#allocation2 + $0x139] sm:$0xff]
        %v461 = vld [vmem:[#allocation2 + $0x141] sm:$0xff]
        %v462 = vld [vmem:[#allocation2 + $0x151] sm:$0xff]
        %v463 = vld [vmem:[#allocation2 + $0x159] sm:$0xff]
        %v464 = vld [vmem:[#allocation2 + $0x169] sm:$0xff]
        %v465 = vld [vmem:[#allocation2 + $0x171] sm:$0xff]
        %s466 = scalar_lea.vmem %s1, 4
        %v467 = vld [vmem:[%s466] sm:$0x7]
        %v469 = vsel %vm278, %v434, 0
        %v472 = vsel %vm278, %v435, 0
        %v475 = vsel %vm278, %v436, 0
        %v478 = vsel %vm278, %v437, 0
        %v481 = vsel %vm278, %v438, 0
        %v484 = vsel %vm278, %v439, 0
        %v487 = vsel %vm278, %v440, 0
        %v490 = vsel %vm278, %v441, 0
        %v493 = vsel %vm278, %v442, 0
        %v496 = vsel %vm278, %v443, 0
        %v499 = vsel %vm278, %v444, 0
        %v502 = vsel %vm278, %v445, 0
        %v505 = vsel %vm278, %v446, 0
        %v508 = vsel %vm278, %v447, 0
        %v511 = vsel %vm278, %v448, 0
        %v514 = vsel %vm278, %v449, 0
        %v517 = vsel %vm278, %v450, 0
        %v520 = vsel %vm278, %v451, 0
        %v523 = vsel %vm278, %v452, 0
        %v526 = vsel %vm278, %v453, 0
        %v529 = vsel %vm278, %v454, 0
        %v532 = vsel %vm278, %v455, 0
        %v535 = vsel %vm278, %v456, 0
        %v538 = vsel %vm278, %v457, 0
        %v541 = vsel %vm278, %v458, 0
        %v544 = vsel %vm278, %v459, 0
        %v547 = vsel %vm278, %v460, 0
        %v550 = vsel %vm278, %v461, 0
        %v553 = vsel %vm278, %v462, 0
        %v556 = vsel %vm278, %v463, 0
        %v559 = vsel %vm278, %v464, 0
        %v562 = vsel %vm278, %v465, 0
        %vm564 = vcmask 1042432
        %v566 = vsel %vm564, %v467, 0
        %568 = vmatprep.subr.mxu0 0.0
        %569 = vmatpush1.msra.mxu0 %v566
        %570 = vmatprep.subr.mxu0 0.0
        %571 = vmatpush1.msra.mxu0 0.0
        %572 = vmatprep.subr.mxu0 0.0
        %573 = vmatpush1.msra.mxu0 0.0
        %574 = vmatprep.subr.mxu0 0.0
        %575 = vmatpush1.msra.mxu0 0.0
        %576 = vmatprep.subr.mxu0 0.0
        %577 = vmatpush1.msra.mxu0 0.0
        %578 = vmatprep.subr.mxu0 0.0
        %579 = vmatpush1.msra.mxu0 0.0
        %580 = vmatprep.subr.mxu0 0.0
        %581 = vmatpush1.msra.mxu0 0.0
        %582 = vmatprep.subr.mxu0 0.0
        %583 = vmatpush1.msra.mxu0 0.0
        %584 = vmatprep.subr.mxu0 0.0
        %585 = vmatpush1.msra.mxu0 0.0
        %586 = vmatprep.subr.mxu0 0.0
        %587 = vmatpush1.msra.mxu0 0.0
        %588 = vmatprep.subr.mxu0 0.0
        %589 = vmatpush1.msra.mxu0 0.0
        %590 = vmatprep.subr.mxu0 0.0
        %591 = vmatpush1.msra.mxu0 0.0
        %592 = vmatprep.subr.mxu0 0.0
        %593 = vmatpush1.msra.mxu0 0.0
        %594 = vmatprep.subr.mxu0 0.0
        %595 = vmatpush1.msra.mxu0 0.0
        %596 = vmatprep.subr.mxu0 0.0
        %597 = vmatpush1.msra.mxu0 0.0
        %598 = vmatprep.subr.mxu0 0.0
        %599 = vmatpush1.msra.mxu0 0.0
        %600 = vmatprep.subr.mxu0 0.0
        %601 = vmatpush1.msra.mxu0 0.0
        %602 = vmatprep.subr.mxu0 0.0
        %603 = vmatpush1.msra.mxu0 0.0
        %604 = vmatprep.subr.mxu0 0.0
        %605 = vmatpush1.msra.mxu0 0.0
        %606 = vmatprep.subr.mxu0 0.0
        %607 = vmatpush1.msra.mxu0 0.0
        %608 = vmatprep.subr.mxu0 0.0
        %609 = vmatpush1.msra.mxu0 0.0
        %610 = vmatprep.subr.mxu0 0.0
        %611 = vmatpush1.msra.mxu0 0.0
        %612 = vmatprep.subr.mxu0 0.0
        %613 = vmatpush1.msra.mxu0 0.0
        %614 = vmatprep.subr.mxu0 0.0
        %615 = vmatpush1.msra.mxu0 0.0
        %616 = vmatprep.subr.mxu0 0.0
        %617 = vmatpush1.msra.mxu0 0.0
        %618 = vmatprep.subr.mxu0 0.0
        %619 = vmatpush1.msra.mxu0 0.0
        %620 = vmatprep.subr.mxu0 0.0
        %621 = vmatpush1.msra.mxu0 0.0
        %622 = vmatprep.subr.mxu0 0.0
        %623 = vmatpush1.msra.mxu0 0.0
        %624 = vmatprep.subr.mxu0 0.0
        %625 = vmatpush1.msra.mxu0 0.0
        %626 = vmatprep.subr.mxu0 0.0
        %627 = vmatpush1.msra.mxu0 0.0
        %628 = vmatprep.subr.mxu0 0.0
        %629 = vmatpush1.msra.mxu0 0.0
        %630 = vmatprep.subr.mxu0 0.0
        %631 = vmatpush1.msra.mxu0 0.0
        %632 = vmatprep.mubr.f32.mxu0 0.0
        %633 = vmatmul.mubr.f32.gmra.mrb[0].mxu0 %v469
        %v634 = vpop.f32.mrb[0].mxu0
        %v635 = vadd.f32 0.0, %v634
        %v636 = vpop.f32.mrb[0].mxu0
        %637 = vmatprep.mubr.f32.mxu0 0.0
        %638 = vmatmul.mubr.f32.gmra.mrb[0].mxu0 %v472
        %v639 = vpop.f32.mrb[0].mxu0
        %v640 = vadd.f32 0.0, %v639
        %v641 = vpop.f32.mrb[0].mxu0
        %642 = vmatprep.mubr.f32.mxu0 0.0
        %643 = vmatmul.mubr.f32.gmra.mrb[0].mxu0 %v475
        %v644 = vpop.f32.mrb[0].mxu0
        %v645 = vadd.f32 0.0, %v644
        %v646 = vpop.f32.mrb[0].mxu0
        %647 = vmatprep.mubr.f32.mxu0 0.0
        %648 = vmatmul.mubr.f32.gmra.mrb[0].mxu0 %v478
        %v649 = vpop.f32.mrb[0].mxu0
        %v650 = vadd.f32 0.0, %v649
        %v651 = vpop.f32.mrb[0].mxu0
        %652 = vmatprep.mubr.f32.mxu0 0.0
        %653 = vmatmul.mubr.f32.gmra.mrb[0].mxu0 %v481
        %v654 = vpop.f32.mrb[0].mxu0
        %v655 = vadd.f32 0.0, %v654
        %v656 = vpop.f32.mrb[0].mxu0
        %657 = vmatprep.mubr.f32.mxu0 0.0
        %658 = vmatmul.mubr.f32.gmra.mrb[0].mxu0 %v484
        %v659 = vpop.f32.mrb[0].mxu0
        %v660 = vadd.f32 0.0, %v659
        %v661 = vpop.f32.mrb[0].mxu0
        %662 = vmatprep.mubr.f32.mxu0 0.0
        %663 = vmatmul.mubr.f32.gmra.mrb[0].mxu0 %v487
        %v664 = vpop.f32.mrb[0].mxu0
        %v665 = vadd.f32 0.0, %v664
        %v666 = vpop.f32.mrb[0].mxu0
        %667 = vmatprep.mubr.f32.mxu0 0.0
        %668 = vmatmul.mubr.f32.gmra.mrb[0].mxu0 %v490
        %v669 = vpop.f32.mrb[0].mxu0
        %v670 = vadd.f32 0.0, %v669
        %v671 = vpop.f32.mrb[0].mxu0
        %672 = vmatprep.mubr.f32.mxu0 0.0
        %673 = vmatmul.mubr.f32.gmra.mrb[0].mxu0 %v493
        %v674 = vpop.f32.mrb[0].mxu0
        %v675 = vadd.f32 0.0, %v674
        %v676 = vpop.f32.mrb[0].mxu0
        %677 = vmatprep.mubr.f32.mxu0 0.0
        %678 = vmatmul.mubr.f32.gmra.mrb[0].mxu0 %v496
        %v679 = vpop.f32.mrb[0].mxu0
        %v680 = vadd.f32 0.0, %v679
        %v681 = vpop.f32.mrb[0].mxu0
        %682 = vmatprep.mubr.f32.mxu0 0.0
        %683 = vmatmul.mubr.f32.gmra.mrb[0].mxu0 %v499
        %v684 = vpop.f32.mrb[0].mxu0
        %v685 = vadd.f32 0.0, %v684
        %v686 = vpop.f32.mrb[0].mxu0
        %687 = vmatprep.mubr.f32.mxu0 0.0
        %688 = vmatmul.mubr.f32.gmra.mrb[0].mxu0 %v502
        %v689 = vpop.f32.mrb[0].mxu0
        %v690 = vadd.f32 0.0, %v689
        %v691 = vpop.f32.mrb[0].mxu0
        %692 = vmatprep.mubr.f32.mxu0 0.0
        %693 = vmatmul.mubr.f32.gmra.mrb[0].mxu0 %v505
        %v694 = vpop.f32.mrb[0].mxu0
        %v695 = vadd.f32 0.0, %v694
        %v696 = vpop.f32.mrb[0].mxu0
        %697 = vmatprep.mubr.f32.mxu0 0.0
        %698 = vmatmul.mubr.f32.gmra.mrb[0].mxu0 %v508
        %v699 = vpop.f32.mrb[0].mxu0
        %v700 = vadd.f32 0.0, %v699
        %v701 = vpop.f32.mrb[0].mxu0
        %702 = vmatprep.mubr.f32.mxu0 0.0
        %703 = vmatmul.mubr.f32.gmra.mrb[0].mxu0 %v511
        %v704 = vpop.f32.mrb[0].mxu0
        %v705 = vadd.f32 0.0, %v704
        %v706 = vpop.f32.mrb[0].mxu0
        %707 = vmatprep.mubr.f32.mxu0 0.0
        %708 = vmatmul.mubr.f32.gmra.mrb[0].mxu0 %v514
        %v709 = vpop.f32.mrb[0].mxu0
        %v710 = vadd.f32 0.0, %v709
        %v711 = vpop.f32.mrb[0].mxu0
        %712 = vmatprep.mubr.f32.mxu0 0.0
        %713 = vmatmul.mubr.f32.gmra.mrb[0].mxu0 %v517
        %v714 = vpop.f32.mrb[0].mxu0
        %v715 = vadd.f32 0.0, %v714
        %v716 = vpop.f32.mrb[0].mxu0
        %717 = vmatprep.mubr.f32.mxu0 0.0
        %718 = vmatmul.mubr.f32.gmra.mrb[0].mxu0 %v520
        %v719 = vpop.f32.mrb[0].mxu0
        %v720 = vadd.f32 0.0, %v719
        %v721 = vpop.f32.mrb[0].mxu0
        %722 = vmatprep.mubr.f32.mxu0 0.0
        %723 = vmatmul.mubr.f32.gmra.mrb[0].mxu0 %v523
        %v724 = vpop.f32.mrb[0].mxu0
        %v725 = vadd.f32 0.0, %v724
        %v726 = vpop.f32.mrb[0].mxu0
        %727 = vmatprep.mubr.f32.mxu0 0.0
        %728 = vmatmul.mubr.f32.gmra.mrb[0].mxu0 %v526
        %v729 = vpop.f32.mrb[0].mxu0
        %v730 = vadd.f32 0.0, %v729
        %v731 = vpop.f32.mrb[0].mxu0
        %732 = vmatprep.mubr.f32.mxu0 0.0
        %733 = vmatmul.mubr.f32.gmra.mrb[0].mxu0 %v529
        %v734 = vpop.f32.mrb[0].mxu0
        %v735 = vadd.f32 0.0, %v734
        %v736 = vpop.f32.mrb[0].mxu0
        %737 = vmatprep.mubr.f32.mxu0 0.0
        %738 = vmatmul.mubr.f32.gmra.mrb[0].mxu0 %v532
        %v739 = vpop.f32.mrb[0].mxu0
        %v740 = vadd.f32 0.0, %v739
        %v741 = vpop.f32.mrb[0].mxu0
        %742 = vmatprep.mubr.f32.mxu0 0.0
        %743 = vmatmul.mubr.f32.gmra.mrb[0].mxu0 %v535
        %v744 = vpop.f32.mrb[0].mxu0
        %v745 = vadd.f32 0.0, %v744
        %v746 = vpop.f32.mrb[0].mxu0
        %747 = vmatprep.mubr.f32.mxu0 0.0
        %748 = vmatmul.mubr.f32.gmra.mrb[0].mxu0 %v538
        %v749 = vpop.f32.mrb[0].mxu0
        %v750 = vadd.f32 0.0, %v749
        %v751 = vpop.f32.mrb[0].mxu0
        %752 = vmatprep.mubr.f32.mxu0 0.0
        %753 = vmatmul.mubr.f32.gmra.mrb[0].mxu0 %v541
        %v754 = vpop.f32.mrb[0].mxu0
        %v755 = vadd.f32 0.0, %v754
        %v756 = vpop.f32.mrb[0].mxu0
        %757 = vmatprep.mubr.f32.mxu0 0.0
        %758 = vmatmul.mubr.f32.gmra.mrb[0].mxu0 %v544
        %v759 = vpop.f32.mrb[0].mxu0
        %v760 = vadd.f32 0.0, %v759
        %v761 = vpop.f32.mrb[0].mxu0
        %762 = vmatprep.mubr.f32.mxu0 0.0
        %763 = vmatmul.mubr.f32.gmra.mrb[0].mxu0 %v547
        %v764 = vpop.f32.mrb[0].mxu0
        %v765 = vadd.f32 0.0, %v764
        %v766 = vpop.f32.mrb[0].mxu0
        %767 = vmatprep.mubr.f32.mxu0 0.0
        %768 = vmatmul.mubr.f32.gmra.mrb[0].mxu0 %v550
        %v769 = vpop.f32.mrb[0].mxu0
        %v770 = vadd.f32 0.0, %v769
        %v771 = vpop.f32.mrb[0].mxu0
        %772 = vmatprep.mubr.f32.mxu0 0.0
        %773 = vmatmul.mubr.f32.gmra.mrb[0].mxu0 %v553
        %v774 = vpop.f32.mrb[0].mxu0
        %v775 = vadd.f32 0.0, %v774
        %v776 = vpop.f32.mrb[0].mxu0
        %777 = vmatprep.mubr.f32.mxu0 0.0
        %778 = vmatmul.mubr.f32.gmra.mrb[0].mxu0 %v556
        %v779 = vpop.f32.mrb[0].mxu0
        %v780 = vadd.f32 0.0, %v779
        %v781 = vpop.f32.mrb[0].mxu0
        %782 = vmatprep.mubr.f32.mxu0 0.0
        %783 = vmatmul.mubr.f32.gmra.mrb[0].mxu0 %v559
        %v784 = vpop.f32.mrb[0].mxu0
        %v785 = vadd.f32 0.0, %v784
        %v786 = vpop.f32.mrb[0].mxu0
        %787 = vmatprep.mubr.f32.mxu0 0.0
        %788 = vmatmul.mubr.f32.gmra.mrb[0].mxu0 %v562
        %v789 = vpop.f32.mrb[0].mxu0
        %v790 = vadd.f32 0.0, %v789
        %v791 = vpop.f32.mrb[0].mxu0
        %792 = vdwg.mxu0
        %v794 = vsel %vm278, %v401, 0
        %v797 = vsel %vm278, %v402, 0
        %v800 = vsel %vm278, %v403, 0
        %v803 = vsel %vm278, %v404, 0
        %v806 = vsel %vm278, %v405, 0
        %v809 = vsel %vm278, %v406, 0
        %v812 = vsel %vm278, %v407, 0
        %v815 = vsel %vm278, %v408, 0
        %v818 = vsel %vm278, %v409, 0
        %v821 = vsel %vm278, %v410, 0
        %v824 = vsel %vm278, %v411, 0
        %v827 = vsel %vm278, %v412, 0
        %v830 = vsel %vm278, %v413, 0
        %v833 = vsel %vm278, %v414, 0
        %v836 = vsel %vm278, %v415, 0
        %v839 = vsel %vm278, %v416, 0
        %v842 = vsel %vm278, %v417, 0
        %v845 = vsel %vm278, %v418, 0
        %v848 = vsel %vm278, %v419, 0
        %v851 = vsel %vm278, %v420, 0
        %v854 = vsel %vm278, %v421, 0
        %v857 = vsel %vm278, %v422, 0
        %v860 = vsel %vm278, %v423, 0
        %v863 = vsel %vm278, %v424, 0
        %v866 = vsel %vm278, %v425, 0
        %v869 = vsel %vm278, %v426, 0
        %v872 = vsel %vm278, %v427, 0
        %v875 = vsel %vm278, %v428, 0
        %v878 = vsel %vm278, %v429, 0
        %v881 = vsel %vm278, %v430, 0
        %v884 = vsel %vm278, %v431, 0
        %v887 = vsel %vm278, %v432, 0
        %v890 = vsel %vm564, %v433, 0
        %892 = vmatprep.subr.mxu0 0.0
        %893 = vmatpush1.msra.mxu0 %v890
        %894 = vmatprep.subr.mxu0 0.0
        %895 = vmatpush1.msra.mxu0 0.0
        %896 = vmatprep.subr.mxu0 0.0
        %897 = vmatpush1.msra.mxu0 0.0
        %898 = vmatprep.subr.mxu0 0.0
        %899 = vmatpush1.msra.mxu0 0.0
        %900 = vmatprep.subr.mxu0 0.0
        %901 = vmatpush1.msra.mxu0 0.0
        %902 = vmatprep.subr.mxu0 0.0
        %903 = vmatpush1.msra.mxu0 0.0
        %904 = vmatprep.subr.mxu0 0.0
        %905 = vmatpush1.msra.mxu0 0.0
        %906 = vmatprep.subr.mxu0 0.0
        %907 = vmatpush1.msra.mxu0 0.0
        %908 = vmatprep.subr.mxu0 0.0
        %909 = vmatpush1.msra.mxu0 0.0
        %910 = vmatprep.subr.mxu0 0.0
        %911 = vmatpush1.msra.mxu0 0.0
        %912 = vmatprep.subr.mxu0 0.0
        %913 = vmatpush1.msra.mxu0 0.0
        %914 = vmatprep.subr.mxu0 0.0
        %915 = vmatpush1.msra.mxu0 0.0
        %916 = vmatprep.subr.mxu0 0.0
        %917 = vmatpush1.msra.mxu0 0.0
        %918 = vmatprep.subr.mxu0 0.0
        %919 = vmatpush1.msra.mxu0 0.0
        %920 = vmatprep.subr.mxu0 0.0
        %921 = vmatpush1.msra.mxu0 0.0
        %922 = vmatprep.subr.mxu0 0.0
        %923 = vmatpush1.msra.mxu0 0.0
        %924 = vmatprep.subr.mxu0 0.0
        %925 = vmatpush1.msra.mxu0 0.0
        %926 = vmatprep.subr.mxu0 0.0
        %927 = vmatpush1.msra.mxu0 0.0
        %928 = vmatprep.subr.mxu0 0.0
        %929 = vmatpush1.msra.mxu0 0.0
        %930 = vmatprep.subr.mxu0 0.0
        %931 = vmatpush1.msra.mxu0 0.0
        %932 = vmatprep.subr.mxu0 0.0
        %933 = vmatpush1.msra.mxu0 0.0
        %934 = vmatprep.subr.mxu0 0.0
        %935 = vmatpush1.msra.mxu0 0.0
        %936 = vmatprep.subr.mxu0 0.0
        %937 = vmatpush1.msra.mxu0 0.0
        %938 = vmatprep.subr.mxu0 0.0
        %939 = vmatpush1.msra.mxu0 0.0
        %940 = vmatprep.subr.mxu0 0.0
        %941 = vmatpush1.msra.mxu0 0.0
        %942 = vmatprep.subr.mxu0 0.0
        %943 = vmatpush1.msra.mxu0 0.0
        %944 = vmatprep.subr.mxu0 0.0
        %945 = vmatpush1.msra.mxu0 0.0
        %946 = vmatprep.subr.mxu0 0.0
        %947 = vmatpush1.msra.mxu0 0.0
        %948 = vmatprep.subr.mxu0 0.0
        %949 = vmatpush1.msra.mxu0 0.0
        %950 = vmatprep.subr.mxu0 0.0
        %951 = vmatpush1.msra.mxu0 0.0
        %952 = vmatprep.subr.mxu0 0.0
        %953 = vmatpush1.msra.mxu0 0.0
        %954 = vmatprep.subr.mxu0 0.0
        %955 = vmatpush1.msra.mxu0 0.0
        %956 = vmatprep.mubr.f32.mxu0 0.0
        %957 = vmatmul.mubr.f32.gmra.mrb[0].mxu0 %v794
        %v958 = vpop.f32.mrb[0].mxu0
        %v959 = vadd.f32 %v635, %v958
        %v960 = vpop.f32.mrb[0].mxu0
        %961 = vmatprep.mubr.f32.mxu0 0.0
        %962 = vmatmul.mubr.f32.gmra.mrb[0].mxu0 %v797
        %v963 = vpop.f32.mrb[0].mxu0
        %v964 = vadd.f32 %v640, %v963
        %v965 = vpop.f32.mrb[0].mxu0
        %966 = vmatprep.mubr.f32.mxu0 0.0
        %967 = vmatmul.mubr.f32.gmra.mrb[0].mxu0 %v800
        %v968 = vpop.f32.mrb[0].mxu0
        %v969 = vadd.f32 %v645, %v968
        %v970 = vpop.f32.mrb[0].mxu0
        %971 = vmatprep.mubr.f32.mxu0 0.0
        %972 = vmatmul.mubr.f32.gmra.mrb[0].mxu0 %v803
        %v973 = vpop.f32.mrb[0].mxu0
        %v974 = vadd.f32 %v650, %v973
        %v975 = vpop.f32.mrb[0].mxu0
        %976 = vmatprep.mubr.f32.mxu0 0.0
        %977 = vmatmul.mubr.f32.gmra.mrb[0].mxu0 %v806
        %v978 = vpop.f32.mrb[0].mxu0
        %v979 = vadd.f32 %v655, %v978
        %v980 = vpop.f32.mrb[0].mxu0
        %981 = vmatprep.mubr.f32.mxu0 0.0
        %982 = vmatmul.mubr.f32.gmra.mrb[0].mxu0 %v809
        %v983 = vpop.f32.mrb[0].mxu0
        %v984 = vadd.f32 %v660, %v983
        %v985 = vpop.f32.mrb[0].mxu0
        %986 = vmatprep.mubr.f32.mxu0 0.0
        %987 = vmatmul.mubr.f32.gmra.mrb[0].mxu0 %v812
        %v988 = vpop.f32.mrb[0].mxu0
        %v989 = vadd.f32 %v665, %v988
        %v990 = vpop.f32.mrb[0].mxu0
        %991 = vmatprep.mubr.f32.mxu0 0.0
        %992 = vmatmul.mubr.f32.gmra.mrb[0].mxu0 %v815
        %v993 = vpop.f32.mrb[0].mxu0
        %v994 = vadd.f32 %v670, %v993
        %v995 = vpop.f32.mrb[0].mxu0
        %996 = vmatprep.mubr.f32.mxu0 0.0
        %997 = vmatmul.mubr.f32.gmra.mrb[0].mxu0 %v818
        %v998 = vpop.f32.mrb[0].mxu0
        %v999 = vadd.f32 %v675, %v998
        %v1000 = vpop.f32.mrb[0].mxu0
        %1001 = vmatprep.mubr.f32.mxu0 0.0
        %1002 = vmatmul.mubr.f32.gmra.mrb[0].mxu0 %v821
        %v1003 = vpop.f32.mrb[0].mxu0
        %v1004 = vadd.f32 %v680, %v1003
        %v1005 = vpop.f32.mrb[0].mxu0
        %1006 = vmatprep.mubr.f32.mxu0 0.0
        %1007 = vmatmul.mubr.f32.gmra.mrb[0].mxu0 %v824
        %v1008 = vpop.f32.mrb[0].mxu0
        %v1009 = vadd.f32 %v685, %v1008
        %v1010 = vpop.f32.mrb[0].mxu0
        %1011 = vmatprep.mubr.f32.mxu0 0.0
        %1012 = vmatmul.mubr.f32.gmra.mrb[0].mxu0 %v827
        %v1013 = vpop.f32.mrb[0].mxu0
        %v1014 = vadd.f32 %v690, %v1013
        %v1015 = vpop.f32.mrb[0].mxu0
        %1016 = vmatprep.mubr.f32.mxu0 0.0
        %1017 = vmatmul.mubr.f32.gmra.mrb[0].mxu0 %v830
        %v1018 = vpop.f32.mrb[0].mxu0
        %v1019 = vadd.f32 %v695, %v1018
        %v1020 = vpop.f32.mrb[0].mxu0
        %1021 = vmatprep.mubr.f32.mxu0 0.0
        %1022 = vmatmul.mubr.f32.gmra.mrb[0].mxu0 %v833
        %v1023 = vpop.f32.mrb[0].mxu0
        %v1024 = vadd.f32 %v700, %v1023
        %v1025 = vpop.f32.mrb[0].mxu0
        %1026 = vmatprep.mubr.f32.mxu0 0.0
        %1027 = vmatmul.mubr.f32.gmra.mrb[0].mxu0 %v836
        %v1028 = vpop.f32.mrb[0].mxu0
        %v1029 = vadd.f32 %v705, %v1028
        %v1030 = vpop.f32.mrb[0].mxu0
        %1031 = vmatprep.mubr.f32.mxu0 0.0
        %1032 = vmatmul.mubr.f32.gmra.mrb[0].mxu0 %v839
        %v1033 = vpop.f32.mrb[0].mxu0
        %v1034 = vadd.f32 %v710, %v1033
        %v1035 = vpop.f32.mrb[0].mxu0
        %1036 = vmatprep.mubr.f32.mxu0 0.0
        %1037 = vmatmul.mubr.f32.gmra.mrb[0].mxu0 %v842
        %v1038 = vpop.f32.mrb[0].mxu0
        %v1039 = vadd.f32 %v715, %v1038
        %v1040 = vpop.f32.mrb[0].mxu0
        %1041 = vmatprep.mubr.f32.mxu0 0.0
        %1042 = vmatmul.mubr.f32.gmra.mrb[0].mxu0 %v845
        %v1043 = vpop.f32.mrb[0].mxu0
        %v1044 = vadd.f32 %v720, %v1043
        %v1045 = vpop.f32.mrb[0].mxu0
        %1046 = vmatprep.mubr.f32.mxu0 0.0
        %1047 = vmatmul.mubr.f32.gmra.mrb[0].mxu0 %v848
        %v1048 = vpop.f32.mrb[0].mxu0
        %v1049 = vadd.f32 %v725, %v1048
        %v1050 = vpop.f32.mrb[0].mxu0
        %1051 = vmatprep.mubr.f32.mxu0 0.0
        %1052 = vmatmul.mubr.f32.gmra.mrb[0].mxu0 %v851
        %v1053 = vpop.f32.mrb[0].mxu0
        %v1054 = vadd.f32 %v730, %v1053
        %v1055 = vpop.f32.mrb[0].mxu0
        %1056 = vmatprep.mubr.f32.mxu0 0.0
        %1057 = vmatmul.mubr.f32.gmra.mrb[0].mxu0 %v854
        %v1058 = vpop.f32.mrb[0].mxu0
        %v1059 = vadd.f32 %v735, %v1058
        %v1060 = vpop.f32.mrb[0].mxu0
        %1061 = vmatprep.mubr.f32.mxu0 0.0
        %1062 = vmatmul.mubr.f32.gmra.mrb[0].mxu0 %v857
        %v1063 = vpop.f32.mrb[0].mxu0
        %v1064 = vadd.f32 %v740, %v1063
        %v1065 = vpop.f32.mrb[0].mxu0
        %1066 = vmatprep.mubr.f32.mxu0 0.0
        %1067 = vmatmul.mubr.f32.gmra.mrb[0].mxu0 %v860
        %v1068 = vpop.f32.mrb[0].mxu0
        %v1069 = vadd.f32 %v745, %v1068
        %v1070 = vpop.f32.mrb[0].mxu0
        %1071 = vmatprep.mubr.f32.mxu0 0.0
        %1072 = vmatmul.mubr.f32.gmra.mrb[0].mxu0 %v863
        %v1073 = vpop.f32.mrb[0].mxu0
        %v1074 = vadd.f32 %v750, %v1073
        %v1075 = vpop.f32.mrb[0].mxu0
        %1076 = vmatprep.mubr.f32.mxu0 0.0
        %1077 = vmatmul.mubr.f32.gmra.mrb[0].mxu0 %v866
        %v1078 = vpop.f32.mrb[0].mxu0
        %v1079 = vadd.f32 %v755, %v1078
        %v1080 = vpop.f32.mrb[0].mxu0
        %1081 = vmatprep.mubr.f32.mxu0 0.0
        %1082 = vmatmul.mubr.f32.gmra.mrb[0].mxu0 %v869
        %v1083 = vpop.f32.mrb[0].mxu0
        %v1084 = vadd.f32 %v760, %v1083
        %v1085 = vpop.f32.mrb[0].mxu0
        %1086 = vmatprep.mubr.f32.mxu0 0.0
        %1087 = vmatmul.mubr.f32.gmra.mrb[0].mxu0 %v872
        %v1088 = vpop.f32.mrb[0].mxu0
        %v1089 = vadd.f32 %v765, %v1088
        %v1090 = vpop.f32.mrb[0].mxu0
        %1091 = vmatprep.mubr.f32.mxu0 0.0
        %1092 = vmatmul.mubr.f32.gmra.mrb[0].mxu0 %v875
        %v1093 = vpop.f32.mrb[0].mxu0
        %v1094 = vadd.f32 %v770, %v1093
        %v1095 = vpop.f32.mrb[0].mxu0
        %1096 = vmatprep.mubr.f32.mxu0 0.0
        %1097 = vmatmul.mubr.f32.gmra.mrb[0].mxu0 %v878
        %v1098 = vpop.f32.mrb[0].mxu0
        %v1099 = vadd.f32 %v775, %v1098
        %v1100 = vpop.f32.mrb[0].mxu0
        %1101 = vmatprep.mubr.f32.mxu0 0.0
        %1102 = vmatmul.mubr.f32.gmra.mrb[0].mxu0 %v881
        %v1103 = vpop.f32.mrb[0].mxu0
        %v1104 = vadd.f32 %v780, %v1103
        %v1105 = vpop.f32.mrb[0].mxu0
        %1106 = vmatprep.mubr.f32.mxu0 0.0
        %1107 = vmatmul.mubr.f32.gmra.mrb[0].mxu0 %v884
        %v1108 = vpop.f32.mrb[0].mxu0
        %v1109 = vadd.f32 %v785, %v1108
        %v1110 = vpop.f32.mrb[0].mxu0
        %1111 = vmatprep.mubr.f32.mxu0 0.0
        %1112 = vmatmul.mubr.f32.gmra.mrb[0].mxu0 %v887
        %v1113 = vpop.f32.mrb[0].mxu0
        %v1114 = vadd.f32 %v790, %v1113
        %v1115 = vpop.f32.mrb[0].mxu0
        %1116 = vdwg.mxu0
        %v1117 = vld [vmem:[#allocation2 + $0x2] sm:$0xff]
        %v1118 = vld [vmem:[#allocation2 + $0xa] sm:$0xff]
        %v1119 = vld [vmem:[#allocation2 + $0x1a] sm:$0xff]
        %v1120 = vld [vmem:[#allocation2 + $0x22] sm:$0xff]
        %v1121 = vld [vmem:[#allocation2 + $0x32] sm:$0xff]
        %v1122 = vld [vmem:[#allocation2 + $0x3a] sm:$0xff]
        %v1123 = vld [vmem:[#allocation2 + $0x4a] sm:$0xff]
        %v1124 = vld [vmem:[#allocation2 + $0x52] sm:$0xff]
        %v1125 = vld [vmem:[#allocation2 + $0x62] sm:$0xff]
        %v1126 = vld [vmem:[#allocation2 + $0x6a] sm:$0xff]
        %v1127 = vld [vmem:[#allocation2 + $0x7a] sm:$0xff]
        %v1128 = vld [vmem:[#allocation2 + $0x82] sm:$0xff]
        %v1129 = vld [vmem:[#allocation2 + $0x92] sm:$0xff]
        %v1130 = vld [vmem:[#allocation2 + $0x9a] sm:$0xff]
        %v1131 = vld [vmem:[#allocation2 + $0xaa] sm:$0xff]
        %v1132 = vld [vmem:[#allocation2 + $0xb2] sm:$0xff]
        %v1133 = vld [vmem:[#allocation2 + $0xc2] sm:$0xff]
        %v1134 = vld [vmem:[#allocation2 + $0xca] sm:$0xff]
        %v1135 = vld [vmem:[#allocation2 + $0xda] sm:$0xff]
        %v1136 = vld [vmem:[#allocation2 + $0xe2] sm:$0xff]
        %v1137 = vld [vmem:[#allocation2 + $0xf2] sm:$0xff]
        %v1138 = vld [vmem:[#allocation2 + $0xfa] sm:$0xff]
        %v1139 = vld [vmem:[#allocation2 + $0x10a] sm:$0xff]
        %v1140 = vld [vmem:[#allocation2 + $0x112] sm:$0xff]
        %v1141 = vld [vmem:[#allocation2 + $0x122] sm:$0xff]
        %v1142 = vld [vmem:[#allocation2 + $0x12a] sm:$0xff]
        %v1143 = vld [vmem:[#allocation2 + $0x13a] sm:$0xff]
        %v1144 = vld [vmem:[#allocation2 + $0x142] sm:$0xff]
        %v1145 = vld [vmem:[#allocation2 + $0x152] sm:$0xff]
        %v1146 = vld [vmem:[#allocation2 + $0x15a] sm:$0xff]
        %v1147 = vld [vmem:[#allocation2 + $0x16a] sm:$0xff]
        %v1148 = vld [vmem:[#allocation2 + $0x172] sm:$0xff]
        %s1149 = scalar_lea.vmem %s1, 8
        %v1150 = vld [vmem:[%s1149] sm:$0x7]
        %v1152 = vsel %vm278, %v1117, 0
        %v1155 = vsel %vm278, %v1118, 0
        %v1158 = vsel %vm278, %v1119, 0
        %v1161 = vsel %vm278, %v1120, 0
        %v1164 = vsel %vm278, %v1121, 0
        %v1167 = vsel %vm278, %v1122, 0
        %v1170 = vsel %vm278, %v1123, 0
        %v1173 = vsel %vm278, %v1124, 0
        %v1176 = vsel %vm278, %v1125, 0
        %v1179 = vsel %vm278, %v1126, 0
        %v1182 = vsel %vm278, %v1127, 0
        %v1185 = vsel %vm278, %v1128, 0
        %v1188 = vsel %vm278, %v1129, 0
        %v1191 = vsel %vm278, %v1130, 0
        %v1194 = vsel %vm278, %v1131, 0
        %v1197 = vsel %vm278, %v1132, 0
        %v1200 = vsel %vm278, %v1133, 0
        %v1203 = vsel %vm278, %v1134, 0
        %v1206 = vsel %vm278, %v1135, 0
        %v1209 = vsel %vm278, %v1136, 0
        %v1212 = vsel %vm278, %v1137, 0
        %v1215 = vsel %vm278, %v1138, 0
        %v1218 = vsel %vm278, %v1139, 0
        %v1221 = vsel %vm278, %v1140, 0
        %v1224 = vsel %vm278, %v1141, 0
        %v1227 = vsel %vm278, %v1142, 0
        %v1230 = vsel %vm278, %v1143, 0
        %v1233 = vsel %vm278, %v1144, 0
        %v1236 = vsel %vm278, %v1145, 0
        %v1239 = vsel %vm278, %v1146, 0
        %v1242 = vsel %vm278, %v1147, 0
        %v1245 = vsel %vm278, %v1148, 0
        %v1248 = vsel %vm564, %v1150, 0
        %1250 = vmatprep.subr.mxu0 0.0
        %1251 = vmatpush1.msra.mxu0 %v1248
        %1252 = vmatprep.subr.mxu0 0.0
        %1253 = vmatpush1.msra.mxu0 0.0
        %1254 = vmatprep.subr.mxu0 0.0
        %1255 = vmatpush1.msra.mxu0 0.0
        %1256 = vmatprep.subr.mxu0 0.0
        %1257 = vmatpush1.msra.mxu0 0.0
        %1258 = vmatprep.subr.mxu0 0.0
        %1259 = vmatpush1.msra.mxu0 0.0
        %1260 = vmatprep.subr.mxu0 0.0
        %1261 = vmatpush1.msra.mxu0 0.0
        %1262 = vmatprep.subr.mxu0 0.0
        %1263 = vmatpush1.msra.mxu0 0.0
        %1264 = vmatprep.subr.mxu0 0.0
        %1265 = vmatpush1.msra.mxu0 0.0
        %1266 = vmatprep.subr.mxu0 0.0
        %1267 = vmatpush1.msra.mxu0 0.0
        %1268 = vmatprep.subr.mxu0 0.0
        %1269 = vmatpush1.msra.mxu0 0.0
        %1270 = vmatprep.subr.mxu0 0.0
        %1271 = vmatpush1.msra.mxu0 0.0
        %1272 = vmatprep.subr.mxu0 0.0
        %1273 = vmatpush1.msra.mxu0 0.0
        %1274 = vmatprep.subr.mxu0 0.0
        %1275 = vmatpush1.msra.mxu0 0.0
        %1276 = vmatprep.subr.mxu0 0.0
        %1277 = vmatpush1.msra.mxu0 0.0
        %1278 = vmatprep.subr.mxu0 0.0
        %1279 = vmatpush1.msra.mxu0 0.0
        %1280 = vmatprep.subr.mxu0 0.0
        %1281 = vmatpush1.msra.mxu0 0.0
        %1282 = vmatprep.subr.mxu0 0.0
        %1283 = vmatpush1.msra.mxu0 0.0
        %1284 = vmatprep.subr.mxu0 0.0
        %1285 = vmatpush1.msra.mxu0 0.0
        %1286 = vmatprep.subr.mxu0 0.0
        %1287 = vmatpush1.msra.mxu0 0.0
        %1288 = vmatprep.subr.mxu0 0.0
        %1289 = vmatpush1.msra.mxu0 0.0
        %1290 = vmatprep.subr.mxu0 0.0
        %1291 = vmatpush1.msra.mxu0 0.0
        %1292 = vmatprep.subr.mxu0 0.0
        %1293 = vmatpush1.msra.mxu0 0.0
        %1294 = vmatprep.subr.mxu0 0.0
        %1295 = vmatpush1.msra.mxu0 0.0
        %1296 = vmatprep.subr.mxu0 0.0
        %1297 = vmatpush1.msra.mxu0 0.0
        %1298 = vmatprep.subr.mxu0 0.0
        %1299 = vmatpush1.msra.mxu0 0.0
        %1300 = vmatprep.subr.mxu0 0.0
        %1301 = vmatpush1.msra.mxu0 0.0
        %1302 = vmatprep.subr.mxu0 0.0
        %1303 = vmatpush1.msra.mxu0 0.0
        %1304 = vmatprep.subr.mxu0 0.0
        %1305 = vmatpush1.msra.mxu0 0.0
        %1306 = vmatprep.subr.mxu0 0.0
        %1307 = vmatpush1.msra.mxu0 0.0
        %1308 = vmatprep.subr.mxu0 0.0
        %1309 = vmatpush1.msra.mxu0 0.0
        %1310 = vmatprep.subr.mxu0 0.0
        %1311 = vmatpush1.msra.mxu0 0.0
        %1312 = vmatprep.subr.mxu0 0.0
        %1313 = vmatpush1.msra.mxu0 0.0
        %1314 = vmatprep.mubr.f32.mxu0 0.0
        %1315 = vmatmul.mubr.f32.gmra.mrb[0].mxu0 %v1152
        %v1316 = vpop.f32.mrb[0].mxu0
        %v1317 = vadd.f32 0.0, %v1316
        %v1318 = vpop.f32.mrb[0].mxu0
        %1319 = vmatprep.mubr.f32.mxu0 0.0
        %1320 = vmatmul.mubr.f32.gmra.mrb[0].mxu0 %v1155
        %v1321 = vpop.f32.mrb[0].mxu0
        %v1322 = vadd.f32 0.0, %v1321
        %v1323 = vpop.f32.mrb[0].mxu0
        %1324 = vmatprep.mubr.f32.mxu0 0.0
        %1325 = vmatmul.mubr.f32.gmra.mrb[0].mxu0 %v1158
        %v1326 = vpop.f32.mrb[0].mxu0
        %v1327 = vadd.f32 0.0, %v1326
        %v1328 = vpop.f32.mrb[0].mxu0
        %1329 = vmatprep.mubr.f32.mxu0 0.0
        %1330 = vmatmul.mubr.f32.gmra.mrb[0].mxu0 %v1161
        %v1331 = vpop.f32.mrb[0].mxu0
        %v1332 = vadd.f32 0.0, %v1331
        %v1333 = vpop.f32.mrb[0].mxu0
        %1334 = vmatprep.mubr.f32.mxu0 0.0
        %1335 = vmatmul.mubr.f32.gmra.mrb[0].mxu0 %v1164
        %v1336 = vpop.f32.mrb[0].mxu0
        %v1337 = vadd.f32 0.0, %v1336
        %v1338 = vpop.f32.mrb[0].mxu0
        %1339 = vmatprep.mubr.f32.mxu0 0.0
        %1340 = vmatmul.mubr.f32.gmra.mrb[0].mxu0 %v1167
        %v1341 = vpop.f32.mrb[0].mxu0
        %v1342 = vadd.f32 0.0, %v1341
        %v1343 = vpop.f32.mrb[0].mxu0
        %1344 = vmatprep.mubr.f32.mxu0 0.0
        %1345 = vmatmul.mubr.f32.gmra.mrb[0].mxu0 %v1170
        %v1346 = vpop.f32.mrb[0].mxu0
        %v1347 = vadd.f32 0.0, %v1346
        %v1348 = vpop.f32.mrb[0].mxu0
        %1349 = vmatprep.mubr.f32.mxu0 0.0
        %1350 = vmatmul.mubr.f32.gmra.mrb[0].mxu0 %v1173
        %v1351 = vpop.f32.mrb[0].mxu0
        %v1352 = vadd.f32 0.0, %v1351
        %v1353 = vpop.f32.mrb[0].mxu0
        %1354 = vmatprep.mubr.f32.mxu0 0.0
        %1355 = vmatmul.mubr.f32.gmra.mrb[0].mxu0 %v1176
        %v1356 = vpop.f32.mrb[0].mxu0
        %v1357 = vadd.f32 0.0, %v1356
        %v1358 = vpop.f32.mrb[0].mxu0
        %1359 = vmatprep.mubr.f32.mxu0 0.0
        %1360 = vmatmul.mubr.f32.gmra.mrb[0].mxu0 %v1179
        %v1361 = vpop.f32.mrb[0].mxu0
        %v1362 = vadd.f32 0.0, %v1361
        %v1363 = vpop.f32.mrb[0].mxu0
        %1364 = vmatprep.mubr.f32.mxu0 0.0
        %1365 = vmatmul.mubr.f32.gmra.mrb[0].mxu0 %v1182
        %v1366 = vpop.f32.mrb[0].mxu0
        %v1367 = vadd.f32 0.0, %v1366
        %v1368 = vpop.f32.mrb[0].mxu0
        %1369 = vmatprep.mubr.f32.mxu0 0.0
        %1370 = vmatmul.mubr.f32.gmra.mrb[0].mxu0 %v1185
        %v1371 = vpop.f32.mrb[0].mxu0
        %v1372 = vadd.f32 0.0, %v1371
        %v1373 = vpop.f32.mrb[0].mxu0
        %1374 = vmatprep.mubr.f32.mxu0 0.0
        %1375 = vmatmul.mubr.f32.gmra.mrb[0].mxu0 %v1188
        %v1376 = vpop.f32.mrb[0].mxu0
        %v1377 = vadd.f32 0.0, %v1376
        %v1378 = vpop.f32.mrb[0].mxu0
        %1379 = vmatprep.mubr.f32.mxu0 0.0
        %1380 = vmatmul.mubr.f32.gmra.mrb[0].mxu0 %v1191
        %v1381 = vpop.f32.mrb[0].mxu0
        %v1382 = vadd.f32 0.0, %v1381
        %v1383 = vpop.f32.mrb[0].mxu0
        %1384 = vmatprep.mubr.f32.mxu0 0.0
        %1385 = vmatmul.mubr.f32.gmra.mrb[0].mxu0 %v1194
        %v1386 = vpop.f32.mrb[0].mxu0
        %v1387 = vadd.f32 0.0, %v1386
        %v1388 = vpop.f32.mrb[0].mxu0
        %1389 = vmatprep.mubr.f32.mxu0 0.0
        %1390 = vmatmul.mubr.f32.gmra.mrb[0].mxu0 %v1197
        %v1391 = vpop.f32.mrb[0].mxu0
        %v1392 = vadd.f32 0.0, %v1391
        %v1393 = vpop.f32.mrb[0].mxu0
        %1394 = vmatprep.mubr.f32.mxu0 0.0
        %1395 = vmatmul.mubr.f32.gmra.mrb[0].mxu0 %v1200
        %v1396 = vpop.f32.mrb[0].mxu0
        %v1397 = vadd.f32 0.0, %v1396
        %v1398 = vpop.f32.mrb[0].mxu0
        %1399 = vmatprep.mubr.f32.mxu0 0.0
        %1400 = vmatmul.mubr.f32.gmra.mrb[0].mxu0 %v1203
        %v1401 = vpop.f32.mrb[0].mxu0
        %v1402 = vadd.f32 0.0, %v1401
        %v1403 = vpop.f32.mrb[0].mxu0
        %1404 = vmatprep.mubr.f32.mxu0 0.0
        %1405 = vmatmul.mubr.f32.gmra.mrb[0].mxu0 %v1206
        %v1406 = vpop.f32.mrb[0].mxu0
        %v1407 = vadd.f32 0.0, %v1406
        %v1408 = vpop.f32.mrb[0].mxu0
        %1409 = vmatprep.mubr.f32.mxu0 0.0
        %1410 = vmatmul.mubr.f32.gmra.mrb[0].mxu0 %v1209
        %v1411 = vpop.f32.mrb[0].mxu0
        %v1412 = vadd.f32 0.0, %v1411
        %v1413 = vpop.f32.mrb[0].mxu0
        %1414 = vmatprep.mubr.f32.mxu0 0.0
        %1415 = vmatmul.mubr.f32.gmra.mrb[0].mxu0 %v1212
        %v1416 = vpop.f32.mrb[0].mxu0
        %v1417 = vadd.f32 0.0, %v1416
        %v1418 = vpop.f32.mrb[0].mxu0
        %1419 = vmatprep.mubr.f32.mxu0 0.0
        %1420 = vmatmul.mubr.f32.gmra.mrb[0].mxu0 %v1215
        %v1421 = vpop.f32.mrb[0].mxu0
        %v1422 = vadd.f32 0.0, %v1421
        %v1423 = vpop.f32.mrb[0].mxu0
        %1424 = vmatprep.mubr.f32.mxu0 0.0
        %1425 = vmatmul.mubr.f32.gmra.mrb[0].mxu0 %v1218
        %v1426 = vpop.f32.mrb[0].mxu0
        %v1427 = vadd.f32 0.0, %v1426
        %v1428 = vpop.f32.mrb[0].mxu0
        %1429 = vmatprep.mubr.f32.mxu0 0.0
        %1430 = vmatmul.mubr.f32.gmra.mrb[0].mxu0 %v1221
        %v1431 = vpop.f32.mrb[0].mxu0
        %v1432 = vadd.f32 0.0, %v1431
        %v1433 = vpop.f32.mrb[0].mxu0
        %1434 = vmatprep.mubr.f32.mxu0 0.0
        %1435 = vmatmul.mubr.f32.gmra.mrb[0].mxu0 %v1224
        %v1436 = vpop.f32.mrb[0].mxu0
        %v1437 = vadd.f32 0.0, %v1436
        %v1438 = vpop.f32.mrb[0].mxu0
        %1439 = vmatprep.mubr.f32.mxu0 0.0
        %1440 = vmatmul.mubr.f32.gmra.mrb[0].mxu0 %v1227
        %v1441 = vpop.f32.mrb[0].mxu0
        %v1442 = vadd.f32 0.0, %v1441
        %v1443 = vpop.f32.mrb[0].mxu0
        %1444 = vmatprep.mubr.f32.mxu0 0.0
        %1445 = vmatmul.mubr.f32.gmra.mrb[0].mxu0 %v1230
        %v1446 = vpop.f32.mrb[0].mxu0
        %v1447 = vadd.f32 0.0, %v1446
        %v1448 = vpop.f32.mrb[0].mxu0
        %1449 = vmatprep.mubr.f32.mxu0 0.0
        %1450 = vmatmul.mubr.f32.gmra.mrb[0].mxu0 %v1233
        %v1451 = vpop.f32.mrb[0].mxu0
        %v1452 = vadd.f32 0.0, %v1451
        %v1453 = vpop.f32.mrb[0].mxu0
        %1454 = vmatprep.mubr.f32.mxu0 0.0
        %1455 = vmatmul.mubr.f32.gmra.mrb[0].mxu0 %v1236
        %v1456 = vpop.f32.mrb[0].mxu0
        %v1457 = vadd.f32 0.0, %v1456
        %v1458 = vpop.f32.mrb[0].mxu0
        %1459 = vmatprep.mubr.f32.mxu0 0.0
        %1460 = vmatmul.mubr.f32.gmra.mrb[0].mxu0 %v1239
        %v1461 = vpop.f32.mrb[0].mxu0
        %v1462 = vadd.f32 0.0, %v1461
        %v1463 = vpop.f32.mrb[0].mxu0
        %1464 = vmatprep.mubr.f32.mxu0 0.0
        %1465 = vmatmul.mubr.f32.gmra.mrb[0].mxu0 %v1242
        %v1466 = vpop.f32.mrb[0].mxu0
        %v1467 = vadd.f32 0.0, %v1466
        %v1468 = vpop.f32.mrb[0].mxu0
        %1469 = vmatprep.mubr.f32.mxu0 0.0
        %1470 = vmatmul.mubr.f32.gmra.mrb[0].mxu0 %v1245
        %v1471 = vpop.f32.mrb[0].mxu0
        %v1472 = vadd.f32 0.0, %v1471
        %v1473 = vpop.f32.mrb[0].mxu0
        %1474 = vdwg.mxu0
        %v1475 = vadd.f32 %v959, %v1317
        %v1476 = vadd.f32 %v964, %v1322
        %v1477 = vadd.f32 %v969, %v1327
        %v1478 = vadd.f32 %v974, %v1332
        %v1479 = vadd.f32 %v979, %v1337
        %v1480 = vadd.f32 %v984, %v1342
        %v1481 = vadd.f32 %v989, %v1347
        %v1482 = vadd.f32 %v994, %v1352
        %v1483 = vadd.f32 %v999, %v1357
        %v1484 = vadd.f32 %v1004, %v1362
        %v1485 = vadd.f32 %v1009, %v1367
        %v1486 = vadd.f32 %v1014, %v1372
        %v1487 = vadd.f32 %v1019, %v1377
        %v1488 = vadd.f32 %v1024, %v1382
        %v1489 = vadd.f32 %v1029, %v1387
        %v1490 = vadd.f32 %v1034, %v1392
        %v1491 = vadd.f32 %v1039, %v1397
        %v1492 = vadd.f32 %v1044, %v1402
        %v1493 = vadd.f32 %v1049, %v1407
        %v1494 = vadd.f32 %v1054, %v1412
        %v1495 = vadd.f32 %v1059, %v1417
        %v1496 = vadd.f32 %v1064, %v1422
        %v1497 = vadd.f32 %v1069, %v1427
        %v1498 = vadd.f32 %v1074, %v1432
        %v1499 = vadd.f32 %v1079, %v1437
        %v1500 = vadd.f32 %v1084, %v1442
        %v1501 = vadd.f32 %v1089, %v1447
        %v1502 = vadd.f32 %v1094, %v1452
        %v1503 = vadd.f32 %v1099, %v1457
        %v1504 = vadd.f32 %v1104, %v1462
        %v1505 = vadd.f32 %v1109, %v1467
        %v1506 = vadd.f32 %v1114, %v1472
        %v1507 = vld [vmem:[%s366] sm:$0xff]
        %v1508 = vld [vmem:[%s366 + $0x8] sm:$0xff]
        %v1509 = vld [vmem:[%s366 + $0x18] sm:$0xff]
        %v1510 = vld [vmem:[%s366 + $0x20] sm:$0xff]
        %v1511 = vld [vmem:[%s366 + $0x30] sm:$0xff]
        %v1512 = vld [vmem:[%s366 + $0x38] sm:$0xff]
        %v1513 = vld [vmem:[%s366 + $0x48] sm:$0xff]
        %v1514 = vld [vmem:[%s366 + $0x50] sm:$0xff]
        %v1515 = vld [vmem:[%s366 + $0x60] sm:$0xff]
        %v1516 = vld [vmem:[%s366 + $0x68] sm:$0xff]
        %v1517 = vld [vmem:[%s366 + $0x78] sm:$0xff]
        %v1518 = vld [vmem:[%s366 + $0x80] sm:$0xff]
        %v1519 = vld [vmem:[%s366 + $0x90] sm:$0xff]
        %v1520 = vld [vmem:[%s366 + $0x98] sm:$0xff]
        %v1521 = vld [vmem:[%s366 + $0xa8] sm:$0xff]
        %v1522 = vld [vmem:[%s366 + $0xb0] sm:$0xff]
        %v1523 = vld [vmem:[%s366 + $0xc0] sm:$0xff]
        %v1524 = vld [vmem:[%s366 + $0xc8] sm:$0xff]
        %v1525 = vld [vmem:[%s366 + $0xd8] sm:$0xff]
        %v1526 = vld [vmem:[%s366 + $0xe0] sm:$0xff]
        %v1527 = vld [vmem:[%s366 + $0xf0] sm:$0xff]
        %v1528 = vld [vmem:[%s366 + $0xf8] sm:$0xff]
        %v1529 = vld [vmem:[%s366 + $0x108] sm:$0xff]
        %v1530 = vld [vmem:[%s366 + $0x110] sm:$0xff]
        %v1531 = vld [vmem:[%s366 + $0x120] sm:$0xff]
        %v1532 = vld [vmem:[%s366 + $0x128] sm:$0xff]
        %v1533 = vld [vmem:[%s366 + $0x138] sm:$0xff]
        %v1534 = vld [vmem:[%s366 + $0x140] sm:$0xff]
        %v1535 = vld [vmem:[%s366 + $0x150] sm:$0xff]
        %v1536 = vld [vmem:[%s366 + $0x158] sm:$0xff]
        %v1537 = vld [vmem:[%s366 + $0x168] sm:$0xff]
        %v1538 = vld [vmem:[%s366 + $0x170] sm:$0xff]
        %s1539 = scalar_lea.vmem %s1, 12
        %v1540 = vld [vmem:[%s1539] sm:$0x7]
        %v1542 = vsel %vm278, %v1507, 0
        %v1545 = vsel %vm278, %v1508, 0
        %v1548 = vsel %vm278, %v1509, 0
        %v1551 = vsel %vm278, %v1510, 0
        %v1554 = vsel %vm278, %v1511, 0
        %v1557 = vsel %vm278, %v1512, 0
        %v1560 = vsel %vm278, %v1513, 0
        %v1563 = vsel %vm278, %v1514, 0
        %v1566 = vsel %vm278, %v1515, 0
        %v1569 = vsel %vm278, %v1516, 0
        %v1572 = vsel %vm278, %v1517, 0
        %v1575 = vsel %vm278, %v1518, 0
        %v1578 = vsel %vm278, %v1519, 0
        %v1581 = vsel %vm278, %v1520, 0
        %v1584 = vsel %vm278, %v1521, 0
        %v1587 = vsel %vm278, %v1522, 0
        %v1590 = vsel %vm278, %v1523, 0
        %v1593 = vsel %vm278, %v1524, 0
        %v1596 = vsel %vm278, %v1525, 0
        %v1599 = vsel %vm278, %v1526, 0
        %v1602 = vsel %vm278, %v1527, 0
        %v1605 = vsel %vm278, %v1528, 0
        %v1608 = vsel %vm278, %v1529, 0
        %v1611 = vsel %vm278, %v1530, 0
        %v1614 = vsel %vm278, %v1531, 0
        %v1617 = vsel %vm278, %v1532, 0
        %v1620 = vsel %vm278, %v1533, 0
        %v1623 = vsel %vm278, %v1534, 0
        %v1626 = vsel %vm278, %v1535, 0
        %v1629 = vsel %vm278, %v1536, 0
        %v1632 = vsel %vm278, %v1537, 0
        %v1635 = vsel %vm278, %v1538, 0
        %v1638 = vsel %vm564, %v1540, 0
        %1640 = vmatprep.subr.mxu0 0.0
        %1641 = vmatpush1.msra.mxu0 %v1638
        %1642 = vmatprep.subr.mxu0 0.0
        %1643 = vmatpush1.msra.mxu0 0.0
        %1644 = vmatprep.subr.mxu0 0.0
        %1645 = vmatpush1.msra.mxu0 0.0
        %1646 = vmatprep.subr.mxu0 0.0
        %1647 = vmatpush1.msra.mxu0 0.0
        %1648 = vmatprep.subr.mxu0 0.0
        %1649 = vmatpush1.msra.mxu0 0.0
        %1650 = vmatprep.subr.mxu0 0.0
        %1651 = vmatpush1.msra.mxu0 0.0
        %1652 = vmatprep.subr.mxu0 0.0
        %1653 = vmatpush1.msra.mxu0 0.0
        %1654 = vmatprep.subr.mxu0 0.0
        %1655 = vmatpush1.msra.mxu0 0.0
        %1656 = vmatprep.subr.mxu0 0.0
        %1657 = vmatpush1.msra.mxu0 0.0
        %1658 = vmatprep.subr.mxu0 0.0
        %1659 = vmatpush1.msra.mxu0 0.0
        %1660 = vmatprep.subr.mxu0 0.0
        %1661 = vmatpush1.msra.mxu0 0.0
        %1662 = vmatprep.subr.mxu0 0.0
        %1663 = vmatpush1.msra.mxu0 0.0
        %1664 = vmatprep.subr.mxu0 0.0
        %1665 = vmatpush1.msra.mxu0 0.0
        %1666 = vmatprep.subr.mxu0 0.0
        %1667 = vmatpush1.msra.mxu0 0.0
        %1668 = vmatprep.subr.mxu0 0.0
        %1669 = vmatpush1.msra.mxu0 0.0
        %1670 = vmatprep.subr.mxu0 0.0
        %1671 = vmatpush1.msra.mxu0 0.0
        %1672 = vmatprep.subr.mxu0 0.0
        %1673 = vmatpush1.msra.mxu0 0.0
        %1674 = vmatprep.subr.mxu0 0.0
        %1675 = vmatpush1.msra.mxu0 0.0
        %1676 = vmatprep.subr.mxu0 0.0
        %1677 = vmatpush1.msra.mxu0 0.0
        %1678 = vmatprep.subr.mxu0 0.0
        %1679 = vmatpush1.msra.mxu0 0.0
        %1680 = vmatprep.subr.mxu0 0.0
        %1681 = vmatpush1.msra.mxu0 0.0
        %1682 = vmatprep.subr.mxu0 0.0
        %1683 = vmatpush1.msra.mxu0 0.0
        %1684 = vmatprep.subr.mxu0 0.0
        %1685 = vmatpush1.msra.mxu0 0.0
        %1686 = vmatprep.subr.mxu0 0.0
        %1687 = vmatpush1.msra.mxu0 0.0
        %1688 = vmatprep.subr.mxu0 0.0
        %1689 = vmatpush1.msra.mxu0 0.0
        %1690 = vmatprep.subr.mxu0 0.0
        %1691 = vmatpush1.msra.mxu0 0.0
        %1692 = vmatprep.subr.mxu0 0.0
        %1693 = vmatpush1.msra.mxu0 0.0
        %1694 = vmatprep.subr.mxu0 0.0
        %1695 = vmatpush1.msra.mxu0 0.0
        %1696 = vmatprep.subr.mxu0 0.0
        %1697 = vmatpush1.msra.mxu0 0.0
        %1698 = vmatprep.subr.mxu0 0.0
        %1699 = vmatpush1.msra.mxu0 0.0
        %1700 = vmatprep.subr.mxu0 0.0
        %1701 = vmatpush1.msra.mxu0 0.0
        %1702 = vmatprep.subr.mxu0 0.0
        %1703 = vmatpush1.msra.mxu0 0.0
        %1704 = vmatprep.mubr.f32.mxu0 0.0
        %1705 = vmatmul.mubr.f32.gmra.mrb[0].mxu0 %v1542
        %v1706 = vpop.f32.mrb[0].mxu0
        %v1707 = vadd.f32 0.0, %v1706
        %v1708 = vpop.f32.mrb[0].mxu0
        %1709 = vmatprep.mubr.f32.mxu0 0.0
        %1710 = vmatmul.mubr.f32.gmra.mrb[0].mxu0 %v1545
        %v1711 = vpop.f32.mrb[0].mxu0
        %v1712 = vadd.f32 0.0, %v1711
        %v1713 = vpop.f32.mrb[0].mxu0
        %1714 = vmatprep.mubr.f32.mxu0 0.0
        %1715 = vmatmul.mubr.f32.gmra.mrb[0].mxu0 %v1548
        %v1716 = vpop.f32.mrb[0].mxu0
        %v1717 = vadd.f32 0.0, %v1716
        %v1718 = vpop.f32.mrb[0].mxu0
        %1719 = vmatprep.mubr.f32.mxu0 0.0
        %1720 = vmatmul.mubr.f32.gmra.mrb[0].mxu0 %v1551
        %v1721 = vpop.f32.mrb[0].mxu0
        %v1722 = vadd.f32 0.0, %v1721
        %v1723 = vpop.f32.mrb[0].mxu0
        %1724 = vmatprep.mubr.f32.mxu0 0.0
        %1725 = vmatmul.mubr.f32.gmra.mrb[0].mxu0 %v1554
        %v1726 = vpop.f32.mrb[0].mxu0
        %v1727 = vadd.f32 0.0, %v1726
        %v1728 = vpop.f32.mrb[0].mxu0
        %1729 = vmatprep.mubr.f32.mxu0 0.0
        %1730 = vmatmul.mubr.f32.gmra.mrb[0].mxu0 %v1557
        %v1731 = vpop.f32.mrb[0].mxu0
        %v1732 = vadd.f32 0.0, %v1731
        %v1733 = vpop.f32.mrb[0].mxu0
        %1734 = vmatprep.mubr.f32.mxu0 0.0
        %1735 = vmatmul.mubr.f32.gmra.mrb[0].mxu0 %v1560
        %v1736 = vpop.f32.mrb[0].mxu0
        %v1737 = vadd.f32 0.0, %v1736
        %v1738 = vpop.f32.mrb[0].mxu0
        %1739 = vmatprep.mubr.f32.mxu0 0.0
        %1740 = vmatmul.mubr.f32.gmra.mrb[0].mxu0 %v1563
        %v1741 = vpop.f32.mrb[0].mxu0
        %v1742 = vadd.f32 0.0, %v1741
        %v1743 = vpop.f32.mrb[0].mxu0
        %1744 = vmatprep.mubr.f32.mxu0 0.0
        %1745 = vmatmul.mubr.f32.gmra.mrb[0].mxu0 %v1566
        %v1746 = vpop.f32.mrb[0].mxu0
        %v1747 = vadd.f32 0.0, %v1746
        %v1748 = vpop.f32.mrb[0].mxu0
        %1749 = vmatprep.mubr.f32.mxu0 0.0
        %1750 = vmatmul.mubr.f32.gmra.mrb[0].mxu0 %v1569
        %v1751 = vpop.f32.mrb[0].mxu0
        %v1752 = vadd.f32 0.0, %v1751
        %v1753 = vpop.f32.mrb[0].mxu0
        %1754 = vmatprep.mubr.f32.mxu0 0.0
        %1755 = vmatmul.mubr.f32.gmra.mrb[0].mxu0 %v1572
        %v1756 = vpop.f32.mrb[0].mxu0
        %v1757 = vadd.f32 0.0, %v1756
        %v1758 = vpop.f32.mrb[0].mxu0
        %1759 = vmatprep.mubr.f32.mxu0 0.0
        %1760 = vmatmul.mubr.f32.gmra.mrb[0].mxu0 %v1575
        %v1761 = vpop.f32.mrb[0].mxu0
        %v1762 = vadd.f32 0.0, %v1761
        %v1763 = vpop.f32.mrb[0].mxu0
        %1764 = vmatprep.mubr.f32.mxu0 0.0
        %1765 = vmatmul.mubr.f32.gmra.mrb[0].mxu0 %v1578
        %v1766 = vpop.f32.mrb[0].mxu0
        %v1767 = vadd.f32 0.0, %v1766
        %v1768 = vpop.f32.mrb[0].mxu0
        %1769 = vmatprep.mubr.f32.mxu0 0.0
        %1770 = vmatmul.mubr.f32.gmra.mrb[0].mxu0 %v1581
        %v1771 = vpop.f32.mrb[0].mxu0
        %v1772 = vadd.f32 0.0, %v1771
        %v1773 = vpop.f32.mrb[0].mxu0
        %1774 = vmatprep.mubr.f32.mxu0 0.0
        %1775 = vmatmul.mubr.f32.gmra.mrb[0].mxu0 %v1584
        %v1776 = vpop.f32.mrb[0].mxu0
        %v1777 = vadd.f32 0.0, %v1776
        %v1778 = vpop.f32.mrb[0].mxu0
        %1779 = vmatprep.mubr.f32.mxu0 0.0
        %1780 = vmatmul.mubr.f32.gmra.mrb[0].mxu0 %v1587
        %v1781 = vpop.f32.mrb[0].mxu0
        %v1782 = vadd.f32 0.0, %v1781
        %v1783 = vpop.f32.mrb[0].mxu0
        %1784 = vmatprep.mubr.f32.mxu0 0.0
        %1785 = vmatmul.mubr.f32.gmra.mrb[0].mxu0 %v1590
        %v1786 = vpop.f32.mrb[0].mxu0
        %v1787 = vadd.f32 0.0, %v1786
        %v1788 = vpop.f32.mrb[0].mxu0
        %1789 = vmatprep.mubr.f32.mxu0 0.0
        %1790 = vmatmul.mubr.f32.gmra.mrb[0].mxu0 %v1593
        %v1791 = vpop.f32.mrb[0].mxu0
        %v1792 = vadd.f32 0.0, %v1791
        %v1793 = vpop.f32.mrb[0].mxu0
        %1794 = vmatprep.mubr.f32.mxu0 0.0
        %1795 = vmatmul.mubr.f32.gmra.mrb[0].mxu0 %v1596
        %v1796 = vpop.f32.mrb[0].mxu0
        %v1797 = vadd.f32 0.0, %v1796
        %v1798 = vpop.f32.mrb[0].mxu0
        %1799 = vmatprep.mubr.f32.mxu0 0.0
        %1800 = vmatmul.mubr.f32.gmra.mrb[0].mxu0 %v1599
        %v1801 = vpop.f32.mrb[0].mxu0
        %v1802 = vadd.f32 0.0, %v1801
        %v1803 = vpop.f32.mrb[0].mxu0
        %1804 = vmatprep.mubr.f32.mxu0 0.0
        %1805 = vmatmul.mubr.f32.gmra.mrb[0].mxu0 %v1602
        %v1806 = vpop.f32.mrb[0].mxu0
        %v1807 = vadd.f32 0.0, %v1806
        %v1808 = vpop.f32.mrb[0].mxu0
        %1809 = vmatprep.mubr.f32.mxu0 0.0
        %1810 = vmatmul.mubr.f32.gmra.mrb[0].mxu0 %v1605
        %v1811 = vpop.f32.mrb[0].mxu0
        %v1812 = vadd.f32 0.0, %v1811
        %v1813 = vpop.f32.mrb[0].mxu0
        %1814 = vmatprep.mubr.f32.mxu0 0.0
        %1815 = vmatmul.mubr.f32.gmra.mrb[0].mxu0 %v1608
        %v1816 = vpop.f32.mrb[0].mxu0
        %v1817 = vadd.f32 0.0, %v1816
        %v1818 = vpop.f32.mrb[0].mxu0
        %1819 = vmatprep.mubr.f32.mxu0 0.0
        %1820 = vmatmul.mubr.f32.gmra.mrb[0].mxu0 %v1611
        %v1821 = vpop.f32.mrb[0].mxu0
        %v1822 = vadd.f32 0.0, %v1821
        %v1823 = vpop.f32.mrb[0].mxu0
        %1824 = vmatprep.mubr.f32.mxu0 0.0
        %1825 = vmatmul.mubr.f32.gmra.mrb[0].mxu0 %v1614
        %v1826 = vpop.f32.mrb[0].mxu0
        %v1827 = vadd.f32 0.0, %v1826
        %v1828 = vpop.f32.mrb[0].mxu0
        %1829 = vmatprep.mubr.f32.mxu0 0.0
        %1830 = vmatmul.mubr.f32.gmra.mrb[0].mxu0 %v1617
        %v1831 = vpop.f32.mrb[0].mxu0
        %v1832 = vadd.f32 0.0, %v1831
        %v1833 = vpop.f32.mrb[0].mxu0
        %1834 = vmatprep.mubr.f32.mxu0 0.0
        %1835 = vmatmul.mubr.f32.gmra.mrb[0].mxu0 %v1620
        %v1836 = vpop.f32.mrb[0].mxu0
        %v1837 = vadd.f32 0.0, %v1836
        %v1838 = vpop.f32.mrb[0].mxu0
        %1839 = vmatprep.mubr.f32.mxu0 0.0
        %1840 = vmatmul.mubr.f32.gmra.mrb[0].mxu0 %v1623
        %v1841 = vpop.f32.mrb[0].mxu0
        %v1842 = vadd.f32 0.0, %v1841
        %v1843 = vpop.f32.mrb[0].mxu0
        %1844 = vmatprep.mubr.f32.mxu0 0.0
        %1845 = vmatmul.mubr.f32.gmra.mrb[0].mxu0 %v1626
        %v1846 = vpop.f32.mrb[0].mxu0
        %v1847 = vadd.f32 0.0, %v1846
        %v1848 = vpop.f32.mrb[0].mxu0
        %1849 = vmatprep.mubr.f32.mxu0 0.0
        %1850 = vmatmul.mubr.f32.gmra.mrb[0].mxu0 %v1629
        %v1851 = vpop.f32.mrb[0].mxu0
        %v1852 = vadd.f32 0.0, %v1851
        %v1853 = vpop.f32.mrb[0].mxu0
        %1854 = vmatprep.mubr.f32.mxu0 0.0
        %1855 = vmatmul.mubr.f32.gmra.mrb[0].mxu0 %v1632
        %v1856 = vpop.f32.mrb[0].mxu0
        %v1857 = vadd.f32 0.0, %v1856
        %v1858 = vpop.f32.mrb[0].mxu0
        %1859 = vmatprep.mubr.f32.mxu0 0.0
        %1860 = vmatmul.mubr.f32.gmra.mrb[0].mxu0 %v1635
        %v1861 = vpop.f32.mrb[0].mxu0
        %v1862 = vadd.f32 0.0, %v1861
        %v1863 = vpop.f32.mrb[0].mxu0
        %1864 = vdwg.mxu0
        %v1865 = vadd.f32 %v1475, %v1707
        %v1866 = vadd.f32 %v1476, %v1712
        %v1867 = vadd.f32 %v1477, %v1717
        %v1868 = vadd.f32 %v1478, %v1722
        %v1869 = vadd.f32 %v1479, %v1727
        %v1870 = vadd.f32 %v1480, %v1732
        %v1871 = vadd.f32 %v1481, %v1737
        %v1872 = vadd.f32 %v1482, %v1742
        %v1873 = vadd.f32 %v1483, %v1747
        %v1874 = vadd.f32 %v1484, %v1752
        %v1875 = vadd.f32 %v1485, %v1757
        %v1876 = vadd.f32 %v1486, %v1762
        %v1877 = vadd.f32 %v1487, %v1767
        %v1878 = vadd.f32 %v1488, %v1772
        %v1879 = vadd.f32 %v1489, %v1777
        %v1880 = vadd.f32 %v1490, %v1782
        %v1881 = vadd.f32 %v1491, %v1787
        %v1882 = vadd.f32 %v1492, %v1792
        %v1883 = vadd.f32 %v1493, %v1797
        %v1884 = vadd.f32 %v1494, %v1802
        %v1885 = vadd.f32 %v1495, %v1807
        %v1886 = vadd.f32 %v1496, %v1812
        %v1887 = vadd.f32 %v1497, %v1817
        %v1888 = vadd.f32 %v1498, %v1822
        %v1889 = vadd.f32 %v1499, %v1827
        %v1890 = vadd.f32 %v1500, %v1832
        %v1891 = vadd.f32 %v1501, %v1837
        %v1892 = vadd.f32 %v1502, %v1842
        %v1893 = vadd.f32 %v1503, %v1847
        %v1894 = vadd.f32 %v1504, %v1852
        %v1895 = vadd.f32 %v1505, %v1857
        %v1896 = vadd.f32 %v1506, %v1862
        %v1897 = vld [vmem:[%s366 + $0x1] sm:$0xff]
        %v1898 = vld [vmem:[%s366 + $0x9] sm:$0xff]
        %v1899 = vld [vmem:[%s366 + $0x19] sm:$0xff]
        %v1900 = vld [vmem:[%s366 + $0x21] sm:$0xff]
        %v1901 = vld [vmem:[%s366 + $0x31] sm:$0xff]
        %v1902 = vld [vmem:[%s366 + $0x39] sm:$0xff]
        %v1903 = vld [vmem:[%s366 + $0x49] sm:$0xff]
        %v1904 = vld [vmem:[%s366 + $0x51] sm:$0xff]
        %v1905 = vld [vmem:[%s366 + $0x61] sm:$0xff]
        %v1906 = vld [vmem:[%s366 + $0x69] sm:$0xff]
        %v1907 = vld [vmem:[%s366 + $0x79] sm:$0xff]
        %v1908 = vld [vmem:[%s366 + $0x81] sm:$0xff]
        %v1909 = vld [vmem:[%s366 + $0x91] sm:$0xff]
        %v1910 = vld [vmem:[%s366 + $0x99] sm:$0xff]
        %v1911 = vld [vmem:[%s366 + $0xa9] sm:$0xff]
        %v1912 = vld [vmem:[%s366 + $0xb1] sm:$0xff]
        %v1913 = vld [vmem:[%s366 + $0xc1] sm:$0xff]
        %v1914 = vld [vmem:[%s366 + $0xc9] sm:$0xff]
        %v1915 = vld [vmem:[%s366 + $0xd9] sm:$0xff]
        %v1916 = vld [vmem:[%s366 + $0xe1] sm:$0xff]
        %v1917 = vld [vmem:[%s366 + $0xf1] sm:$0xff]
        %v1918 = vld [vmem:[%s366 + $0xf9] sm:$0xff]
        %v1919 = vld [vmem:[%s366 + $0x109] sm:$0xff]
        %v1920 = vld [vmem:[%s366 + $0x111] sm:$0xff]
        %v1921 = vld [vmem:[%s366 + $0x121] sm:$0xff]
        %v1922 = vld [vmem:[%s366 + $0x129] sm:$0xff]
        %v1923 = vld [vmem:[%s366 + $0x139] sm:$0xff]
        %v1924 = vld [vmem:[%s366 + $0x141] sm:$0xff]
        %v1925 = vld [vmem:[%s366 + $0x151] sm:$0xff]
        %v1926 = vld [vmem:[%s366 + $0x159] sm:$0xff]
        %v1927 = vld [vmem:[%s366 + $0x169] sm:$0xff]
        %v1928 = vld [vmem:[%s366 + $0x171] sm:$0xff]
        %s1929 = scalar_lea.vmem %s1, 16
        %v1930 = vld [vmem:[%s1929] sm:$0x7]
        %v1932 = vsel %vm278, %v1897, 0
        %v1935 = vsel %vm278, %v1898, 0
        %v1938 = vsel %vm278, %v1899, 0
        %v1941 = vsel %vm278, %v1900, 0
        %v1944 = vsel %vm278, %v1901, 0
        %v1947 = vsel %vm278, %v1902, 0
        %v1950 = vsel %vm278, %v1903, 0
        %v1953 = vsel %vm278, %v1904, 0
        %v1956 = vsel %vm278, %v1905, 0
        %v1959 = vsel %vm278, %v1906, 0
        %v1962 = vsel %vm278, %v1907, 0
        %v1965 = vsel %vm278, %v1908, 0
        %v1968 = vsel %vm278, %v1909, 0
        %v1971 = vsel %vm278, %v1910, 0
        %v1974 = vsel %vm278, %v1911, 0
        %v1977 = vsel %vm278, %v1912, 0
        %v1980 = vsel %vm278, %v1913, 0
        %v1983 = vsel %vm278, %v1914, 0
        %v1986 = vsel %vm278, %v1915, 0
        %v1989 = vsel %vm278, %v1916, 0
        %v1992 = vsel %vm278, %v1917, 0
        %v1995 = vsel %vm278, %v1918, 0
        %v1998 = vsel %vm278, %v1919, 0
        %v2001 = vsel %vm278, %v1920, 0
        %v2004 = vsel %vm278, %v1921, 0
        %v2007 = vsel %vm278, %v1922, 0
        %v2010 = vsel %vm278, %v1923, 0
        %v2013 = vsel %vm278, %v1924, 0
        %v2016 = vsel %vm278, %v1925, 0
        %v2019 = vsel %vm278, %v1926, 0
        %v2022 = vsel %vm278, %v1927, 0
        %v2025 = vsel %vm278, %v1928, 0
        %v2028 = vsel %vm564, %v1930, 0
        %2030 = vmatprep.subr.mxu0 0.0
        %2031 = vmatpush1.msra.mxu0 %v2028
        %2032 = vmatprep.subr.mxu0 0.0
        %2033 = vmatpush1.msra.mxu0 0.0
        %2034 = vmatprep.subr.mxu0 0.0
        %2035 = vmatpush1.msra.mxu0 0.0
        %2036 = vmatprep.subr.mxu0 0.0
        %2037 = vmatpush1.msra.mxu0 0.0
        %2038 = vmatprep.subr.mxu0 0.0
        %2039 = vmatpush1.msra.mxu0 0.0
        %2040 = vmatprep.subr.mxu0 0.0
        %2041 = vmatpush1.msra.mxu0 0.0
        %2042 = vmatprep.subr.mxu0 0.0
        %2043 = vmatpush1.msra.mxu0 0.0
        %2044 = vmatprep.subr.mxu0 0.0
        %2045 = vmatpush1.msra.mxu0 0.0
        %2046 = vmatprep.subr.mxu0 0.0
        %2047 = vmatpush1.msra.mxu0 0.0
        %2048 = vmatprep.subr.mxu0 0.0
        %2049 = vmatpush1.msra.mxu0 0.0
        %2050 = vmatprep.subr.mxu0 0.0
        %2051 = vmatpush1.msra.mxu0 0.0
        %2052 = vmatprep.subr.mxu0 0.0
        %2053 = vmatpush1.msra.mxu0 0.0
        %2054 = vmatprep.subr.mxu0 0.0
        %2055 = vmatpush1.msra.mxu0 0.0
        %2056 = vmatprep.subr.mxu0 0.0
        %2057 = vmatpush1.msra.mxu0 0.0
        %2058 = vmatprep.subr.mxu0 0.0
        %2059 = vmatpush1.msra.mxu0 0.0
        %2060 = vmatprep.subr.mxu0 0.0
        %2061 = vmatpush1.msra.mxu0 0.0
        %2062 = vmatprep.subr.mxu0 0.0
        %2063 = vmatpush1.msra.mxu0 0.0
        %2064 = vmatprep.subr.mxu0 0.0
        %2065 = vmatpush1.msra.mxu0 0.0
        %2066 = vmatprep.subr.mxu0 0.0
        %2067 = vmatpush1.msra.mxu0 0.0
        %2068 = vmatprep.subr.mxu0 0.0
        %2069 = vmatpush1.msra.mxu0 0.0
        %2070 = vmatprep.subr.mxu0 0.0
        %2071 = vmatpush1.msra.mxu0 0.0
        %2072 = vmatprep.subr.mxu0 0.0
        %2073 = vmatpush1.msra.mxu0 0.0
        %2074 = vmatprep.subr.mxu0 0.0
        %2075 = vmatpush1.msra.mxu0 0.0
        %2076 = vmatprep.subr.mxu0 0.0
        %2077 = vmatpush1.msra.mxu0 0.0
        %2078 = vmatprep.subr.mxu0 0.0
        %2079 = vmatpush1.msra.mxu0 0.0
        %2080 = vmatprep.subr.mxu0 0.0
        %2081 = vmatpush1.msra.mxu0 0.0
        %2082 = vmatprep.subr.mxu0 0.0
        %2083 = vmatpush1.msra.mxu0 0.0
        %2084 = vmatprep.subr.mxu0 0.0
        %2085 = vmatpush1.msra.mxu0 0.0
        %2086 = vmatprep.subr.mxu0 0.0
        %2087 = vmatpush1.msra.mxu0 0.0
        %2088 = vmatprep.subr.mxu0 0.0
        %2089 = vmatpush1.msra.mxu0 0.0
        %2090 = vmatprep.subr.mxu0 0.0
        %2091 = vmatpush1.msra.mxu0 0.0
        %2092 = vmatprep.subr.mxu0 0.0
        %2093 = vmatpush1.msra.mxu0 0.0
        %2094 = vmatprep.mubr.f32.mxu0 0.0
        %2095 = vmatmul.mubr.f32.gmra.mrb[0].mxu0 %v1932
        %v2096 = vpop.f32.mrb[0].mxu0
        %v2097 = vadd.f32 0.0, %v2096
        %v2098 = vpop.f32.mrb[0].mxu0
        %2099 = vmatprep.mubr.f32.mxu0 0.0
        %2100 = vmatmul.mubr.f32.gmra.mrb[0].mxu0 %v1935
        %v2101 = vpop.f32.mrb[0].mxu0
        %v2102 = vadd.f32 0.0, %v2101
        %v2103 = vpop.f32.mrb[0].mxu0
        %2104 = vmatprep.mubr.f32.mxu0 0.0
        %2105 = vmatmul.mubr.f32.gmra.mrb[0].mxu0 %v1938
        %v2106 = vpop.f32.mrb[0].mxu0
        %v2107 = vadd.f32 0.0, %v2106
        %v2108 = vpop.f32.mrb[0].mxu0
        %2109 = vmatprep.mubr.f32.mxu0 0.0
        %2110 = vmatmul.mubr.f32.gmra.mrb[0].mxu0 %v1941
        %v2111 = vpop.f32.mrb[0].mxu0
        %v2112 = vadd.f32 0.0, %v2111
        %v2113 = vpop.f32.mrb[0].mxu0
        %2114 = vmatprep.mubr.f32.mxu0 0.0
        %2115 = vmatmul.mubr.f32.gmra.mrb[0].mxu0 %v1944
        %v2116 = vpop.f32.mrb[0].mxu0
        %v2117 = vadd.f32 0.0, %v2116
        %v2118 = vpop.f32.mrb[0].mxu0
        %2119 = vmatprep.mubr.f32.mxu0 0.0
        %2120 = vmatmul.mubr.f32.gmra.mrb[0].mxu0 %v1947
        %v2121 = vpop.f32.mrb[0].mxu0
        %v2122 = vadd.f32 0.0, %v2121
        %v2123 = vpop.f32.mrb[0].mxu0
        %2124 = vmatprep.mubr.f32.mxu0 0.0
        %2125 = vmatmul.mubr.f32.gmra.mrb[0].mxu0 %v1950
        %v2126 = vpop.f32.mrb[0].mxu0
        %v2127 = vadd.f32 0.0, %v2126
        %v2128 = vpop.f32.mrb[0].mxu0
        %2129 = vmatprep.mubr.f32.mxu0 0.0
        %2130 = vmatmul.mubr.f32.gmra.mrb[0].mxu0 %v1953
        %v2131 = vpop.f32.mrb[0].mxu0
        %v2132 = vadd.f32 0.0, %v2131
        %v2133 = vpop.f32.mrb[0].mxu0
        %2134 = vmatprep.mubr.f32.mxu0 0.0
        %2135 = vmatmul.mubr.f32.gmra.mrb[0].mxu0 %v1956
        %v2136 = vpop.f32.mrb[0].mxu0
        %v2137 = vadd.f32 0.0, %v2136
        %v2138 = vpop.f32.mrb[0].mxu0
        %2139 = vmatprep.mubr.f32.mxu0 0.0
        %2140 = vmatmul.mubr.f32.gmra.mrb[0].mxu0 %v1959
        %v2141 = vpop.f32.mrb[0].mxu0
        %v2142 = vadd.f32 0.0, %v2141
        %v2143 = vpop.f32.mrb[0].mxu0
        %2144 = vmatprep.mubr.f32.mxu0 0.0
        %2145 = vmatmul.mubr.f32.gmra.mrb[0].mxu0 %v1962
        %v2146 = vpop.f32.mrb[0].mxu0
        %v2147 = vadd.f32 0.0, %v2146
        %v2148 = vpop.f32.mrb[0].mxu0
        %2149 = vmatprep.mubr.f32.mxu0 0.0
        %2150 = vmatmul.mubr.f32.gmra.mrb[0].mxu0 %v1965
        %v2151 = vpop.f32.mrb[0].mxu0
        %v2152 = vadd.f32 0.0, %v2151
        %v2153 = vpop.f32.mrb[0].mxu0
        %2154 = vmatprep.mubr.f32.mxu0 0.0
        %2155 = vmatmul.mubr.f32.gmra.mrb[0].mxu0 %v1968
        %v2156 = vpop.f32.mrb[0].mxu0
        %v2157 = vadd.f32 0.0, %v2156
        %v2158 = vpop.f32.mrb[0].mxu0
        %2159 = vmatprep.mubr.f32.mxu0 0.0
        %2160 = vmatmul.mubr.f32.gmra.mrb[0].mxu0 %v1971
        %v2161 = vpop.f32.mrb[0].mxu0
        %v2162 = vadd.f32 0.0, %v2161
        %v2163 = vpop.f32.mrb[0].mxu0
        %2164 = vmatprep.mubr.f32.mxu0 0.0
        %2165 = vmatmul.mubr.f32.gmra.mrb[0].mxu0 %v1974
        %v2166 = vpop.f32.mrb[0].mxu0
        %v2167 = vadd.f32 0.0, %v2166
        %v2168 = vpop.f32.mrb[0].mxu0
        %2169 = vmatprep.mubr.f32.mxu0 0.0
        %2170 = vmatmul.mubr.f32.gmra.mrb[0].mxu0 %v1977
        %v2171 = vpop.f32.mrb[0].mxu0
        %v2172 = vadd.f32 0.0, %v2171
        %v2173 = vpop.f32.mrb[0].mxu0
        %2174 = vmatprep.mubr.f32.mxu0 0.0
        %2175 = vmatmul.mubr.f32.gmra.mrb[0].mxu0 %v1980
        %v2176 = vpop.f32.mrb[0].mxu0
        %v2177 = vadd.f32 0.0, %v2176
        %v2178 = vpop.f32.mrb[0].mxu0
        %2179 = vmatprep.mubr.f32.mxu0 0.0
        %2180 = vmatmul.mubr.f32.gmra.mrb[0].mxu0 %v1983
        %v2181 = vpop.f32.mrb[0].mxu0
        %v2182 = vadd.f32 0.0, %v2181
        %v2183 = vpop.f32.mrb[0].mxu0
        %2184 = vmatprep.mubr.f32.mxu0 0.0
        %2185 = vmatmul.mubr.f32.gmra.mrb[0].mxu0 %v1986
        %v2186 = vpop.f32.mrb[0].mxu0
        %v2187 = vadd.f32 0.0, %v2186
        %v2188 = vpop.f32.mrb[0].mxu0
        %2189 = vmatprep.mubr.f32.mxu0 0.0
        %2190 = vmatmul.mubr.f32.gmra.mrb[0].mxu0 %v1989
        %v2191 = vpop.f32.mrb[0].mxu0
        %v2192 = vadd.f32 0.0, %v2191
        %v2193 = vpop.f32.mrb[0].mxu0
        %2194 = vmatprep.mubr.f32.mxu0 0.0
        %2195 = vmatmul.mubr.f32.gmra.mrb[0].mxu0 %v1992
        %v2196 = vpop.f32.mrb[0].mxu0
        %v2197 = vadd.f32 0.0, %v2196
        %v2198 = vpop.f32.mrb[0].mxu0
        %2199 = vmatprep.mubr.f32.mxu0 0.0
        %2200 = vmatmul.mubr.f32.gmra.mrb[0].mxu0 %v1995
        %v2201 = vpop.f32.mrb[0].mxu0
        %v2202 = vadd.f32 0.0, %v2201
        %v2203 = vpop.f32.mrb[0].mxu0
        %2204 = vmatprep.mubr.f32.mxu0 0.0
        %2205 = vmatmul.mubr.f32.gmra.mrb[0].mxu0 %v1998
        %v2206 = vpop.f32.mrb[0].mxu0
        %v2207 = vadd.f32 0.0, %v2206
        %v2208 = vpop.f32.mrb[0].mxu0
        %2209 = vmatprep.mubr.f32.mxu0 0.0
        %2210 = vmatmul.mubr.f32.gmra.mrb[0].mxu0 %v2001
        %v2211 = vpop.f32.mrb[0].mxu0
        %v2212 = vadd.f32 0.0, %v2211
        %v2213 = vpop.f32.mrb[0].mxu0
        %2214 = vmatprep.mubr.f32.mxu0 0.0
        %2215 = vmatmul.mubr.f32.gmra.mrb[0].mxu0 %v2004
        %v2216 = vpop.f32.mrb[0].mxu0
        %v2217 = vadd.f32 0.0, %v2216
        %v2218 = vpop.f32.mrb[0].mxu0
        %2219 = vmatprep.mubr.f32.mxu0 0.0
        %2220 = vmatmul.mubr.f32.gmra.mrb[0].mxu0 %v2007
        %v2221 = vpop.f32.mrb[0].mxu0
        %v2222 = vadd.f32 0.0, %v2221
        %v2223 = vpop.f32.mrb[0].mxu0
        %2224 = vmatprep.mubr.f32.mxu0 0.0
        %2225 = vmatmul.mubr.f32.gmra.mrb[0].mxu0 %v2010
        %v2226 = vpop.f32.mrb[0].mxu0
        %v2227 = vadd.f32 0.0, %v2226
        %v2228 = vpop.f32.mrb[0].mxu0
        %2229 = vmatprep.mubr.f32.mxu0 0.0
        %2230 = vmatmul.mubr.f32.gmra.mrb[0].mxu0 %v2013
        %v2231 = vpop.f32.mrb[0].mxu0
        %v2232 = vadd.f32 0.0, %v2231
        %v2233 = vpop.f32.mrb[0].mxu0
        %2234 = vmatprep.mubr.f32.mxu0 0.0
        %2235 = vmatmul.mubr.f32.gmra.mrb[0].mxu0 %v2016
        %v2236 = vpop.f32.mrb[0].mxu0
        %v2237 = vadd.f32 0.0, %v2236
        %v2238 = vpop.f32.mrb[0].mxu0
        %2239 = vmatprep.mubr.f32.mxu0 0.0
        %2240 = vmatmul.mubr.f32.gmra.mrb[0].mxu0 %v2019
        %v2241 = vpop.f32.mrb[0].mxu0
        %v2242 = vadd.f32 0.0, %v2241
        %v2243 = vpop.f32.mrb[0].mxu0
        %2244 = vmatprep.mubr.f32.mxu0 0.0
        %2245 = vmatmul.mubr.f32.gmra.mrb[0].mxu0 %v2022
        %v2246 = vpop.f32.mrb[0].mxu0
        %v2247 = vadd.f32 0.0, %v2246
        %v2248 = vpop.f32.mrb[0].mxu0
        %2249 = vmatprep.mubr.f32.mxu0 0.0
        %2250 = vmatmul.mubr.f32.gmra.mrb[0].mxu0 %v2025
        %v2251 = vpop.f32.mrb[0].mxu0
        %v2252 = vadd.f32 0.0, %v2251
        %v2253 = vpop.f32.mrb[0].mxu0
        %2254 = vdwg.mxu0
        %v2255 = vadd.f32 %v1865, %v2097
        %v2256 = vadd.f32 %v1866, %v2102
        %v2257 = vadd.f32 %v1867, %v2107
        %v2258 = vadd.f32 %v1868, %v2112
        %v2259 = vadd.f32 %v1869, %v2117
        %v2260 = vadd.f32 %v1870, %v2122
        %v2261 = vadd.f32 %v1871, %v2127
        %v2262 = vadd.f32 %v1872, %v2132
        %v2263 = vadd.f32 %v1873, %v2137
        %v2264 = vadd.f32 %v1874, %v2142
        %v2265 = vadd.f32 %v1875, %v2147
        %v2266 = vadd.f32 %v1876, %v2152
        %v2267 = vadd.f32 %v1877, %v2157
        %v2268 = vadd.f32 %v1878, %v2162
        %v2269 = vadd.f32 %v1879, %v2167
        %v2270 = vadd.f32 %v1880, %v2172
        %v2271 = vadd.f32 %v1881, %v2177
        %v2272 = vadd.f32 %v1882, %v2182
        %v2273 = vadd.f32 %v1883, %v2187
        %v2274 = vadd.f32 %v1884, %v2192
        %v2275 = vadd.f32 %v1885, %v2197
        %v2276 = vadd.f32 %v1886, %v2202
        %v2277 = vadd.f32 %v1887, %v2207
        %v2278 = vadd.f32 %v1888, %v2212
        %v2279 = vadd.f32 %v1889, %v2217
        %v2280 = vadd.f32 %v1890, %v2222
        %v2281 = vadd.f32 %v1891, %v2227
        %v2282 = vadd.f32 %v1892, %v2232
        %v2283 = vadd.f32 %v1893, %v2237
        %v2284 = vadd.f32 %v1894, %v2242
        %v2285 = vadd.f32 %v1895, %v2247
        %v2286 = vadd.f32 %v1896, %v2252
        %v2287 = vld [vmem:[%s366 + $0x2] sm:$0xff]
        %v2288 = vld [vmem:[%s366 + $0xa] sm:$0xff]
        %v2289 = vld [vmem:[%s366 + $0x1a] sm:$0xff]
        %v2290 = vld [vmem:[%s366 + $0x22] sm:$0xff]
        %v2291 = vld [vmem:[%s366 + $0x32] sm:$0xff]
        %v2292 = vld [vmem:[%s366 + $0x3a] sm:$0xff]
        %v2293 = vld [vmem:[%s366 + $0x4a] sm:$0xff]
        %v2294 = vld [vmem:[%s366 + $0x52] sm:$0xff]
        %v2295 = vld [vmem:[%s366 + $0x62] sm:$0xff]
        %v2296 = vld [vmem:[%s366 + $0x6a] sm:$0xff]
        %v2297 = vld [vmem:[%s366 + $0x7a] sm:$0xff]
        %v2298 = vld [vmem:[%s366 + $0x82] sm:$0xff]
        %v2299 = vld [vmem:[%s366 + $0x92] sm:$0xff]
        %v2300 = vld [vmem:[%s366 + $0x9a] sm:$0xff]
        %v2301 = vld [vmem:[%s366 + $0xaa] sm:$0xff]
        %v2302 = vld [vmem:[%s366 + $0xb2] sm:$0xff]
        %v2303 = vld [vmem:[%s366 + $0xc2] sm:$0xff]
        %v2304 = vld [vmem:[%s366 + $0xca] sm:$0xff]
        %v2305 = vld [vmem:[%s366 + $0xda] sm:$0xff]
        %v2306 = vld [vmem:[%s366 + $0xe2] sm:$0xff]
        %v2307 = vld [vmem:[%s366 + $0xf2] sm:$0xff]
        %v2308 = vld [vmem:[%s366 + $0xfa] sm:$0xff]
        %v2309 = vld [vmem:[%s366 + $0x10a] sm:$0xff]
        %v2310 = vld [vmem:[%s366 + $0x112] sm:$0xff]
        %v2311 = vld [vmem:[%s366 + $0x122] sm:$0xff]
        %v2312 = vld [vmem:[%s366 + $0x12a] sm:$0xff]
        %v2313 = vld [vmem:[%s366 + $0x13a] sm:$0xff]
        %v2314 = vld [vmem:[%s366 + $0x142] sm:$0xff]
        %v2315 = vld [vmem:[%s366 + $0x152] sm:$0xff]
        %v2316 = vld [vmem:[%s366 + $0x15a] sm:$0xff]
        %v2317 = vld [vmem:[%s366 + $0x16a] sm:$0xff]
        %v2318 = vld [vmem:[%s366 + $0x172] sm:$0xff]
        %s2319 = scalar_lea.vmem %s1, 20
        %v2320 = vld [vmem:[%s2319] sm:$0x7]
        %v2322 = vsel %vm278, %v2287, 0
        %v2325 = vsel %vm278, %v2288, 0
        %v2328 = vsel %vm278, %v2289, 0
        %v2331 = vsel %vm278, %v2290, 0
        %v2334 = vsel %vm278, %v2291, 0
        %v2337 = vsel %vm278, %v2292, 0
        %v2340 = vsel %vm278, %v2293, 0
        %v2343 = vsel %vm278, %v2294, 0
        %v2346 = vsel %vm278, %v2295, 0
        %v2349 = vsel %vm278, %v2296, 0
        %v2352 = vsel %vm278, %v2297, 0
        %v2355 = vsel %vm278, %v2298, 0
        %v2358 = vsel %vm278, %v2299, 0
        %v2361 = vsel %vm278, %v2300, 0
        %v2364 = vsel %vm278, %v2301, 0
        %v2367 = vsel %vm278, %v2302, 0
        %v2370 = vsel %vm278, %v2303, 0
        %v2373 = vsel %vm278, %v2304, 0
        %v2376 = vsel %vm278, %v2305, 0
        %v2379 = vsel %vm278, %v2306, 0
        %v2382 = vsel %vm278, %v2307, 0
        %v2385 = vsel %vm278, %v2308, 0
        %v2388 = vsel %vm278, %v2309, 0
        %v2391 = vsel %vm278, %v2310, 0
        %v2394 = vsel %vm278, %v2311, 0
        %v2397 = vsel %vm278, %v2312, 0
        %v2400 = vsel %vm278, %v2313, 0
        %v2403 = vsel %vm278, %v2314, 0
        %v2406 = vsel %vm278, %v2315, 0
        %v2409 = vsel %vm278, %v2316, 0
        %v2412 = vsel %vm278, %v2317, 0
        %v2415 = vsel %vm278, %v2318, 0
        %v2418 = vsel %vm564, %v2320, 0
        %2420 = vmatprep.subr.mxu0 0.0
        %2421 = vmatpush1.msra.mxu0 %v2418
        %2422 = vmatprep.subr.mxu0 0.0
        %2423 = vmatpush1.msra.mxu0 0.0
        %2424 = vmatprep.subr.mxu0 0.0
        %2425 = vmatpush1.msra.mxu0 0.0
        %2426 = vmatprep.subr.mxu0 0.0
        %2427 = vmatpush1.msra.mxu0 0.0
        %2428 = vmatprep.subr.mxu0 0.0
        %2429 = vmatpush1.msra.mxu0 0.0
        %2430 = vmatprep.subr.mxu0 0.0
        %2431 = vmatpush1.msra.mxu0 0.0
        %2432 = vmatprep.subr.mxu0 0.0
        %2433 = vmatpush1.msra.mxu0 0.0
        %2434 = vmatprep.subr.mxu0 0.0
        %2435 = vmatpush1.msra.mxu0 0.0
        %2436 = vmatprep.subr.mxu0 0.0
        %2437 = vmatpush1.msra.mxu0 0.0
        %2438 = vmatprep.subr.mxu0 0.0
        %2439 = vmatpush1.msra.mxu0 0.0
        %2440 = vmatprep.subr.mxu0 0.0
        %2441 = vmatpush1.msra.mxu0 0.0
        %2442 = vmatprep.subr.mxu0 0.0
        %2443 = vmatpush1.msra.mxu0 0.0
        %2444 = vmatprep.subr.mxu0 0.0
        %2445 = vmatpush1.msra.mxu0 0.0
        %2446 = vmatprep.subr.mxu0 0.0
        %2447 = vmatpush1.msra.mxu0 0.0
        %2448 = vmatprep.subr.mxu0 0.0
        %2449 = vmatpush1.msra.mxu0 0.0
        %2450 = vmatprep.subr.mxu0 0.0
        %2451 = vmatpush1.msra.mxu0 0.0
        %2452 = vmatprep.subr.mxu0 0.0
        %2453 = vmatpush1.msra.mxu0 0.0
        %2454 = vmatprep.subr.mxu0 0.0
        %2455 = vmatpush1.msra.mxu0 0.0
        %2456 = vmatprep.subr.mxu0 0.0
        %2457 = vmatpush1.msra.mxu0 0.0
        %2458 = vmatprep.subr.mxu0 0.0
        %2459 = vmatpush1.msra.mxu0 0.0
        %2460 = vmatprep.subr.mxu0 0.0
        %2461 = vmatpush1.msra.mxu0 0.0
        %2462 = vmatprep.subr.mxu0 0.0
        %2463 = vmatpush1.msra.mxu0 0.0
        %2464 = vmatprep.subr.mxu0 0.0
        %2465 = vmatpush1.msra.mxu0 0.0
        %2466 = vmatprep.subr.mxu0 0.0
        %2467 = vmatpush1.msra.mxu0 0.0
        %2468 = vmatprep.subr.mxu0 0.0
        %2469 = vmatpush1.msra.mxu0 0.0
        %2470 = vmatprep.subr.mxu0 0.0
        %2471 = vmatpush1.msra.mxu0 0.0
        %2472 = vmatprep.subr.mxu0 0.0
        %2473 = vmatpush1.msra.mxu0 0.0
        %2474 = vmatprep.subr.mxu0 0.0
        %2475 = vmatpush1.msra.mxu0 0.0
        %2476 = vmatprep.subr.mxu0 0.0
        %2477 = vmatpush1.msra.mxu0 0.0
        %2478 = vmatprep.subr.mxu0 0.0
        %2479 = vmatpush1.msra.mxu0 0.0
        %2480 = vmatprep.subr.mxu0 0.0
        %2481 = vmatpush1.msra.mxu0 0.0
        %2482 = vmatprep.subr.mxu0 0.0
        %2483 = vmatpush1.msra.mxu0 0.0
        %2484 = vmatprep.mubr.f32.mxu0 0.0
        %2485 = vmatmul.mubr.f32.gmra.mrb[0].mxu0 %v2322
        %v2486 = vpop.f32.mrb[0].mxu0
        %v2487 = vadd.f32 0.0, %v2486
        %v2488 = vpop.f32.mrb[0].mxu0
        %2489 = vmatprep.mubr.f32.mxu0 0.0
        %2490 = vmatmul.mubr.f32.gmra.mrb[0].mxu0 %v2325
        %v2491 = vpop.f32.mrb[0].mxu0
        %v2492 = vadd.f32 0.0, %v2491
        %v2493 = vpop.f32.mrb[0].mxu0
        %2494 = vmatprep.mubr.f32.mxu0 0.0
        %2495 = vmatmul.mubr.f32.gmra.mrb[0].mxu0 %v2328
        %v2496 = vpop.f32.mrb[0].mxu0
        %v2497 = vadd.f32 0.0, %v2496
        %v2498 = vpop.f32.mrb[0].mxu0
        %2499 = vmatprep.mubr.f32.mxu0 0.0
        %2500 = vmatmul.mubr.f32.gmra.mrb[0].mxu0 %v2331
        %v2501 = vpop.f32.mrb[0].mxu0
        %v2502 = vadd.f32 0.0, %v2501
        %v2503 = vpop.f32.mrb[0].mxu0
        %2504 = vmatprep.mubr.f32.mxu0 0.0
        %2505 = vmatmul.mubr.f32.gmra.mrb[0].mxu0 %v2334
        %v2506 = vpop.f32.mrb[0].mxu0
        %v2507 = vadd.f32 0.0, %v2506
        %v2508 = vpop.f32.mrb[0].mxu0
        %2509 = vmatprep.mubr.f32.mxu0 0.0
        %2510 = vmatmul.mubr.f32.gmra.mrb[0].mxu0 %v2337
        %v2511 = vpop.f32.mrb[0].mxu0
        %v2512 = vadd.f32 0.0, %v2511
        %v2513 = vpop.f32.mrb[0].mxu0
        %2514 = vmatprep.mubr.f32.mxu0 0.0
        %2515 = vmatmul.mubr.f32.gmra.mrb[0].mxu0 %v2340
        %v2516 = vpop.f32.mrb[0].mxu0
        %v2517 = vadd.f32 0.0, %v2516
        %v2518 = vpop.f32.mrb[0].mxu0
        %2519 = vmatprep.mubr.f32.mxu0 0.0
        %2520 = vmatmul.mubr.f32.gmra.mrb[0].mxu0 %v2343
        %v2521 = vpop.f32.mrb[0].mxu0
        %v2522 = vadd.f32 0.0, %v2521
        %v2523 = vpop.f32.mrb[0].mxu0
        %2524 = vmatprep.mubr.f32.mxu0 0.0
        %2525 = vmatmul.mubr.f32.gmra.mrb[0].mxu0 %v2346
        %v2526 = vpop.f32.mrb[0].mxu0
        %v2527 = vadd.f32 0.0, %v2526
        %v2528 = vpop.f32.mrb[0].mxu0
        %2529 = vmatprep.mubr.f32.mxu0 0.0
        %2530 = vmatmul.mubr.f32.gmra.mrb[0].mxu0 %v2349
        %v2531 = vpop.f32.mrb[0].mxu0
        %v2532 = vadd.f32 0.0, %v2531
        %v2533 = vpop.f32.mrb[0].mxu0
        %2534 = vmatprep.mubr.f32.mxu0 0.0
        %2535 = vmatmul.mubr.f32.gmra.mrb[0].mxu0 %v2352
        %v2536 = vpop.f32.mrb[0].mxu0
        %v2537 = vadd.f32 0.0, %v2536
        %v2538 = vpop.f32.mrb[0].mxu0
        %2539 = vmatprep.mubr.f32.mxu0 0.0
        %2540 = vmatmul.mubr.f32.gmra.mrb[0].mxu0 %v2355
        %v2541 = vpop.f32.mrb[0].mxu0
        %v2542 = vadd.f32 0.0, %v2541
        %v2543 = vpop.f32.mrb[0].mxu0
        %2544 = vmatprep.mubr.f32.mxu0 0.0
        %2545 = vmatmul.mubr.f32.gmra.mrb[0].mxu0 %v2358
        %v2546 = vpop.f32.mrb[0].mxu0
        %v2547 = vadd.f32 0.0, %v2546
        %v2548 = vpop.f32.mrb[0].mxu0
        %2549 = vmatprep.mubr.f32.mxu0 0.0
        %2550 = vmatmul.mubr.f32.gmra.mrb[0].mxu0 %v2361
        %v2551 = vpop.f32.mrb[0].mxu0
        %v2552 = vadd.f32 0.0, %v2551
        %v2553 = vpop.f32.mrb[0].mxu0
        %2554 = vmatprep.mubr.f32.mxu0 0.0
        %2555 = vmatmul.mubr.f32.gmra.mrb[0].mxu0 %v2364
        %v2556 = vpop.f32.mrb[0].mxu0
        %v2557 = vadd.f32 0.0, %v2556
        %v2558 = vpop.f32.mrb[0].mxu0
        %2559 = vmatprep.mubr.f32.mxu0 0.0
        %2560 = vmatmul.mubr.f32.gmra.mrb[0].mxu0 %v2367
        %v2561 = vpop.f32.mrb[0].mxu0
        %v2562 = vadd.f32 0.0, %v2561
        %v2563 = vpop.f32.mrb[0].mxu0
        %2564 = vmatprep.mubr.f32.mxu0 0.0
        %2565 = vmatmul.mubr.f32.gmra.mrb[0].mxu0 %v2370
        %v2566 = vpop.f32.mrb[0].mxu0
        %v2567 = vadd.f32 0.0, %v2566
        %v2568 = vpop.f32.mrb[0].mxu0
        %2569 = vmatprep.mubr.f32.mxu0 0.0
        %2570 = vmatmul.mubr.f32.gmra.mrb[0].mxu0 %v2373
        %v2571 = vpop.f32.mrb[0].mxu0
        %v2572 = vadd.f32 0.0, %v2571
        %v2573 = vpop.f32.mrb[0].mxu0
        %2574 = vmatprep.mubr.f32.mxu0 0.0
        %2575 = vmatmul.mubr.f32.gmra.mrb[0].mxu0 %v2376
        %v2576 = vpop.f32.mrb[0].mxu0
        %v2577 = vadd.f32 0.0, %v2576
        %v2578 = vpop.f32.mrb[0].mxu0
        %2579 = vmatprep.mubr.f32.mxu0 0.0
        %2580 = vmatmul.mubr.f32.gmra.mrb[0].mxu0 %v2379
        %v2581 = vpop.f32.mrb[0].mxu0
        %v2582 = vadd.f32 0.0, %v2581
        %v2583 = vpop.f32.mrb[0].mxu0
        %2584 = vmatprep.mubr.f32.mxu0 0.0
        %2585 = vmatmul.mubr.f32.gmra.mrb[0].mxu0 %v2382
        %v2586 = vpop.f32.mrb[0].mxu0
        %v2587 = vadd.f32 0.0, %v2586
        %v2588 = vpop.f32.mrb[0].mxu0
        %2589 = vmatprep.mubr.f32.mxu0 0.0
        %2590 = vmatmul.mubr.f32.gmra.mrb[0].mxu0 %v2385
        %v2591 = vpop.f32.mrb[0].mxu0
        %v2592 = vadd.f32 0.0, %v2591
        %v2593 = vpop.f32.mrb[0].mxu0
        %2594 = vmatprep.mubr.f32.mxu0 0.0
        %2595 = vmatmul.mubr.f32.gmra.mrb[0].mxu0 %v2388
        %v2596 = vpop.f32.mrb[0].mxu0
        %v2597 = vadd.f32 0.0, %v2596
        %v2598 = vpop.f32.mrb[0].mxu0
        %2599 = vmatprep.mubr.f32.mxu0 0.0
        %2600 = vmatmul.mubr.f32.gmra.mrb[0].mxu0 %v2391
        %v2601 = vpop.f32.mrb[0].mxu0
        %v2602 = vadd.f32 0.0, %v2601
        %v2603 = vpop.f32.mrb[0].mxu0
        %2604 = vmatprep.mubr.f32.mxu0 0.0
        %2605 = vmatmul.mubr.f32.gmra.mrb[0].mxu0 %v2394
        %v2606 = vpop.f32.mrb[0].mxu0
        %v2607 = vadd.f32 0.0, %v2606
        %v2608 = vpop.f32.mrb[0].mxu0
        %2609 = vmatprep.mubr.f32.mxu0 0.0
        %2610 = vmatmul.mubr.f32.gmra.mrb[0].mxu0 %v2397
        %v2611 = vpop.f32.mrb[0].mxu0
        %v2612 = vadd.f32 0.0, %v2611
        %v2613 = vpop.f32.mrb[0].mxu0
        %2614 = vmatprep.mubr.f32.mxu0 0.0
        %2615 = vmatmul.mubr.f32.gmra.mrb[0].mxu0 %v2400
        %v2616 = vpop.f32.mrb[0].mxu0
        %v2617 = vadd.f32 0.0, %v2616
        %v2618 = vpop.f32.mrb[0].mxu0
        %2619 = vmatprep.mubr.f32.mxu0 0.0
        %2620 = vmatmul.mubr.f32.gmra.mrb[0].mxu0 %v2403
        %v2621 = vpop.f32.mrb[0].mxu0
        %v2622 = vadd.f32 0.0, %v2621
        %v2623 = vpop.f32.mrb[0].mxu0
        %2624 = vmatprep.mubr.f32.mxu0 0.0
        %2625 = vmatmul.mubr.f32.gmra.mrb[0].mxu0 %v2406
        %v2626 = vpop.f32.mrb[0].mxu0
        %v2627 = vadd.f32 0.0, %v2626
        %v2628 = vpop.f32.mrb[0].mxu0
        %2629 = vmatprep.mubr.f32.mxu0 0.0
        %2630 = vmatmul.mubr.f32.gmra.mrb[0].mxu0 %v2409
        %v2631 = vpop.f32.mrb[0].mxu0
        %v2632 = vadd.f32 0.0, %v2631
        %v2633 = vpop.f32.mrb[0].mxu0
        %2634 = vmatprep.mubr.f32.mxu0 0.0
        %2635 = vmatmul.mubr.f32.gmra.mrb[0].mxu0 %v2412
        %v2636 = vpop.f32.mrb[0].mxu0
        %v2637 = vadd.f32 0.0, %v2636
        %v2638 = vpop.f32.mrb[0].mxu0
        %2639 = vmatprep.mubr.f32.mxu0 0.0
        %2640 = vmatmul.mubr.f32.gmra.mrb[0].mxu0 %v2415
        %v2641 = vpop.f32.mrb[0].mxu0
        %v2642 = vadd.f32 0.0, %v2641
        %v2643 = vpop.f32.mrb[0].mxu0
        %2644 = vdwg.mxu0
        %v2645 = vadd.f32 %v2255, %v2487
        %v2646 = vadd.f32 %v2256, %v2492
        %v2647 = vadd.f32 %v2257, %v2497
        %v2648 = vadd.f32 %v2258, %v2502
        %v2649 = vadd.f32 %v2259, %v2507
        %v2650 = vadd.f32 %v2260, %v2512
        %v2651 = vadd.f32 %v2261, %v2517
        %v2652 = vadd.f32 %v2262, %v2522
        %v2653 = vadd.f32 %v2263, %v2527
        %v2654 = vadd.f32 %v2264, %v2532
        %v2655 = vadd.f32 %v2265, %v2537
        %v2656 = vadd.f32 %v2266, %v2542
        %v2657 = vadd.f32 %v2267, %v2547
        %v2658 = vadd.f32 %v2268, %v2552
        %v2659 = vadd.f32 %v2269, %v2557
        %v2660 = vadd.f32 %v2270, %v2562
        %v2661 = vadd.f32 %v2271, %v2567
        %v2662 = vadd.f32 %v2272, %v2572
        %v2663 = vadd.f32 %v2273, %v2577
        %v2664 = vadd.f32 %v2274, %v2582
        %v2665 = vadd.f32 %v2275, %v2587
        %v2666 = vadd.f32 %v2276, %v2592
        %v2667 = vadd.f32 %v2277, %v2597
        %v2668 = vadd.f32 %v2278, %v2602
        %v2669 = vadd.f32 %v2279, %v2607
        %v2670 = vadd.f32 %v2280, %v2612
        %v2671 = vadd.f32 %v2281, %v2617
        %v2672 = vadd.f32 %v2282, %v2622
        %v2673 = vadd.f32 %v2283, %v2627
        %v2674 = vadd.f32 %v2284, %v2632
        %v2675 = vadd.f32 %v2285, %v2637
        %v2676 = vadd.f32 %v2286, %v2642
        %s2677 = scalar_lea.vmem [#allocation2], 48
        %v2678 = vld [vmem:[%s2677] sm:$0xff]
        %v2679 = vld [vmem:[%s2677 + $0x8] sm:$0xff]
        %v2680 = vld [vmem:[%s2677 + $0x18] sm:$0xff]
        %v2681 = vld [vmem:[%s2677 + $0x20] sm:$0xff]
        %v2682 = vld [vmem:[%s2677 + $0x30] sm:$0xff]
        %v2683 = vld [vmem:[%s2677 + $0x38] sm:$0xff]
        %v2684 = vld [vmem:[%s2677 + $0x48] sm:$0xff]
        %v2685 = vld [vmem:[%s2677 + $0x50] sm:$0xff]
        %v2686 = vld [vmem:[%s2677 + $0x60] sm:$0xff]
        %v2687 = vld [vmem:[%s2677 + $0x68] sm:$0xff]
        %v2688 = vld [vmem:[%s2677 + $0x78] sm:$0xff]
        %v2689 = vld [vmem:[%s2677 + $0x80] sm:$0xff]
        %v2690 = vld [vmem:[%s2677 + $0x90] sm:$0xff]
        %v2691 = vld [vmem:[%s2677 + $0x98] sm:$0xff]
        %v2692 = vld [vmem:[%s2677 + $0xa8] sm:$0xff]
        %v2693 = vld [vmem:[%s2677 + $0xb0] sm:$0xff]
        %v2694 = vld [vmem:[%s2677 + $0xc0] sm:$0xff]
        %v2695 = vld [vmem:[%s2677 + $0xc8] sm:$0xff]
        %v2696 = vld [vmem:[%s2677 + $0xd8] sm:$0xff]
        %v2697 = vld [vmem:[%s2677 + $0xe0] sm:$0xff]
        %v2698 = vld [vmem:[%s2677 + $0xf0] sm:$0xff]
        %v2699 = vld [vmem:[%s2677 + $0xf8] sm:$0xff]
        %v2700 = vld [vmem:[%s2677 + $0x108] sm:$0xff]
        %v2701 = vld [vmem:[%s2677 + $0x110] sm:$0xff]
        %v2702 = vld [vmem:[%s2677 + $0x120] sm:$0xff]
        %v2703 = vld [vmem:[%s2677 + $0x128] sm:$0xff]
        %v2704 = vld [vmem:[%s2677 + $0x138] sm:$0xff]
        %v2705 = vld [vmem:[%s2677 + $0x140] sm:$0xff]
        %v2706 = vld [vmem:[%s2677 + $0x150] sm:$0xff]
        %v2707 = vld [vmem:[%s2677 + $0x158] sm:$0xff]
        %v2708 = vld [vmem:[%s2677 + $0x168] sm:$0xff]
        %v2709 = vld [vmem:[%s2677 + $0x170] sm:$0xff]
        %s2710 = scalar_lea.vmem %s1, 24
        %v2711 = vld [vmem:[%s2710] sm:$0x7]
        %v2713 = vsel %vm278, %v2678, 0
        %v2716 = vsel %vm278, %v2679, 0
        %v2719 = vsel %vm278, %v2680, 0
        %v2722 = vsel %vm278, %v2681, 0
        %v2725 = vsel %vm278, %v2682, 0
        %v2728 = vsel %vm278, %v2683, 0
        %v2731 = vsel %vm278, %v2684, 0
        %v2734 = vsel %vm278, %v2685, 0
        %v2737 = vsel %vm278, %v2686, 0
        %v2740 = vsel %vm278, %v2687, 0
        %v2743 = vsel %vm278, %v2688, 0
        %v2746 = vsel %vm278, %v2689, 0
        %v2749 = vsel %vm278, %v2690, 0
        %v2752 = vsel %vm278, %v2691, 0
        %v2755 = vsel %vm278, %v2692, 0
        %v2758 = vsel %vm278, %v2693, 0
        %v2761 = vsel %vm278, %v2694, 0
        %v2764 = vsel %vm278, %v2695, 0
        %v2767 = vsel %vm278, %v2696, 0
        %v2770 = vsel %vm278, %v2697, 0
        %v2773 = vsel %vm278, %v2698, 0
        %v2776 = vsel %vm278, %v2699, 0
        %v2779 = vsel %vm278, %v2700, 0
        %v2782 = vsel %vm278, %v2701, 0
        %v2785 = vsel %vm278, %v2702, 0
        %v2788 = vsel %vm278, %v2703, 0
        %v2791 = vsel %vm278, %v2704, 0
        %v2794 = vsel %vm278, %v2705, 0
        %v2797 = vsel %vm278, %v2706, 0
        %v2800 = vsel %vm278, %v2707, 0
        %v2803 = vsel %vm278, %v2708, 0
        %v2806 = vsel %vm278, %v2709, 0
        %v2809 = vsel %vm564, %v2711, 0
        %2811 = vmatprep.subr.mxu0 0.0
        %2812 = vmatpush1.msra.mxu0 %v2809
        %2813 = vmatprep.subr.mxu0 0.0
        %2814 = vmatpush1.msra.mxu0 0.0
        %2815 = vmatprep.subr.mxu0 0.0
        %2816 = vmatpush1.msra.mxu0 0.0
        %2817 = vmatprep.subr.mxu0 0.0
        %2818 = vmatpush1.msra.mxu0 0.0
        %2819 = vmatprep.subr.mxu0 0.0
        %2820 = vmatpush1.msra.mxu0 0.0
        %2821 = vmatprep.subr.mxu0 0.0
        %2822 = vmatpush1.msra.mxu0 0.0
        %2823 = vmatprep.subr.mxu0 0.0
        %2824 = vmatpush1.msra.mxu0 0.0
        %2825 = vmatprep.subr.mxu0 0.0
        %2826 = vmatpush1.msra.mxu0 0.0
        %2827 = vmatprep.subr.mxu0 0.0
        %2828 = vmatpush1.msra.mxu0 0.0
        %2829 = vmatprep.subr.mxu0 0.0
        %2830 = vmatpush1.msra.mxu0 0.0
        %2831 = vmatprep.subr.mxu0 0.0
        %2832 = vmatpush1.msra.mxu0 0.0
        %2833 = vmatprep.subr.mxu0 0.0
        %2834 = vmatpush1.msra.mxu0 0.0
        %2835 = vmatprep.subr.mxu0 0.0
        %2836 = vmatpush1.msra.mxu0 0.0
        %2837 = vmatprep.subr.mxu0 0.0
        %2838 = vmatpush1.msra.mxu0 0.0
        %2839 = vmatprep.subr.mxu0 0.0
        %2840 = vmatpush1.msra.mxu0 0.0
        %2841 = vmatprep.subr.mxu0 0.0
        %2842 = vmatpush1.msra.mxu0 0.0
        %2843 = vmatprep.subr.mxu0 0.0
        %2844 = vmatpush1.msra.mxu0 0.0
        %2845 = vmatprep.subr.mxu0 0.0
        %2846 = vmatpush1.msra.mxu0 0.0
        %2847 = vmatprep.subr.mxu0 0.0
        %2848 = vmatpush1.msra.mxu0 0.0
        %2849 = vmatprep.subr.mxu0 0.0
        %2850 = vmatpush1.msra.mxu0 0.0
        %2851 = vmatprep.subr.mxu0 0.0
        %2852 = vmatpush1.msra.mxu0 0.0
        %2853 = vmatprep.subr.mxu0 0.0
        %2854 = vmatpush1.msra.mxu0 0.0
        %2855 = vmatprep.subr.mxu0 0.0
        %2856 = vmatpush1.msra.mxu0 0.0
        %2857 = vmatprep.subr.mxu0 0.0
        %2858 = vmatpush1.msra.mxu0 0.0
        %2859 = vmatprep.subr.mxu0 0.0
        %2860 = vmatpush1.msra.mxu0 0.0
        %2861 = vmatprep.subr.mxu0 0.0
        %2862 = vmatpush1.msra.mxu0 0.0
        %2863 = vmatprep.subr.mxu0 0.0
        %2864 = vmatpush1.msra.mxu0 0.0
        %2865 = vmatprep.subr.mxu0 0.0
        %2866 = vmatpush1.msra.mxu0 0.0
        %2867 = vmatprep.subr.mxu0 0.0
        %2868 = vmatpush1.msra.mxu0 0.0
        %2869 = vmatprep.subr.mxu0 0.0
        %2870 = vmatpush1.msra.mxu0 0.0
        %2871 = vmatprep.subr.mxu0 0.0
        %2872 = vmatpush1.msra.mxu0 0.0
        %2873 = vmatprep.subr.mxu0 0.0
        %2874 = vmatpush1.msra.mxu0 0.0
        %2875 = vmatprep.mubr.f32.mxu0 0.0
        %2876 = vmatmul.mubr.f32.gmra.mrb[0].mxu0 %v2713
        %v2877 = vpop.f32.mrb[0].mxu0
        %v2878 = vadd.f32 0.0, %v2877
        %v2879 = vpop.f32.mrb[0].mxu0
        %2880 = vmatprep.mubr.f32.mxu0 0.0
        %2881 = vmatmul.mubr.f32.gmra.mrb[0].mxu0 %v2716
        %v2882 = vpop.f32.mrb[0].mxu0
        %v2883 = vadd.f32 0.0, %v2882
        %v2884 = vpop.f32.mrb[0].mxu0
        %2885 = vmatprep.mubr.f32.mxu0 0.0
        %2886 = vmatmul.mubr.f32.gmra.mrb[0].mxu0 %v2719
        %v2887 = vpop.f32.mrb[0].mxu0
        %v2888 = vadd.f32 0.0, %v2887
        %v2889 = vpop.f32.mrb[0].mxu0
        %2890 = vmatprep.mubr.f32.mxu0 0.0
        %2891 = vmatmul.mubr.f32.gmra.mrb[0].mxu0 %v2722
        %v2892 = vpop.f32.mrb[0].mxu0
        %v2893 = vadd.f32 0.0, %v2892
        %v2894 = vpop.f32.mrb[0].mxu0
        %2895 = vmatprep.mubr.f32.mxu0 0.0
        %2896 = vmatmul.mubr.f32.gmra.mrb[0].mxu0 %v2725
        %v2897 = vpop.f32.mrb[0].mxu0
        %v2898 = vadd.f32 0.0, %v2897
        %v2899 = vpop.f32.mrb[0].mxu0
        %2900 = vmatprep.mubr.f32.mxu0 0.0
        %2901 = vmatmul.mubr.f32.gmra.mrb[0].mxu0 %v2728
        %v2902 = vpop.f32.mrb[0].mxu0
        %v2903 = vadd.f32 0.0, %v2902
        %v2904 = vpop.f32.mrb[0].mxu0
        %2905 = vmatprep.mubr.f32.mxu0 0.0
        %2906 = vmatmul.mubr.f32.gmra.mrb[0].mxu0 %v2731
        %v2907 = vpop.f32.mrb[0].mxu0
        %v2908 = vadd.f32 0.0, %v2907
        %v2909 = vpop.f32.mrb[0].mxu0
        %2910 = vmatprep.mubr.f32.mxu0 0.0
        %2911 = vmatmul.mubr.f32.gmra.mrb[0].mxu0 %v2734
        %v2912 = vpop.f32.mrb[0].mxu0
        %v2913 = vadd.f32 0.0, %v2912
        %v2914 = vpop.f32.mrb[0].mxu0
        %2915 = vmatprep.mubr.f32.mxu0 0.0
        %2916 = vmatmul.mubr.f32.gmra.mrb[0].mxu0 %v2737
        %v2917 = vpop.f32.mrb[0].mxu0
        %v2918 = vadd.f32 0.0, %v2917
        %v2919 = vpop.f32.mrb[0].mxu0
        %2920 = vmatprep.mubr.f32.mxu0 0.0
        %2921 = vmatmul.mubr.f32.gmra.mrb[0].mxu0 %v2740
        %v2922 = vpop.f32.mrb[0].mxu0
        %v2923 = vadd.f32 0.0, %v2922
        %v2924 = vpop.f32.mrb[0].mxu0
        %2925 = vmatprep.mubr.f32.mxu0 0.0
        %2926 = vmatmul.mubr.f32.gmra.mrb[0].mxu0 %v2743
        %v2927 = vpop.f32.mrb[0].mxu0
        %v2928 = vadd.f32 0.0, %v2927
        %v2929 = vpop.f32.mrb[0].mxu0
        %2930 = vmatprep.mubr.f32.mxu0 0.0
        %2931 = vmatmul.mubr.f32.gmra.mrb[0].mxu0 %v2746
        %v2932 = vpop.f32.mrb[0].mxu0
        %v2933 = vadd.f32 0.0, %v2932
        %v2934 = vpop.f32.mrb[0].mxu0
        %2935 = vmatprep.mubr.f32.mxu0 0.0
        %2936 = vmatmul.mubr.f32.gmra.mrb[0].mxu0 %v2749
        %v2937 = vpop.f32.mrb[0].mxu0
        %v2938 = vadd.f32 0.0, %v2937
        %v2939 = vpop.f32.mrb[0].mxu0
        %2940 = vmatprep.mubr.f32.mxu0 0.0
        %2941 = vmatmul.mubr.f32.gmra.mrb[0].mxu0 %v2752
        %v2942 = vpop.f32.mrb[0].mxu0
        %v2943 = vadd.f32 0.0, %v2942
        %v2944 = vpop.f32.mrb[0].mxu0
        %2945 = vmatprep.mubr.f32.mxu0 0.0
        %2946 = vmatmul.mubr.f32.gmra.mrb[0].mxu0 %v2755
        %v2947 = vpop.f32.mrb[0].mxu0
        %v2948 = vadd.f32 0.0, %v2947
        %v2949 = vpop.f32.mrb[0].mxu0
        %2950 = vmatprep.mubr.f32.mxu0 0.0
        %2951 = vmatmul.mubr.f32.gmra.mrb[0].mxu0 %v2758
        %v2952 = vpop.f32.mrb[0].mxu0
        %v2953 = vadd.f32 0.0, %v2952
        %v2954 = vpop.f32.mrb[0].mxu0
        %2955 = vmatprep.mubr.f32.mxu0 0.0
        %2956 = vmatmul.mubr.f32.gmra.mrb[0].mxu0 %v2761
        %v2957 = vpop.f32.mrb[0].mxu0
        %v2958 = vadd.f32 0.0, %v2957
        %v2959 = vpop.f32.mrb[0].mxu0
        %2960 = vmatprep.mubr.f32.mxu0 0.0
        %2961 = vmatmul.mubr.f32.gmra.mrb[0].mxu0 %v2764
        %v2962 = vpop.f32.mrb[0].mxu0
        %v2963 = vadd.f32 0.0, %v2962
        %v2964 = vpop.f32.mrb[0].mxu0
        %2965 = vmatprep.mubr.f32.mxu0 0.0
        %2966 = vmatmul.mubr.f32.gmra.mrb[0].mxu0 %v2767
        %v2967 = vpop.f32.mrb[0].mxu0
        %v2968 = vadd.f32 0.0, %v2967
        %v2969 = vpop.f32.mrb[0].mxu0
        %2970 = vmatprep.mubr.f32.mxu0 0.0
        %2971 = vmatmul.mubr.f32.gmra.mrb[0].mxu0 %v2770
        %v2972 = vpop.f32.mrb[0].mxu0
        %v2973 = vadd.f32 0.0, %v2972
        %v2974 = vpop.f32.mrb[0].mxu0
        %2975 = vmatprep.mubr.f32.mxu0 0.0
        %2976 = vmatmul.mubr.f32.gmra.mrb[0].mxu0 %v2773
        %v2977 = vpop.f32.mrb[0].mxu0
        %v2978 = vadd.f32 0.0, %v2977
        %v2979 = vpop.f32.mrb[0].mxu0
        %2980 = vmatprep.mubr.f32.mxu0 0.0
        %2981 = vmatmul.mubr.f32.gmra.mrb[0].mxu0 %v2776
        %v2982 = vpop.f32.mrb[0].mxu0
        %v2983 = vadd.f32 0.0, %v2982
        %v2984 = vpop.f32.mrb[0].mxu0
        %2985 = vmatprep.mubr.f32.mxu0 0.0
        %2986 = vmatmul.mubr.f32.gmra.mrb[0].mxu0 %v2779
        %v2987 = vpop.f32.mrb[0].mxu0
        %v2988 = vadd.f32 0.0, %v2987
        %v2989 = vpop.f32.mrb[0].mxu0
        %2990 = vmatprep.mubr.f32.mxu0 0.0
        %2991 = vmatmul.mubr.f32.gmra.mrb[0].mxu0 %v2782
        %v2992 = vpop.f32.mrb[0].mxu0
        %v2993 = vadd.f32 0.0, %v2992
        %v2994 = vpop.f32.mrb[0].mxu0
        %2995 = vmatprep.mubr.f32.mxu0 0.0
        %2996 = vmatmul.mubr.f32.gmra.mrb[0].mxu0 %v2785
        %v2997 = vpop.f32.mrb[0].mxu0
        %v2998 = vadd.f32 0.0, %v2997
        %v2999 = vpop.f32.mrb[0].mxu0
        %3000 = vmatprep.mubr.f32.mxu0 0.0
        %3001 = vmatmul.mubr.f32.gmra.mrb[0].mxu0 %v2788
        %v3002 = vpop.f32.mrb[0].mxu0
        %v3003 = vadd.f32 0.0, %v3002
        %v3004 = vpop.f32.mrb[0].mxu0
        %3005 = vmatprep.mubr.f32.mxu0 0.0
        %3006 = vmatmul.mubr.f32.gmra.mrb[0].mxu0 %v2791
        %v3007 = vpop.f32.mrb[0].mxu0
        %v3008 = vadd.f32 0.0, %v3007
        %v3009 = vpop.f32.mrb[0].mxu0
        %3010 = vmatprep.mubr.f32.mxu0 0.0
        %3011 = vmatmul.mubr.f32.gmra.mrb[0].mxu0 %v2794
        %v3012 = vpop.f32.mrb[0].mxu0
        %v3013 = vadd.f32 0.0, %v3012
        %v3014 = vpop.f32.mrb[0].mxu0
        %3015 = vmatprep.mubr.f32.mxu0 0.0
        %3016 = vmatmul.mubr.f32.gmra.mrb[0].mxu0 %v2797
        %v3017 = vpop.f32.mrb[0].mxu0
        %v3018 = vadd.f32 0.0, %v3017
        %v3019 = vpop.f32.mrb[0].mxu0
        %3020 = vmatprep.mubr.f32.mxu0 0.0
        %3021 = vmatmul.mubr.f32.gmra.mrb[0].mxu0 %v2800
        %v3022 = vpop.f32.mrb[0].mxu0
        %v3023 = vadd.f32 0.0, %v3022
        %v3024 = vpop.f32.mrb[0].mxu0
        %3025 = vmatprep.mubr.f32.mxu0 0.0
        %3026 = vmatmul.mubr.f32.gmra.mrb[0].mxu0 %v2803
        %v3027 = vpop.f32.mrb[0].mxu0
        %v3028 = vadd.f32 0.0, %v3027
        %v3029 = vpop.f32.mrb[0].mxu0
        %3030 = vmatprep.mubr.f32.mxu0 0.0
        %3031 = vmatmul.mubr.f32.gmra.mrb[0].mxu0 %v2806
        %v3032 = vpop.f32.mrb[0].mxu0
        %v3033 = vadd.f32 0.0, %v3032
        %v3034 = vpop.f32.mrb[0].mxu0
        %3035 = vdwg.mxu0
        %v3036 = vadd.f32 %v2645, %v2878
        %v3037 = vadd.f32 %v2646, %v2883
        %v3038 = vadd.f32 %v2647, %v2888
        %v3039 = vadd.f32 %v2648, %v2893
        %v3040 = vadd.f32 %v2649, %v2898
        %v3041 = vadd.f32 %v2650, %v2903
        %v3042 = vadd.f32 %v2651, %v2908
        %v3043 = vadd.f32 %v2652, %v2913
        %v3044 = vadd.f32 %v2653, %v2918
        %v3045 = vadd.f32 %v2654, %v2923
        %v3046 = vadd.f32 %v2655, %v2928
        %v3047 = vadd.f32 %v2656, %v2933
        %v3048 = vadd.f32 %v2657, %v2938
        %v3049 = vadd.f32 %v2658, %v2943
        %v3050 = vadd.f32 %v2659, %v2948
        %v3051 = vadd.f32 %v2660, %v2953
        %v3052 = vadd.f32 %v2661, %v2958
        %v3053 = vadd.f32 %v2662, %v2963
        %v3054 = vadd.f32 %v2663, %v2968
        %v3055 = vadd.f32 %v2664, %v2973
        %v3056 = vadd.f32 %v2665, %v2978
        %v3057 = vadd.f32 %v2666, %v2983
        %v3058 = vadd.f32 %v2667, %v2988
        %v3059 = vadd.f32 %v2668, %v2993
        %v3060 = vadd.f32 %v2669, %v2998
        %v3061 = vadd.f32 %v2670, %v3003
        %v3062 = vadd.f32 %v2671, %v3008
        %v3063 = vadd.f32 %v2672, %v3013
        %v3064 = vadd.f32 %v2673, %v3018
        %v3065 = vadd.f32 %v2674, %v3023
        %v3066 = vadd.f32 %v2675, %v3028
        %v3067 = vadd.f32 %v2676, %v3033
        %v3068 = vld [vmem:[%s2677 + $0x1] sm:$0xff]
        %v3069 = vld [vmem:[%s2677 + $0x9] sm:$0xff]
        %v3070 = vld [vmem:[%s2677 + $0x19] sm:$0xff]
        %v3071 = vld [vmem:[%s2677 + $0x21] sm:$0xff]
        %v3072 = vld [vmem:[%s2677 + $0x31] sm:$0xff]
        %v3073 = vld [vmem:[%s2677 + $0x39] sm:$0xff]
        %v3074 = vld [vmem:[%s2677 + $0x49] sm:$0xff]
        %v3075 = vld [vmem:[%s2677 + $0x51] sm:$0xff]
        %v3076 = vld [vmem:[%s2677 + $0x61] sm:$0xff]
        %v3077 = vld [vmem:[%s2677 + $0x69] sm:$0xff]
        %v3078 = vld [vmem:[%s2677 + $0x79] sm:$0xff]
        %v3079 = vld [vmem:[%s2677 + $0x81] sm:$0xff]
        %v3080 = vld [vmem:[%s2677 + $0x91] sm:$0xff]
        %v3081 = vld [vmem:[%s2677 + $0x99] sm:$0xff]
        %v3082 = vld [vmem:[%s2677 + $0xa9] sm:$0xff]
        %v3083 = vld [vmem:[%s2677 + $0xb1] sm:$0xff]
        %v3084 = vld [vmem:[%s2677 + $0xc1] sm:$0xff]
        %v3085 = vld [vmem:[%s2677 + $0xc9] sm:$0xff]
        %v3086 = vld [vmem:[%s2677 + $0xd9] sm:$0xff]
        %v3087 = vld [vmem:[%s2677 + $0xe1] sm:$0xff]
        %v3088 = vld [vmem:[%s2677 + $0xf1] sm:$0xff]
        %v3089 = vld [vmem:[%s2677 + $0xf9] sm:$0xff]
        %v3090 = vld [vmem:[%s2677 + $0x109] sm:$0xff]
        %v3091 = vld [vmem:[%s2677 + $0x111] sm:$0xff]
        %v3092 = vld [vmem:[%s2677 + $0x121] sm:$0xff]
        %v3093 = vld [vmem:[%s2677 + $0x129] sm:$0xff]
        %v3094 = vld [vmem:[%s2677 + $0x139] sm:$0xff]
        %v3095 = vld [vmem:[%s2677 + $0x141] sm:$0xff]
        %v3096 = vld [vmem:[%s2677 + $0x151] sm:$0xff]
        %v3097 = vld [vmem:[%s2677 + $0x159] sm:$0xff]
        %v3098 = vld [vmem:[%s2677 + $0x169] sm:$0xff]
        %v3099 = vld [vmem:[%s2677 + $0x171] sm:$0xff]
        %s3100 = scalar_lea.vmem %s1, 28
        %v3101 = vld [vmem:[%s3100] sm:$0x7]
        %v3103 = vsel %vm278, %v3068, 0
        %v3106 = vsel %vm278, %v3069, 0
        %v3109 = vsel %vm278, %v3070, 0
        %v3112 = vsel %vm278, %v3071, 0
        %v3115 = vsel %vm278, %v3072, 0
        %v3118 = vsel %vm278, %v3073, 0
        %v3121 = vsel %vm278, %v3074, 0
        %v3124 = vsel %vm278, %v3075, 0
        %v3127 = vsel %vm278, %v3076, 0
        %v3130 = vsel %vm278, %v3077, 0
        %v3133 = vsel %vm278, %v3078, 0
        %v3136 = vsel %vm278, %v3079, 0
        %v3139 = vsel %vm278, %v3080, 0
        %v3142 = vsel %vm278, %v3081, 0
        %v3145 = vsel %vm278, %v3082, 0
        %v3148 = vsel %vm278, %v3083, 0
        %v3151 = vsel %vm278, %v3084, 0
        %v3154 = vsel %vm278, %v3085, 0
        %v3157 = vsel %vm278, %v3086, 0
        %v3160 = vsel %vm278, %v3087, 0
        %v3163 = vsel %vm278, %v3088, 0
        %v3166 = vsel %vm278, %v3089, 0
        %v3169 = vsel %vm278, %v3090, 0
        %v3172 = vsel %vm278, %v3091, 0
        %v3175 = vsel %vm278, %v3092, 0
        %v3178 = vsel %vm278, %v3093, 0
        %v3181 = vsel %vm278, %v3094, 0
        %v3184 = vsel %vm278, %v3095, 0
        %v3187 = vsel %vm278, %v3096, 0
        %v3190 = vsel %vm278, %v3097, 0
        %v3193 = vsel %vm278, %v3098, 0
        %v3196 = vsel %vm278, %v3099, 0
        %v3199 = vsel %vm564, %v3101, 0
        %3201 = vmatprep.subr.mxu0 0.0
        %3202 = vmatpush1.msra.mxu0 %v3199
        %3203 = vmatprep.subr.mxu0 0.0
        %3204 = vmatpush1.msra.mxu0 0.0
        %3205 = vmatprep.subr.mxu0 0.0
        %3206 = vmatpush1.msra.mxu0 0.0
        %3207 = vmatprep.subr.mxu0 0.0
        %3208 = vmatpush1.msra.mxu0 0.0
        %3209 = vmatprep.subr.mxu0 0.0
        %3210 = vmatpush1.msra.mxu0 0.0
        %3211 = vmatprep.subr.mxu0 0.0
        %3212 = vmatpush1.msra.mxu0 0.0
        %3213 = vmatprep.subr.mxu0 0.0
        %3214 = vmatpush1.msra.mxu0 0.0
        %3215 = vmatprep.subr.mxu0 0.0
        %3216 = vmatpush1.msra.mxu0 0.0
        %3217 = vmatprep.subr.mxu0 0.0
        %3218 = vmatpush1.msra.mxu0 0.0
        %3219 = vmatprep.subr.mxu0 0.0
        %3220 = vmatpush1.msra.mxu0 0.0
        %3221 = vmatprep.subr.mxu0 0.0
        %3222 = vmatpush1.msra.mxu0 0.0
        %3223 = vmatprep.subr.mxu0 0.0
        %3224 = vmatpush1.msra.mxu0 0.0
        %3225 = vmatprep.subr.mxu0 0.0
        %3226 = vmatpush1.msra.mxu0 0.0
        %3227 = vmatprep.subr.mxu0 0.0
        %3228 = vmatpush1.msra.mxu0 0.0
        %3229 = vmatprep.subr.mxu0 0.0
        %3230 = vmatpush1.msra.mxu0 0.0
        %3231 = vmatprep.subr.mxu0 0.0
        %3232 = vmatpush1.msra.mxu0 0.0
        %3233 = vmatprep.subr.mxu0 0.0
        %3234 = vmatpush1.msra.mxu0 0.0
        %3235 = vmatprep.subr.mxu0 0.0
        %3236 = vmatpush1.msra.mxu0 0.0
        %3237 = vmatprep.subr.mxu0 0.0
        %3238 = vmatpush1.msra.mxu0 0.0
        %3239 = vmatprep.subr.mxu0 0.0
        %3240 = vmatpush1.msra.mxu0 0.0
        %3241 = vmatprep.subr.mxu0 0.0
        %3242 = vmatpush1.msra.mxu0 0.0
        %3243 = vmatprep.subr.mxu0 0.0
        %3244 = vmatpush1.msra.mxu0 0.0
        %3245 = vmatprep.subr.mxu0 0.0
        %3246 = vmatpush1.msra.mxu0 0.0
        %3247 = vmatprep.subr.mxu0 0.0
        %3248 = vmatpush1.msra.mxu0 0.0
        %3249 = vmatprep.subr.mxu0 0.0
        %3250 = vmatpush1.msra.mxu0 0.0
        %3251 = vmatprep.subr.mxu0 0.0
        %3252 = vmatpush1.msra.mxu0 0.0
        %3253 = vmatprep.subr.mxu0 0.0
        %3254 = vmatpush1.msra.mxu0 0.0
        %3255 = vmatprep.subr.mxu0 0.0
        %3256 = vmatpush1.msra.mxu0 0.0
        %3257 = vmatprep.subr.mxu0 0.0
        %3258 = vmatpush1.msra.mxu0 0.0
        %3259 = vmatprep.subr.mxu0 0.0
        %3260 = vmatpush1.msra.mxu0 0.0
        %3261 = vmatprep.subr.mxu0 0.0
        %3262 = vmatpush1.msra.mxu0 0.0
        %3263 = vmatprep.subr.mxu0 0.0
        %3264 = vmatpush1.msra.mxu0 0.0
        %3265 = vmatprep.mubr.f32.mxu0 0.0
        %3266 = vmatmul.mubr.f32.gmra.mrb[0].mxu0 %v3103
        %v3267 = vpop.f32.mrb[0].mxu0
        %v3268 = vadd.f32 0.0, %v3267
        %v3269 = vpop.f32.mrb[0].mxu0
        %3270 = vmatprep.mubr.f32.mxu0 0.0
        %3271 = vmatmul.mubr.f32.gmra.mrb[0].mxu0 %v3106
        %v3272 = vpop.f32.mrb[0].mxu0
        %v3273 = vadd.f32 0.0, %v3272
        %v3274 = vpop.f32.mrb[0].mxu0
        %3275 = vmatprep.mubr.f32.mxu0 0.0
        %3276 = vmatmul.mubr.f32.gmra.mrb[0].mxu0 %v3109
        %v3277 = vpop.f32.mrb[0].mxu0
        %v3278 = vadd.f32 0.0, %v3277
        %v3279 = vpop.f32.mrb[0].mxu0
        %3280 = vmatprep.mubr.f32.mxu0 0.0
        %3281 = vmatmul.mubr.f32.gmra.mrb[0].mxu0 %v3112
        %v3282 = vpop.f32.mrb[0].mxu0
        %v3283 = vadd.f32 0.0, %v3282
        %v3284 = vpop.f32.mrb[0].mxu0
        %3285 = vmatprep.mubr.f32.mxu0 0.0
        %3286 = vmatmul.mubr.f32.gmra.mrb[0].mxu0 %v3115
        %v3287 = vpop.f32.mrb[0].mxu0
        %v3288 = vadd.f32 0.0, %v3287
        %v3289 = vpop.f32.mrb[0].mxu0
        %3290 = vmatprep.mubr.f32.mxu0 0.0
        %3291 = vmatmul.mubr.f32.gmra.mrb[0].mxu0 %v3118
        %v3292 = vpop.f32.mrb[0].mxu0
        %v3293 = vadd.f32 0.0, %v3292
        %v3294 = vpop.f32.mrb[0].mxu0
        %3295 = vmatprep.mubr.f32.mxu0 0.0
        %3296 = vmatmul.mubr.f32.gmra.mrb[0].mxu0 %v3121
        %v3297 = vpop.f32.mrb[0].mxu0
        %v3298 = vadd.f32 0.0, %v3297
        %v3299 = vpop.f32.mrb[0].mxu0
        %3300 = vmatprep.mubr.f32.mxu0 0.0
        %3301 = vmatmul.mubr.f32.gmra.mrb[0].mxu0 %v3124
        %v3302 = vpop.f32.mrb[0].mxu0
        %v3303 = vadd.f32 0.0, %v3302
        %v3304 = vpop.f32.mrb[0].mxu0
        %3305 = vmatprep.mubr.f32.mxu0 0.0
        %3306 = vmatmul.mubr.f32.gmra.mrb[0].mxu0 %v3127
        %v3307 = vpop.f32.mrb[0].mxu0
        %v3308 = vadd.f32 0.0, %v3307
        %v3309 = vpop.f32.mrb[0].mxu0
        %3310 = vmatprep.mubr.f32.mxu0 0.0
        %3311 = vmatmul.mubr.f32.gmra.mrb[0].mxu0 %v3130
        %v3312 = vpop.f32.mrb[0].mxu0
        %v3313 = vadd.f32 0.0, %v3312
        %v3314 = vpop.f32.mrb[0].mxu0
        %3315 = vmatprep.mubr.f32.mxu0 0.0
        %3316 = vmatmul.mubr.f32.gmra.mrb[0].mxu0 %v3133
        %v3317 = vpop.f32.mrb[0].mxu0
        %v3318 = vadd.f32 0.0, %v3317
        %v3319 = vpop.f32.mrb[0].mxu0
        %3320 = vmatprep.mubr.f32.mxu0 0.0
        %3321 = vmatmul.mubr.f32.gmra.mrb[0].mxu0 %v3136
        %v3322 = vpop.f32.mrb[0].mxu0
        %v3323 = vadd.f32 0.0, %v3322
        %v3324 = vpop.f32.mrb[0].mxu0
        %3325 = vmatprep.mubr.f32.mxu0 0.0
        %3326 = vmatmul.mubr.f32.gmra.mrb[0].mxu0 %v3139
        %v3327 = vpop.f32.mrb[0].mxu0
        %v3328 = vadd.f32 0.0, %v3327
        %v3329 = vpop.f32.mrb[0].mxu0
        %3330 = vmatprep.mubr.f32.mxu0 0.0
        %3331 = vmatmul.mubr.f32.gmra.mrb[0].mxu0 %v3142
        %v3332 = vpop.f32.mrb[0].mxu0
        %v3333 = vadd.f32 0.0, %v3332
        %v3334 = vpop.f32.mrb[0].mxu0
        %3335 = vmatprep.mubr.f32.mxu0 0.0
        %3336 = vmatmul.mubr.f32.gmra.mrb[0].mxu0 %v3145
        %v3337 = vpop.f32.mrb[0].mxu0
        %v3338 = vadd.f32 0.0, %v3337
        %v3339 = vpop.f32.mrb[0].mxu0
        %3340 = vmatprep.mubr.f32.mxu0 0.0
        %3341 = vmatmul.mubr.f32.gmra.mrb[0].mxu0 %v3148
        %v3342 = vpop.f32.mrb[0].mxu0
        %v3343 = vadd.f32 0.0, %v3342
        %v3344 = vpop.f32.mrb[0].mxu0
        %3345 = vmatprep.mubr.f32.mxu0 0.0
        %3346 = vmatmul.mubr.f32.gmra.mrb[0].mxu0 %v3151
        %v3347 = vpop.f32.mrb[0].mxu0
        %v3348 = vadd.f32 0.0, %v3347
        %v3349 = vpop.f32.mrb[0].mxu0
        %3350 = vmatprep.mubr.f32.mxu0 0.0
        %3351 = vmatmul.mubr.f32.gmra.mrb[0].mxu0 %v3154
        %v3352 = vpop.f32.mrb[0].mxu0
        %v3353 = vadd.f32 0.0, %v3352
        %v3354 = vpop.f32.mrb[0].mxu0
        %3355 = vmatprep.mubr.f32.mxu0 0.0
        %3356 = vmatmul.mubr.f32.gmra.mrb[0].mxu0 %v3157
        %v3357 = vpop.f32.mrb[0].mxu0
        %v3358 = vadd.f32 0.0, %v3357
        %v3359 = vpop.f32.mrb[0].mxu0
        %3360 = vmatprep.mubr.f32.mxu0 0.0
        %3361 = vmatmul.mubr.f32.gmra.mrb[0].mxu0 %v3160
        %v3362 = vpop.f32.mrb[0].mxu0
        %v3363 = vadd.f32 0.0, %v3362
        %v3364 = vpop.f32.mrb[0].mxu0
        %3365 = vmatprep.mubr.f32.mxu0 0.0
        %3366 = vmatmul.mubr.f32.gmra.mrb[0].mxu0 %v3163
        %v3367 = vpop.f32.mrb[0].mxu0
        %v3368 = vadd.f32 0.0, %v3367
        %v3369 = vpop.f32.mrb[0].mxu0
        %3370 = vmatprep.mubr.f32.mxu0 0.0
        %3371 = vmatmul.mubr.f32.gmra.mrb[0].mxu0 %v3166
        %v3372 = vpop.f32.mrb[0].mxu0
        %v3373 = vadd.f32 0.0, %v3372
        %v3374 = vpop.f32.mrb[0].mxu0
        %3375 = vmatprep.mubr.f32.mxu0 0.0
        %3376 = vmatmul.mubr.f32.gmra.mrb[0].mxu0 %v3169
        %v3377 = vpop.f32.mrb[0].mxu0
        %v3378 = vadd.f32 0.0, %v3377
        %v3379 = vpop.f32.mrb[0].mxu0
        %3380 = vmatprep.mubr.f32.mxu0 0.0
        %3381 = vmatmul.mubr.f32.gmra.mrb[0].mxu0 %v3172
        %v3382 = vpop.f32.mrb[0].mxu0
        %v3383 = vadd.f32 0.0, %v3382
        %v3384 = vpop.f32.mrb[0].mxu0
        %3385 = vmatprep.mubr.f32.mxu0 0.0
        %3386 = vmatmul.mubr.f32.gmra.mrb[0].mxu0 %v3175
        %v3387 = vpop.f32.mrb[0].mxu0
        %v3388 = vadd.f32 0.0, %v3387
        %v3389 = vpop.f32.mrb[0].mxu0
        %3390 = vmatprep.mubr.f32.mxu0 0.0
        %3391 = vmatmul.mubr.f32.gmra.mrb[0].mxu0 %v3178
        %v3392 = vpop.f32.mrb[0].mxu0
        %v3393 = vadd.f32 0.0, %v3392
        %v3394 = vpop.f32.mrb[0].mxu0
        %3395 = vmatprep.mubr.f32.mxu0 0.0
        %3396 = vmatmul.mubr.f32.gmra.mrb[0].mxu0 %v3181
        %v3397 = vpop.f32.mrb[0].mxu0
        %v3398 = vadd.f32 0.0, %v3397
        %v3399 = vpop.f32.mrb[0].mxu0
        %3400 = vmatprep.mubr.f32.mxu0 0.0
        %3401 = vmatmul.mubr.f32.gmra.mrb[0].mxu0 %v3184
        %v3402 = vpop.f32.mrb[0].mxu0
        %v3403 = vadd.f32 0.0, %v3402
        %v3404 = vpop.f32.mrb[0].mxu0
        %3405 = vmatprep.mubr.f32.mxu0 0.0
        %3406 = vmatmul.mubr.f32.gmra.mrb[0].mxu0 %v3187
        %v3407 = vpop.f32.mrb[0].mxu0
        %v3408 = vadd.f32 0.0, %v3407
        %v3409 = vpop.f32.mrb[0].mxu0
        %3410 = vmatprep.mubr.f32.mxu0 0.0
        %3411 = vmatmul.mubr.f32.gmra.mrb[0].mxu0 %v3190
        %v3412 = vpop.f32.mrb[0].mxu0
        %v3413 = vadd.f32 0.0, %v3412
        %v3414 = vpop.f32.mrb[0].mxu0
        %3415 = vmatprep.mubr.f32.mxu0 0.0
        %3416 = vmatmul.mubr.f32.gmra.mrb[0].mxu0 %v3193
        %v3417 = vpop.f32.mrb[0].mxu0
        %v3418 = vadd.f32 0.0, %v3417
        %v3419 = vpop.f32.mrb[0].mxu0
        %3420 = vmatprep.mubr.f32.mxu0 0.0
        %3421 = vmatmul.mubr.f32.gmra.mrb[0].mxu0 %v3196
        %v3422 = vpop.f32.mrb[0].mxu0
        %v3423 = vadd.f32 0.0, %v3422
        %v3424 = vpop.f32.mrb[0].mxu0
        %3425 = vdwg.mxu0
        %v3426 = vadd.f32 %v3036, %v3268
        %v3427 = vadd.f32 %v3037, %v3273
        %v3428 = vadd.f32 %v3038, %v3278
        %v3429 = vadd.f32 %v3039, %v3283
        %v3430 = vadd.f32 %v3040, %v3288
        %v3431 = vadd.f32 %v3041, %v3293
        %v3432 = vadd.f32 %v3042, %v3298
        %v3433 = vadd.f32 %v3043, %v3303
        %v3434 = vadd.f32 %v3044, %v3308
        %v3435 = vadd.f32 %v3045, %v3313
        %v3436 = vadd.f32 %v3046, %v3318
        %v3437 = vadd.f32 %v3047, %v3323
        %v3438 = vadd.f32 %v3048, %v3328
        %v3439 = vadd.f32 %v3049, %v3333
        %v3440 = vadd.f32 %v3050, %v3338
        %v3441 = vadd.f32 %v3051, %v3343
        %v3442 = vadd.f32 %v3052, %v3348
        %v3443 = vadd.f32 %v3053, %v3353
        %v3444 = vadd.f32 %v3054, %v3358
        %v3445 = vadd.f32 %v3055, %v3363
        %v3446 = vadd.f32 %v3056, %v3368
        %v3447 = vadd.f32 %v3057, %v3373
        %v3448 = vadd.f32 %v3058, %v3378
        %v3449 = vadd.f32 %v3059, %v3383
        %v3450 = vadd.f32 %v3060, %v3388
        %v3451 = vadd.f32 %v3061, %v3393
        %v3452 = vadd.f32 %v3062, %v3398
        %v3453 = vadd.f32 %v3063, %v3403
        %v3454 = vadd.f32 %v3064, %v3408
        %v3455 = vadd.f32 %v3065, %v3413
        %v3456 = vadd.f32 %v3066, %v3418
        %v3457 = vadd.f32 %v3067, %v3423
        %v3458 = vld [vmem:[%s2677 + $0x2] sm:$0xff]
        %v3459 = vld [vmem:[%s2677 + $0xa] sm:$0xff]
        %v3460 = vld [vmem:[%s2677 + $0x1a] sm:$0xff]
        %v3461 = vld [vmem:[%s2677 + $0x22] sm:$0xff]
        %v3462 = vld [vmem:[%s2677 + $0x32] sm:$0xff]
        %v3463 = vld [vmem:[%s2677 + $0x3a] sm:$0xff]
        %v3464 = vld [vmem:[%s2677 + $0x4a] sm:$0xff]
        %v3465 = vld [vmem:[%s2677 + $0x52] sm:$0xff]
        %v3466 = vld [vmem:[%s2677 + $0x62] sm:$0xff]
        %v3467 = vld [vmem:[%s2677 + $0x6a] sm:$0xff]
        %v3468 = vld [vmem:[%s2677 + $0x7a] sm:$0xff]
        %v3469 = vld [vmem:[%s2677 + $0x82] sm:$0xff]
        %v3470 = vld [vmem:[%s2677 + $0x92] sm:$0xff]
        %v3471 = vld [vmem:[%s2677 + $0x9a] sm:$0xff]
        %v3472 = vld [vmem:[%s2677 + $0xaa] sm:$0xff]
        %v3473 = vld [vmem:[%s2677 + $0xb2] sm:$0xff]
        %v3474 = vld [vmem:[%s2677 + $0xc2] sm:$0xff]
        %v3475 = vld [vmem:[%s2677 + $0xca] sm:$0xff]
        %v3476 = vld [vmem:[%s2677 + $0xda] sm:$0xff]
        %v3477 = vld [vmem:[%s2677 + $0xe2] sm:$0xff]
        %v3478 = vld [vmem:[%s2677 + $0xf2] sm:$0xff]
        %v3479 = vld [vmem:[%s2677 + $0xfa] sm:$0xff]
        %v3480 = vld [vmem:[%s2677 + $0x10a] sm:$0xff]
        %v3481 = vld [vmem:[%s2677 + $0x112] sm:$0xff]
        %v3482 = vld [vmem:[%s2677 + $0x122] sm:$0xff]
        %v3483 = vld [vmem:[%s2677 + $0x12a] sm:$0xff]
        %v3484 = vld [vmem:[%s2677 + $0x13a] sm:$0xff]
        %v3485 = vld [vmem:[%s2677 + $0x142] sm:$0xff]
        %v3486 = vld [vmem:[%s2677 + $0x152] sm:$0xff]
        %v3487 = vld [vmem:[%s2677 + $0x15a] sm:$0xff]
        %v3488 = vld [vmem:[%s2677 + $0x16a] sm:$0xff]
        %v3489 = vld [vmem:[%s2677 + $0x172] sm:$0xff]
        %s3490 = scalar_lea.vmem %s1, 32
        %v3491 = vld [vmem:[%s3490] sm:$0x7]
        %v3493 = vsel %vm278, %v3458, 0
        %v3496 = vsel %vm278, %v3459, 0
        %v3499 = vsel %vm278, %v3460, 0
        %v3502 = vsel %vm278, %v3461, 0
        %v3505 = vsel %vm278, %v3462, 0
        %v3508 = vsel %vm278, %v3463, 0
        %v3511 = vsel %vm278, %v3464, 0
        %v3514 = vsel %vm278, %v3465, 0
        %v3517 = vsel %vm278, %v3466, 0
        %v3520 = vsel %vm278, %v3467, 0
        %v3523 = vsel %vm278, %v3468, 0
        %v3526 = vsel %vm278, %v3469, 0
        %v3529 = vsel %vm278, %v3470, 0
        %v3532 = vsel %vm278, %v3471, 0
        %v3535 = vsel %vm278, %v3472, 0
        %v3538 = vsel %vm278, %v3473, 0
        %v3541 = vsel %vm278, %v3474, 0
        %v3544 = vsel %vm278, %v3475, 0
        %v3547 = vsel %vm278, %v3476, 0
        %v3550 = vsel %vm278, %v3477, 0
        %v3553 = vsel %vm278, %v3478, 0
        %v3556 = vsel %vm278, %v3479, 0
        %v3559 = vsel %vm278, %v3480, 0
        %v3562 = vsel %vm278, %v3481, 0
        %v3565 = vsel %vm278, %v3482, 0
        %v3568 = vsel %vm278, %v3483, 0
        %v3571 = vsel %vm278, %v3484, 0
        %v3574 = vsel %vm278, %v3485, 0
        %v3577 = vsel %vm278, %v3486, 0
        %v3580 = vsel %vm278, %v3487, 0
        %v3583 = vsel %vm278, %v3488, 0
        %v3586 = vsel %vm278, %v3489, 0
        %v3589 = vsel %vm564, %v3491, 0
        %3591 = vmatprep.subr.mxu0 0.0
        %3592 = vmatpush1.msra.mxu0 %v3589
        %3593 = vmatprep.subr.mxu0 0.0
        %3594 = vmatpush1.msra.mxu0 0.0
        %3595 = vmatprep.subr.mxu0 0.0
        %3596 = vmatpush1.msra.mxu0 0.0
        %3597 = vmatprep.subr.mxu0 0.0
        %3598 = vmatpush1.msra.mxu0 0.0
        %3599 = vmatprep.subr.mxu0 0.0
        %3600 = vmatpush1.msra.mxu0 0.0
        %3601 = vmatprep.subr.mxu0 0.0
        %3602 = vmatpush1.msra.mxu0 0.0
        %3603 = vmatprep.subr.mxu0 0.0
        %3604 = vmatpush1.msra.mxu0 0.0
        %3605 = vmatprep.subr.mxu0 0.0
        %3606 = vmatpush1.msra.mxu0 0.0
        %3607 = vmatprep.subr.mxu0 0.0
        %3608 = vmatpush1.msra.mxu0 0.0
        %3609 = vmatprep.subr.mxu0 0.0
        %3610 = vmatpush1.msra.mxu0 0.0
        %3611 = vmatprep.subr.mxu0 0.0
        %3612 = vmatpush1.msra.mxu0 0.0
        %3613 = vmatprep.subr.mxu0 0.0
        %3614 = vmatpush1.msra.mxu0 0.0
        %3615 = vmatprep.subr.mxu0 0.0
        %3616 = vmatpush1.msra.mxu0 0.0
        %3617 = vmatprep.subr.mxu0 0.0
        %3618 = vmatpush1.msra.mxu0 0.0
        %3619 = vmatprep.subr.mxu0 0.0
        %3620 = vmatpush1.msra.mxu0 0.0
        %3621 = vmatprep.subr.mxu0 0.0
        %3622 = vmatpush1.msra.mxu0 0.0
        %3623 = vmatprep.subr.mxu0 0.0
        %3624 = vmatpush1.msra.mxu0 0.0
        %3625 = vmatprep.subr.mxu0 0.0
        %3626 = vmatpush1.msra.mxu0 0.0
        %3627 = vmatprep.subr.mxu0 0.0
        %3628 = vmatpush1.msra.mxu0 0.0
        %3629 = vmatprep.subr.mxu0 0.0
        %3630 = vmatpush1.msra.mxu0 0.0
        %3631 = vmatprep.subr.mxu0 0.0
        %3632 = vmatpush1.msra.mxu0 0.0
        %3633 = vmatprep.subr.mxu0 0.0
        %3634 = vmatpush1.msra.mxu0 0.0
        %3635 = vmatprep.subr.mxu0 0.0
        %3636 = vmatpush1.msra.mxu0 0.0
        %3637 = vmatprep.subr.mxu0 0.0
        %3638 = vmatpush1.msra.mxu0 0.0
        %3639 = vmatprep.subr.mxu0 0.0
        %3640 = vmatpush1.msra.mxu0 0.0
        %3641 = vmatprep.subr.mxu0 0.0
        %3642 = vmatpush1.msra.mxu0 0.0
        %3643 = vmatprep.subr.mxu0 0.0
        %3644 = vmatpush1.msra.mxu0 0.0
        %3645 = vmatprep.subr.mxu0 0.0
        %3646 = vmatpush1.msra.mxu0 0.0
        %3647 = vmatprep.subr.mxu0 0.0
        %3648 = vmatpush1.msra.mxu0 0.0
        %3649 = vmatprep.subr.mxu0 0.0
        %3650 = vmatpush1.msra.mxu0 0.0
        %3651 = vmatprep.subr.mxu0 0.0
        %3652 = vmatpush1.msra.mxu0 0.0
        %3653 = vmatprep.subr.mxu0 0.0
        %3654 = vmatpush1.msra.mxu0 0.0
        %3655 = vmatprep.mubr.f32.mxu0 0.0
        %3656 = vmatmul.mubr.f32.gmra.mrb[0].mxu0 %v3493
        %v3657 = vpop.f32.mrb[0].mxu0
        %v3658 = vadd.f32 0.0, %v3657
        %v3659 = vpop.f32.mrb[0].mxu0
        %3660 = vmatprep.mubr.f32.mxu0 0.0
        %3661 = vmatmul.mubr.f32.gmra.mrb[0].mxu0 %v3496
        %v3662 = vpop.f32.mrb[0].mxu0
        %v3663 = vadd.f32 0.0, %v3662
        %v3664 = vpop.f32.mrb[0].mxu0
        %3665 = vmatprep.mubr.f32.mxu0 0.0
        %3666 = vmatmul.mubr.f32.gmra.mrb[0].mxu0 %v3499
        %v3667 = vpop.f32.mrb[0].mxu0
        %v3668 = vadd.f32 0.0, %v3667
        %v3669 = vpop.f32.mrb[0].mxu0
        %3670 = vmatprep.mubr.f32.mxu0 0.0
        %3671 = vmatmul.mubr.f32.gmra.mrb[0].mxu0 %v3502
        %v3672 = vpop.f32.mrb[0].mxu0
        %v3673 = vadd.f32 0.0, %v3672
        %v3674 = vpop.f32.mrb[0].mxu0
        %3675 = vmatprep.mubr.f32.mxu0 0.0
        %3676 = vmatmul.mubr.f32.gmra.mrb[0].mxu0 %v3505
        %v3677 = vpop.f32.mrb[0].mxu0
        %v3678 = vadd.f32 0.0, %v3677
        %v3679 = vpop.f32.mrb[0].mxu0
        %3680 = vmatprep.mubr.f32.mxu0 0.0
        %3681 = vmatmul.mubr.f32.gmra.mrb[0].mxu0 %v3508
        %v3682 = vpop.f32.mrb[0].mxu0
        %v3683 = vadd.f32 0.0, %v3682
        %v3684 = vpop.f32.mrb[0].mxu0
        %3685 = vmatprep.mubr.f32.mxu0 0.0
        %3686 = vmatmul.mubr.f32.gmra.mrb[0].mxu0 %v3511
        %v3687 = vpop.f32.mrb[0].mxu0
        %v3688 = vadd.f32 0.0, %v3687
        %v3689 = vpop.f32.mrb[0].mxu0
        %3690 = vmatprep.mubr.f32.mxu0 0.0
        %3691 = vmatmul.mubr.f32.gmra.mrb[0].mxu0 %v3514
        %v3692 = vpop.f32.mrb[0].mxu0
        %v3693 = vadd.f32 0.0, %v3692
        %v3694 = vpop.f32.mrb[0].mxu0
        %3695 = vmatprep.mubr.f32.mxu0 0.0
        %3696 = vmatmul.mubr.f32.gmra.mrb[0].mxu0 %v3517
        %v3697 = vpop.f32.mrb[0].mxu0
        %v3698 = vadd.f32 0.0, %v3697
        %v3699 = vpop.f32.mrb[0].mxu0
        %3700 = vmatprep.mubr.f32.mxu0 0.0
        %3701 = vmatmul.mubr.f32.gmra.mrb[0].mxu0 %v3520
        %v3702 = vpop.f32.mrb[0].mxu0
        %v3703 = vadd.f32 0.0, %v3702
        %v3704 = vpop.f32.mrb[0].mxu0
        %3705 = vmatprep.mubr.f32.mxu0 0.0
        %3706 = vmatmul.mubr.f32.gmra.mrb[0].mxu0 %v3523
        %v3707 = vpop.f32.mrb[0].mxu0
        %v3708 = vadd.f32 0.0, %v3707
        %v3709 = vpop.f32.mrb[0].mxu0
        %3710 = vmatprep.mubr.f32.mxu0 0.0
        %3711 = vmatmul.mubr.f32.gmra.mrb[0].mxu0 %v3526
        %v3712 = vpop.f32.mrb[0].mxu0
        %v3713 = vadd.f32 0.0, %v3712
        %v3714 = vpop.f32.mrb[0].mxu0
        %3715 = vmatprep.mubr.f32.mxu0 0.0
        %3716 = vmatmul.mubr.f32.gmra.mrb[0].mxu0 %v3529
        %v3717 = vpop.f32.mrb[0].mxu0
        %v3718 = vadd.f32 0.0, %v3717
        %v3719 = vpop.f32.mrb[0].mxu0
        %3720 = vmatprep.mubr.f32.mxu0 0.0
        %3721 = vmatmul.mubr.f32.gmra.mrb[0].mxu0 %v3532
        %v3722 = vpop.f32.mrb[0].mxu0
        %v3723 = vadd.f32 0.0, %v3722
        %v3724 = vpop.f32.mrb[0].mxu0
        %3725 = vmatprep.mubr.f32.mxu0 0.0
        %3726 = vmatmul.mubr.f32.gmra.mrb[0].mxu0 %v3535
        %v3727 = vpop.f32.mrb[0].mxu0
        %v3728 = vadd.f32 0.0, %v3727
        %v3729 = vpop.f32.mrb[0].mxu0
        %3730 = vmatprep.mubr.f32.mxu0 0.0
        %3731 = vmatmul.mubr.f32.gmra.mrb[0].mxu0 %v3538
        %v3732 = vpop.f32.mrb[0].mxu0
        %v3733 = vadd.f32 0.0, %v3732
        %v3734 = vpop.f32.mrb[0].mxu0
        %3735 = vmatprep.mubr.f32.mxu0 0.0
        %3736 = vmatmul.mubr.f32.gmra.mrb[0].mxu0 %v3541
        %v3737 = vpop.f32.mrb[0].mxu0
        %v3738 = vadd.f32 0.0, %v3737
        %v3739 = vpop.f32.mrb[0].mxu0
        %3740 = vmatprep.mubr.f32.mxu0 0.0
        %3741 = vmatmul.mubr.f32.gmra.mrb[0].mxu0 %v3544
        %v3742 = vpop.f32.mrb[0].mxu0
        %v3743 = vadd.f32 0.0, %v3742
        %v3744 = vpop.f32.mrb[0].mxu0
        %3745 = vmatprep.mubr.f32.mxu0 0.0
        %3746 = vmatmul.mubr.f32.gmra.mrb[0].mxu0 %v3547
        %v3747 = vpop.f32.mrb[0].mxu0
        %v3748 = vadd.f32 0.0, %v3747
        %v3749 = vpop.f32.mrb[0].mxu0
        %3750 = vmatprep.mubr.f32.mxu0 0.0
        %3751 = vmatmul.mubr.f32.gmra.mrb[0].mxu0 %v3550
        %v3752 = vpop.f32.mrb[0].mxu0
        %v3753 = vadd.f32 0.0, %v3752
        %v3754 = vpop.f32.mrb[0].mxu0
        %3755 = vmatprep.mubr.f32.mxu0 0.0
        %3756 = vmatmul.mubr.f32.gmra.mrb[0].mxu0 %v3553
        %v3757 = vpop.f32.mrb[0].mxu0
        %v3758 = vadd.f32 0.0, %v3757
        %v3759 = vpop.f32.mrb[0].mxu0
        %3760 = vmatprep.mubr.f32.mxu0 0.0
        %3761 = vmatmul.mubr.f32.gmra.mrb[0].mxu0 %v3556
        %v3762 = vpop.f32.mrb[0].mxu0
        %v3763 = vadd.f32 0.0, %v3762
        %v3764 = vpop.f32.mrb[0].mxu0
        %3765 = vmatprep.mubr.f32.mxu0 0.0
        %3766 = vmatmul.mubr.f32.gmra.mrb[0].mxu0 %v3559
        %v3767 = vpop.f32.mrb[0].mxu0
        %v3768 = vadd.f32 0.0, %v3767
        %v3769 = vpop.f32.mrb[0].mxu0
        %3770 = vmatprep.mubr.f32.mxu0 0.0
        %3771 = vmatmul.mubr.f32.gmra.mrb[0].mxu0 %v3562
        %v3772 = vpop.f32.mrb[0].mxu0
        %v3773 = vadd.f32 0.0, %v3772
        %v3774 = vpop.f32.mrb[0].mxu0
        %3775 = vmatprep.mubr.f32.mxu0 0.0
        %3776 = vmatmul.mubr.f32.gmra.mrb[0].mxu0 %v3565
        %v3777 = vpop.f32.mrb[0].mxu0
        %v3778 = vadd.f32 0.0, %v3777
        %v3779 = vpop.f32.mrb[0].mxu0
        %3780 = vmatprep.mubr.f32.mxu0 0.0
        %3781 = vmatmul.mubr.f32.gmra.mrb[0].mxu0 %v3568
        %v3782 = vpop.f32.mrb[0].mxu0
        %v3783 = vadd.f32 0.0, %v3782
        %v3784 = vpop.f32.mrb[0].mxu0
        %3785 = vmatprep.mubr.f32.mxu0 0.0
        %3786 = vmatmul.mubr.f32.gmra.mrb[0].mxu0 %v3571
        %v3787 = vpop.f32.mrb[0].mxu0
        %v3788 = vadd.f32 0.0, %v3787
        %v3789 = vpop.f32.mrb[0].mxu0
        %3790 = vmatprep.mubr.f32.mxu0 0.0
        %3791 = vmatmul.mubr.f32.gmra.mrb[0].mxu0 %v3574
        %v3792 = vpop.f32.mrb[0].mxu0
        %v3793 = vadd.f32 0.0, %v3792
        %v3794 = vpop.f32.mrb[0].mxu0
        %3795 = vmatprep.mubr.f32.mxu0 0.0
        %3796 = vmatmul.mubr.f32.gmra.mrb[0].mxu0 %v3577
        %v3797 = vpop.f32.mrb[0].mxu0
        %v3798 = vadd.f32 0.0, %v3797
        %v3799 = vpop.f32.mrb[0].mxu0
        %3800 = vmatprep.mubr.f32.mxu0 0.0
        %3801 = vmatmul.mubr.f32.gmra.mrb[0].mxu0 %v3580
        %v3802 = vpop.f32.mrb[0].mxu0
        %v3803 = vadd.f32 0.0, %v3802
        %v3804 = vpop.f32.mrb[0].mxu0
        %3805 = vmatprep.mubr.f32.mxu0 0.0
        %3806 = vmatmul.mubr.f32.gmra.mrb[0].mxu0 %v3583
        %v3807 = vpop.f32.mrb[0].mxu0
        %v3808 = vadd.f32 0.0, %v3807
        %v3809 = vpop.f32.mrb[0].mxu0
        %3810 = vmatprep.mubr.f32.mxu0 0.0
        %3811 = vmatmul.mubr.f32.gmra.mrb[0].mxu0 %v3586
        %v3812 = vpop.f32.mrb[0].mxu0
        %v3813 = vadd.f32 0.0, %v3812
        %v3814 = vpop.f32.mrb[0].mxu0
        %3815 = vdwg.mxu0
        %v3816 = vadd.f32 %v3426, %v3658
        %v3817 = vadd.f32 %v3427, %v3663
        %v3818 = vadd.f32 %v3428, %v3668
        %v3819 = vadd.f32 %v3429, %v3673
        %v3820 = vadd.f32 %v3430, %v3678
        %v3821 = vadd.f32 %v3431, %v3683
        %v3822 = vadd.f32 %v3432, %v3688
        %v3823 = vadd.f32 %v3433, %v3693
        %v3824 = vadd.f32 %v3434, %v3698
        %v3825 = vadd.f32 %v3435, %v3703
        %v3826 = vadd.f32 %v3436, %v3708
        %v3827 = vadd.f32 %v3437, %v3713
        %v3828 = vadd.f32 %v3438, %v3718
        %v3829 = vadd.f32 %v3439, %v3723
        %v3830 = vadd.f32 %v3440, %v3728
        %v3831 = vadd.f32 %v3441, %v3733
        %v3832 = vadd.f32 %v3442, %v3738
        %v3833 = vadd.f32 %v3443, %v3743
        %v3834 = vadd.f32 %v3444, %v3748
        %v3835 = vadd.f32 %v3445, %v3753
        %v3836 = vadd.f32 %v3446, %v3758
        %v3837 = vadd.f32 %v3447, %v3763
        %v3838 = vadd.f32 %v3448, %v3768
        %v3839 = vadd.f32 %v3449, %v3773
        %v3840 = vadd.f32 %v3450, %v3778
        %v3841 = vadd.f32 %v3451, %v3783
        %v3842 = vadd.f32 %v3452, %v3788
        %v3843 = vadd.f32 %v3453, %v3793
        %v3844 = vadd.f32 %v3454, %v3798
        %v3845 = vadd.f32 %v3455, %v3803
        %v3846 = vadd.f32 %v3456, %v3808
        %v3847 = vadd.f32 %v3457, %v3813
        %v3849 = vlaneseq
        %v3850 = vshrl.u32 %v3849, 7
        %v3851 = vsub.s32 0, %v3850
        %v3852 = vrot.slane %v399, %v3851
        %v3854 = vmul.f32 %v3816, %v3852
        %v3855 = vmul.f32 %v3817, %v3852
        %v3856 = vmul.f32 %v3818, %v3852
        %v3857 = vmul.f32 %v3819, %v3852
        %v3858 = vmul.f32 %v3820, %v3852
        %v3859 = vmul.f32 %v3821, %v3852
        %v3860 = vmul.f32 %v3822, %v3852
        %v3861 = vmul.f32 %v3823, %v3852
        %v3862 = vmul.f32 %v3824, %v3852
        %v3863 = vmul.f32 %v3825, %v3852
        %v3864 = vmul.f32 %v3826, %v3852
        %v3865 = vmul.f32 %v3827, %v3852
        %v3866 = vmul.f32 %v3828, %v3852
        %v3867 = vmul.f32 %v3829, %v3852
        %v3868 = vmul.f32 %v3830, %v3852
        %v3869 = vmul.f32 %v3831, %v3852
        %v3870 = vmul.f32 %v3832, %v3852
        %v3871 = vmul.f32 %v3833, %v3852
        %v3872 = vmul.f32 %v3834, %v3852
        %v3873 = vmul.f32 %v3835, %v3852
        %v3874 = vmul.f32 %v3836, %v3852
        %v3875 = vmul.f32 %v3837, %v3852
        %v3876 = vmul.f32 %v3838, %v3852
        %v3877 = vmul.f32 %v3839, %v3852
        %v3878 = vmul.f32 %v3840, %v3852
        %v3879 = vmul.f32 %v3841, %v3852
        %v3880 = vmul.f32 %v3842, %v3852
        %v3881 = vmul.f32 %v3843, %v3852
        %v3882 = vmul.f32 %v3844, %v3852
        %v3883 = vmul.f32 %v3845, %v3852
        %v3884 = vmul.f32 %v3846, %v3852
        %v3885 = vmul.f32 %v3847, %v3852
        %v3887 = vlaneseq
        %v3888 = vshrl.u32 %v3887, 7
        %v3889 = vsub.s32 0, %v3888
        %v3890 = vrot.slane %v400, %v3889
        %v3892 = vadd.f32 %v3854, %v3890
        %v3893 = vadd.f32 %v3855, %v3890
        %v3894 = vadd.f32 %v3856, %v3890
        %v3895 = vadd.f32 %v3857, %v3890
        %v3896 = vadd.f32 %v3858, %v3890
        %v3897 = vadd.f32 %v3859, %v3890
        %v3898 = vadd.f32 %v3860, %v3890
        %v3899 = vadd.f32 %v3861, %v3890
        %v3900 = vadd.f32 %v3862, %v3890
        %v3901 = vadd.f32 %v3863, %v3890
        %v3902 = vadd.f32 %v3864, %v3890
        %v3903 = vadd.f32 %v3865, %v3890
        %v3904 = vadd.f32 %v3866, %v3890
        %v3905 = vadd.f32 %v3867, %v3890
        %v3906 = vadd.f32 %v3868, %v3890
        %v3907 = vadd.f32 %v3869, %v3890
        %v3908 = vadd.f32 %v3870, %v3890
        %v3909 = vadd.f32 %v3871, %v3890
        %v3910 = vadd.f32 %v3872, %v3890
        %v3911 = vadd.f32 %v3873, %v3890
        %v3912 = vadd.f32 %v3874, %v3890
        %v3913 = vadd.f32 %v3875, %v3890
        %v3914 = vadd.f32 %v3876, %v3890
        %v3915 = vadd.f32 %v3877, %v3890
        %v3916 = vadd.f32 %v3878, %v3890
        %v3917 = vadd.f32 %v3879, %v3890
        %v3918 = vadd.f32 %v3880, %v3890
        %v3919 = vadd.f32 %v3881, %v3890
        %v3920 = vadd.f32 %v3882, %v3890
        %v3921 = vadd.f32 %v3883, %v3890
        %v3922 = vadd.f32 %v3884, %v3890
        %v3923 = vadd.f32 %v3885, %v3890
        %v3924 = vmax.f32 %v3892, 0.0
        %v3925 = vmax.f32 %v3893, 0.0
        %v3926 = vmax.f32 %v3894, 0.0
        %v3927 = vmax.f32 %v3895, 0.0
        %v3928 = vmax.f32 %v3896, 0.0
        %v3929 = vmax.f32 %v3897, 0.0
        %v3930 = vmax.f32 %v3898, 0.0
        %v3931 = vmax.f32 %v3899, 0.0
        %v3932 = vmax.f32 %v3900, 0.0
        %v3933 = vmax.f32 %v3901, 0.0
        %v3934 = vmax.f32 %v3902, 0.0
        %v3935 = vmax.f32 %v3903, 0.0
        %v3936 = vmax.f32 %v3904, 0.0
        %v3937 = vmax.f32 %v3905, 0.0
        %v3938 = vmax.f32 %v3906, 0.0
        %v3939 = vmax.f32 %v3907, 0.0
        %v3940 = vmax.f32 %v3908, 0.0
        %v3941 = vmax.f32 %v3909, 0.0
        %v3942 = vmax.f32 %v3910, 0.0
        %v3943 = vmax.f32 %v3911, 0.0
        %v3944 = vmax.f32 %v3912, 0.0
        %v3945 = vmax.f32 %v3913, 0.0
        %v3946 = vmax.f32 %v3914, 0.0
        %v3947 = vmax.f32 %v3915, 0.0
        %v3948 = vmax.f32 %v3916, 0.0
        %v3949 = vmax.f32 %v3917, 0.0
        %v3950 = vmax.f32 %v3918, 0.0
        %v3951 = vmax.f32 %v3919, 0.0
        %v3952 = vmax.f32 %v3920, 0.0
        %v3953 = vmax.f32 %v3921, 0.0
        %v3954 = vmax.f32 %v3922, 0.0
        %v3955 = vmax.f32 %v3923, 0.0
        %vm3956 = vcmask 523264
        %3957 = vst.msk [vmem:[#allocation3] sm:$0xff] %vm3956, 0.0
        %3958 = vst.msk [vmem:[#allocation3 + $0x8] sm:$0xff] %vm3956, 0.0
        %vm3959 = vcmask 517120
        %3960 = vst.msk [vmem:[#allocation3 + $0x10] sm:$0x3] %vm3959, 0.0
        %3961 = vst.msk [vmem:[#allocation3 + $0x18] sm:$0xff] %vm3956, 0.0
        %3962 = vst.msk [vmem:[#allocation3 + $0x20] sm:$0xff] %vm3956, 0.0
        %3963 = vst.msk [vmem:[#allocation3 + $0x28] sm:$0x3] %vm3959, 0.0
        %3964 = vst.msk [vmem:[#allocation3 + $0x30] sm:$0xff] %vm3956, 0.0
        %3965 = vst.msk [vmem:[#allocation3 + $0x38] sm:$0xff] %vm3956, 0.0
        %3966 = vst.msk [vmem:[#allocation3 + $0x40] sm:$0x3] %vm3959, 0.0
        %3967 = vst.msk [vmem:[#allocation3 + $0x48] sm:$0xff] %vm3956, 0.0
        %3968 = vst.msk [vmem:[#allocation3 + $0x50] sm:$0xff] %vm3956, 0.0
        %3969 = vst.msk [vmem:[#allocation3 + $0x58] sm:$0x3] %vm3959, 0.0
        %3970 = vst.msk [vmem:[#allocation3 + $0x60] sm:$0xff] %vm3956, 0.0
        %3971 = vst.msk [vmem:[#allocation3 + $0x68] sm:$0xff] %vm3956, 0.0
        %3972 = vst.msk [vmem:[#allocation3 + $0x70] sm:$0x3] %vm3959, 0.0
        %3973 = vst.msk [vmem:[#allocation3 + $0x78] sm:$0xff] %vm3956, 0.0
        %3974 = vst.msk [vmem:[#allocation3 + $0x80] sm:$0xff] %vm3956, 0.0
        %3975 = vst.msk [vmem:[#allocation3 + $0x88] sm:$0x3] %vm3959, 0.0
        %3976 = vst.msk [vmem:[#allocation3 + $0x90] sm:$0xff] %vm3956, 0.0
        %3977 = vst.msk [vmem:[#allocation3 + $0x98] sm:$0xff] %vm3956, 0.0
        %3978 = vst.msk [vmem:[#allocation3 + $0xa0] sm:$0x3] %vm3959, 0.0
        %3979 = vst.msk [vmem:[#allocation3 + $0xa8] sm:$0xff] %vm3956, 0.0
        %3980 = vst.msk [vmem:[#allocation3 + $0xb0] sm:$0xff] %vm3956, 0.0
        %3981 = vst.msk [vmem:[#allocation3 + $0xb8] sm:$0x3] %vm3959, 0.0
        %3982 = vst.msk [vmem:[#allocation3 + $0xc0] sm:$0xff] %vm3956, 0.0
        %3983 = vst.msk [vmem:[#allocation3 + $0xc8] sm:$0xff] %vm3956, 0.0
        %3984 = vst.msk [vmem:[#allocation3 + $0xd0] sm:$0x3] %vm3959, 0.0
        %3985 = vst.msk [vmem:[#allocation3 + $0xd8] sm:$0xff] %vm3956, 0.0
        %3986 = vst.msk [vmem:[#allocation3 + $0xe0] sm:$0xff] %vm3956, 0.0
        %3987 = vst.msk [vmem:[#allocation3 + $0xe8] sm:$0x3] %vm3959, 0.0
        %3988 = vst.msk [vmem:[#allocation3 + $0xf0] sm:$0xff] %vm3956, 0.0
        %3989 = vst.msk [vmem:[#allocation3 + $0xf8] sm:$0xff] %vm3956, 0.0
        %3990 = vst.msk [vmem:[#allocation3 + $0x100] sm:$0x3] %vm3959, 0.0
        %3991 = vst.msk [vmem:[#allocation3 + $0x108] sm:$0xff] %vm3956, 0.0
        %3992 = vst.msk [vmem:[#allocation3 + $0x110] sm:$0xff] %vm3956, 0.0
        %3993 = vst.msk [vmem:[#allocation3 + $0x118] sm:$0x3] %vm3959, 0.0
        %3994 = vst.msk [vmem:[#allocation3 + $0x120] sm:$0xff] %vm3956, 0.0
        %3995 = vst.msk [vmem:[#allocation3 + $0x128] sm:$0xff] %vm3956, 0.0
        %3996 = vst.msk [vmem:[#allocation3 + $0x130] sm:$0x3] %vm3959, 0.0
        %3997 = vst.msk [vmem:[#allocation3 + $0x138] sm:$0xff] %vm3956, 0.0
        %3998 = vst.msk [vmem:[#allocation3 + $0x140] sm:$0xff] %vm3956, 0.0
        %3999 = vst.msk [vmem:[#allocation3 + $0x148] sm:$0x3] %vm3959, 0.0
        %4000 = vst.msk [vmem:[#allocation3 + $0x150] sm:$0xff] %vm3956, 0.0
        %4001 = vst.msk [vmem:[#allocation3 + $0x158] sm:$0xff] %vm3956, 0.0
        %4002 = vst.msk [vmem:[#allocation3 + $0x160] sm:$0x3] %vm3959, 0.0
        %4003 = vst.msk [vmem:[#allocation3 + $0x168] sm:$0xff] %vm3956, 0.0
        %4004 = vst.msk [vmem:[#allocation3 + $0x170] sm:$0xff] %vm3956, 0.0
        %4005 = vst.msk [vmem:[#allocation3 + $0x178] sm:$0x3] %vm3959, 0.0
        %4006 = vst.msk [vmem:[#allocation3 + $0x180] sm:$0xff] %vm3956, 0.0
        %4007 = vst.msk [vmem:[#allocation3 + $0x188] sm:$0xff] %vm3956, 0.0
        %4008 = vst.msk [vmem:[#allocation3 + $0x190] sm:$0x3] %vm3959, 0.0
        %4009 = vst.msk [vmem:[#allocation3 + $0x198] sm:$0xff] %vm3956, 0.0
        %4010 = vst.msk [vmem:[#allocation3 + $0x1a0] sm:$0xff] %vm3956, 0.0
        %4011 = vst.msk [vmem:[#allocation3 + $0x1a8] sm:$0x3] %vm3959, 0.0
        %s4012 = scalar_lea.vmem [#allocation3], 24
        %4013 = vst.msk [vmem:[%s4012 + $0x1] sm:$0xff] %vm3956, %v3924
        %4014 = vst.msk [vmem:[%s4012 + $0x9] sm:$0xff] %vm3956, %v3925
        %4015 = vst.msk [vmem:[%s4012 + $0x19] sm:$0xff] %vm3956, %v3926
        %4016 = vst.msk [vmem:[%s4012 + $0x21] sm:$0xff] %vm3956, %v3927
        %4017 = vst.msk [vmem:[%s4012 + $0x31] sm:$0xff] %vm3956, %v3928
        %4018 = vst.msk [vmem:[%s4012 + $0x39] sm:$0xff] %vm3956, %v3929
        %4019 = vst.msk [vmem:[%s4012 + $0x49] sm:$0xff] %vm3956, %v3930
        %4020 = vst.msk [vmem:[%s4012 + $0x51] sm:$0xff] %vm3956, %v3931
        %4021 = vst.msk [vmem:[%s4012 + $0x61] sm:$0xff] %vm3956, %v3932
        %4022 = vst.msk [vmem:[%s4012 + $0x69] sm:$0xff] %vm3956, %v3933
        %4023 = vst.msk [vmem:[%s4012 + $0x79] sm:$0xff] %vm3956, %v3934
        %4024 = vst.msk [vmem:[%s4012 + $0x81] sm:$0xff] %vm3956, %v3935
        %4025 = vst.msk [vmem:[%s4012 + $0x91] sm:$0xff] %vm3956, %v3936
        %4026 = vst.msk [vmem:[%s4012 + $0x99] sm:$0xff] %vm3956, %v3937
        %4027 = vst.msk [vmem:[%s4012 + $0xa9] sm:$0xff] %vm3956, %v3938
        %4028 = vst.msk [vmem:[%s4012 + $0xb1] sm:$0xff] %vm3956, %v3939
        %4029 = vst.msk [vmem:[%s4012 + $0xc1] sm:$0xff] %vm3956, %v3940
        %4030 = vst.msk [vmem:[%s4012 + $0xc9] sm:$0xff] %vm3956, %v3941
        %4031 = vst.msk [vmem:[%s4012 + $0xd9] sm:$0xff] %vm3956, %v3942
        %4032 = vst.msk [vmem:[%s4012 + $0xe1] sm:$0xff] %vm3956, %v3943
        %4033 = vst.msk [vmem:[%s4012 + $0xf1] sm:$0xff] %vm3956, %v3944
        %4034 = vst.msk [vmem:[%s4012 + $0xf9] sm:$0xff] %vm3956, %v3945
        %4035 = vst.msk [vmem:[%s4012 + $0x109] sm:$0xff] %vm3956, %v3946
        %4036 = vst.msk [vmem:[%s4012 + $0x111] sm:$0xff] %vm3956, %v3947
        %4037 = vst.msk [vmem:[%s4012 + $0x121] sm:$0xff] %vm3956, %v3948
        %4038 = vst.msk [vmem:[%s4012 + $0x129] sm:$0xff] %vm3956, %v3949
        %4039 = vst.msk [vmem:[%s4012 + $0x139] sm:$0xff] %vm3956, %v3950
        %4040 = vst.msk [vmem:[%s4012 + $0x141] sm:$0xff] %vm3956, %v3951
        %4041 = vst.msk [vmem:[%s4012 + $0x151] sm:$0xff] %vm3956, %v3952
        %4042 = vst.msk [vmem:[%s4012 + $0x159] sm:$0xff] %vm3956, %v3953
        %4043 = vst.msk [vmem:[%s4012 + $0x169] sm:$0xff] %vm3956, %v3954
        %4044 = vst.msk [vmem:[%s4012 + $0x171] sm:$0xff] %vm3956, %v3955
        %v4045 = vld [vmem:[#allocation3] sm:$0xff]
        %v4046 = vld [vmem:[#allocation3 + $0x8] sm:$0xff]
        %v4047 = vld [vmem:[#allocation3 + $0x18] sm:$0xff]
        %v4048 = vld [vmem:[#allocation3 + $0x20] sm:$0xff]
        %v4049 = vld [vmem:[#allocation3 + $0x30] sm:$0xff]
        %v4050 = vld [vmem:[#allocation3 + $0x38] sm:$0xff]
        %v4051 = vld [vmem:[#allocation3 + $0x48] sm:$0xff]
        %v4052 = vld [vmem:[#allocation3 + $0x50] sm:$0xff]
        %v4053 = vld [vmem:[#allocation3 + $0x60] sm:$0xff]
        %v4054 = vld [vmem:[#allocation3 + $0x68] sm:$0xff]
        %v4055 = vld [vmem:[#allocation3 + $0x78] sm:$0xff]
        %v4056 = vld [vmem:[#allocation3 + $0x80] sm:$0xff]
        %v4057 = vld [vmem:[#allocation3 + $0x90] sm:$0xff]
        %v4058 = vld [vmem:[#allocation3 + $0x98] sm:$0xff]
        %v4059 = vld [vmem:[#allocation3 + $0xa8] sm:$0xff]
        %v4060 = vld [vmem:[#allocation3 + $0xb0] sm:$0xff]
        %v4061 = vld [vmem:[#allocation3 + $0xc0] sm:$0xff]
        %v4062 = vld [vmem:[#allocation3 + $0xc8] sm:$0xff]
        %v4063 = vld [vmem:[#allocation3 + $0xd8] sm:$0xff]
        %v4064 = vld [vmem:[#allocation3 + $0xe0] sm:$0xff]
        %v4065 = vld [vmem:[#allocation3 + $0xf0] sm:$0xff]
        %v4066 = vld [vmem:[#allocation3 + $0xf8] sm:$0xff]
        %v4067 = vld [vmem:[#allocation3 + $0x108] sm:$0xff]
        %v4068 = vld [vmem:[#allocation3 + $0x110] sm:$0xff]
        %v4069 = vld [vmem:[#allocation3 + $0x120] sm:$0xff]
        %v4070 = vld [vmem:[#allocation3 + $0x128] sm:$0xff]
        %v4071 = vld [vmem:[#allocation3 + $0x138] sm:$0xff]
        %v4072 = vld [vmem:[#allocation3 + $0x140] sm:$0xff]
        %v4073 = vld [vmem:[#allocation3 + $0x150] sm:$0xff]
        %v4074 = vld [vmem:[#allocation3 + $0x158] sm:$0xff]
        %v4075 = vld [vmem:[#allocation3 + $0x168] sm:$0xff]
        %v4076 = vld [vmem:[#allocation3 + $0x170] sm:$0xff]
        %v4077 = vpack.c.bf16 %v4046, %v4045
        %v4078 = vpack.c.bf16 %v4048, %v4047
        %v4079 = vpack.c.bf16 %v4050, %v4049
        %v4080 = vpack.c.bf16 %v4052, %v4051
        %v4081 = vpack.c.bf16 %v4054, %v4053
        %v4082 = vpack.c.bf16 %v4056, %v4055
        %v4083 = vpack.c.bf16 %v4058, %v4057
        %v4084 = vpack.c.bf16 %v4060, %v4059
        %v4085 = vpack.c.bf16 %v4062, %v4061
        %v4086 = vpack.c.bf16 %v4064, %v4063
        %v4087 = vpack.c.bf16 %v4066, %v4065
        %v4088 = vpack.c.bf16 %v4068, %v4067
        %v4089 = vpack.c.bf16 %v4070, %v4069
        %v4090 = vpack.c.bf16 %v4072, %v4071
        %v4091 = vpack.c.bf16 %v4074, %v4073
        %v4092 = vpack.c.bf16 %v4076, %v4075
        %4093 = vst.msk [vmem:[#allocation4] sm:$0xff] %vm3956, %v4077
        %4094 = vst.msk [vmem:[#allocation4 + $0x28] sm:$0xff] %vm3956, %v4078
        %4095 = vst.msk [vmem:[#allocation4 + $0x50] sm:$0xff] %vm3956, %v4079
        %4096 = vst.msk [vmem:[#allocation4 + $0x78] sm:$0xff] %vm3956, %v4080
        %4097 = vst.msk [vmem:[#allocation4 + $0xa0] sm:$0xff] %vm3956, %v4081
        %4098 = vst.msk [vmem:[#allocation4 + $0xc8] sm:$0xff] %vm3956, %v4082
        %4099 = vst.msk [vmem:[#allocation4 + $0xf0] sm:$0xff] %vm3956, %v4083
        %4100 = vst.msk [vmem:[#allocation4 + $0x118] sm:$0xff] %vm3956, %v4084
        %4101 = vst.msk [vmem:[#allocation4 + $0x140] sm:$0xff] %vm3956, %v4085
        %4102 = vst.msk [vmem:[#allocation4 + $0x168] sm:$0xff] %vm3956, %v4086
        %4103 = vst.msk [vmem:[#allocation4 + $0x190] sm:$0xff] %vm3956, %v4087
        %4104 = vst.msk [vmem:[#allocation4 + $0x1b8] sm:$0xff] %vm3956, %v4088
        %4105 = vst.msk [vmem:[#allocation4 + $0x1e0] sm:$0xff] %vm3956, %v4089
        %4106 = vst.msk [vmem:[#allocation4 + $0x208] sm:$0xff] %vm3956, %v4090
        %4107 = vst.msk [vmem:[#allocation4 + $0x230] sm:$0xff] %vm3956, %v4091
        %4108 = vst.msk [vmem:[#allocation4 + $0x258] sm:$0xff] %vm3956, %v4092
        %v4109 = vld [vmem:[#allocation3 + $0x1] sm:$0xff]
        %v4110 = vld [vmem:[#allocation3 + $0x9] sm:$0xff]
        %v4111 = vld [vmem:[#allocation3 + $0x19] sm:$0xff]
        %v4112 = vld [vmem:[#allocation3 + $0x21] sm:$0xff]
        %v4113 = vld [vmem:[#allocation3 + $0x31] sm:$0xff]
        %v4114 = vld [vmem:[#allocation3 + $0x39] sm:$0xff]
        %v4115 = vld [vmem:[#allocation3 + $0x49] sm:$0xff]
        %v4116 = vld [vmem:[#allocation3 + $0x51] sm:$0xff]
        %v4117 = vld [vmem:[#allocation3 + $0x61] sm:$0xff]
        %v4118 = vld [vmem:[#allocation3 + $0x69] sm:$0xff]
        %v4119 = vld [vmem:[#allocation3 + $0x79] sm:$0xff]
        %v4120 = vld [vmem:[#allocation3 + $0x81] sm:$0xff]
        %v4121 = vld [vmem:[#allocation3 + $0x91] sm:$0xff]
        %v4122 = vld [vmem:[#allocation3 + $0x99] sm:$0xff]
        %v4123 = vld [vmem:[#allocation3 + $0xa9] sm:$0xff]
        %v4124 = vld [vmem:[#allocation3 + $0xb1] sm:$0xff]
        %v4125 = vld [vmem:[#allocation3 + $0xc1] sm:$0xff]
        %v4126 = vld [vmem:[#allocation3 + $0xc9] sm:$0xff]
        %v4127 = vld [vmem:[#allocation3 + $0xd9] sm:$0xff]
        %v4128 = vld [vmem:[#allocation3 + $0xe1] sm:$0xff]
        %v4129 = vld [vmem:[#allocation3 + $0xf1] sm:$0xff]
        %v4130 = vld [vmem:[#allocation3 + $0xf9] sm:$0xff]
        %v4131 = vld [vmem:[#allocation3 + $0x109] sm:$0xff]
        %v4132 = vld [vmem:[#allocation3 + $0x111] sm:$0xff]
        %v4133 = vld [vmem:[#allocation3 + $0x121] sm:$0xff]
        %v4134 = vld [vmem:[#allocation3 + $0x129] sm:$0xff]
        %v4135 = vld [vmem:[#allocation3 + $0x139] sm:$0xff]
        %v4136 = vld [vmem:[#allocation3 + $0x141] sm:$0xff]
        %v4137 = vld [vmem:[#allocation3 + $0x151] sm:$0xff]
        %v4138 = vld [vmem:[#allocation3 + $0x159] sm:$0xff]
        %v4139 = vld [vmem:[#allocation3 + $0x169] sm:$0xff]
        %v4140 = vld [vmem:[#allocation3 + $0x171] sm:$0xff]
        %v4141 = vpack.c.bf16 %v4110, %v4109
        %v4142 = vpack.c.bf16 %v4112, %v4111
        %v4143 = vpack.c.bf16 %v4114, %v4113
        %v4144 = vpack.c.bf16 %v4116, %v4115
        %v4145 = vpack.c.bf16 %v4118, %v4117
        %v4146 = vpack.c.bf16 %v4120, %v4119
        %v4147 = vpack.c.bf16 %v4122, %v4121
        %v4148 = vpack.c.bf16 %v4124, %v4123
        %v4149 = vpack.c.bf16 %v4126, %v4125
        %v4150 = vpack.c.bf16 %v4128, %v4127
        %v4151 = vpack.c.bf16 %v4130, %v4129
        %v4152 = vpack.c.bf16 %v4132, %v4131
        %v4153 = vpack.c.bf16 %v4134, %v4133
        %v4154 = vpack.c.bf16 %v4136, %v4135
        %v4155 = vpack.c.bf16 %v4138, %v4137
        %v4156 = vpack.c.bf16 %v4140, %v4139
        %4173 = vrot.lane.b32.xlu0 %v4141, 64
        %v4174 = vpop.permute.xlu0 %4173
        %4175 = vrot.lane.b32.xlu0 %v4142, 64
        %v4176 = vpop.permute.xlu0 %4175
        %4177 = vrot.lane.b32.xlu0 %v4143, 64
        %v4178 = vpop.permute.xlu0 %4177
        %4179 = vrot.lane.b32.xlu0 %v4144, 64
        %v4180 = vpop.permute.xlu0 %4179
        %4181 = vrot.lane.b32.xlu0 %v4145, 64
        %v4182 = vpop.permute.xlu0 %4181
        %4183 = vrot.lane.b32.xlu0 %v4146, 64
        %v4184 = vpop.permute.xlu0 %4183
        %4185 = vrot.lane.b32.xlu0 %v4147, 64
        %v4186 = vpop.permute.xlu0 %4185
        %4187 = vrot.lane.b32.xlu0 %v4148, 64
        %v4188 = vpop.permute.xlu0 %4187
        %4189 = vrot.lane.b32.xlu0 %v4149, 64
        %v4190 = vpop.permute.xlu0 %4189
        %4191 = vrot.lane.b32.xlu0 %v4150, 64
        %v4192 = vpop.permute.xlu0 %4191
        %4193 = vrot.lane.b32.xlu0 %v4151, 64
        %v4194 = vpop.permute.xlu0 %4193
        %4195 = vrot.lane.b32.xlu0 %v4152, 64
        %v4196 = vpop.permute.xlu0 %4195
        %4197 = vrot.lane.b32.xlu0 %v4153, 64
        %v4198 = vpop.permute.xlu0 %4197
        %4199 = vrot.lane.b32.xlu0 %v4154, 64
        %v4200 = vpop.permute.xlu0 %4199
        %4201 = vrot.lane.b32.xlu0 %v4155, 64
        %v4202 = vpop.permute.xlu0 %4201
        %4203 = vrot.lane.b32.xlu0 %v4156, 64
        %v4204 = vpop.permute.xlu0 %4203
        %vm4221 = vcmask 1048064
        %4222 = vst.msk [vmem:[#allocation4] sm:$0xff] %vm4221, %v4174
        %4223 = vst.msk [vmem:[#allocation4 + $0x28] sm:$0xff] %vm4221, %v4176
        %4224 = vst.msk [vmem:[#allocation4 + $0x50] sm:$0xff] %vm4221, %v4178
        %4225 = vst.msk [vmem:[#allocation4 + $0x78] sm:$0xff] %vm4221, %v4180
        %4226 = vst.msk [vmem:[#allocation4 + $0xa0] sm:$0xff] %vm4221, %v4182
        %4227 = vst.msk [vmem:[#allocation4 + $0xc8] sm:$0xff] %vm4221, %v4184
        %4228 = vst.msk [vmem:[#allocation4 + $0xf0] sm:$0xff] %vm4221, %v4186
        %4229 = vst.msk [vmem:[#allocation4 + $0x118] sm:$0xff] %vm4221, %v4188
        %4230 = vst.msk [vmem:[#allocation4 + $0x140] sm:$0xff] %vm4221, %v4190
        %4231 = vst.msk [vmem:[#allocation4 + $0x168] sm:$0xff] %vm4221, %v4192
        %4232 = vst.msk [vmem:[#allocation4 + $0x190] sm:$0xff] %vm4221, %v4194
        %4233 = vst.msk [vmem:[#allocation4 + $0x1b8] sm:$0xff] %vm4221, %v4196
        %4234 = vst.msk [vmem:[#allocation4 + $0x1e0] sm:$0xff] %vm4221, %v4198
        %4235 = vst.msk [vmem:[#allocation4 + $0x208] sm:$0xff] %vm4221, %v4200
        %4236 = vst.msk [vmem:[#allocation4 + $0x230] sm:$0xff] %vm4221, %v4202
        %4237 = vst.msk [vmem:[#allocation4 + $0x258] sm:$0xff] %vm4221, %v4204
        %v4238 = vld [vmem:[#allocation3 + $0x2] sm:$0xff]
        %v4239 = vld [vmem:[#allocation3 + $0xa] sm:$0xff]
        %v4240 = vld [vmem:[#allocation3 + $0x1a] sm:$0xff]
        %v4241 = vld [vmem:[#allocation3 + $0x22] sm:$0xff]
        %v4242 = vld [vmem:[#allocation3 + $0x32] sm:$0xff]
        %v4243 = vld [vmem:[#allocation3 + $0x3a] sm:$0xff]
        %v4244 = vld [vmem:[#allocation3 + $0x4a] sm:$0xff]
        %v4245 = vld [vmem:[#allocation3 + $0x52] sm:$0xff]
        %v4246 = vld [vmem:[#allocation3 + $0x62] sm:$0xff]
        %v4247 = vld [vmem:[#allocation3 + $0x6a] sm:$0xff]
        %v4248 = vld [vmem:[#allocation3 + $0x7a] sm:$0xff]
        %v4249 = vld [vmem:[#allocation3 + $0x82] sm:$0xff]
        %v4250 = vld [vmem:[#allocation3 + $0x92] sm:$0xff]
        %v4251 = vld [vmem:[#allocation3 + $0x9a] sm:$0xff]
        %v4252 = vld [vmem:[#allocation3 + $0xaa] sm:$0xff]
        %v4253 = vld [vmem:[#allocation3 + $0xb2] sm:$0xff]
        %v4254 = vld [vmem:[#allocation3 + $0xc2] sm:$0xff]
        %v4255 = vld [vmem:[#allocation3 + $0xca] sm:$0xff]
        %v4256 = vld [vmem:[#allocation3 + $0xda] sm:$0xff]
        %v4257 = vld [vmem:[#allocation3 + $0xe2] sm:$0xff]
        %v4258 = vld [vmem:[#allocation3 + $0xf2] sm:$0xff]
        %v4259 = vld [vmem:[#allocation3 + $0xfa] sm:$0xff]
        %v4260 = vld [vmem:[#allocation3 + $0x10a] sm:$0xff]
        %v4261 = vld [vmem:[#allocation3 + $0x112] sm:$0xff]
        %v4262 = vld [vmem:[#allocation3 + $0x122] sm:$0xff]
        %v4263 = vld [vmem:[#allocation3 + $0x12a] sm:$0xff]
        %v4264 = vld [vmem:[#allocation3 + $0x13a] sm:$0xff]
        %v4265 = vld [vmem:[#allocation3 + $0x142] sm:$0xff]
        %v4266 = vld [vmem:[#allocation3 + $0x152] sm:$0xff]
        %v4267 = vld [vmem:[#allocation3 + $0x15a] sm:$0xff]
        %v4268 = vld [vmem:[#allocation3 + $0x16a] sm:$0xff]
        %v4269 = vld [vmem:[#allocation3 + $0x172] sm:$0xff]
        %v4270 = vpack.c.bf16 %v4239, %v4238
        %v4271 = vpack.c.bf16 %v4241, %v4240
        %v4272 = vpack.c.bf16 %v4243, %v4242
        %v4273 = vpack.c.bf16 %v4245, %v4244
        %v4274 = vpack.c.bf16 %v4247, %v4246
        %v4275 = vpack.c.bf16 %v4249, %v4248
        %v4276 = vpack.c.bf16 %v4251, %v4250
        %v4277 = vpack.c.bf16 %v4253, %v4252
        %v4278 = vpack.c.bf16 %v4255, %v4254
        %v4279 = vpack.c.bf16 %v4257, %v4256
        %v4280 = vpack.c.bf16 %v4259, %v4258
        %v4281 = vpack.c.bf16 %v4261, %v4260
        %v4282 = vpack.c.bf16 %v4263, %v4262
        %v4283 = vpack.c.bf16 %v4265, %v4264
        %v4284 = vpack.c.bf16 %v4267, %v4266
        %v4285 = vpack.c.bf16 %v4269, %v4268
        %4286 = vst.msk [vmem:[#allocation4 + $0x8] sm:$0xff] %vm3956, %v4270
        %4287 = vst.msk [vmem:[#allocation4 + $0x30] sm:$0xff] %vm3956, %v4271
        %4288 = vst.msk [vmem:[#allocation4 + $0x58] sm:$0xff] %vm3956, %v4272
        %4289 = vst.msk [vmem:[#allocation4 + $0x80] sm:$0xff] %vm3956, %v4273
        %4290 = vst.msk [vmem:[#allocation4 + $0xa8] sm:$0xff] %vm3956, %v4274
        %4291 = vst.msk [vmem:[#allocation4 + $0xd0] sm:$0xff] %vm3956, %v4275
        %4292 = vst.msk [vmem:[#allocation4 + $0xf8] sm:$0xff] %vm3956, %v4276
        %4293 = vst.msk [vmem:[#allocation4 + $0x120] sm:$0xff] %vm3956, %v4277
        %4294 = vst.msk [vmem:[#allocation4 + $0x148] sm:$0xff] %vm3956, %v4278
        %4295 = vst.msk [vmem:[#allocation4 + $0x170] sm:$0xff] %vm3956, %v4279
        %4296 = vst.msk [vmem:[#allocation4 + $0x198] sm:$0xff] %vm3956, %v4280
        %4297 = vst.msk [vmem:[#allocation4 + $0x1c0] sm:$0xff] %vm3956, %v4281
        %4298 = vst.msk [vmem:[#allocation4 + $0x1e8] sm:$0xff] %vm3956, %v4282
        %4299 = vst.msk [vmem:[#allocation4 + $0x210] sm:$0xff] %vm3956, %v4283
        %4300 = vst.msk [vmem:[#allocation4 + $0x238] sm:$0xff] %vm3956, %v4284
        %4301 = vst.msk [vmem:[#allocation4 + $0x260] sm:$0xff] %vm3956, %v4285
        %v4302 = vld [vmem:[%s4012] sm:$0xff]
        %v4303 = vld [vmem:[%s4012 + $0x8] sm:$0xff]
        %v4304 = vld [vmem:[%s4012 + $0x18] sm:$0xff]
        %v4305 = vld [vmem:[%s4012 + $0x20] sm:$0xff]
        %v4306 = vld [vmem:[%s4012 + $0x30] sm:$0xff]
        %v4307 = vld [vmem:[%s4012 + $0x38] sm:$0xff]
        %v4308 = vld [vmem:[%s4012 + $0x48] sm:$0xff]
        %v4309 = vld [vmem:[%s4012 + $0x50] sm:$0xff]
        %v4310 = vld [vmem:[%s4012 + $0x60] sm:$0xff]
        %v4311 = vld [vmem:[%s4012 + $0x68] sm:$0xff]
        %v4312 = vld [vmem:[%s4012 + $0x78] sm:$0xff]
        %v4313 = vld [vmem:[%s4012 + $0x80] sm:$0xff]
        %v4314 = vld [vmem:[%s4012 + $0x90] sm:$0xff]
        %v4315 = vld [vmem:[%s4012 + $0x98] sm:$0xff]
        %v4316 = vld [vmem:[%s4012 + $0xa8] sm:$0xff]
        %v4317 = vld [vmem:[%s4012 + $0xb0] sm:$0xff]
        %v4318 = vld [vmem:[%s4012 + $0xc0] sm:$0xff]
        %v4319 = vld [vmem:[%s4012 + $0xc8] sm:$0xff]
        %v4320 = vld [vmem:[%s4012 + $0xd8] sm:$0xff]
        %v4321 = vld [vmem:[%s4012 + $0xe0] sm:$0xff]
        %v4322 = vld [vmem:[%s4012 + $0xf0] sm:$0xff]
        %v4323 = vld [vmem:[%s4012 + $0xf8] sm:$0xff]
        %v4324 = vld [vmem:[%s4012 + $0x108] sm:$0xff]
        %v4325 = vld [vmem:[%s4012 + $0x110] sm:$0xff]
        %v4326 = vld [vmem:[%s4012 + $0x120] sm:$0xff]
        %v4327 = vld [vmem:[%s4012 + $0x128] sm:$0xff]
        %v4328 = vld [vmem:[%s4012 + $0x138] sm:$0xff]
        %v4329 = vld [vmem:[%s4012 + $0x140] sm:$0xff]
        %v4330 = vld [vmem:[%s4012 + $0x150] sm:$0xff]
        %v4331 = vld [vmem:[%s4012 + $0x158] sm:$0xff]
        %v4332 = vld [vmem:[%s4012 + $0x168] sm:$0xff]
        %v4333 = vld [vmem:[%s4012 + $0x170] sm:$0xff]
        %v4334 = vpack.c.bf16 %v4303, %v4302
        %v4335 = vpack.c.bf16 %v4305, %v4304
        %v4336 = vpack.c.bf16 %v4307, %v4306
        %v4337 = vpack.c.bf16 %v4309, %v4308
        %v4338 = vpack.c.bf16 %v4311, %v4310
        %v4339 = vpack.c.bf16 %v4313, %v4312
        %v4340 = vpack.c.bf16 %v4315, %v4314
        %v4341 = vpack.c.bf16 %v4317, %v4316
        %v4342 = vpack.c.bf16 %v4319, %v4318
        %v4343 = vpack.c.bf16 %v4321, %v4320
        %v4344 = vpack.c.bf16 %v4323, %v4322
        %v4345 = vpack.c.bf16 %v4325, %v4324
        %v4346 = vpack.c.bf16 %v4327, %v4326
        %v4347 = vpack.c.bf16 %v4329, %v4328
        %v4348 = vpack.c.bf16 %v4331, %v4330
        %v4349 = vpack.c.bf16 %v4333, %v4332
        %4366 = vrot.lane.b32.xlu0 %v4334, 64
        %v4367 = vpop.permute.xlu0 %4366
        %4368 = vrot.lane.b32.xlu0 %v4335, 64
        %v4369 = vpop.permute.xlu0 %4368
        %4370 = vrot.lane.b32.xlu0 %v4336, 64
        %v4371 = vpop.permute.xlu0 %4370
        %4372 = vrot.lane.b32.xlu0 %v4337, 64
        %v4373 = vpop.permute.xlu0 %4372
        %4374 = vrot.lane.b32.xlu0 %v4338, 64
        %v4375 = vpop.permute.xlu0 %4374
        %4376 = vrot.lane.b32.xlu0 %v4339, 64
        %v4377 = vpop.permute.xlu0 %4376
        %4378 = vrot.lane.b32.xlu0 %v4340, 64
        %v4379 = vpop.permute.xlu0 %4378
        %4380 = vrot.lane.b32.xlu0 %v4341, 64
        %v4381 = vpop.permute.xlu0 %4380
        %4382 = vrot.lane.b32.xlu0 %v4342, 64
        %v4383 = vpop.permute.xlu0 %4382
        %4384 = vrot.lane.b32.xlu0 %v4343, 64
        %v4385 = vpop.permute.xlu0 %4384
        %4386 = vrot.lane.b32.xlu0 %v4344, 64
        %v4387 = vpop.permute.xlu0 %4386
        %4388 = vrot.lane.b32.xlu0 %v4345, 64
        %v4389 = vpop.permute.xlu0 %4388
        %4390 = vrot.lane.b32.xlu0 %v4346, 64
        %v4391 = vpop.permute.xlu0 %4390
        %4392 = vrot.lane.b32.xlu0 %v4347, 64
        %v4393 = vpop.permute.xlu0 %4392
        %4394 = vrot.lane.b32.xlu0 %v4348, 64
        %v4395 = vpop.permute.xlu0 %4394
        %4396 = vrot.lane.b32.xlu0 %v4349, 64
        %v4397 = vpop.permute.xlu0 %4396
        %4414 = vst.msk [vmem:[#allocation4 + $0x8] sm:$0xff] %vm4221, %v4367
        %4415 = vst.msk [vmem:[#allocation4 + $0x30] sm:$0xff] %vm4221, %v4369
        %4416 = vst.msk [vmem:[#allocation4 + $0x58] sm:$0xff] %vm4221, %v4371
        %4417 = vst.msk [vmem:[#allocation4 + $0x80] sm:$0xff] %vm4221, %v4373
        %4418 = vst.msk [vmem:[#allocation4 + $0xa8] sm:$0xff] %vm4221, %v4375
        %4419 = vst.msk [vmem:[#allocation4 + $0xd0] sm:$0xff] %vm4221, %v4377
        %4420 = vst.msk [vmem:[#allocation4 + $0xf8] sm:$0xff] %vm4221, %v4379
        %4421 = vst.msk [vmem:[#allocation4 + $0x120] sm:$0xff] %vm4221, %v4381
        %4422 = vst.msk [vmem:[#allocation4 + $0x148] sm:$0xff] %vm4221, %v4383
        %4423 = vst.msk [vmem:[#allocation4 + $0x170] sm:$0xff] %vm4221, %v4385
        %4424 = vst.msk [vmem:[#allocation4 + $0x198] sm:$0xff] %vm4221, %v4387
        %4425 = vst.msk [vmem:[#allocation4 + $0x1c0] sm:$0xff] %vm4221, %v4389
        %4426 = vst.msk [vmem:[#allocation4 + $0x1e8] sm:$0xff] %vm4221, %v4391
        %4427 = vst.msk [vmem:[#allocation4 + $0x210] sm:$0xff] %vm4221, %v4393
        %4428 = vst.msk [vmem:[#allocation4 + $0x238] sm:$0xff] %vm4221, %v4395
        %4429 = vst.msk [vmem:[#allocation4 + $0x260] sm:$0xff] %vm4221, %v4397
        %v4430 = vld [vmem:[%s4012 + $0x1] sm:$0xff]
        %v4431 = vld [vmem:[%s4012 + $0x9] sm:$0xff]
        %v4432 = vld [vmem:[%s4012 + $0x19] sm:$0xff]
        %v4433 = vld [vmem:[%s4012 + $0x21] sm:$0xff]
        %v4434 = vld [vmem:[%s4012 + $0x31] sm:$0xff]
        %v4435 = vld [vmem:[%s4012 + $0x39] sm:$0xff]
        %v4436 = vld [vmem:[%s4012 + $0x49] sm:$0xff]
        %v4437 = vld [vmem:[%s4012 + $0x51] sm:$0xff]
        %v4438 = vld [vmem:[%s4012 + $0x61] sm:$0xff]
        %v4439 = vld [vmem:[%s4012 + $0x69] sm:$0xff]
        %v4440 = vld [vmem:[%s4012 + $0x79] sm:$0xff]
        %v4441 = vld [vmem:[%s4012 + $0x81] sm:$0xff]
        %v4442 = vld [vmem:[%s4012 + $0x91] sm:$0xff]
        %v4443 = vld [vmem:[%s4012 + $0x99] sm:$0xff]
        %v4444 = vld [vmem:[%s4012 + $0xa9] sm:$0xff]
        %v4445 = vld [vmem:[%s4012 + $0xb1] sm:$0xff]
        %v4446 = vld [vmem:[%s4012 + $0xc1] sm:$0xff]
        %v4447 = vld [vmem:[%s4012 + $0xc9] sm:$0xff]
        %v4448 = vld [vmem:[%s4012 + $0xd9] sm:$0xff]
        %v4449 = vld [vmem:[%s4012 + $0xe1] sm:$0xff]
        %v4450 = vld [vmem:[%s4012 + $0xf1] sm:$0xff]
        %v4451 = vld [vmem:[%s4012 + $0xf9] sm:$0xff]
        %v4452 = vld [vmem:[%s4012 + $0x109] sm:$0xff]
        %v4453 = vld [vmem:[%s4012 + $0x111] sm:$0xff]
        %v4454 = vld [vmem:[%s4012 + $0x121] sm:$0xff]
        %v4455 = vld [vmem:[%s4012 + $0x129] sm:$0xff]
        %v4456 = vld [vmem:[%s4012 + $0x139] sm:$0xff]
        %v4457 = vld [vmem:[%s4012 + $0x141] sm:$0xff]
        %v4458 = vld [vmem:[%s4012 + $0x151] sm:$0xff]
        %v4459 = vld [vmem:[%s4012 + $0x159] sm:$0xff]
        %v4460 = vld [vmem:[%s4012 + $0x169] sm:$0xff]
        %v4461 = vld [vmem:[%s4012 + $0x171] sm:$0xff]
        %v4462 = vpack.c.bf16 %v4431, %v4430
        %v4463 = vpack.c.bf16 %v4433, %v4432
        %v4464 = vpack.c.bf16 %v4435, %v4434
        %v4465 = vpack.c.bf16 %v4437, %v4436
        %v4466 = vpack.c.bf16 %v4439, %v4438
        %v4467 = vpack.c.bf16 %v4441, %v4440
        %v4468 = vpack.c.bf16 %v4443, %v4442
        %v4469 = vpack.c.bf16 %v4445, %v4444
        %v4470 = vpack.c.bf16 %v4447, %v4446
        %v4471 = vpack.c.bf16 %v4449, %v4448
        %v4472 = vpack.c.bf16 %v4451, %v4450
        %v4473 = vpack.c.bf16 %v4453, %v4452
        %v4474 = vpack.c.bf16 %v4455, %v4454
        %v4475 = vpack.c.bf16 %v4457, %v4456
        %v4476 = vpack.c.bf16 %v4459, %v4458
        %v4477 = vpack.c.bf16 %v4461, %v4460
        %4478 = vst.msk [vmem:[#allocation4 + $0x10] sm:$0xff] %vm3956, %v4462
        %4479 = vst.msk [vmem:[#allocation4 + $0x38] sm:$0xff] %vm3956, %v4463
        %4480 = vst.msk [vmem:[#allocation4 + $0x60] sm:$0xff] %vm3956, %v4464
        %4481 = vst.msk [vmem:[#allocation4 + $0x88] sm:$0xff] %vm3956, %v4465
        %4482 = vst.msk [vmem:[#allocation4 + $0xb0] sm:$0xff] %vm3956, %v4466
        %4483 = vst.msk [vmem:[#allocation4 + $0xd8] sm:$0xff] %vm3956, %v4467
        %4484 = vst.msk [vmem:[#allocation4 + $0x100] sm:$0xff] %vm3956, %v4468
        %4485 = vst.msk [vmem:[#allocation4 + $0x128] sm:$0xff] %vm3956, %v4469
        %4486 = vst.msk [vmem:[#allocation4 + $0x150] sm:$0xff] %vm3956, %v4470
        %4487 = vst.msk [vmem:[#allocation4 + $0x178] sm:$0xff] %vm3956, %v4471
        %4488 = vst.msk [vmem:[#allocation4 + $0x1a0] sm:$0xff] %vm3956, %v4472
        %4489 = vst.msk [vmem:[#allocation4 + $0x1c8] sm:$0xff] %vm3956, %v4473
        %4490 = vst.msk [vmem:[#allocation4 + $0x1f0] sm:$0xff] %vm3956, %v4474
        %4491 = vst.msk [vmem:[#allocation4 + $0x218] sm:$0xff] %vm3956, %v4475
        %4492 = vst.msk [vmem:[#allocation4 + $0x240] sm:$0xff] %vm3956, %v4476
        %4493 = vst.msk [vmem:[#allocation4 + $0x268] sm:$0xff] %vm3956, %v4477
        %v4494 = vld [vmem:[%s4012 + $0x2] sm:$0xff]
        %v4495 = vld [vmem:[%s4012 + $0xa] sm:$0xff]
        %v4496 = vld [vmem:[%s4012 + $0x1a] sm:$0xff]
        %v4497 = vld [vmem:[%s4012 + $0x22] sm:$0xff]
        %v4498 = vld [vmem:[%s4012 + $0x32] sm:$0xff]
        %v4499 = vld [vmem:[%s4012 + $0x3a] sm:$0xff]
        %v4500 = vld [vmem:[%s4012 + $0x4a] sm:$0xff]
        %v4501 = vld [vmem:[%s4012 + $0x52] sm:$0xff]
        %v4502 = vld [vmem:[%s4012 + $0x62] sm:$0xff]
        %v4503 = vld [vmem:[%s4012 + $0x6a] sm:$0xff]
        %v4504 = vld [vmem:[%s4012 + $0x7a] sm:$0xff]
        %v4505 = vld [vmem:[%s4012 + $0x82] sm:$0xff]
        %v4506 = vld [vmem:[%s4012 + $0x92] sm:$0xff]
        %v4507 = vld [vmem:[%s4012 + $0x9a] sm:$0xff]
        %v4508 = vld [vmem:[%s4012 + $0xaa] sm:$0xff]
        %v4509 = vld [vmem:[%s4012 + $0xb2] sm:$0xff]
        %v4510 = vld [vmem:[%s4012 + $0xc2] sm:$0xff]
        %v4511 = vld [vmem:[%s4012 + $0xca] sm:$0xff]
        %v4512 = vld [vmem:[%s4012 + $0xda] sm:$0xff]
        %v4513 = vld [vmem:[%s4012 + $0xe2] sm:$0xff]
        %v4514 = vld [vmem:[%s4012 + $0xf2] sm:$0xff]
        %v4515 = vld [vmem:[%s4012 + $0xfa] sm:$0xff]
        %v4516 = vld [vmem:[%s4012 + $0x10a] sm:$0xff]
        %v4517 = vld [vmem:[%s4012 + $0x112] sm:$0xff]
        %v4518 = vld [vmem:[%s4012 + $0x122] sm:$0xff]
        %v4519 = vld [vmem:[%s4012 + $0x12a] sm:$0xff]
        %v4520 = vld [vmem:[%s4012 + $0x13a] sm:$0xff]
        %v4521 = vld [vmem:[%s4012 + $0x142] sm:$0xff]
        %v4522 = vld [vmem:[%s4012 + $0x152] sm:$0xff]
        %v4523 = vld [vmem:[%s4012 + $0x15a] sm:$0xff]
        %v4524 = vld [vmem:[%s4012 + $0x16a] sm:$0xff]
        %v4525 = vld [vmem:[%s4012 + $0x172] sm:$0xff]
        %v4526 = vpack.c.bf16 %v4495, %v4494
        %v4527 = vpack.c.bf16 %v4497, %v4496
        %v4528 = vpack.c.bf16 %v4499, %v4498
        %v4529 = vpack.c.bf16 %v4501, %v4500
        %v4530 = vpack.c.bf16 %v4503, %v4502
        %v4531 = vpack.c.bf16 %v4505, %v4504
        %v4532 = vpack.c.bf16 %v4507, %v4506
        %v4533 = vpack.c.bf16 %v4509, %v4508
        %v4534 = vpack.c.bf16 %v4511, %v4510
        %v4535 = vpack.c.bf16 %v4513, %v4512
        %v4536 = vpack.c.bf16 %v4515, %v4514
        %v4537 = vpack.c.bf16 %v4517, %v4516
        %v4538 = vpack.c.bf16 %v4519, %v4518
        %v4539 = vpack.c.bf16 %v4521, %v4520
        %v4540 = vpack.c.bf16 %v4523, %v4522
        %v4541 = vpack.c.bf16 %v4525, %v4524
        %4558 = vrot.lane.b32.xlu0 %v4526, 64
        %v4559 = vpop.permute.xlu0 %4558
        %4560 = vrot.lane.b32.xlu0 %v4527, 64
        %v4561 = vpop.permute.xlu0 %4560
        %4562 = vrot.lane.b32.xlu0 %v4528, 64
        %v4563 = vpop.permute.xlu0 %4562
        %4564 = vrot.lane.b32.xlu0 %v4529, 64
        %v4565 = vpop.permute.xlu0 %4564
        %4566 = vrot.lane.b32.xlu0 %v4530, 64
        %v4567 = vpop.permute.xlu0 %4566
        %4568 = vrot.lane.b32.xlu0 %v4531, 64
        %v4569 = vpop.permute.xlu0 %4568
        %4570 = vrot.lane.b32.xlu0 %v4532, 64
        %v4571 = vpop.permute.xlu0 %4570
        %4572 = vrot.lane.b32.xlu0 %v4533, 64
        %v4573 = vpop.permute.xlu0 %4572
        %4574 = vrot.lane.b32.xlu0 %v4534, 64
        %v4575 = vpop.permute.xlu0 %4574
        %4576 = vrot.lane.b32.xlu0 %v4535, 64
        %v4577 = vpop.permute.xlu0 %4576
        %4578 = vrot.lane.b32.xlu0 %v4536, 64
        %v4579 = vpop.permute.xlu0 %4578
        %4580 = vrot.lane.b32.xlu0 %v4537, 64
        %v4581 = vpop.permute.xlu0 %4580
        %4582 = vrot.lane.b32.xlu0 %v4538, 64
        %v4583 = vpop.permute.xlu0 %4582
        %4584 = vrot.lane.b32.xlu0 %v4539, 64
        %v4585 = vpop.permute.xlu0 %4584
        %4586 = vrot.lane.b32.xlu0 %v4540, 64
        %v4587 = vpop.permute.xlu0 %4586
        %4588 = vrot.lane.b32.xlu0 %v4541, 64
        %v4589 = vpop.permute.xlu0 %4588
        %4606 = vst.msk [vmem:[#allocation4 + $0x10] sm:$0xff] %vm4221, %v4559
        %4607 = vst.msk [vmem:[#allocation4 + $0x38] sm:$0xff] %vm4221, %v4561
        %4608 = vst.msk [vmem:[#allocation4 + $0x60] sm:$0xff] %vm4221, %v4563
        %4609 = vst.msk [vmem:[#allocation4 + $0x88] sm:$0xff] %vm4221, %v4565
        %4610 = vst.msk [vmem:[#allocation4 + $0xb0] sm:$0xff] %vm4221, %v4567
        %4611 = vst.msk [vmem:[#allocation4 + $0xd8] sm:$0xff] %vm4221, %v4569
        %4612 = vst.msk [vmem:[#allocation4 + $0x100] sm:$0xff] %vm4221, %v4571
        %4613 = vst.msk [vmem:[#allocation4 + $0x128] sm:$0xff] %vm4221, %v4573
        %4614 = vst.msk [vmem:[#allocation4 + $0x150] sm:$0xff] %vm4221, %v4575
        %4615 = vst.msk [vmem:[#allocation4 + $0x178] sm:$0xff] %vm4221, %v4577
        %4616 = vst.msk [vmem:[#allocation4 + $0x1a0] sm:$0xff] %vm4221, %v4579
        %4617 = vst.msk [vmem:[#allocation4 + $0x1c8] sm:$0xff] %vm4221, %v4581
        %4618 = vst.msk [vmem:[#allocation4 + $0x1f0] sm:$0xff] %vm4221, %v4583
        %4619 = vst.msk [vmem:[#allocation4 + $0x218] sm:$0xff] %vm4221, %v4585
        %4620 = vst.msk [vmem:[#allocation4 + $0x240] sm:$0xff] %vm4221, %v4587
        %4621 = vst.msk [vmem:[#allocation4 + $0x268] sm:$0xff] %vm4221, %v4589
        %s4622 = scalar_lea.vmem [#allocation3], 48
        %v4623 = vld [vmem:[%s4622] sm:$0xff]
        %v4624 = vld [vmem:[%s4622 + $0x8] sm:$0xff]
        %v4625 = vld [vmem:[%s4622 + $0x18] sm:$0xff]
        %v4626 = vld [vmem:[%s4622 + $0x20] sm:$0xff]
        %v4627 = vld [vmem:[%s4622 + $0x30] sm:$0xff]
        %v4628 = vld [vmem:[%s4622 + $0x38] sm:$0xff]
        %v4629 = vld [vmem:[%s4622 + $0x48] sm:$0xff]
        %v4630 = vld [vmem:[%s4622 + $0x50] sm:$0xff]
        %v4631 = vld [vmem:[%s4622 + $0x60] sm:$0xff]
        %v4632 = vld [vmem:[%s4622 + $0x68] sm:$0xff]
        %v4633 = vld [vmem:[%s4622 + $0x78] sm:$0xff]
        %v4634 = vld [vmem:[%s4622 + $0x80] sm:$0xff]
        %v4635 = vld [vmem:[%s4622 + $0x90] sm:$0xff]
        %v4636 = vld [vmem:[%s4622 + $0x98] sm:$0xff]
        %v4637 = vld [vmem:[%s4622 + $0xa8] sm:$0xff]
        %v4638 = vld [vmem:[%s4622 + $0xb0] sm:$0xff]
        %v4639 = vld [vmem:[%s4622 + $0xc0] sm:$0xff]
        %v4640 = vld [vmem:[%s4622 + $0xc8] sm:$0xff]
        %v4641 = vld [vmem:[%s4622 + $0xd8] sm:$0xff]
        %v4642 = vld [vmem:[%s4622 + $0xe0] sm:$0xff]
        %v4643 = vld [vmem:[%s4622 + $0xf0] sm:$0xff]
        %v4644 = vld [vmem:[%s4622 + $0xf8] sm:$0xff]
        %v4645 = vld [vmem:[%s4622 + $0x108] sm:$0xff]
        %v4646 = vld [vmem:[%s4622 + $0x110] sm:$0xff]
        %v4647 = vld [vmem:[%s4622 + $0x120] sm:$0xff]
        %v4648 = vld [vmem:[%s4622 + $0x128] sm:$0xff]
        %v4649 = vld [vmem:[%s4622 + $0x138] sm:$0xff]
        %v4650 = vld [vmem:[%s4622 + $0x140] sm:$0xff]
        %v4651 = vld [vmem:[%s4622 + $0x150] sm:$0xff]
        %v4652 = vld [vmem:[%s4622 + $0x158] sm:$0xff]
        %v4653 = vld [vmem:[%s4622 + $0x168] sm:$0xff]
        %v4654 = vld [vmem:[%s4622 + $0x170] sm:$0xff]
        %v4655 = vpack.c.bf16 %v4624, %v4623
        %v4656 = vpack.c.bf16 %v4626, %v4625
        %v4657 = vpack.c.bf16 %v4628, %v4627
        %v4658 = vpack.c.bf16 %v4630, %v4629
        %v4659 = vpack.c.bf16 %v4632, %v4631
        %v4660 = vpack.c.bf16 %v4634, %v4633
        %v4661 = vpack.c.bf16 %v4636, %v4635
        %v4662 = vpack.c.bf16 %v4638, %v4637
        %v4663 = vpack.c.bf16 %v4640, %v4639
        %v4664 = vpack.c.bf16 %v4642, %v4641
        %v4665 = vpack.c.bf16 %v4644, %v4643
        %v4666 = vpack.c.bf16 %v4646, %v4645
        %v4667 = vpack.c.bf16 %v4648, %v4647
        %v4668 = vpack.c.bf16 %v4650, %v4649
        %v4669 = vpack.c.bf16 %v4652, %v4651
        %v4670 = vpack.c.bf16 %v4654, %v4653
        %4671 = vst.msk [vmem:[#allocation4 + $0x18] sm:$0xff] %vm3956, %v4655
        %4672 = vst.msk [vmem:[#allocation4 + $0x40] sm:$0xff] %vm3956, %v4656
        %4673 = vst.msk [vmem:[#allocation4 + $0x68] sm:$0xff] %vm3956, %v4657
        %4674 = vst.msk [vmem:[#allocation4 + $0x90] sm:$0xff] %vm3956, %v4658
        %4675 = vst.msk [vmem:[#allocation4 + $0xb8] sm:$0xff] %vm3956, %v4659
        %4676 = vst.msk [vmem:[#allocation4 + $0xe0] sm:$0xff] %vm3956, %v4660
        %4677 = vst.msk [vmem:[#allocation4 + $0x108] sm:$0xff] %vm3956, %v4661
        %4678 = vst.msk [vmem:[#allocation4 + $0x130] sm:$0xff] %vm3956, %v4662
        %4679 = vst.msk [vmem:[#allocation4 + $0x158] sm:$0xff] %vm3956, %v4663
        %4680 = vst.msk [vmem:[#allocation4 + $0x180] sm:$0xff] %vm3956, %v4664
        %4681 = vst.msk [vmem:[#allocation4 + $0x1a8] sm:$0xff] %vm3956, %v4665
        %4682 = vst.msk [vmem:[#allocation4 + $0x1d0] sm:$0xff] %vm3956, %v4666
        %4683 = vst.msk [vmem:[#allocation4 + $0x1f8] sm:$0xff] %vm3956, %v4667
        %4684 = vst.msk [vmem:[#allocation4 + $0x220] sm:$0xff] %vm3956, %v4668
        %4685 = vst.msk [vmem:[#allocation4 + $0x248] sm:$0xff] %vm3956, %v4669
        %4686 = vst.msk [vmem:[#allocation4 + $0x270] sm:$0xff] %vm3956, %v4670
        %v4687 = vld [vmem:[%s4622 + $0x1] sm:$0xff]
        %v4688 = vld [vmem:[%s4622 + $0x9] sm:$0xff]
        %v4689 = vld [vmem:[%s4622 + $0x19] sm:$0xff]
        %v4690 = vld [vmem:[%s4622 + $0x21] sm:$0xff]
        %v4691 = vld [vmem:[%s4622 + $0x31] sm:$0xff]
        %v4692 = vld [vmem:[%s4622 + $0x39] sm:$0xff]
        %v4693 = vld [vmem:[%s4622 + $0x49] sm:$0xff]
        %v4694 = vld [vmem:[%s4622 + $0x51] sm:$0xff]
        %v4695 = vld [vmem:[%s4622 + $0x61] sm:$0xff]
        %v4696 = vld [vmem:[%s4622 + $0x69] sm:$0xff]
        %v4697 = vld [vmem:[%s4622 + $0x79] sm:$0xff]
        %v4698 = vld [vmem:[%s4622 + $0x81] sm:$0xff]
        %v4699 = vld [vmem:[%s4622 + $0x91] sm:$0xff]
        %v4700 = vld [vmem:[%s4622 + $0x99] sm:$0xff]
        %v4701 = vld [vmem:[%s4622 + $0xa9] sm:$0xff]
        %v4702 = vld [vmem:[%s4622 + $0xb1] sm:$0xff]
        %v4703 = vld [vmem:[%s4622 + $0xc1] sm:$0xff]
        %v4704 = vld [vmem:[%s4622 + $0xc9] sm:$0xff]
        %v4705 = vld [vmem:[%s4622 + $0xd9] sm:$0xff]
        %v4706 = vld [vmem:[%s4622 + $0xe1] sm:$0xff]
        %v4707 = vld [vmem:[%s4622 + $0xf1] sm:$0xff]
        %v4708 = vld [vmem:[%s4622 + $0xf9] sm:$0xff]
        %v4709 = vld [vmem:[%s4622 + $0x109] sm:$0xff]
        %v4710 = vld [vmem:[%s4622 + $0x111] sm:$0xff]
        %v4711 = vld [vmem:[%s4622 + $0x121] sm:$0xff]
        %v4712 = vld [vmem:[%s4622 + $0x129] sm:$0xff]
        %v4713 = vld [vmem:[%s4622 + $0x139] sm:$0xff]
        %v4714 = vld [vmem:[%s4622 + $0x141] sm:$0xff]
        %v4715 = vld [vmem:[%s4622 + $0x151] sm:$0xff]
        %v4716 = vld [vmem:[%s4622 + $0x159] sm:$0xff]
        %v4717 = vld [vmem:[%s4622 + $0x169] sm:$0xff]
        %v4718 = vld [vmem:[%s4622 + $0x171] sm:$0xff]
        %v4719 = vpack.c.bf16 %v4688, %v4687
        %v4720 = vpack.c.bf16 %v4690, %v4689
        %v4721 = vpack.c.bf16 %v4692, %v4691
        %v4722 = vpack.c.bf16 %v4694, %v4693
        %v4723 = vpack.c.bf16 %v4696, %v4695
        %v4724 = vpack.c.bf16 %v4698, %v4697
        %v4725 = vpack.c.bf16 %v4700, %v4699
        %v4726 = vpack.c.bf16 %v4702, %v4701
        %v4727 = vpack.c.bf16 %v4704, %v4703
        %v4728 = vpack.c.bf16 %v4706, %v4705
        %v4729 = vpack.c.bf16 %v4708, %v4707
        %v4730 = vpack.c.bf16 %v4710, %v4709
        %v4731 = vpack.c.bf16 %v4712, %v4711
        %v4732 = vpack.c.bf16 %v4714, %v4713
        %v4733 = vpack.c.bf16 %v4716, %v4715
        %v4734 = vpack.c.bf16 %v4718, %v4717
        %4751 = vrot.lane.b32.xlu0 %v4719, 64
        %v4752 = vpop.permute.xlu0 %4751
        %4753 = vrot.lane.b32.xlu0 %v4720, 64
        %v4754 = vpop.permute.xlu0 %4753
        %4755 = vrot.lane.b32.xlu0 %v4721, 64
        %v4756 = vpop.permute.xlu0 %4755
        %4757 = vrot.lane.b32.xlu0 %v4722, 64
        %v4758 = vpop.permute.xlu0 %4757
        %4759 = vrot.lane.b32.xlu0 %v4723, 64
        %v4760 = vpop.permute.xlu0 %4759
        %4761 = vrot.lane.b32.xlu0 %v4724, 64
        %v4762 = vpop.permute.xlu0 %4761
        %4763 = vrot.lane.b32.xlu0 %v4725, 64
        %v4764 = vpop.permute.xlu0 %4763
        %4765 = vrot.lane.b32.xlu0 %v4726, 64
        %v4766 = vpop.permute.xlu0 %4765
        %4767 = vrot.lane.b32.xlu0 %v4727, 64
        %v4768 = vpop.permute.xlu0 %4767
        %4769 = vrot.lane.b32.xlu0 %v4728, 64
        %v4770 = vpop.permute.xlu0 %4769
        %4771 = vrot.lane.b32.xlu0 %v4729, 64
        %v4772 = vpop.permute.xlu0 %4771
        %4773 = vrot.lane.b32.xlu0 %v4730, 64
        %v4774 = vpop.permute.xlu0 %4773
        %4775 = vrot.lane.b32.xlu0 %v4731, 64
        %v4776 = vpop.permute.xlu0 %4775
        %4777 = vrot.lane.b32.xlu0 %v4732, 64
        %v4778 = vpop.permute.xlu0 %4777
        %4779 = vrot.lane.b32.xlu0 %v4733, 64
        %v4780 = vpop.permute.xlu0 %4779
        %4781 = vrot.lane.b32.xlu0 %v4734, 64
        %v4782 = vpop.permute.xlu0 %4781
        %4799 = vst.msk [vmem:[#allocation4 + $0x18] sm:$0xff] %vm4221, %v4752
        %4800 = vst.msk [vmem:[#allocation4 + $0x40] sm:$0xff] %vm4221, %v4754
        %4801 = vst.msk [vmem:[#allocation4 + $0x68] sm:$0xff] %vm4221, %v4756
        %4802 = vst.msk [vmem:[#allocation4 + $0x90] sm:$0xff] %vm4221, %v4758
        %4803 = vst.msk [vmem:[#allocation4 + $0xb8] sm:$0xff] %vm4221, %v4760
        %4804 = vst.msk [vmem:[#allocation4 + $0xe0] sm:$0xff] %vm4221, %v4762
        %4805 = vst.msk [vmem:[#allocation4 + $0x108] sm:$0xff] %vm4221, %v4764
        %4806 = vst.msk [vmem:[#allocation4 + $0x130] sm:$0xff] %vm4221, %v4766
        %4807 = vst.msk [vmem:[#allocation4 + $0x158] sm:$0xff] %vm4221, %v4768
        %4808 = vst.msk [vmem:[#allocation4 + $0x180] sm:$0xff] %vm4221, %v4770
        %4809 = vst.msk [vmem:[#allocation4 + $0x1a8] sm:$0xff] %vm4221, %v4772
        %4810 = vst.msk [vmem:[#allocation4 + $0x1d0] sm:$0xff] %vm4221, %v4774
        %4811 = vst.msk [vmem:[#allocation4 + $0x1f8] sm:$0xff] %vm4221, %v4776
        %4812 = vst.msk [vmem:[#allocation4 + $0x220] sm:$0xff] %vm4221, %v4778
        %4813 = vst.msk [vmem:[#allocation4 + $0x248] sm:$0xff] %vm4221, %v4780
        %4814 = vst.msk [vmem:[#allocation4 + $0x270] sm:$0xff] %vm4221, %v4782
        %v4815 = vld [vmem:[%s4622 + $0x2] sm:$0xff]
        %v4816 = vld [vmem:[%s4622 + $0xa] sm:$0xff]
        %v4817 = vld [vmem:[%s4622 + $0x1a] sm:$0xff]
        %v4818 = vld [vmem:[%s4622 + $0x22] sm:$0xff]
        %v4819 = vld [vmem:[%s4622 + $0x32] sm:$0xff]
        %v4820 = vld [vmem:[%s4622 + $0x3a] sm:$0xff]
        %v4821 = vld [vmem:[%s4622 + $0x4a] sm:$0xff]
        %v4822 = vld [vmem:[%s4622 + $0x52] sm:$0xff]
        %v4823 = vld [vmem:[%s4622 + $0x62] sm:$0xff]
        %v4824 = vld [vmem:[%s4622 + $0x6a] sm:$0xff]
        %v4825 = vld [vmem:[%s4622 + $0x7a] sm:$0xff]
        %v4826 = vld [vmem:[%s4622 + $0x82] sm:$0xff]
        %v4827 = vld [vmem:[%s4622 + $0x92] sm:$0xff]
        %v4828 = vld [vmem:[%s4622 + $0x9a] sm:$0xff]
        %v4829 = vld [vmem:[%s4622 + $0xaa] sm:$0xff]
        %v4830 = vld [vmem:[%s4622 + $0xb2] sm:$0xff]
        %v4831 = vld [vmem:[%s4622 + $0xc2] sm:$0xff]
        %v4832 = vld [vmem:[%s4622 + $0xca] sm:$0xff]
        %v4833 = vld [vmem:[%s4622 + $0xda] sm:$0xff]
        %v4834 = vld [vmem:[%s4622 + $0xe2] sm:$0xff]
        %v4835 = vld [vmem:[%s4622 + $0xf2] sm:$0xff]
        %v4836 = vld [vmem:[%s4622 + $0xfa] sm:$0xff]
        %v4837 = vld [vmem:[%s4622 + $0x10a] sm:$0xff]
        %v4838 = vld [vmem:[%s4622 + $0x112] sm:$0xff]
        %v4839 = vld [vmem:[%s4622 + $0x122] sm:$0xff]
        %v4840 = vld [vmem:[%s4622 + $0x12a] sm:$0xff]
        %v4841 = vld [vmem:[%s4622 + $0x13a] sm:$0xff]
        %v4842 = vld [vmem:[%s4622 + $0x142] sm:$0xff]
        %v4843 = vld [vmem:[%s4622 + $0x152] sm:$0xff]
        %v4844 = vld [vmem:[%s4622 + $0x15a] sm:$0xff]
        %v4845 = vld [vmem:[%s4622 + $0x16a] sm:$0xff]
        %v4846 = vld [vmem:[%s4622 + $0x172] sm:$0xff]
        %v4847 = vpack.c.bf16 %v4816, %v4815
        %v4848 = vpack.c.bf16 %v4818, %v4817
        %v4849 = vpack.c.bf16 %v4820, %v4819
        %v4850 = vpack.c.bf16 %v4822, %v4821
        %v4851 = vpack.c.bf16 %v4824, %v4823
        %v4852 = vpack.c.bf16 %v4826, %v4825
        %v4853 = vpack.c.bf16 %v4828, %v4827
        %v4854 = vpack.c.bf16 %v4830, %v4829
        %v4855 = vpack.c.bf16 %v4832, %v4831
        %v4856 = vpack.c.bf16 %v4834, %v4833
        %v4857 = vpack.c.bf16 %v4836, %v4835
        %v4858 = vpack.c.bf16 %v4838, %v4837
        %v4859 = vpack.c.bf16 %v4840, %v4839
        %v4860 = vpack.c.bf16 %v4842, %v4841
        %v4861 = vpack.c.bf16 %v4844, %v4843
        %v4862 = vpack.c.bf16 %v4846, %v4845
        %4863 = vst.msk [vmem:[#allocation4 + $0x20] sm:$0xff] %vm3956, %v4847
        %4864 = vst.msk [vmem:[#allocation4 + $0x48] sm:$0xff] %vm3956, %v4848
        %4865 = vst.msk [vmem:[#allocation4 + $0x70] sm:$0xff] %vm3956, %v4849
        %4866 = vst.msk [vmem:[#allocation4 + $0x98] sm:$0xff] %vm3956, %v4850
        %4867 = vst.msk [vmem:[#allocation4 + $0xc0] sm:$0xff] %vm3956, %v4851
        %4868 = vst.msk [vmem:[#allocation4 + $0xe8] sm:$0xff] %vm3956, %v4852
        %4869 = vst.msk [vmem:[#allocation4 + $0x110] sm:$0xff] %vm3956, %v4853
        %4870 = vst.msk [vmem:[#allocation4 + $0x138] sm:$0xff] %vm3956, %v4854
        %4871 = vst.msk [vmem:[#allocation4 + $0x160] sm:$0xff] %vm3956, %v4855
        %4872 = vst.msk [vmem:[#allocation4 + $0x188] sm:$0xff] %vm3956, %v4856
        %4873 = vst.msk [vmem:[#allocation4 + $0x1b0] sm:$0xff] %vm3956, %v4857
        %4874 = vst.msk [vmem:[#allocation4 + $0x1d8] sm:$0xff] %vm3956, %v4858
        %4875 = vst.msk [vmem:[#allocation4 + $0x200] sm:$0xff] %vm3956, %v4859
        %4876 = vst.msk [vmem:[#allocation4 + $0x228] sm:$0xff] %vm3956, %v4860
        %4877 = vst.msk [vmem:[#allocation4 + $0x250] sm:$0xff] %vm3956, %v4861
        %4878 = vst.msk [vmem:[#allocation4 + $0x278] sm:$0xff] %vm3956, %v4862
        %v4879 = vld [vmem:[%s5] sm:$0x3]
        %v4880 = vld [vmem:[%s6] sm:$0x3]
        %v4881 = vld [vmem:[#allocation4] sm:$0xff]
        %v4882 = vld [vmem:[#allocation4 + $0x8] sm:$0xff]
        %v4883 = vld [vmem:[#allocation4 + $0x10] sm:$0xff]
        %v4884 = vld [vmem:[#allocation4 + $0x18] sm:$0xff]
        %v4885 = vld [vmem:[#allocation4 + $0x20] sm:$0xff]
        %v4886 = vld [vmem:[#allocation4 + $0x28] sm:$0xff]
        %v4887 = vld [vmem:[#allocation4 + $0x30] sm:$0xff]
        %v4888 = vld [vmem:[#allocation4 + $0x38] sm:$0xff]
        %v4889 = vld [vmem:[#allocation4 + $0x40] sm:$0xff]
        %v4890 = vld [vmem:[#allocation4 + $0x48] sm:$0xff]
        %v4891 = vld [vmem:[#allocation4 + $0x50] sm:$0xff]
        %v4892 = vld [vmem:[#allocation4 + $0x58] sm:$0xff]
        %v4893 = vld [vmem:[#allocation4 + $0x60] sm:$0xff]
        %v4894 = vld [vmem:[#allocation4 + $0x68] sm:$0xff]
        %v4895 = vld [vmem:[#allocation4 + $0x70] sm:$0xff]
        %v4896 = vld [vmem:[#allocation4 + $0x78] sm:$0xff]
        %v4897 = vld [vmem:[#allocation4 + $0x80] sm:$0xff]
        %v4898 = vld [vmem:[#allocation4 + $0x88] sm:$0xff]
        %v4899 = vld [vmem:[#allocation4 + $0x90] sm:$0xff]
        %v4900 = vld [vmem:[#allocation4 + $0x98] sm:$0xff]
        %v4901 = vld [vmem:[#allocation4 + $0xa0] sm:$0xff]
        %v4902 = vld [vmem:[#allocation4 + $0xa8] sm:$0xff]
        %v4903 = vld [vmem:[#allocation4 + $0xb0] sm:$0xff]
        %v4904 = vld [vmem:[#allocation4 + $0xb8] sm:$0xff]
        %v4905 = vld [vmem:[#allocation4 + $0xc0] sm:$0xff]
        %v4906 = vld [vmem:[#allocation4 + $0xc8] sm:$0xff]
        %v4907 = vld [vmem:[#allocation4 + $0xd0] sm:$0xff]
        %v4908 = vld [vmem:[#allocation4 + $0xd8] sm:$0xff]
        %v4909 = vld [vmem:[#allocation4 + $0xe0] sm:$0xff]
        %v4910 = vld [vmem:[#allocation4 + $0xe8] sm:$0xff]
        %v4911 = vld [vmem:[#allocation4 + $0xf0] sm:$0xff]
        %v4912 = vld [vmem:[#allocation4 + $0xf8] sm:$0xff]
        %v4913 = vld [vmem:[#allocation4 + $0x100] sm:$0xff]
        %v4914 = vld [vmem:[#allocation4 + $0x108] sm:$0xff]
        %v4915 = vld [vmem:[#allocation4 + $0x110] sm:$0xff]
        %v4916 = vld [vmem:[#allocation4 + $0x118] sm:$0xff]
        %v4917 = vld [vmem:[#allocation4 + $0x120] sm:$0xff]
        %v4918 = vld [vmem:[#allocation4 + $0x128] sm:$0xff]
        %v4919 = vld [vmem:[#allocation4 + $0x130] sm:$0xff]
        %v4920 = vld [vmem:[#allocation4 + $0x138] sm:$0xff]
        %v4921 = vld [vmem:[%s4] sm:$0xff]
        %v4922 = vld [vmem:[%s4 + $0x8] sm:$0xff]
        %v4923 = vld [vmem:[%s4 + $0x10] sm:$0xff]
        %v4924 = vld [vmem:[%s4 + $0x18] sm:$0xff]
        %v4925 = vld [vmem:[%s4 + $0x20] sm:$0xff]
        %v4926 = vld [vmem:[%s4 + $0x28] sm:$0xff]
        %v4927 = vld [vmem:[%s4 + $0x30] sm:$0xff]
        %v4928 = vld [vmem:[%s4 + $0x38] sm:$0xff]
        %v4929 = vld [vmem:[%s4 + $0x40] sm:$0xff]
        %v4930 = vld [vmem:[%s4 + $0x48] sm:$0xff]
        %v4931 = vld [vmem:[%s4 + $0x50] sm:$0xff]
        %v4932 = vld [vmem:[%s4 + $0x58] sm:$0xff]
        %v4933 = vld [vmem:[%s4 + $0x60] sm:$0xff]
        %v4934 = vld [vmem:[%s4 + $0x68] sm:$0xff]
        %v4935 = vld [vmem:[%s4 + $0x70] sm:$0xff]
        %v4936 = vld [vmem:[%s4 + $0x78] sm:$0xff]
        %v4937 = vld [vmem:[%s4 + $0x80] sm:$0xff]
        %v4938 = vld [vmem:[%s4 + $0x88] sm:$0xff]
        %v4939 = vld [vmem:[%s4 + $0x90] sm:$0xff]
        %v4940 = vld [vmem:[%s4 + $0x98] sm:$0xff]
        %v4941 = vld [vmem:[%s4 + $0xa0] sm:$0xff]
        %v4942 = vld [vmem:[%s4 + $0xa8] sm:$0xff]
        %v4943 = vld [vmem:[%s4 + $0xb0] sm:$0xff]
        %v4944 = vld [vmem:[%s4 + $0xb8] sm:$0xff]
        %v4945 = vld [vmem:[%s4 + $0xc0] sm:$0xff]
        %v4946 = vld [vmem:[%s4 + $0xc8] sm:$0xff]
        %v4947 = vld [vmem:[%s4 + $0xd0] sm:$0xff]
        %v4948 = vld [vmem:[%s4 + $0xd8] sm:$0xff]
        %v4949 = vld [vmem:[%s4 + $0xe0] sm:$0xff]
        %v4950 = vld [vmem:[%s4 + $0xe8] sm:$0xff]
        %v4951 = vld [vmem:[%s4 + $0xf0] sm:$0xff]
        %v4952 = vld [vmem:[%s4 + $0xf8] sm:$0xff]
        %v4953 = vld [vmem:[%s4 + $0x100] sm:$0xff]
        %v4954 = vld [vmem:[%s4 + $0x108] sm:$0xff]
        %v4955 = vld [vmem:[%s4 + $0x110] sm:$0xff]
        %v4956 = vld [vmem:[%s4 + $0x118] sm:$0xff]
        %v4957 = vld [vmem:[%s4 + $0x120] sm:$0xff]
        %v4958 = vld [vmem:[%s4 + $0x128] sm:$0xff]
        %v4959 = vld [vmem:[%s4 + $0x130] sm:$0xff]
        %v4960 = vld [vmem:[%s4 + $0x138] sm:$0xff]
        %v4961 = vld [vmem:[%s4 + $0x140] sm:$0xff]
        %v4962 = vld [vmem:[%s4 + $0x148] sm:$0xff]
        %v4963 = vld [vmem:[%s4 + $0x150] sm:$0xff]
        %v4964 = vld [vmem:[%s4 + $0x158] sm:$0xff]
        %v4965 = vld [vmem:[%s4 + $0x160] sm:$0xff]
        %v4966 = vld [vmem:[%s4 + $0x168] sm:$0xff]
        %v4967 = vld [vmem:[%s4 + $0x170] sm:$0xff]
        %v4968 = vld [vmem:[%s4 + $0x178] sm:$0xff]
        %v4969 = vld [vmem:[%s4 + $0x180] sm:$0xff]
        %v4970 = vld [vmem:[%s4 + $0x188] sm:$0xff]
        %v4971 = vld [vmem:[%s4 + $0x190] sm:$0xff]
        %v4972 = vld [vmem:[%s4 + $0x198] sm:$0xff]
        %v4973 = vld [vmem:[%s4 + $0x1a0] sm:$0xff]
        %v4974 = vld [vmem:[%s4 + $0x1a8] sm:$0xff]
        %v4975 = vld [vmem:[%s4 + $0x1b0] sm:$0xff]
        %v4976 = vld [vmem:[%s4 + $0x1b8] sm:$0xff]
        %v4977 = vld [vmem:[%s4 + $0x1c0] sm:$0xff]
        %v4978 = vld [vmem:[%s4 + $0x1c8] sm:$0xff]
        %v4979 = vld [vmem:[%s4 + $0x1d0] sm:$0xff]
        %v4980 = vld [vmem:[%s4 + $0x1d8] sm:$0xff]
        %v4981 = vld [vmem:[%s4 + $0x1e0] sm:$0xff]
        %v4982 = vld [vmem:[%s4 + $0x1e8] sm:$0xff]
        %v4983 = vld [vmem:[%s4 + $0x1f0] sm:$0xff]
        %v4984 = vld [vmem:[%s4 + $0x1f8] sm:$0xff]
        %v4985 = vld [vmem:[%s4 + $0x200] sm:$0xff]
        %v4986 = vld [vmem:[%s4 + $0x208] sm:$0xff]
        %v4987 = vld [vmem:[%s4 + $0x210] sm:$0xff]
        %v4988 = vld [vmem:[%s4 + $0x218] sm:$0xff]
        %v4989 = vld [vmem:[%s4 + $0x220] sm:$0xff]
        %v4990 = vld [vmem:[%s4 + $0x228] sm:$0xff]
        %v4991 = vld [vmem:[%s4 + $0x230] sm:$0xff]
        %v4992 = vld [vmem:[%s4 + $0x238] sm:$0xff]
        %v5065 = vunpack.c.l.b16 %v4921
        %v5066 = vunpack.c.h.b16 %v4921
        %v5067 = vunpack.c.l.b16 %v4922
        %v5068 = vunpack.c.h.b16 %v4922
        %v5069 = vunpack.c.l.b16 %v4923
        %v5070 = vunpack.c.h.b16 %v4923
        %v5071 = vunpack.c.l.b16 %v4924
        %v5072 = vunpack.c.h.b16 %v4924
        %v5073 = vunpack.c.l.b16 %v4925
        %v5074 = vunpack.c.h.b16 %v4925
        %v5075 = vunpack.c.l.b16 %v4926
        %v5076 = vunpack.c.h.b16 %v4926
        %v5077 = vunpack.c.l.b16 %v4927
        %v5078 = vunpack.c.h.b16 %v4927
        %v5079 = vunpack.c.l.b16 %v4928
        %v5080 = vunpack.c.h.b16 %v4928
        %v5081 = vunpack.c.l.b16 %v4929
        %v5082 = vunpack.c.h.b16 %v4929
        %v5083 = vunpack.c.l.b16 %v4930
        %v5084 = vunpack.c.h.b16 %v4930
        %v5085 = vunpack.c.l.b16 %v4931
        %v5086 = vunpack.c.h.b16 %v4931
        %v5087 = vunpack.c.l.b16 %v4932
        %v5088 = vunpack.c.h.b16 %v4932
        %v5089 = vunpack.c.l.b16 %v4933
        %v5090 = vunpack.c.h.b16 %v4933
        %v5091 = vunpack.c.l.b16 %v4934
        %v5092 = vunpack.c.h.b16 %v4934
        %v5093 = vunpack.c.l.b16 %v4935
        %v5094 = vunpack.c.h.b16 %v4935
        %v5095 = vunpack.c.l.b16 %v4936
        %v5096 = vunpack.c.h.b16 %v4936
        %v5097 = vunpack.c.l.b16 %v4937
        %v5098 = vunpack.c.h.b16 %v4937
        %v5099 = vunpack.c.l.b16 %v4938
        %v5100 = vunpack.c.h.b16 %v4938
        %v5101 = vunpack.c.l.b16 %v4939
        %v5102 = vunpack.c.h.b16 %v4939
        %v5103 = vunpack.c.l.b16 %v4940
        %v5104 = vunpack.c.h.b16 %v4940
        %v5105 = vunpack.c.l.b16 %v4941
        %v5106 = vunpack.c.h.b16 %v4941
        %v5107 = vunpack.c.l.b16 %v4942
        %v5108 = vunpack.c.h.b16 %v4942
        %v5109 = vunpack.c.l.b16 %v4943
        %v5110 = vunpack.c.h.b16 %v4943
        %v5111 = vunpack.c.l.b16 %v4944
        %v5112 = vunpack.c.h.b16 %v4944
        %v5113 = vunpack.c.l.b16 %v4945
        %v5114 = vunpack.c.h.b16 %v4945
        %v5115 = vunpack.c.l.b16 %v4946
        %v5116 = vunpack.c.h.b16 %v4946
        %v5117 = vunpack.c.l.b16 %v4947
        %v5118 = vunpack.c.h.b16 %v4947
        %v5119 = vunpack.c.l.b16 %v4948
        %v5120 = vunpack.c.h.b16 %v4948
        %v5121 = vunpack.c.l.b16 %v4949
        %v5122 = vunpack.c.h.b16 %v4949
        %v5123 = vunpack.c.l.b16 %v4950
        %v5124 = vunpack.c.h.b16 %v4950
        %v5125 = vunpack.c.l.b16 %v4951
        %v5126 = vunpack.c.h.b16 %v4951
        %v5127 = vunpack.c.l.b16 %v4952
        %v5128 = vunpack.c.h.b16 %v4952
        %v5129 = vunpack.c.l.b16 %v4953
        %v5130 = vunpack.c.h.b16 %v4953
        %v5131 = vunpack.c.l.b16 %v4954
        %v5132 = vunpack.c.h.b16 %v4954
        %v5133 = vunpack.c.l.b16 %v4955
        %v5134 = vunpack.c.h.b16 %v4955
        %v5135 = vunpack.c.l.b16 %v4956
        %v5136 = vunpack.c.h.b16 %v4956
        %v5137 = vunpack.c.l.b16 %v4957
        %v5138 = vunpack.c.h.b16 %v4957
        %v5139 = vunpack.c.l.b16 %v4958
        %v5140 = vunpack.c.h.b16 %v4958
        %v5141 = vunpack.c.l.b16 %v4959
        %v5142 = vunpack.c.h.b16 %v4959
        %v5143 = vunpack.c.l.b16 %v4960
        %v5144 = vunpack.c.h.b16 %v4960
        %v5145 = vunpack.c.l.b16 %v4961
        %v5146 = vunpack.c.h.b16 %v4961
        %v5147 = vunpack.c.l.b16 %v4962
        %v5148 = vunpack.c.h.b16 %v4962
        %v5149 = vunpack.c.l.b16 %v4963
        %v5150 = vunpack.c.h.b16 %v4963
        %v5151 = vunpack.c.l.b16 %v4964
        %v5152 = vunpack.c.h.b16 %v4964
        %v5153 = vunpack.c.l.b16 %v4965
        %v5154 = vunpack.c.h.b16 %v4965
        %v5155 = vunpack.c.l.b16 %v4966
        %v5156 = vunpack.c.h.b16 %v4966
        %v5157 = vunpack.c.l.b16 %v4967
        %v5158 = vunpack.c.h.b16 %v4967
        %v5159 = vunpack.c.l.b16 %v4968
        %v5160 = vunpack.c.h.b16 %v4968
        %v5161 = vunpack.c.l.b16 %v4969
        %v5162 = vunpack.c.h.b16 %v4969
        %v5163 = vunpack.c.l.b16 %v4970
        %v5164 = vunpack.c.h.b16 %v4970
        %v5165 = vunpack.c.l.b16 %v4971
        %v5166 = vunpack.c.h.b16 %v4971
        %v5167 = vunpack.c.l.b16 %v4972
        %v5168 = vunpack.c.h.b16 %v4972
        %v5169 = vunpack.c.l.b16 %v4973
        %v5170 = vunpack.c.h.b16 %v4973
        %v5171 = vunpack.c.l.b16 %v4974
        %v5172 = vunpack.c.h.b16 %v4974
        %v5173 = vunpack.c.l.b16 %v4975
        %v5174 = vunpack.c.h.b16 %v4975
        %v5175 = vunpack.c.l.b16 %v4976
        %v5176 = vunpack.c.h.b16 %v4976
        %v5177 = vunpack.c.l.b16 %v4977
        %v5178 = vunpack.c.h.b16 %v4977
        %v5179 = vunpack.c.l.b16 %v4978
        %v5180 = vunpack.c.h.b16 %v4978
        %v5181 = vunpack.c.l.b16 %v4979
        %v5182 = vunpack.c.h.b16 %v4979
        %v5183 = vunpack.c.l.b16 %v4980
        %v5184 = vunpack.c.h.b16 %v4980
        %v5185 = vunpack.c.l.b16 %v4981
        %v5186 = vunpack.c.h.b16 %v4981
        %v5187 = vunpack.c.l.b16 %v4982
        %v5188 = vunpack.c.h.b16 %v4982
        %v5189 = vunpack.c.l.b16 %v4983
        %v5190 = vunpack.c.h.b16 %v4983
        %v5191 = vunpack.c.l.b16 %v4984
        %v5192 = vunpack.c.h.b16 %v4984
        %v5193 = vunpack.c.l.b16 %v4985
        %v5194 = vunpack.c.h.b16 %v4985
        %v5195 = vunpack.c.l.b16 %v4986
        %v5196 = vunpack.c.h.b16 %v4986
        %v5197 = vunpack.c.l.b16 %v4987
        %v5198 = vunpack.c.h.b16 %v4987
        %v5199 = vunpack.c.l.b16 %v4988
        %v5200 = vunpack.c.h.b16 %v4988
        %v5201 = vunpack.c.l.b16 %v4989
        %v5202 = vunpack.c.h.b16 %v4989
        %v5203 = vunpack.c.l.b16 %v4990
        %v5204 = vunpack.c.h.b16 %v4990
        %v5205 = vunpack.c.l.b16 %v4991
        %v5206 = vunpack.c.h.b16 %v4991
        %v5207 = vunpack.c.l.b16 %v4992
        %v5208 = vunpack.c.h.b16 %v4992
        %v5209 = vpack.c.b16 %v5067, %v5065
        %v5210 = vpack.c.b16 %v5068, %v5066
        %v5211 = vpack.c.b16 %v5071, %v5069
        %v5212 = vpack.c.b16 %v5072, %v5070
        %v5213 = vpack.c.b16 %v5075, %v5073
        %v5214 = vpack.c.b16 %v5076, %v5074
        %v5215 = vpack.c.b16 %v5079, %v5077
        %v5216 = vpack.c.b16 %v5080, %v5078
        %v5217 = vpack.c.b16 %v5083, %v5081
        %v5218 = vpack.c.b16 %v5084, %v5082
        %v5219 = vpack.c.b16 %v5087, %v5085
        %v5220 = vpack.c.b16 %v5088, %v5086
        %v5221 = vpack.c.b16 %v5091, %v5089
        %v5222 = vpack.c.b16 %v5092, %v5090
        %v5223 = vpack.c.b16 %v5095, %v5093
        %v5224 = vpack.c.b16 %v5096, %v5094
        %v5225 = vpack.c.b16 %v5099, %v5097
        %v5226 = vpack.c.b16 %v5100, %v5098
        %v5227 = vpack.c.b16 %v5103, %v5101
        %v5228 = vpack.c.b16 %v5104, %v5102
        %v5229 = vpack.c.b16 %v5107, %v5105
        %v5230 = vpack.c.b16 %v5108, %v5106
        %v5231 = vpack.c.b16 %v5111, %v5109
        %v5232 = vpack.c.b16 %v5112, %v5110
        %v5233 = vpack.c.b16 %v5115, %v5113
        %v5234 = vpack.c.b16 %v5116, %v5114
        %v5235 = vpack.c.b16 %v5119, %v5117
        %v5236 = vpack.c.b16 %v5120, %v5118
        %v5237 = vpack.c.b16 %v5123, %v5121
        %v5238 = vpack.c.b16 %v5124, %v5122
        %v5239 = vpack.c.b16 %v5127, %v5125
        %v5240 = vpack.c.b16 %v5128, %v5126
        %v5241 = vpack.c.b16 %v5131, %v5129
        %v5242 = vpack.c.b16 %v5132, %v5130
        %v5243 = vpack.c.b16 %v5135, %v5133
        %v5244 = vpack.c.b16 %v5136, %v5134
        %v5245 = vpack.c.b16 %v5139, %v5137
        %v5246 = vpack.c.b16 %v5140, %v5138
        %v5247 = vpack.c.b16 %v5143, %v5141
        %v5248 = vpack.c.b16 %v5144, %v5142
        %v5249 = vpack.c.b16 %v5147, %v5145
        %v5250 = vpack.c.b16 %v5148, %v5146
        %v5251 = vpack.c.b16 %v5151, %v5149
        %v5252 = vpack.c.b16 %v5152, %v5150
        %v5253 = vpack.c.b16 %v5155, %v5153
        %v5254 = vpack.c.b16 %v5156, %v5154
        %v5255 = vpack.c.b16 %v5159, %v5157
        %v5256 = vpack.c.b16 %v5160, %v5158
        %v5257 = vpack.c.b16 %v5163, %v5161
        %v5258 = vpack.c.b16 %v5164, %v5162
        %v5259 = vpack.c.b16 %v5167, %v5165
        %v5260 = vpack.c.b16 %v5168, %v5166
        %v5261 = vpack.c.b16 %v5171, %v5169
        %v5262 = vpack.c.b16 %v5172, %v5170
        %v5263 = vpack.c.b16 %v5175, %v5173
        %v5264 = vpack.c.b16 %v5176, %v5174
        %v5265 = vpack.c.b16 %v5179, %v5177
        %v5266 = vpack.c.b16 %v5180, %v5178
        %v5267 = vpack.c.b16 %v5183, %v5181
        %v5268 = vpack.c.b16 %v5184, %v5182
        %v5269 = vpack.c.b16 %v5187, %v5185
        %v5270 = vpack.c.b16 %v5188, %v5186
        %v5271 = vpack.c.b16 %v5191, %v5189
        %v5272 = vpack.c.b16 %v5192, %v5190
        %v5273 = vpack.c.b16 %v5195, %v5193
        %v5274 = vpack.c.b16 %v5196, %v5194
        %v5275 = vpack.c.b16 %v5199, %v5197
        %v5276 = vpack.c.b16 %v5200, %v5198
        %v5277 = vpack.c.b16 %v5203, %v5201
        %v5278 = vpack.c.b16 %v5204, %v5202
        %v5279 = vpack.c.b16 %v5207, %v5205
        %v5280 = vpack.c.b16 %v5208, %v5206
        %v5354 = vsel %vm3956, %v4885, 0
        %v5357 = vsel %vm3956, %v4890, 0
        %v5360 = vsel %vm3956, %v4895, 0
        %v5363 = vsel %vm3956, %v4900, 0
        %v5366 = vsel %vm3956, %v4905, 0
        %v5369 = vsel %vm3956, %v4910, 0
        %v5372 = vsel %vm3956, %v4915, 0
        %v5375 = vsel %vm3956, %v4920, 0
        %5377 = vmatprep.subr.bf16.mxu0 %v5210
        %5378 = vmatpush1.bf16.msra.mxu0 %v5209
        %5379 = vmatprep.subr.bf16.mxu0 %v5212
        %5380 = vmatpush1.bf16.msra.mxu0 %v5211
        %5381 = vmatprep.subr.bf16.mxu0 %v5214
        %5382 = vmatpush1.bf16.msra.mxu0 %v5213
        %5383 = vmatprep.subr.bf16.mxu0 %v5216
        %5384 = vmatpush1.bf16.msra.mxu0 %v5215
        %5385 = vmatprep.subr.bf16.mxu0 %v5218
        %5386 = vmatpush1.bf16.msra.mxu0 %v5217
        %5387 = vmatprep.subr.bf16.mxu0 %v5220
        %5388 = vmatpush1.bf16.msra.mxu0 %v5219
        %5389 = vmatprep.subr.bf16.mxu0 %v5222
        %5390 = vmatpush1.bf16.msra.mxu0 %v5221
        %5391 = vmatprep.subr.bf16.mxu0 %v5224
        %5392 = vmatpush1.bf16.msra.mxu0 %v5223
        %5393 = vmatprep.subr.bf16.mxu0 %v5226
        %5394 = vmatpush1.bf16.msra.mxu0 %v5225
        %5395 = vmatprep.subr.bf16.mxu0 %v5228
        %5396 = vmatpush1.bf16.msra.mxu0 %v5227
        %5397 = vmatprep.subr.bf16.mxu0 %v5230
        %5398 = vmatpush1.bf16.msra.mxu0 %v5229
        %5399 = vmatprep.subr.bf16.mxu0 %v5232
        %5400 = vmatpush1.bf16.msra.mxu0 %v5231
        %5401 = vmatprep.subr.bf16.mxu0 %v5234
        %5402 = vmatpush1.bf16.msra.mxu0 %v5233
        %5403 = vmatprep.subr.bf16.mxu0 %v5236
        %5404 = vmatpush1.bf16.msra.mxu0 %v5235
        %5405 = vmatprep.subr.bf16.mxu0 %v5238
        %5406 = vmatpush1.bf16.msra.mxu0 %v5237
        %5407 = vmatprep.subr.bf16.mxu0 %v5240
        %5408 = vmatpush1.bf16.msra.mxu0 %v5239
        %5409 = vmatprep.mubr.bf16.mxu0 %v4882
        %5410 = vmatmul.mubr.bf16.gmra.mrb[0].mxu0 %v4881
        %v5411 = vpop.f32.mrb[0].mxu0
        %v5412 = vadd.f32 0.0, %v5411
        %v5413 = vpop.f32.mrb[0].mxu0
        %v5414 = vadd.f32 0.0, %v5413
        %v5415 = vpop.f32.mrb[0].mxu0
        %v5416 = vadd.f32 0.0, %v5415
        %v5417 = vpop.f32.mrb[0].mxu0
        %v5418 = vadd.f32 0.0, %v5417
        %5419 = vmatprep.mubr.bf16.mxu0 %v4887
        %5420 = vmatmul.mubr.bf16.gmra.mrb[0].mxu0 %v4886
        %v5421 = vpop.f32.mrb[0].mxu0
        %v5422 = vadd.f32 0.0, %v5421
        %v5423 = vpop.f32.mrb[0].mxu0
        %v5424 = vadd.f32 0.0, %v5423
        %v5425 = vpop.f32.mrb[0].mxu0
        %v5426 = vadd.f32 0.0, %v5425
        %v5427 = vpop.f32.mrb[0].mxu0
        %v5428 = vadd.f32 0.0, %v5427
        %5429 = vmatprep.mubr.bf16.mxu0 %v4892
        %5430 = vmatmul.mubr.bf16.gmra.mrb[0].mxu0 %v4891
        %v5431 = vpop.f32.mrb[0].mxu0
        %v5432 = vadd.f32 0.0, %v5431
        %v5433 = vpop.f32.mrb[0].mxu0
        %v5434 = vadd.f32 0.0, %v5433
        %v5435 = vpop.f32.mrb[0].mxu0
        %v5436 = vadd.f32 0.0, %v5435
        %v5437 = vpop.f32.mrb[0].mxu0
        %v5438 = vadd.f32 0.0, %v5437
        %5439 = vmatprep.mubr.bf16.mxu0 %v4897
        %5440 = vmatmul.mubr.bf16.gmra.mrb[0].mxu0 %v4896
        %v5441 = vpop.f32.mrb[0].mxu0
        %v5442 = vadd.f32 0.0, %v5441
        %v5443 = vpop.f32.mrb[0].mxu0
        %v5444 = vadd.f32 0.0, %v5443
        %v5445 = vpop.f32.mrb[0].mxu0
        %v5446 = vadd.f32 0.0, %v5445
        %v5447 = vpop.f32.mrb[0].mxu0
        %v5448 = vadd.f32 0.0, %v5447
        %5449 = vmatprep.mubr.bf16.mxu0 %v4902
        %5450 = vmatmul.mubr.bf16.gmra.mrb[0].mxu0 %v4901
        %v5451 = vpop.f32.mrb[0].mxu0
        %v5452 = vadd.f32 0.0, %v5451
        %v5453 = vpop.f32.mrb[0].mxu0
        %v5454 = vadd.f32 0.0, %v5453
        %v5455 = vpop.f32.mrb[0].mxu0
        %v5456 = vadd.f32 0.0, %v5455
        %v5457 = vpop.f32.mrb[0].mxu0
        %v5458 = vadd.f32 0.0, %v5457
        %5459 = vmatprep.mubr.bf16.mxu0 %v4907
        %5460 = vmatmul.mubr.bf16.gmra.mrb[0].mxu0 %v4906
        %v5461 = vpop.f32.mrb[0].mxu0
        %v5462 = vadd.f32 0.0, %v5461
        %v5463 = vpop.f32.mrb[0].mxu0
        %v5464 = vadd.f32 0.0, %v5463
        %v5465 = vpop.f32.mrb[0].mxu0
        %v5466 = vadd.f32 0.0, %v5465
        %v5467 = vpop.f32.mrb[0].mxu0
        %v5468 = vadd.f32 0.0, %v5467
        %5469 = vmatprep.mubr.bf16.mxu0 %v4912
        %5470 = vmatmul.mubr.bf16.gmra.mrb[0].mxu0 %v4911
        %v5471 = vpop.f32.mrb[0].mxu0
        %v5472 = vadd.f32 0.0, %v5471
        %v5473 = vpop.f32.mrb[0].mxu0
        %v5474 = vadd.f32 0.0, %v5473
        %v5475 = vpop.f32.mrb[0].mxu0
        %v5476 = vadd.f32 0.0, %v5475
        %v5477 = vpop.f32.mrb[0].mxu0
        %v5478 = vadd.f32 0.0, %v5477
        %5479 = vmatprep.mubr.bf16.mxu0 %v4917
        %5480 = vmatmul.mubr.bf16.gmra.mrb[0].mxu0 %v4916
        %v5481 = vpop.f32.mrb[0].mxu0
        %v5482 = vadd.f32 0.0, %v5481
        %v5483 = vpop.f32.mrb[0].mxu0
        %v5484 = vadd.f32 0.0, %v5483
        %v5485 = vpop.f32.mrb[0].mxu0
        %v5486 = vadd.f32 0.0, %v5485
        %v5487 = vpop.f32.mrb[0].mxu0
        %v5488 = vadd.f32 0.0, %v5487
        %5489 = vdwg.mxu0
        %5490 = vmatprep.subr.bf16.mxu0 %v5242
        %5491 = vmatpush1.bf16.msra.mxu0 %v5241
        %5492 = vmatprep.subr.bf16.mxu0 %v5244
        %5493 = vmatpush1.bf16.msra.mxu0 %v5243
        %5494 = vmatprep.subr.bf16.mxu0 %v5246
        %5495 = vmatpush1.bf16.msra.mxu0 %v5245
        %5496 = vmatprep.subr.bf16.mxu0 %v5248
        %5497 = vmatpush1.bf16.msra.mxu0 %v5247
        %5498 = vmatprep.subr.bf16.mxu0 %v5250
        %5499 = vmatpush1.bf16.msra.mxu0 %v5249
        %5500 = vmatprep.subr.bf16.mxu0 %v5252
        %5501 = vmatpush1.bf16.msra.mxu0 %v5251
        %5502 = vmatprep.subr.bf16.mxu0 %v5254
        %5503 = vmatpush1.bf16.msra.mxu0 %v5253
        %5504 = vmatprep.subr.bf16.mxu0 %v5256
        %5505 = vmatpush1.bf16.msra.mxu0 %v5255
        %5506 = vmatprep.subr.bf16.mxu0 %v5258
        %5507 = vmatpush1.bf16.msra.mxu0 %v5257
        %5508 = vmatprep.subr.bf16.mxu0 %v5260
        %5509 = vmatpush1.bf16.msra.mxu0 %v5259
        %5510 = vmatprep.subr.bf16.mxu0 %v5262
        %5511 = vmatpush1.bf16.msra.mxu0 %v5261
        %5512 = vmatprep.subr.bf16.mxu0 %v5264
        %5513 = vmatpush1.bf16.msra.mxu0 %v5263
        %5514 = vmatprep.subr.bf16.mxu0 %v5266
        %5515 = vmatpush1.bf16.msra.mxu0 %v5265
        %5516 = vmatprep.subr.bf16.mxu0 %v5268
        %5517 = vmatpush1.bf16.msra.mxu0 %v5267
        %5518 = vmatprep.subr.bf16.mxu0 %v5270
        %5519 = vmatpush1.bf16.msra.mxu0 %v5269
        %5520 = vmatprep.subr.bf16.mxu0 %v5272
        %5521 = vmatpush1.bf16.msra.mxu0 %v5271
        %5522 = vmatprep.mubr.bf16.mxu0 %v4884
        %5523 = vmatmul.mubr.bf16.gmra.mrb[0].mxu0 %v4883
        %v5524 = vpop.f32.mrb[0].mxu0
        %v5525 = vadd.f32 %v5412, %v5524
        %v5526 = vpop.f32.mrb[0].mxu0
        %v5527 = vadd.f32 %v5414, %v5526
        %v5528 = vpop.f32.mrb[0].mxu0
        %v5529 = vadd.f32 %v5416, %v5528
        %v5530 = vpop.f32.mrb[0].mxu0
        %v5531 = vadd.f32 %v5418, %v5530
        %5532 = vmatprep.mubr.bf16.mxu0 %v4889
        %5533 = vmatmul.mubr.bf16.gmra.mrb[0].mxu0 %v4888
        %v5534 = vpop.f32.mrb[0].mxu0
        %v5535 = vadd.f32 %v5422, %v5534
        %v5536 = vpop.f32.mrb[0].mxu0
        %v5537 = vadd.f32 %v5424, %v5536
        %v5538 = vpop.f32.mrb[0].mxu0
        %v5539 = vadd.f32 %v5426, %v5538
        %v5540 = vpop.f32.mrb[0].mxu0
        %v5541 = vadd.f32 %v5428, %v5540
        %5542 = vmatprep.mubr.bf16.mxu0 %v4894
        %5543 = vmatmul.mubr.bf16.gmra.mrb[0].mxu0 %v4893
        %v5544 = vpop.f32.mrb[0].mxu0
        %v5545 = vadd.f32 %v5432, %v5544
        %v5546 = vpop.f32.mrb[0].mxu0
        %v5547 = vadd.f32 %v5434, %v5546
        %v5548 = vpop.f32.mrb[0].mxu0
        %v5549 = vadd.f32 %v5436, %v5548
        %v5550 = vpop.f32.mrb[0].mxu0
        %v5551 = vadd.f32 %v5438, %v5550
        %5552 = vmatprep.mubr.bf16.mxu0 %v4899
        %5553 = vmatmul.mubr.bf16.gmra.mrb[0].mxu0 %v4898
        %v5554 = vpop.f32.mrb[0].mxu0
        %v5555 = vadd.f32 %v5442, %v5554
        %v5556 = vpop.f32.mrb[0].mxu0
        %v5557 = vadd.f32 %v5444, %v5556
        %v5558 = vpop.f32.mrb[0].mxu0
        %v5559 = vadd.f32 %v5446, %v5558
        %v5560 = vpop.f32.mrb[0].mxu0
        %v5561 = vadd.f32 %v5448, %v5560
        %5562 = vmatprep.mubr.bf16.mxu0 %v4904
        %5563 = vmatmul.mubr.bf16.gmra.mrb[0].mxu0 %v4903
        %v5564 = vpop.f32.mrb[0].mxu0
        %v5565 = vadd.f32 %v5452, %v5564
        %v5566 = vpop.f32.mrb[0].mxu0
        %v5567 = vadd.f32 %v5454, %v5566
        %v5568 = vpop.f32.mrb[0].mxu0
        %v5569 = vadd.f32 %v5456, %v5568
        %v5570 = vpop.f32.mrb[0].mxu0
        %v5571 = vadd.f32 %v5458, %v5570
        %5572 = vmatprep.mubr.bf16.mxu0 %v4909
        %5573 = vmatmul.mubr.bf16.gmra.mrb[0].mxu0 %v4908
        %v5574 = vpop.f32.mrb[0].mxu0
        %v5575 = vadd.f32 %v5462, %v5574
        %v5576 = vpop.f32.mrb[0].mxu0
        %v5577 = vadd.f32 %v5464, %v5576
        %v5578 = vpop.f32.mrb[0].mxu0
        %v5579 = vadd.f32 %v5466, %v5578
        %v5580 = vpop.f32.mrb[0].mxu0
        %v5581 = vadd.f32 %v5468, %v5580
        %5582 = vmatprep.mubr.bf16.mxu0 %v4914
        %5583 = vmatmul.mubr.bf16.gmra.mrb[0].mxu0 %v4913
        %v5584 = vpop.f32.mrb[0].mxu0
        %v5585 = vadd.f32 %v5472, %v5584
        %v5586 = vpop.f32.mrb[0].mxu0
        %v5587 = vadd.f32 %v5474, %v5586
        %v5588 = vpop.f32.mrb[0].mxu0
        %v5589 = vadd.f32 %v5476, %v5588
        %v5590 = vpop.f32.mrb[0].mxu0
        %v5591 = vadd.f32 %v5478, %v5590
        %5592 = vmatprep.mubr.bf16.mxu0 %v4919
        %5593 = vmatmul.mubr.bf16.gmra.mrb[0].mxu0 %v4918
        %v5594 = vpop.f32.mrb[0].mxu0
        %v5595 = vadd.f32 %v5482, %v5594
        %v5596 = vpop.f32.mrb[0].mxu0
        %v5597 = vadd.f32 %v5484, %v5596
        %v5598 = vpop.f32.mrb[0].mxu0
        %v5599 = vadd.f32 %v5486, %v5598
        %v5600 = vpop.f32.mrb[0].mxu0
        %v5601 = vadd.f32 %v5488, %v5600
        %5602 = vdwg.mxu0
        %5603 = vmatprep.subr.bf16.mxu0 %v5274
        %5604 = vmatpush1.bf16.msra.mxu0 %v5273
        %5605 = vmatprep.subr.bf16.mxu0 %v5276
        %5606 = vmatpush1.bf16.msra.mxu0 %v5275
        %5607 = vmatprep.subr.bf16.mxu0 %v5278
        %5608 = vmatpush1.bf16.msra.mxu0 %v5277
        %5609 = vmatprep.subr.bf16.mxu0 %v5280
        %5610 = vmatpush1.bf16.msra.mxu0 %v5279
        %5611 = vmatprep.subr.bf16.mxu0 0
        %5612 = vmatpush1.bf16.msra.mxu0 0
        %5613 = vmatprep.subr.bf16.mxu0 0
        %5614 = vmatpush1.bf16.msra.mxu0 0
        %5615 = vmatprep.subr.bf16.mxu0 0
        %5616 = vmatpush1.bf16.msra.mxu0 0
        %5617 = vmatprep.subr.bf16.mxu0 0
        %5618 = vmatpush1.bf16.msra.mxu0 0
        %5619 = vmatprep.subr.bf16.mxu0 0
        %5620 = vmatpush1.bf16.msra.mxu0 0
        %5621 = vmatprep.subr.bf16.mxu0 0
        %5622 = vmatpush1.bf16.msra.mxu0 0
        %5623 = vmatprep.subr.bf16.mxu0 0
        %5624 = vmatpush1.bf16.msra.mxu0 0
        %5625 = vmatprep.subr.bf16.mxu0 0
        %5626 = vmatpush1.bf16.msra.mxu0 0
        %5627 = vmatprep.subr.bf16.mxu0 0
        %5628 = vmatpush1.bf16.msra.mxu0 0
        %5629 = vmatprep.subr.bf16.mxu0 0
        %5630 = vmatpush1.bf16.msra.mxu0 0
        %5631 = vmatprep.subr.bf16.mxu0 0
        %5632 = vmatpush1.bf16.msra.mxu0 0
        %5633 = vmatprep.subr.bf16.mxu0 0
        %5634 = vmatpush1.bf16.msra.mxu0 0
        %5635 = vmatprep.mubr.bf16.mxu0 0
        %5636 = vmatmul.mubr.bf16.gmra.mrb[0].mxu0 %v5354
        %v5637 = vpop.f32.mrb[0].mxu0
        %v5638 = vadd.f32 %v5525, %v5637
        %v5639 = vpop.f32.mrb[0].mxu0
        %v5640 = vadd.f32 %v5527, %v5639
        %v5641 = vpop.f32.mrb[0].mxu0
        %v5642 = vadd.f32 %v5529, %v5641
        %v5643 = vpop.f32.mrb[0].mxu0
        %v5644 = vadd.f32 %v5531, %v5643
        %5645 = vmatprep.mubr.bf16.mxu0 0
        %5646 = vmatmul.mubr.bf16.gmra.mrb[0].mxu0 %v5357
        %v5647 = vpop.f32.mrb[0].mxu0
        %v5648 = vadd.f32 %v5535, %v5647
        %v5649 = vpop.f32.mrb[0].mxu0
        %v5650 = vadd.f32 %v5537, %v5649
        %v5651 = vpop.f32.mrb[0].mxu0
        %v5652 = vadd.f32 %v5539, %v5651
        %v5653 = vpop.f32.mrb[0].mxu0
        %v5654 = vadd.f32 %v5541, %v5653
        %5655 = vmatprep.mubr.bf16.mxu0 0
        %5656 = vmatmul.mubr.bf16.gmra.mrb[0].mxu0 %v5360
        %v5657 = vpop.f32.mrb[0].mxu0
        %v5658 = vadd.f32 %v5545, %v5657
        %v5659 = vpop.f32.mrb[0].mxu0
        %v5660 = vadd.f32 %v5547, %v5659
        %v5661 = vpop.f32.mrb[0].mxu0
        %v5662 = vadd.f32 %v5549, %v5661
        %v5663 = vpop.f32.mrb[0].mxu0
        %v5664 = vadd.f32 %v5551, %v5663
        %5665 = vmatprep.mubr.bf16.mxu0 0
        %5666 = vmatmul.mubr.bf16.gmra.mrb[0].mxu0 %v5363
        %v5667 = vpop.f32.mrb[0].mxu0
        %v5668 = vadd.f32 %v5555, %v5667
        %v5669 = vpop.f32.mrb[0].mxu0
        %v5670 = vadd.f32 %v5557, %v5669
        %v5671 = vpop.f32.mrb[0].mxu0
        %v5672 = vadd.f32 %v5559, %v5671
        %v5673 = vpop.f32.mrb[0].mxu0
        %v5674 = vadd.f32 %v5561, %v5673
        %5675 = vmatprep.mubr.bf16.mxu0 0
        %5676 = vmatmul.mubr.bf16.gmra.mrb[0].mxu0 %v5366
        %v5677 = vpop.f32.mrb[0].mxu0
        %v5678 = vadd.f32 %v5565, %v5677
        %v5679 = vpop.f32.mrb[0].mxu0
        %v5680 = vadd.f32 %v5567, %v5679
        %v5681 = vpop.f32.mrb[0].mxu0
        %v5682 = vadd.f32 %v5569, %v5681
        %v5683 = vpop.f32.mrb[0].mxu0
        %v5684 = vadd.f32 %v5571, %v5683
        %5685 = vmatprep.mubr.bf16.mxu0 0
        %5686 = vmatmul.mubr.bf16.gmra.mrb[0].mxu0 %v5369
        %v5687 = vpop.f32.mrb[0].mxu0
        %v5688 = vadd.f32 %v5575, %v5687
        %v5689 = vpop.f32.mrb[0].mxu0
        %v5690 = vadd.f32 %v5577, %v5689
        %v5691 = vpop.f32.mrb[0].mxu0
        %v5692 = vadd.f32 %v5579, %v5691
        %v5693 = vpop.f32.mrb[0].mxu0
        %v5694 = vadd.f32 %v5581, %v5693
        %5695 = vmatprep.mubr.bf16.mxu0 0
        %5696 = vmatmul.mubr.bf16.gmra.mrb[0].mxu0 %v5372
        %v5697 = vpop.f32.mrb[0].mxu0
        %v5698 = vadd.f32 %v5585, %v5697
        %v5699 = vpop.f32.mrb[0].mxu0
        %v5700 = vadd.f32 %v5587, %v5699
        %v5701 = vpop.f32.mrb[0].mxu0
        %v5702 = vadd.f32 %v5589, %v5701
        %v5703 = vpop.f32.mrb[0].mxu0
        %v5704 = vadd.f32 %v5591, %v5703
        %5705 = vmatprep.mubr.bf16.mxu0 0
        %5706 = vmatmul.mubr.bf16.gmra.mrb[0].mxu0 %v5375
        %v5707 = vpop.f32.mrb[0].mxu0
        %v5708 = vadd.f32 %v5595, %v5707
        %v5709 = vpop.f32.mrb[0].mxu0
        %v5710 = vadd.f32 %v5597, %v5709
        %v5711 = vpop.f32.mrb[0].mxu0
        %v5712 = vadd.f32 %v5599, %v5711
        %v5713 = vpop.f32.mrb[0].mxu0
        %v5714 = vadd.f32 %v5601, %v5713
        %5715 = vdwg.mxu0
        %v5717 = vlaneseq
        %v5718 = vshrl.u32 %v5717, 7
        %v5719 = vsub.s32 0, %v5718
        %v5720 = vrot.slane %v4879, %v5719
        %v5721 = vlaneseq
        %v5722 = vshrl.u32 %v5721, 7
        %v5723 = vsub.s32 1, %v5722
        %v5724 = vrot.slane %v4879, %v5723
        %v5727 = vmul.f32 %v5638, %v5720
        %v5728 = vmul.f32 %v5640, %v5724
        %v5729 = vmul.f32 %v5642, %v5720
        %v5730 = vmul.f32 %v5644, %v5724
        %v5731 = vmul.f32 %v5648, %v5720
        %v5732 = vmul.f32 %v5650, %v5724
        %v5733 = vmul.f32 %v5652, %v5720
        %v5734 = vmul.f32 %v5654, %v5724
        %v5735 = vmul.f32 %v5658, %v5720
        %v5736 = vmul.f32 %v5660, %v5724
        %v5737 = vmul.f32 %v5662, %v5720
        %v5738 = vmul.f32 %v5664, %v5724
        %v5739 = vmul.f32 %v5668, %v5720
        %v5740 = vmul.f32 %v5670, %v5724
        %v5741 = vmul.f32 %v5672, %v5720
        %v5742 = vmul.f32 %v5674, %v5724
        %v5743 = vmul.f32 %v5678, %v5720
        %v5744 = vmul.f32 %v5680, %v5724
        %v5745 = vmul.f32 %v5682, %v5720
        %v5746 = vmul.f32 %v5684, %v5724
        %v5747 = vmul.f32 %v5688, %v5720
        %v5748 = vmul.f32 %v5690, %v5724
        %v5749 = vmul.f32 %v5692, %v5720
        %v5750 = vmul.f32 %v5694, %v5724
        %v5751 = vmul.f32 %v5698, %v5720
        %v5752 = vmul.f32 %v5700, %v5724
        %v5753 = vmul.f32 %v5702, %v5720
        %v5754 = vmul.f32 %v5704, %v5724
        %v5755 = vmul.f32 %v5708, %v5720
        %v5756 = vmul.f32 %v5710, %v5724
        %v5757 = vmul.f32 %v5712, %v5720
        %v5758 = vmul.f32 %v5714, %v5724
        %v5760 = vlaneseq
        %v5761 = vshrl.u32 %v5760, 7
        %v5762 = vsub.s32 0, %v5761
        %v5763 = vrot.slane %v4880, %v5762
        %v5764 = vlaneseq
        %v5765 = vshrl.u32 %v5764, 7
        %v5766 = vsub.s32 1, %v5765
        %v5767 = vrot.slane %v4880, %v5766
        %v5770 = vadd.f32 %v5727, %v5763
        %v5771 = vadd.f32 %v5728, %v5767
        %v5772 = vadd.f32 %v5729, %v5763
        %v5773 = vadd.f32 %v5730, %v5767
        %v5774 = vadd.f32 %v5731, %v5763
        %v5775 = vadd.f32 %v5732, %v5767
        %v5776 = vadd.f32 %v5733, %v5763
        %v5777 = vadd.f32 %v5734, %v5767
        %v5778 = vadd.f32 %v5735, %v5763
        %v5779 = vadd.f32 %v5736, %v5767
        %v5780 = vadd.f32 %v5737, %v5763
        %v5781 = vadd.f32 %v5738, %v5767
        %v5782 = vadd.f32 %v5739, %v5763
        %v5783 = vadd.f32 %v5740, %v5767
        %v5784 = vadd.f32 %v5741, %v5763
        %v5785 = vadd.f32 %v5742, %v5767
        %v5786 = vadd.f32 %v5743, %v5763
        %v5787 = vadd.f32 %v5744, %v5767
        %v5788 = vadd.f32 %v5745, %v5763
        %v5789 = vadd.f32 %v5746, %v5767
        %v5790 = vadd.f32 %v5747, %v5763
        %v5791 = vadd.f32 %v5748, %v5767
        %v5792 = vadd.f32 %v5749, %v5763
        %v5793 = vadd.f32 %v5750, %v5767
        %v5794 = vadd.f32 %v5751, %v5763
        %v5795 = vadd.f32 %v5752, %v5767
        %v5796 = vadd.f32 %v5753, %v5763
        %v5797 = vadd.f32 %v5754, %v5767
        %v5798 = vadd.f32 %v5755, %v5763
        %v5799 = vadd.f32 %v5756, %v5767
        %v5800 = vadd.f32 %v5757, %v5763
        %v5801 = vadd.f32 %v5758, %v5767
        %v5802 = vmax.f32 %v5770, 0.0
        %v5803 = vmax.f32 %v5771, 0.0
        %v5804 = vmax.f32 %v5772, 0.0
        %v5805 = vmax.f32 %v5773, 0.0
        %v5806 = vmax.f32 %v5774, 0.0
        %v5807 = vmax.f32 %v5775, 0.0
        %v5808 = vmax.f32 %v5776, 0.0
        %v5809 = vmax.f32 %v5777, 0.0
        %v5810 = vmax.f32 %v5778, 0.0
        %v5811 = vmax.f32 %v5779, 0.0
        %v5812 = vmax.f32 %v5780, 0.0
        %v5813 = vmax.f32 %v5781, 0.0
        %v5814 = vmax.f32 %v5782, 0.0
        %v5815 = vmax.f32 %v5783, 0.0
        %v5816 = vmax.f32 %v5784, 0.0
        %v5817 = vmax.f32 %v5785, 0.0
        %v5818 = vmax.f32 %v5786, 0.0
        %v5819 = vmax.f32 %v5787, 0.0
        %v5820 = vmax.f32 %v5788, 0.0
        %v5821 = vmax.f32 %v5789, 0.0
        %v5822 = vmax.f32 %v5790, 0.0
        %v5823 = vmax.f32 %v5791, 0.0
        %v5824 = vmax.f32 %v5792, 0.0
        %v5825 = vmax.f32 %v5793, 0.0
        %v5826 = vmax.f32 %v5794, 0.0
        %v5827 = vmax.f32 %v5795, 0.0
        %v5828 = vmax.f32 %v5796, 0.0
        %v5829 = vmax.f32 %v5797, 0.0
        %v5830 = vmax.f32 %v5798, 0.0
        %v5831 = vmax.f32 %v5799, 0.0
        %v5832 = vmax.f32 %v5800, 0.0
        %v5833 = vmax.f32 %v5801, 0.0
        %5834 = vst [vmem:[%s271] sm:$0xff] %v5802
        %5835 = vst [vmem:[%s271 + $0x8] sm:$0xff] %v5803
        %5836 = vst [vmem:[%s271 + $0x10] sm:$0xff] %v5804
        %5837 = vst [vmem:[%s271 + $0x18] sm:$0xff] %v5805
        %5838 = vst [vmem:[%s271 + $0x20] sm:$0xff] %v5806
        %5839 = vst [vmem:[%s271 + $0x28] sm:$0xff] %v5807
        %5840 = vst [vmem:[%s271 + $0x30] sm:$0xff] %v5808
        %5841 = vst [vmem:[%s271 + $0x38] sm:$0xff] %v5809
        %5842 = vst [vmem:[%s271 + $0x40] sm:$0xff] %v5810
        %5843 = vst [vmem:[%s271 + $0x48] sm:$0xff] %v5811
        %5844 = vst [vmem:[%s271 + $0x50] sm:$0xff] %v5812
        %5845 = vst [vmem:[%s271 + $0x58] sm:$0xff] %v5813
        %5846 = vst [vmem:[%s271 + $0x60] sm:$0xff] %v5814
        %5847 = vst [vmem:[%s271 + $0x68] sm:$0xff] %v5815
        %5848 = vst [vmem:[%s271 + $0x70] sm:$0xff] %v5816
        %5849 = vst [vmem:[%s271 + $0x78] sm:$0xff] %v5817
        %5850 = vst [vmem:[%s271 + $0x80] sm:$0xff] %v5818
        %5851 = vst [vmem:[%s271 + $0x88] sm:$0xff] %v5819
        %5852 = vst [vmem:[%s271 + $0x90] sm:$0xff] %v5820
        %5853 = vst [vmem:[%s271 + $0x98] sm:$0xff] %v5821
        %5854 = vst [vmem:[%s271 + $0xa0] sm:$0xff] %v5822
        %5855 = vst [vmem:[%s271 + $0xa8] sm:$0xff] %v5823
        %5856 = vst [vmem:[%s271 + $0xb0] sm:$0xff] %v5824
        %5857 = vst [vmem:[%s271 + $0xb8] sm:$0xff] %v5825
        %5858 = vst [vmem:[%s271 + $0xc0] sm:$0xff] %v5826
        %5859 = vst [vmem:[%s271 + $0xc8] sm:$0xff] %v5827
        %5860 = vst [vmem:[%s271 + $0xd0] sm:$0xff] %v5828
        %5861 = vst [vmem:[%s271 + $0xd8] sm:$0xff] %v5829
        %5862 = vst [vmem:[%s271 + $0xe0] sm:$0xff] %v5830
        %5863 = vst [vmem:[%s271 + $0xe8] sm:$0xff] %v5831
        %5864 = vst [vmem:[%s271 + $0xf0] sm:$0xff] %v5832
        %5865 = vst [vmem:[%s271 + $0xf8] sm:$0xff] %v5833
        %v5866 = vld [vmem:[#allocation4 + $0x140] sm:$0xff]
        %v5867 = vld [vmem:[#allocation4 + $0x148] sm:$0xff]
        %v5868 = vld [vmem:[#allocation4 + $0x150] sm:$0xff]
        %v5869 = vld [vmem:[#allocation4 + $0x158] sm:$0xff]
        %v5870 = vld [vmem:[#allocation4 + $0x160] sm:$0xff]
        %v5871 = vld [vmem:[#allocation4 + $0x168] sm:$0xff]
        %v5872 = vld [vmem:[#allocation4 + $0x170] sm:$0xff]
        %v5873 = vld [vmem:[#allocation4 + $0x178] sm:$0xff]
        %v5874 = vld [vmem:[#allocation4 + $0x180] sm:$0xff]
        %v5875 = vld [vmem:[#allocation4 + $0x188] sm:$0xff]
        %v5876 = vld [vmem:[#allocation4 + $0x190] sm:$0xff]
        %v5877 = vld [vmem:[#allocation4 + $0x198] sm:$0xff]
        %v5878 = vld [vmem:[#allocation4 + $0x1a0] sm:$0xff]
        %v5879 = vld [vmem:[#allocation4 + $0x1a8] sm:$0xff]
        %v5880 = vld [vmem:[#allocation4 + $0x1b0] sm:$0xff]
        %v5881 = vld [vmem:[#allocation4 + $0x1b8] sm:$0xff]
        %v5882 = vld [vmem:[#allocation4 + $0x1c0] sm:$0xff]
        %v5883 = vld [vmem:[#allocation4 + $0x1c8] sm:$0xff]
        %v5884 = vld [vmem:[#allocation4 + $0x1d0] sm:$0xff]
        %v5885 = vld [vmem:[#allocation4 + $0x1d8] sm:$0xff]
        %v5886 = vld [vmem:[#allocation4 + $0x1e0] sm:$0xff]
        %v5887 = vld [vmem:[#allocation4 + $0x1e8] sm:$0xff]
        %v5888 = vld [vmem:[#allocation4 + $0x1f0] sm:$0xff]
        %v5889 = vld [vmem:[#allocation4 + $0x1f8] sm:$0xff]
        %v5890 = vld [vmem:[#allocation4 + $0x200] sm:$0xff]
        %v5891 = vld [vmem:[#allocation4 + $0x208] sm:$0xff]
        %v5892 = vld [vmem:[#allocation4 + $0x210] sm:$0xff]
        %v5893 = vld [vmem:[#allocation4 + $0x218] sm:$0xff]
        %v5894 = vld [vmem:[#allocation4 + $0x220] sm:$0xff]
        %v5895 = vld [vmem:[#allocation4 + $0x228] sm:$0xff]
        %v5896 = vld [vmem:[#allocation4 + $0x230] sm:$0xff]
        %v5897 = vld [vmem:[#allocation4 + $0x238] sm:$0xff]
        %v5898 = vld [vmem:[#allocation4 + $0x240] sm:$0xff]
        %v5899 = vld [vmem:[#allocation4 + $0x248] sm:$0xff]
        %v5900 = vld [vmem:[#allocation4 + $0x250] sm:$0xff]
        %v5901 = vld [vmem:[#allocation4 + $0x258] sm:$0xff]
        %v5902 = vld [vmem:[#allocation4 + $0x260] sm:$0xff]
        %v5903 = vld [vmem:[#allocation4 + $0x268] sm:$0xff]
        %v5904 = vld [vmem:[#allocation4 + $0x270] sm:$0xff]
        %v5905 = vld [vmem:[#allocation4 + $0x278] sm:$0xff]
        %v5906 = vld [vmem:[%s4] sm:$0xff]
        %v5907 = vld [vmem:[%s4 + $0x8] sm:$0xff]
        %v5908 = vld [vmem:[%s4 + $0x10] sm:$0xff]
        %v5909 = vld [vmem:[%s4 + $0x18] sm:$0xff]
        %v5910 = vld [vmem:[%s4 + $0x20] sm:$0xff]
        %v5911 = vld [vmem:[%s4 + $0x28] sm:$0xff]
        %v5912 = vld [vmem:[%s4 + $0x30] sm:$0xff]
        %v5913 = vld [vmem:[%s4 + $0x38] sm:$0xff]
        %v5914 = vld [vmem:[%s4 + $0x40] sm:$0xff]
        %v5915 = vld [vmem:[%s4 + $0x48] sm:$0xff]
        %v5916 = vld [vmem:[%s4 + $0x50] sm:$0xff]
        %v5917 = vld [vmem:[%s4 + $0x58] sm:$0xff]
        %v5918 = vld [vmem:[%s4 + $0x60] sm:$0xff]
        %v5919 = vld [vmem:[%s4 + $0x68] sm:$0xff]
        %v5920 = vld [vmem:[%s4 + $0x70] sm:$0xff]
        %v5921 = vld [vmem:[%s4 + $0x78] sm:$0xff]
        %v5922 = vld [vmem:[%s4 + $0x80] sm:$0xff]
        %v5923 = vld [vmem:[%s4 + $0x88] sm:$0xff]
        %v5924 = vld [vmem:[%s4 + $0x90] sm:$0xff]
        %v5925 = vld [vmem:[%s4 + $0x98] sm:$0xff]
        %v5926 = vld [vmem:[%s4 + $0xa0] sm:$0xff]
        %v5927 = vld [vmem:[%s4 + $0xa8] sm:$0xff]
        %v5928 = vld [vmem:[%s4 + $0xb0] sm:$0xff]
        %v5929 = vld [vmem:[%s4 + $0xb8] sm:$0xff]
        %v5930 = vld [vmem:[%s4 + $0xc0] sm:$0xff]
        %v5931 = vld [vmem:[%s4 + $0xc8] sm:$0xff]
        %v5932 = vld [vmem:[%s4 + $0xd0] sm:$0xff]
        %v5933 = vld [vmem:[%s4 + $0xd8] sm:$0xff]
        %v5934 = vld [vmem:[%s4 + $0xe0] sm:$0xff]
        %v5935 = vld [vmem:[%s4 + $0xe8] sm:$0xff]
        %v5936 = vld [vmem:[%s4 + $0xf0] sm:$0xff]
        %v5937 = vld [vmem:[%s4 + $0xf8] sm:$0xff]
        %v5938 = vld [vmem:[%s4 + $0x100] sm:$0xff]
        %v5939 = vld [vmem:[%s4 + $0x108] sm:$0xff]
        %v5940 = vld [vmem:[%s4 + $0x110] sm:$0xff]
        %v5941 = vld [vmem:[%s4 + $0x118] sm:$0xff]
        %v5942 = vld [vmem:[%s4 + $0x120] sm:$0xff]
        %v5943 = vld [vmem:[%s4 + $0x128] sm:$0xff]
        %v5944 = vld [vmem:[%s4 + $0x130] sm:$0xff]
        %v5945 = vld [vmem:[%s4 + $0x138] sm:$0xff]
        %v5946 = vld [vmem:[%s4 + $0x140] sm:$0xff]
        %v5947 = vld [vmem:[%s4 + $0x148] sm:$0xff]
        %v5948 = vld [vmem:[%s4 + $0x150] sm:$0xff]
        %v5949 = vld [vmem:[%s4 + $0x158] sm:$0xff]
        %v5950 = vld [vmem:[%s4 + $0x160] sm:$0xff]
        %v5951 = vld [vmem:[%s4 + $0x168] sm:$0xff]
        %v5952 = vld [vmem:[%s4 + $0x170] sm:$0xff]
        %v5953 = vld [vmem:[%s4 + $0x178] sm:$0xff]
        %v5954 = vld [vmem:[%s4 + $0x180] sm:$0xff]
        %v5955 = vld [vmem:[%s4 + $0x188] sm:$0xff]
        %v5956 = vld [vmem:[%s4 + $0x190] sm:$0xff]
        %v5957 = vld [vmem:[%s4 + $0x198] sm:$0xff]
        %v5958 = vld [vmem:[%s4 + $0x1a0] sm:$0xff]
        %v5959 = vld [vmem:[%s4 + $0x1a8] sm:$0xff]
        %v5960 = vld [vmem:[%s4 + $0x1b0] sm:$0xff]
        %v5961 = vld [vmem:[%s4 + $0x1b8] sm:$0xff]
        %v5962 = vld [vmem:[%s4 + $0x1c0] sm:$0xff]
        %v5963 = vld [vmem:[%s4 + $0x1c8] sm:$0xff]
        %v5964 = vld [vmem:[%s4 + $0x1d0] sm:$0xff]
        %v5965 = vld [vmem:[%s4 + $0x1d8] sm:$0xff]
        %v5966 = vld [vmem:[%s4 + $0x1e0] sm:$0xff]
        %v5967 = vld [vmem:[%s4 + $0x1e8] sm:$0xff]
        %v5968 = vld [vmem:[%s4 + $0x1f0] sm:$0xff]
        %v5969 = vld [vmem:[%s4 + $0x1f8] sm:$0xff]
        %v5970 = vld [vmem:[%s4 + $0x200] sm:$0xff]
        %v5971 = vld [vmem:[%s4 + $0x208] sm:$0xff]
        %v5972 = vld [vmem:[%s4 + $0x210] sm:$0xff]
        %v5973 = vld [vmem:[%s4 + $0x218] sm:$0xff]
        %v5974 = vld [vmem:[%s4 + $0x220] sm:$0xff]
        %v5975 = vld [vmem:[%s4 + $0x228] sm:$0xff]
        %v5976 = vld [vmem:[%s4 + $0x230] sm:$0xff]
        %v5977 = vld [vmem:[%s4 + $0x238] sm:$0xff]
        %v6050 = vunpack.c.l.b16 %v5906
        %v6051 = vunpack.c.h.b16 %v5906
        %v6052 = vunpack.c.l.b16 %v5907
        %v6053 = vunpack.c.h.b16 %v5907
        %v6054 = vunpack.c.l.b16 %v5908
        %v6055 = vunpack.c.h.b16 %v5908
        %v6056 = vunpack.c.l.b16 %v5909
        %v6057 = vunpack.c.h.b16 %v5909
        %v6058 = vunpack.c.l.b16 %v5910
        %v6059 = vunpack.c.h.b16 %v5910
        %v6060 = vunpack.c.l.b16 %v5911
        %v6061 = vunpack.c.h.b16 %v5911
        %v6062 = vunpack.c.l.b16 %v5912
        %v6063 = vunpack.c.h.b16 %v5912
        %v6064 = vunpack.c.l.b16 %v5913
        %v6065 = vunpack.c.h.b16 %v5913
        %v6066 = vunpack.c.l.b16 %v5914
        %v6067 = vunpack.c.h.b16 %v5914
        %v6068 = vunpack.c.l.b16 %v5915
        %v6069 = vunpack.c.h.b16 %v5915
        %v6070 = vunpack.c.l.b16 %v5916
        %v6071 = vunpack.c.h.b16 %v5916
        %v6072 = vunpack.c.l.b16 %v5917
        %v6073 = vunpack.c.h.b16 %v5917
        %v6074 = vunpack.c.l.b16 %v5918
        %v6075 = vunpack.c.h.b16 %v5918
        %v6076 = vunpack.c.l.b16 %v5919
        %v6077 = vunpack.c.h.b16 %v5919
        %v6078 = vunpack.c.l.b16 %v5920
        %v6079 = vunpack.c.h.b16 %v5920
        %v6080 = vunpack.c.l.b16 %v5921
        %v6081 = vunpack.c.h.b16 %v5921
        %v6082 = vunpack.c.l.b16 %v5922
        %v6083 = vunpack.c.h.b16 %v5922
        %v6084 = vunpack.c.l.b16 %v5923
        %v6085 = vunpack.c.h.b16 %v5923
        %v6086 = vunpack.c.l.b16 %v5924
        %v6087 = vunpack.c.h.b16 %v5924
        %v6088 = vunpack.c.l.b16 %v5925
        %v6089 = vunpack.c.h.b16 %v5925
        %v6090 = vunpack.c.l.b16 %v5926
        %v6091 = vunpack.c.h.b16 %v5926
        %v6092 = vunpack.c.l.b16 %v5927
        %v6093 = vunpack.c.h.b16 %v5927
        %v6094 = vunpack.c.l.b16 %v5928
        %v6095 = vunpack.c.h.b16 %v5928
        %v6096 = vunpack.c.l.b16 %v5929
        %v6097 = vunpack.c.h.b16 %v5929
        %v6098 = vunpack.c.l.b16 %v5930
        %v6099 = vunpack.c.h.b16 %v5930
        %v6100 = vunpack.c.l.b16 %v5931
        %v6101 = vunpack.c.h.b16 %v5931
        %v6102 = vunpack.c.l.b16 %v5932
        %v6103 = vunpack.c.h.b16 %v5932
        %v6104 = vunpack.c.l.b16 %v5933
        %v6105 = vunpack.c.h.b16 %v5933
        %v6106 = vunpack.c.l.b16 %v5934
        %v6107 = vunpack.c.h.b16 %v5934
        %v6108 = vunpack.c.l.b16 %v5935
        %v6109 = vunpack.c.h.b16 %v5935
        %v6110 = vunpack.c.l.b16 %v5936
        %v6111 = vunpack.c.h.b16 %v5936
        %v6112 = vunpack.c.l.b16 %v5937
        %v6113 = vunpack.c.h.b16 %v5937
        %v6114 = vunpack.c.l.b16 %v5938
        %v6115 = vunpack.c.h.b16 %v5938
        %v6116 = vunpack.c.l.b16 %v5939
        %v6117 = vunpack.c.h.b16 %v5939
        %v6118 = vunpack.c.l.b16 %v5940
        %v6119 = vunpack.c.h.b16 %v5940
        %v6120 = vunpack.c.l.b16 %v5941
        %v6121 = vunpack.c.h.b16 %v5941
        %v6122 = vunpack.c.l.b16 %v5942
        %v6123 = vunpack.c.h.b16 %v5942
        %v6124 = vunpack.c.l.b16 %v5943
        %v6125 = vunpack.c.h.b16 %v5943
        %v6126 = vunpack.c.l.b16 %v5944
        %v6127 = vunpack.c.h.b16 %v5944
        %v6128 = vunpack.c.l.b16 %v5945
        %v6129 = vunpack.c.h.b16 %v5945
        %v6130 = vunpack.c.l.b16 %v5946
        %v6131 = vunpack.c.h.b16 %v5946
        %v6132 = vunpack.c.l.b16 %v5947
        %v6133 = vunpack.c.h.b16 %v5947
        %v6134 = vunpack.c.l.b16 %v5948
        %v6135 = vunpack.c.h.b16 %v5948
        %v6136 = vunpack.c.l.b16 %v5949
        %v6137 = vunpack.c.h.b16 %v5949
        %v6138 = vunpack.c.l.b16 %v5950
        %v6139 = vunpack.c.h.b16 %v5950
        %v6140 = vunpack.c.l.b16 %v5951
        %v6141 = vunpack.c.h.b16 %v5951
        %v6142 = vunpack.c.l.b16 %v5952
        %v6143 = vunpack.c.h.b16 %v5952
        %v6144 = vunpack.c.l.b16 %v5953
        %v6145 = vunpack.c.h.b16 %v5953
        %v6146 = vunpack.c.l.b16 %v5954
        %v6147 = vunpack.c.h.b16 %v5954
        %v6148 = vunpack.c.l.b16 %v5955
        %v6149 = vunpack.c.h.b16 %v5955
        %v6150 = vunpack.c.l.b16 %v5956
        %v6151 = vunpack.c.h.b16 %v5956
        %v6152 = vunpack.c.l.b16 %v5957
        %v6153 = vunpack.c.h.b16 %v5957
        %v6154 = vunpack.c.l.b16 %v5958
        %v6155 = vunpack.c.h.b16 %v5958
        %v6156 = vunpack.c.l.b16 %v5959
        %v6157 = vunpack.c.h.b16 %v5959
        %v6158 = vunpack.c.l.b16 %v5960
        %v6159 = vunpack.c.h.b16 %v5960
        %v6160 = vunpack.c.l.b16 %v5961
        %v6161 = vunpack.c.h.b16 %v5961
        %v6162 = vunpack.c.l.b16 %v5962
        %v6163 = vunpack.c.h.b16 %v5962
        %v6164 = vunpack.c.l.b16 %v5963
        %v6165 = vunpack.c.h.b16 %v5963
        %v6166 = vunpack.c.l.b16 %v5964
        %v6167 = vunpack.c.h.b16 %v5964
        %v6168 = vunpack.c.l.b16 %v5965
        %v6169 = vunpack.c.h.b16 %v5965
        %v6170 = vunpack.c.l.b16 %v5966
        %v6171 = vunpack.c.h.b16 %v5966
        %v6172 = vunpack.c.l.b16 %v5967
        %v6173 = vunpack.c.h.b16 %v5967
        %v6174 = vunpack.c.l.b16 %v5968
        %v6175 = vunpack.c.h.b16 %v5968
        %v6176 = vunpack.c.l.b16 %v5969
        %v6177 = vunpack.c.h.b16 %v5969
        %v6178 = vunpack.c.l.b16 %v5970
        %v6179 = vunpack.c.h.b16 %v5970
        %v6180 = vunpack.c.l.b16 %v5971
        %v6181 = vunpack.c.h.b16 %v5971
        %v6182 = vunpack.c.l.b16 %v5972
        %v6183 = vunpack.c.h.b16 %v5972
        %v6184 = vunpack.c.l.b16 %v5973
        %v6185 = vunpack.c.h.b16 %v5973
        %v6186 = vunpack.c.l.b16 %v5974
        %v6187 = vunpack.c.h.b16 %v5974
        %v6188 = vunpack.c.l.b16 %v5975
        %v6189 = vunpack.c.h.b16 %v5975
        %v6190 = vunpack.c.l.b16 %v5976
        %v6191 = vunpack.c.h.b16 %v5976
        %v6192 = vunpack.c.l.b16 %v5977
        %v6193 = vunpack.c.h.b16 %v5977
        %v6194 = vpack.c.b16 %v6052, %v6050
        %v6195 = vpack.c.b16 %v6053, %v6051
        %v6196 = vpack.c.b16 %v6056, %v6054
        %v6197 = vpack.c.b16 %v6057, %v6055
        %v6198 = vpack.c.b16 %v6060, %v6058
        %v6199 = vpack.c.b16 %v6061, %v6059
        %v6200 = vpack.c.b16 %v6064, %v6062
        %v6201 = vpack.c.b16 %v6065, %v6063
        %v6202 = vpack.c.b16 %v6068, %v6066
        %v6203 = vpack.c.b16 %v6069, %v6067
        %v6204 = vpack.c.b16 %v6072, %v6070
        %v6205 = vpack.c.b16 %v6073, %v6071
        %v6206 = vpack.c.b16 %v6076, %v6074
        %v6207 = vpack.c.b16 %v6077, %v6075
        %v6208 = vpack.c.b16 %v6080, %v6078
        %v6209 = vpack.c.b16 %v6081, %v6079
        %v6210 = vpack.c.b16 %v6084, %v6082
        %v6211 = vpack.c.b16 %v6085, %v6083
        %v6212 = vpack.c.b16 %v6088, %v6086
        %v6213 = vpack.c.b16 %v6089, %v6087
        %v6214 = vpack.c.b16 %v6092, %v6090
        %v6215 = vpack.c.b16 %v6093, %v6091
        %v6216 = vpack.c.b16 %v6096, %v6094
        %v6217 = vpack.c.b16 %v6097, %v6095
        %v6218 = vpack.c.b16 %v6100, %v6098
        %v6219 = vpack.c.b16 %v6101, %v6099
        %v6220 = vpack.c.b16 %v6104, %v6102
        %v6221 = vpack.c.b16 %v6105, %v6103
        %v6222 = vpack.c.b16 %v6108, %v6106
        %v6223 = vpack.c.b16 %v6109, %v6107
        %v6224 = vpack.c.b16 %v6112, %v6110
        %v6225 = vpack.c.b16 %v6113, %v6111
        %v6226 = vpack.c.b16 %v6116, %v6114
        %v6227 = vpack.c.b16 %v6117, %v6115
        %v6228 = vpack.c.b16 %v6120, %v6118
        %v6229 = vpack.c.b16 %v6121, %v6119
        %v6230 = vpack.c.b16 %v6124, %v6122
        %v6231 = vpack.c.b16 %v6125, %v6123
        %v6232 = vpack.c.b16 %v6128, %v6126
        %v6233 = vpack.c.b16 %v6129, %v6127
        %v6234 = vpack.c.b16 %v6132, %v6130
        %v6235 = vpack.c.b16 %v6133, %v6131
        %v6236 = vpack.c.b16 %v6136, %v6134
        %v6237 = vpack.c.b16 %v6137, %v6135
        %v6238 = vpack.c.b16 %v6140, %v6138
        %v6239 = vpack.c.b16 %v6141, %v6139
        %v6240 = vpack.c.b16 %v6144, %v6142
        %v6241 = vpack.c.b16 %v6145, %v6143
        %v6242 = vpack.c.b16 %v6148, %v6146
        %v6243 = vpack.c.b16 %v6149, %v6147
        %v6244 = vpack.c.b16 %v6152, %v6150
        %v6245 = vpack.c.b16 %v6153, %v6151
        %v6246 = vpack.c.b16 %v6156, %v6154
        %v6247 = vpack.c.b16 %v6157, %v6155
        %v6248 = vpack.c.b16 %v6160, %v6158
        %v6249 = vpack.c.b16 %v6161, %v6159
        %v6250 = vpack.c.b16 %v6164, %v6162
        %v6251 = vpack.c.b16 %v6165, %v6163
        %v6252 = vpack.c.b16 %v6168, %v6166
        %v6253 = vpack.c.b16 %v6169, %v6167
        %v6254 = vpack.c.b16 %v6172, %v6170
        %v6255 = vpack.c.b16 %v6173, %v6171
        %v6256 = vpack.c.b16 %v6176, %v6174
        %v6257 = vpack.c.b16 %v6177, %v6175
        %v6258 = vpack.c.b16 %v6180, %v6178
        %v6259 = vpack.c.b16 %v6181, %v6179
        %v6260 = vpack.c.b16 %v6184, %v6182
        %v6261 = vpack.c.b16 %v6185, %v6183
        %v6262 = vpack.c.b16 %v6188, %v6186
        %v6263 = vpack.c.b16 %v6189, %v6187
        %v6264 = vpack.c.b16 %v6192, %v6190
        %v6265 = vpack.c.b16 %v6193, %v6191
        %v6339 = vsel %vm3956, %v5870, 0
        %v6342 = vsel %vm3956, %v5875, 0
        %v6345 = vsel %vm3956, %v5880, 0
        %v6348 = vsel %vm3956, %v5885, 0
        %v6351 = vsel %vm3956, %v5890, 0
        %v6354 = vsel %vm3956, %v5895, 0
        %v6357 = vsel %vm3956, %v5900, 0
        %v6360 = vsel %vm3956, %v5905, 0
        %6362 = vmatprep.subr.bf16.mxu0 %v6195
        %6363 = vmatpush1.bf16.msra.mxu0 %v6194
        %6364 = vmatprep.subr.bf16.mxu0 %v6197
        %6365 = vmatpush1.bf16.msra.mxu0 %v6196
        %6366 = vmatprep.subr.bf16.mxu0 %v6199
        %6367 = vmatpush1.bf16.msra.mxu0 %v6198
        %6368 = vmatprep.subr.bf16.mxu0 %v6201
        %6369 = vmatpush1.bf16.msra.mxu0 %v6200
        %6370 = vmatprep.subr.bf16.mxu0 %v6203
        %6371 = vmatpush1.bf16.msra.mxu0 %v6202
        %6372 = vmatprep.subr.bf16.mxu0 %v6205
        %6373 = vmatpush1.bf16.msra.mxu0 %v6204
        %6374 = vmatprep.subr.bf16.mxu0 %v6207
        %6375 = vmatpush1.bf16.msra.mxu0 %v6206
        %6376 = vmatprep.subr.bf16.mxu0 %v6209
        %6377 = vmatpush1.bf16.msra.mxu0 %v6208
        %6378 = vmatprep.subr.bf16.mxu0 %v6211
        %6379 = vmatpush1.bf16.msra.mxu0 %v6210
        %6380 = vmatprep.subr.bf16.mxu0 %v6213
        %6381 = vmatpush1.bf16.msra.mxu0 %v6212
        %6382 = vmatprep.subr.bf16.mxu0 %v6215
        %6383 = vmatpush1.bf16.msra.mxu0 %v6214
        %6384 = vmatprep.subr.bf16.mxu0 %v6217
        %6385 = vmatpush1.bf16.msra.mxu0 %v6216
        %6386 = vmatprep.subr.bf16.mxu0 %v6219
        %6387 = vmatpush1.bf16.msra.mxu0 %v6218
        %6388 = vmatprep.subr.bf16.mxu0 %v6221
        %6389 = vmatpush1.bf16.msra.mxu0 %v6220
        %6390 = vmatprep.subr.bf16.mxu0 %v6223
        %6391 = vmatpush1.bf16.msra.mxu0 %v6222
        %6392 = vmatprep.subr.bf16.mxu0 %v6225
        %6393 = vmatpush1.bf16.msra.mxu0 %v6224
        %6394 = vmatprep.mubr.bf16.mxu0 %v5867
        %6395 = vmatmul.mubr.bf16.gmra.mrb[0].mxu0 %v5866
        %v6396 = vpop.f32.mrb[0].mxu0
        %v6397 = vadd.f32 0.0, %v6396
        %v6398 = vpop.f32.mrb[0].mxu0
        %v6399 = vadd.f32 0.0, %v6398
        %v6400 = vpop.f32.mrb[0].mxu0
        %v6401 = vadd.f32 0.0, %v6400
        %v6402 = vpop.f32.mrb[0].mxu0
        %v6403 = vadd.f32 0.0, %v6402
        %6404 = vmatprep.mubr.bf16.mxu0 %v5872
        %6405 = vmatmul.mubr.bf16.gmra.mrb[0].mxu0 %v5871
        %v6406 = vpop.f32.mrb[0].mxu0
        %v6407 = vadd.f32 0.0, %v6406
        %v6408 = vpop.f32.mrb[0].mxu0
        %v6409 = vadd.f32 0.0, %v6408
        %v6410 = vpop.f32.mrb[0].mxu0
        %v6411 = vadd.f32 0.0, %v6410
        %v6412 = vpop.f32.mrb[0].mxu0
        %v6413 = vadd.f32 0.0, %v6412
        %6414 = vmatprep.mubr.bf16.mxu0 %v5877
        %6415 = vmatmul.mubr.bf16.gmra.mrb[0].mxu0 %v5876
        %v6416 = vpop.f32.mrb[0].mxu0
        %v6417 = vadd.f32 0.0, %v6416
        %v6418 = vpop.f32.mrb[0].mxu0
        %v6419 = vadd.f32 0.0, %v6418
        %v6420 = vpop.f32.mrb[0].mxu0
        %v6421 = vadd.f32 0.0, %v6420
        %v6422 = vpop.f32.mrb[0].mxu0
        %v6423 = vadd.f32 0.0, %v6422
        %6424 = vmatprep.mubr.bf16.mxu0 %v5882
        %6425 = vmatmul.mubr.bf16.gmra.mrb[0].mxu0 %v5881
        %v6426 = vpop.f32.mrb[0].mxu0
        %v6427 = vadd.f32 0.0, %v6426
        %v6428 = vpop.f32.mrb[0].mxu0
        %v6429 = vadd.f32 0.0, %v6428
        %v6430 = vpop.f32.mrb[0].mxu0
        %v6431 = vadd.f32 0.0, %v6430
        %v6432 = vpop.f32.mrb[0].mxu0
        %v6433 = vadd.f32 0.0, %v6432
        %6434 = vmatprep.mubr.bf16.mxu0 %v5887
        %6435 = vmatmul.mubr.bf16.gmra.mrb[0].mxu0 %v5886
        %v6436 = vpop.f32.mrb[0].mxu0
        %v6437 = vadd.f32 0.0, %v6436
        %v6438 = vpop.f32.mrb[0].mxu0
        %v6439 = vadd.f32 0.0, %v6438
        %v6440 = vpop.f32.mrb[0].mxu0
        %v6441 = vadd.f32 0.0, %v6440
        %v6442 = vpop.f32.mrb[0].mxu0
        %v6443 = vadd.f32 0.0, %v6442
        %6444 = vmatprep.mubr.bf16.mxu0 %v5892
        %6445 = vmatmul.mubr.bf16.gmra.mrb[0].mxu0 %v5891
        %v6446 = vpop.f32.mrb[0].mxu0
        %v6447 = vadd.f32 0.0, %v6446
        %v6448 = vpop.f32.mrb[0].mxu0
        %v6449 = vadd.f32 0.0, %v6448
        %v6450 = vpop.f32.mrb[0].mxu0
        %v6451 = vadd.f32 0.0, %v6450
        %v6452 = vpop.f32.mrb[0].mxu0
        %v6453 = vadd.f32 0.0, %v6452
        %6454 = vmatprep.mubr.bf16.mxu0 %v5897
        %6455 = vmatmul.mubr.bf16.gmra.mrb[0].mxu0 %v5896
        %v6456 = vpop.f32.mrb[0].mxu0
        %v6457 = vadd.f32 0.0, %v6456
        %v6458 = vpop.f32.mrb[0].mxu0
        %v6459 = vadd.f32 0.0, %v6458
        %v6460 = vpop.f32.mrb[0].mxu0
        %v6461 = vadd.f32 0.0, %v6460
        %v6462 = vpop.f32.mrb[0].mxu0
        %v6463 = vadd.f32 0.0, %v6462
        %6464 = vmatprep.mubr.bf16.mxu0 %v5902
        %6465 = vmatmul.mubr.bf16.gmra.mrb[0].mxu0 %v5901
        %v6466 = vpop.f32.mrb[0].mxu0
        %v6467 = vadd.f32 0.0, %v6466
        %v6468 = vpop.f32.mrb[0].mxu0
        %v6469 = vadd.f32 0.0, %v6468
        %v6470 = vpop.f32.mrb[0].mxu0
        %v6471 = vadd.f32 0.0, %v6470
        %v6472 = vpop.f32.mrb[0].mxu0
        %v6473 = vadd.f32 0.0, %v6472
        %6474 = vdwg.mxu0
        %6475 = vmatprep.subr.bf16.mxu0 %v6227
        %6476 = vmatpush1.bf16.msra.mxu0 %v6226
        %6477 = vmatprep.subr.bf16.mxu0 %v6229
        %6478 = vmatpush1.bf16.msra.mxu0 %v6228
        %6479 = vmatprep.subr.bf16.mxu0 %v6231
        %6480 = vmatpush1.bf16.msra.mxu0 %v6230
        %6481 = vmatprep.subr.bf16.mxu0 %v6233
        %6482 = vmatpush1.bf16.msra.mxu0 %v6232
        %6483 = vmatprep.subr.bf16.mxu0 %v6235
        %6484 = vmatpush1.bf16.msra.mxu0 %v6234
        %6485 = vmatprep.subr.bf16.mxu0 %v6237
        %6486 = vmatpush1.bf16.msra.mxu0 %v6236
        %6487 = vmatprep.subr.bf16.mxu0 %v6239
        %6488 = vmatpush1.bf16.msra.mxu0 %v6238
        %6489 = vmatprep.subr.bf16.mxu0 %v6241
        %6490 = vmatpush1.bf16.msra.mxu0 %v6240
        %6491 = vmatprep.subr.bf16.mxu0 %v6243
        %6492 = vmatpush1.bf16.msra.mxu0 %v6242
        %6493 = vmatprep.subr.bf16.mxu0 %v6245
        %6494 = vmatpush1.bf16.msra.mxu0 %v6244
        %6495 = vmatprep.subr.bf16.mxu0 %v6247
        %6496 = vmatpush1.bf16.msra.mxu0 %v6246
        %6497 = vmatprep.subr.bf16.mxu0 %v6249
        %6498 = vmatpush1.bf16.msra.mxu0 %v6248
        %6499 = vmatprep.subr.bf16.mxu0 %v6251
        %6500 = vmatpush1.bf16.msra.mxu0 %v6250
        %6501 = vmatprep.subr.bf16.mxu0 %v6253
        %6502 = vmatpush1.bf16.msra.mxu0 %v6252
        %6503 = vmatprep.subr.bf16.mxu0 %v6255
        %6504 = vmatpush1.bf16.msra.mxu0 %v6254
        %6505 = vmatprep.subr.bf16.mxu0 %v6257
        %6506 = vmatpush1.bf16.msra.mxu0 %v6256
        %6507 = vmatprep.mubr.bf16.mxu0 %v5869
        %6508 = vmatmul.mubr.bf16.gmra.mrb[0].mxu0 %v5868
        %v6509 = vpop.f32.mrb[0].mxu0
        %v6510 = vadd.f32 %v6397, %v6509
        %v6511 = vpop.f32.mrb[0].mxu0
        %v6512 = vadd.f32 %v6399, %v6511
        %v6513 = vpop.f32.mrb[0].mxu0
        %v6514 = vadd.f32 %v6401, %v6513
        %v6515 = vpop.f32.mrb[0].mxu0
        %v6516 = vadd.f32 %v6403, %v6515
        %6517 = vmatprep.mubr.bf16.mxu0 %v5874
        %6518 = vmatmul.mubr.bf16.gmra.mrb[0].mxu0 %v5873
        %v6519 = vpop.f32.mrb[0].mxu0
        %v6520 = vadd.f32 %v6407, %v6519
        %v6521 = vpop.f32.mrb[0].mxu0
        %v6522 = vadd.f32 %v6409, %v6521
        %v6523 = vpop.f32.mrb[0].mxu0
        %v6524 = vadd.f32 %v6411, %v6523
        %v6525 = vpop.f32.mrb[0].mxu0
        %v6526 = vadd.f32 %v6413, %v6525
        %6527 = vmatprep.mubr.bf16.mxu0 %v5879
        %6528 = vmatmul.mubr.bf16.gmra.mrb[0].mxu0 %v5878
        %v6529 = vpop.f32.mrb[0].mxu0
        %v6530 = vadd.f32 %v6417, %v6529
        %v6531 = vpop.f32.mrb[0].mxu0
        %v6532 = vadd.f32 %v6419, %v6531
        %v6533 = vpop.f32.mrb[0].mxu0
        %v6534 = vadd.f32 %v6421, %v6533
        %v6535 = vpop.f32.mrb[0].mxu0
        %v6536 = vadd.f32 %v6423, %v6535
        %6537 = vmatprep.mubr.bf16.mxu0 %v5884
        %6538 = vmatmul.mubr.bf16.gmra.mrb[0].mxu0 %v5883
        %v6539 = vpop.f32.mrb[0].mxu0
        %v6540 = vadd.f32 %v6427, %v6539
        %v6541 = vpop.f32.mrb[0].mxu0
        %v6542 = vadd.f32 %v6429, %v6541
        %v6543 = vpop.f32.mrb[0].mxu0
        %v6544 = vadd.f32 %v6431, %v6543
        %v6545 = vpop.f32.mrb[0].mxu0
        %v6546 = vadd.f32 %v6433, %v6545
        %6547 = vmatprep.mubr.bf16.mxu0 %v5889
        %6548 = vmatmul.mubr.bf16.gmra.mrb[0].mxu0 %v5888
        %v6549 = vpop.f32.mrb[0].mxu0
        %v6550 = vadd.f32 %v6437, %v6549
        %v6551 = vpop.f32.mrb[0].mxu0
        %v6552 = vadd.f32 %v6439, %v6551
        %v6553 = vpop.f32.mrb[0].mxu0
        %v6554 = vadd.f32 %v6441, %v6553
        %v6555 = vpop.f32.mrb[0].mxu0
        %v6556 = vadd.f32 %v6443, %v6555
        %6557 = vmatprep.mubr.bf16.mxu0 %v5894
        %6558 = vmatmul.mubr.bf16.gmra.mrb[0].mxu0 %v5893
        %v6559 = vpop.f32.mrb[0].mxu0
        %v6560 = vadd.f32 %v6447, %v6559
        %v6561 = vpop.f32.mrb[0].mxu0
        %v6562 = vadd.f32 %v6449, %v6561
        %v6563 = vpop.f32.mrb[0].mxu0
        %v6564 = vadd.f32 %v6451, %v6563
        %v6565 = vpop.f32.mrb[0].mxu0
        %v6566 = vadd.f32 %v6453, %v6565
        %6567 = vmatprep.mubr.bf16.mxu0 %v5899
        %6568 = vmatmul.mubr.bf16.gmra.mrb[0].mxu0 %v5898
        %v6569 = vpop.f32.mrb[0].mxu0
        %v6570 = vadd.f32 %v6457, %v6569
        %v6571 = vpop.f32.mrb[0].mxu0
        %v6572 = vadd.f32 %v6459, %v6571
        %v6573 = vpop.f32.mrb[0].mxu0
        %v6574 = vadd.f32 %v6461, %v6573
        %v6575 = vpop.f32.mrb[0].mxu0
        %v6576 = vadd.f32 %v6463, %v6575
        %6577 = vmatprep.mubr.bf16.mxu0 %v5904
        %6578 = vmatmul.mubr.bf16.gmra.mrb[0].mxu0 %v5903
        %v6579 = vpop.f32.mrb[0].mxu0
        %v6580 = vadd.f32 %v6467, %v6579
        %v6581 = vpop.f32.mrb[0].mxu0
        %v6582 = vadd.f32 %v6469, %v6581
        %v6583 = vpop.f32.mrb[0].mxu0
        %v6584 = vadd.f32 %v6471, %v6583
        %v6585 = vpop.f32.mrb[0].mxu0
        %v6586 = vadd.f32 %v6473, %v6585
        %6587 = vdwg.mxu0
        %6588 = vmatprep.subr.bf16.mxu0 %v6259
        %6589 = vmatpush1.bf16.msra.mxu0 %v6258
        %6590 = vmatprep.subr.bf16.mxu0 %v6261
        %6591 = vmatpush1.bf16.msra.mxu0 %v6260
        %6592 = vmatprep.subr.bf16.mxu0 %v6263
        %6593 = vmatpush1.bf16.msra.mxu0 %v6262
        %6594 = vmatprep.subr.bf16.mxu0 %v6265
        %6595 = vmatpush1.bf16.msra.mxu0 %v6264
        %6596 = vmatprep.subr.bf16.mxu0 0
        %6597 = vmatpush1.bf16.msra.mxu0 0
        %6598 = vmatprep.subr.bf16.mxu0 0
        %6599 = vmatpush1.bf16.msra.mxu0 0
        %6600 = vmatprep.subr.bf16.mxu0 0
        %6601 = vmatpush1.bf16.msra.mxu0 0
        %6602 = vmatprep.subr.bf16.mxu0 0
        %6603 = vmatpush1.bf16.msra.mxu0 0
        %6604 = vmatprep.subr.bf16.mxu0 0
        %6605 = vmatpush1.bf16.msra.mxu0 0
        %6606 = vmatprep.subr.bf16.mxu0 0
        %6607 = vmatpush1.bf16.msra.mxu0 0
        %6608 = vmatprep.subr.bf16.mxu0 0
        %6609 = vmatpush1.bf16.msra.mxu0 0
        %6610 = vmatprep.subr.bf16.mxu0 0
        %6611 = vmatpush1.bf16.msra.mxu0 0
        %6612 = vmatprep.subr.bf16.mxu0 0
        %6613 = vmatpush1.bf16.msra.mxu0 0
        %6614 = vmatprep.subr.bf16.mxu0 0
        %6615 = vmatpush1.bf16.msra.mxu0 0
        %6616 = vmatprep.subr.bf16.mxu0 0
        %6617 = vmatpush1.bf16.msra.mxu0 0
        %6618 = vmatprep.subr.bf16.mxu0 0
        %6619 = vmatpush1.bf16.msra.mxu0 0
        %6620 = vmatprep.mubr.bf16.mxu0 0
        %6621 = vmatmul.mubr.bf16.gmra.mrb[0].mxu0 %v6339
        %v6622 = vpop.f32.mrb[0].mxu0
        %v6623 = vadd.f32 %v6510, %v6622
        %v6624 = vpop.f32.mrb[0].mxu0
        %v6625 = vadd.f32 %v6512, %v6624
        %v6626 = vpop.f32.mrb[0].mxu0
        %v6627 = vadd.f32 %v6514, %v6626
        %v6628 = vpop.f32.mrb[0].mxu0
        %v6629 = vadd.f32 %v6516, %v6628
        %6630 = vmatprep.mubr.bf16.mxu0 0
        %6631 = vmatmul.mubr.bf16.gmra.mrb[0].mxu0 %v6342
        %v6632 = vpop.f32.mrb[0].mxu0
        %v6633 = vadd.f32 %v6520, %v6632
        %v6634 = vpop.f32.mrb[0].mxu0
        %v6635 = vadd.f32 %v6522, %v6634
        %v6636 = vpop.f32.mrb[0].mxu0
        %v6637 = vadd.f32 %v6524, %v6636
        %v6638 = vpop.f32.mrb[0].mxu0
        %v6639 = vadd.f32 %v6526, %v6638
        %6640 = vmatprep.mubr.bf16.mxu0 0
        %6641 = vmatmul.mubr.bf16.gmra.mrb[0].mxu0 %v6345
        %v6642 = vpop.f32.mrb[0].mxu0
        %v6643 = vadd.f32 %v6530, %v6642
        %v6644 = vpop.f32.mrb[0].mxu0
        %v6645 = vadd.f32 %v6532, %v6644
        %v6646 = vpop.f32.mrb[0].mxu0
        %v6647 = vadd.f32 %v6534, %v6646
        %v6648 = vpop.f32.mrb[0].mxu0
        %v6649 = vadd.f32 %v6536, %v6648
        %6650 = vmatprep.mubr.bf16.mxu0 0
        %6651 = vmatmul.mubr.bf16.gmra.mrb[0].mxu0 %v6348
        %v6652 = vpop.f32.mrb[0].mxu0
        %v6653 = vadd.f32 %v6540, %v6652
        %v6654 = vpop.f32.mrb[0].mxu0
        %v6655 = vadd.f32 %v6542, %v6654
        %v6656 = vpop.f32.mrb[0].mxu0
        %v6657 = vadd.f32 %v6544, %v6656
        %v6658 = vpop.f32.mrb[0].mxu0
        %v6659 = vadd.f32 %v6546, %v6658
        %6660 = vmatprep.mubr.bf16.mxu0 0
        %6661 = vmatmul.mubr.bf16.gmra.mrb[0].mxu0 %v6351
        %v6662 = vpop.f32.mrb[0].mxu0
        %v6663 = vadd.f32 %v6550, %v6662
        %v6664 = vpop.f32.mrb[0].mxu0
        %v6665 = vadd.f32 %v6552, %v6664
        %v6666 = vpop.f32.mrb[0].mxu0
        %v6667 = vadd.f32 %v6554, %v6666
        %v6668 = vpop.f32.mrb[0].mxu0
        %v6669 = vadd.f32 %v6556, %v6668
        %6670 = vmatprep.mubr.bf16.mxu0 0
        %6671 = vmatmul.mubr.bf16.gmra.mrb[0].mxu0 %v6354
        %v6672 = vpop.f32.mrb[0].mxu0
        %v6673 = vadd.f32 %v6560, %v6672
        %v6674 = vpop.f32.mrb[0].mxu0
        %v6675 = vadd.f32 %v6562, %v6674
        %v6676 = vpop.f32.mrb[0].mxu0
        %v6677 = vadd.f32 %v6564, %v6676
        %v6678 = vpop.f32.mrb[0].mxu0
        %v6679 = vadd.f32 %v6566, %v6678
        %6680 = vmatprep.mubr.bf16.mxu0 0
        %6681 = vmatmul.mubr.bf16.gmra.mrb[0].mxu0 %v6357
        %v6682 = vpop.f32.mrb[0].mxu0
        %v6683 = vadd.f32 %v6570, %v6682
        %v6684 = vpop.f32.mrb[0].mxu0
        %v6685 = vadd.f32 %v6572, %v6684
        %v6686 = vpop.f32.mrb[0].mxu0
        %v6687 = vadd.f32 %v6574, %v6686
        %v6688 = vpop.f32.mrb[0].mxu0
        %v6689 = vadd.f32 %v6576, %v6688
        %6690 = vmatprep.mubr.bf16.mxu0 0
        %6691 = vmatmul.mubr.bf16.gmra.mrb[0].mxu0 %v6360
        %v6692 = vpop.f32.mrb[0].mxu0
        %v6693 = vadd.f32 %v6580, %v6692
        %v6694 = vpop.f32.mrb[0].mxu0
        %v6695 = vadd.f32 %v6582, %v6694
        %v6696 = vpop.f32.mrb[0].mxu0
        %v6697 = vadd.f32 %v6584, %v6696
        %v6698 = vpop.f32.mrb[0].mxu0
        %v6699 = vadd.f32 %v6586, %v6698
        %6700 = vdwg.mxu0
        %v6701 = vmul.f32 %v6623, %v5720
        %v6702 = vmul.f32 %v6625, %v5724
        %v6703 = vmul.f32 %v6627, %v5720
        %v6704 = vmul.f32 %v6629, %v5724
        %v6705 = vmul.f32 %v6633, %v5720
        %v6706 = vmul.f32 %v6635, %v5724
        %v6707 = vmul.f32 %v6637, %v5720
        %v6708 = vmul.f32 %v6639, %v5724
        %v6709 = vmul.f32 %v6643, %v5720
        %v6710 = vmul.f32 %v6645, %v5724
        %v6711 = vmul.f32 %v6647, %v5720
        %v6712 = vmul.f32 %v6649, %v5724
        %v6713 = vmul.f32 %v6653, %v5720
        %v6714 = vmul.f32 %v6655, %v5724
        %v6715 = vmul.f32 %v6657, %v5720
        %v6716 = vmul.f32 %v6659, %v5724
        %v6717 = vmul.f32 %v6663, %v5720
        %v6718 = vmul.f32 %v6665, %v5724
        %v6719 = vmul.f32 %v6667, %v5720
        %v6720 = vmul.f32 %v6669, %v5724
        %v6721 = vmul.f32 %v6673, %v5720
        %v6722 = vmul.f32 %v6675, %v5724
        %v6723 = vmul.f32 %v6677, %v5720
        %v6724 = vmul.f32 %v6679, %v5724
        %v6725 = vmul.f32 %v6683, %v5720
        %v6726 = vmul.f32 %v6685, %v5724
        %v6727 = vmul.f32 %v6687, %v5720
        %v6728 = vmul.f32 %v6689, %v5724
        %v6729 = vmul.f32 %v6693, %v5720
        %v6730 = vmul.f32 %v6695, %v5724
        %v6731 = vmul.f32 %v6697, %v5720
        %v6732 = vmul.f32 %v6699, %v5724
        %v6733 = vadd.f32 %v6701, %v5763
        %v6734 = vadd.f32 %v6702, %v5767
        %v6735 = vadd.f32 %v6703, %v5763
        %v6736 = vadd.f32 %v6704, %v5767
        %v6737 = vadd.f32 %v6705, %v5763
        %v6738 = vadd.f32 %v6706, %v5767
        %v6739 = vadd.f32 %v6707, %v5763
        %v6740 = vadd.f32 %v6708, %v5767
        %v6741 = vadd.f32 %v6709, %v5763
        %v6742 = vadd.f32 %v6710, %v5767
        %v6743 = vadd.f32 %v6711, %v5763
        %v6744 = vadd.f32 %v6712, %v5767
        %v6745 = vadd.f32 %v6713, %v5763
        %v6746 = vadd.f32 %v6714, %v5767
        %v6747 = vadd.f32 %v6715, %v5763
        %v6748 = vadd.f32 %v6716, %v5767
        %v6749 = vadd.f32 %v6717, %v5763
        %v6750 = vadd.f32 %v6718, %v5767
        %v6751 = vadd.f32 %v6719, %v5763
        %v6752 = vadd.f32 %v6720, %v5767
        %v6753 = vadd.f32 %v6721, %v5763
        %v6754 = vadd.f32 %v6722, %v5767
        %v6755 = vadd.f32 %v6723, %v5763
        %v6756 = vadd.f32 %v6724, %v5767
        %v6757 = vadd.f32 %v6725, %v5763
        %v6758 = vadd.f32 %v6726, %v5767
        %v6759 = vadd.f32 %v6727, %v5763
        %v6760 = vadd.f32 %v6728, %v5767
        %v6761 = vadd.f32 %v6729, %v5763
        %v6762 = vadd.f32 %v6730, %v5767
        %v6763 = vadd.f32 %v6731, %v5763
        %v6764 = vadd.f32 %v6732, %v5767
        %v6765 = vmax.f32 %v6733, 0.0
        %v6766 = vmax.f32 %v6734, 0.0
        %v6767 = vmax.f32 %v6735, 0.0
        %v6768 = vmax.f32 %v6736, 0.0
        %v6769 = vmax.f32 %v6737, 0.0
        %v6770 = vmax.f32 %v6738, 0.0
        %v6771 = vmax.f32 %v6739, 0.0
        %v6772 = vmax.f32 %v6740, 0.0
        %v6773 = vmax.f32 %v6741, 0.0
        %v6774 = vmax.f32 %v6742, 0.0
        %v6775 = vmax.f32 %v6743, 0.0
        %v6776 = vmax.f32 %v6744, 0.0
        %v6777 = vmax.f32 %v6745, 0.0
        %v6778 = vmax.f32 %v6746, 0.0
        %v6779 = vmax.f32 %v6747, 0.0
        %v6780 = vmax.f32 %v6748, 0.0
        %v6781 = vmax.f32 %v6749, 0.0
        %v6782 = vmax.f32 %v6750, 0.0
        %v6783 = vmax.f32 %v6751, 0.0
        %v6784 = vmax.f32 %v6752, 0.0
        %v6785 = vmax.f32 %v6753, 0.0
        %v6786 = vmax.f32 %v6754, 0.0
        %v6787 = vmax.f32 %v6755, 0.0
        %v6788 = vmax.f32 %v6756, 0.0
        %v6789 = vmax.f32 %v6757, 0.0
        %v6790 = vmax.f32 %v6758, 0.0
        %v6791 = vmax.f32 %v6759, 0.0
        %v6792 = vmax.f32 %v6760, 0.0
        %v6793 = vmax.f32 %v6761, 0.0
        %v6794 = vmax.f32 %v6762, 0.0
        %v6795 = vmax.f32 %v6763, 0.0
        %v6796 = vmax.f32 %v6764, 0.0
        %6797 = vst [vmem:[%s271 + $0x100] sm:$0xff] %v6765
        %6798 = vst [vmem:[%s271 + $0x108] sm:$0xff] %v6766
        %6799 = vst [vmem:[%s271 + $0x110] sm:$0xff] %v6767
        %6800 = vst [vmem:[%s271 + $0x118] sm:$0xff] %v6768
        %6801 = vst [vmem:[%s271 + $0x120] sm:$0xff] %v6769
        %6802 = vst [vmem:[%s271 + $0x128] sm:$0xff] %v6770
        %6803 = vst [vmem:[%s271 + $0x130] sm:$0xff] %v6771
        %6804 = vst [vmem:[%s271 + $0x138] sm:$0xff] %v6772
        %6805 = vst [vmem:[%s271 + $0x140] sm:$0xff] %v6773
        %6806 = vst [vmem:[%s271 + $0x148] sm:$0xff] %v6774
        %6807 = vst [vmem:[%s271 + $0x150] sm:$0xff] %v6775
        %6808 = vst [vmem:[%s271 + $0x158] sm:$0xff] %v6776
        %6809 = vst [vmem:[%s271 + $0x160] sm:$0xff] %v6777
        %6810 = vst [vmem:[%s271 + $0x168] sm:$0xff] %v6778
        %6811 = vst [vmem:[%s271 + $0x170] sm:$0xff] %v6779
        %6812 = vst [vmem:[%s271 + $0x178] sm:$0xff] %v6780
        %6813 = vst [vmem:[%s271 + $0x180] sm:$0xff] %v6781
        %6814 = vst [vmem:[%s271 + $0x188] sm:$0xff] %v6782
        %6815 = vst [vmem:[%s271 + $0x190] sm:$0xff] %v6783
        %6816 = vst [vmem:[%s271 + $0x198] sm:$0xff] %v6784
        %6817 = vst [vmem:[%s271 + $0x1a0] sm:$0xff] %v6785
        %6818 = vst [vmem:[%s271 + $0x1a8] sm:$0xff] %v6786
        %6819 = vst [vmem:[%s271 + $0x1b0] sm:$0xff] %v6787
        %6820 = vst [vmem:[%s271 + $0x1b8] sm:$0xff] %v6788
        %6821 = vst [vmem:[%s271 + $0x1c0] sm:$0xff] %v6789
        %6822 = vst [vmem:[%s271 + $0x1c8] sm:$0xff] %v6790
        %6823 = vst [vmem:[%s271 + $0x1d0] sm:$0xff] %v6791
        %6824 = vst [vmem:[%s271 + $0x1d8] sm:$0xff] %v6792
        %6825 = vst [vmem:[%s271 + $0x1e0] sm:$0xff] %v6793
        %6826 = vst [vmem:[%s271 + $0x1e8] sm:$0xff] %v6794
        %6827 = vst [vmem:[%s271 + $0x1f0] sm:$0xff] %v6795
        %6828 = vst [vmem:[%s271 + $0x1f8] sm:$0xff] %v6796
        %s6829 = sand.u32 %s181, 1
        %s6830 = scalar_lea.sflag [#allocation6], %s6829
        %s6831 = sand.u32 %s181, 1
        %s6832 = smul.addr %s6831, 512
        %s6833 = scalar_lea.vmem [#allocation5], %s6832
        // Predicated region
        $region49: #{tpu_custom_call.1} parent=47 // pred_check
          %p6834 = pneg %p191
        $region50: #{tpu_custom_call.1} parent=47 // pred_check_branch
          %6836 = sbr.rel (%p6834) target = $region52
        $region51: #{tpu_custom_call.1} parent=47 // pred_region
          %s6838 = ssub.s32 8192, 8192
          %6839 = vsyncadd %s6830, %s6838
          %s6840 = smul.addr %s21, 64
          %s6841 = smul.addr %s6840, 128
          %s6842 = scalar_lea.hbm %s7, %s6841
          %s6843 = sshll.u32 %s6833, 4
          %s6844 = int_to_ptr.vmem [resolvable:$true] %s6843
          %6849 = dma.vmem_to_hbm [thread:$0]  %s6844, 8192, %s6842, %s6830, 256, 256, 16
        $region52: #{tpu_custom_call.1} parent=47 // pred_fallthru
          _
      $region48: #{tpu_custom_call.1} parent=5 // pred_fallthru
        _
      %p6850 = scmp.le.s32.totalorder 2, %s16
      // Predicated region
      $region53: #{tpu_custom_call.1} parent=5 // pred_check
        %p6851 = pneg %p6850
      $region54: #{tpu_custom_call.1} parent=5 // pred_check_branch
        %6853 = sbr.rel (%p6851) target = $region56
      $region55: #{tpu_custom_call.1} parent=5 // pred_region
        %s6854 = ssub.s32 %s16, 2
        // Predicated region
        $region57: #{tpu_custom_call.1} parent=55 // pred_check
          %p6855 = pneg %p197
        $region58: #{tpu_custom_call.1} parent=55 // pred_check_branch
          %6857 = sbr.rel (%p6855) target = $region60
        $region59: #{tpu_custom_call.1} parent=55 // pred_region
          %s6858 = sand.u32 %s182, 1
          %s6859 = scalar_lea.sflag [#allocation6], %s6858
          %s6860 = sand.u32 %s182, 1
          %s6861 = smul.addr %s6860, 512
          %s6862 = scalar_lea.vmem [#allocation5], %s6861
          %6863 = dma.done %s6859, 8192
        $region60: #{tpu_custom_call.1} parent=55 // pred_fallthru
          _
      $region56: #{tpu_custom_call.1} parent=5 // pred_fallthru
        _
    $region6: #{tpu_custom_call.1} parent=1 // loop_footer
      %s20 = sadd.s32 1, %s16
    $region7: #{tpu_custom_call.1} parent=1 // loop_footer_branch
      %15 = sbr.rel target = $region3
    $region8: #{tpu_custom_call.1} parent=1 // loop_exit
      _
    %6864 = vsyncpa [#allocation6], 1
    %s6865 = scalar_lea.sflag [#allocation6], 1
    %6866 = vsyncpa %s6865, 1

</llo_original>
